<compile_context>
chip_gen: v6e
topology: v6e:2x2x1
jax: 0.10.0
libtpu: 0.0.40
codegen_flags: <defaults>
</compile_context>

<pallas_src>
import functools

import jax
import jax.numpy as jnp
from jax import lax
from jax.experimental import pallas as pl
from jax.experimental.pallas import tpu as pltpu


def _round_up(x, m):
    return -(-x // m) * m


# ---------------------------------------------------------------------------
# Pallas kernel: fused (A @ W + b) with optional ReLU.
# A: (TM, Kp) bf16, W: (Kp, TN) bf16, b: (1, TN) f32.  Full-K contraction in a
# single step -> accumulate straight into the output tile, no scratch, no K
# grid (addresses review items 1-3).
# ---------------------------------------------------------------------------
def _mm_bias_relu_kernel(a_ref, w_ref, b_ref, o_ref, *, apply_relu):
    acc = jnp.dot(a_ref[...], w_ref[...], preferred_element_type=jnp.float32)
    acc = acc + b_ref[...]
    if apply_relu:
        acc = jnp.maximum(acc, 0.0)
    o_ref[...] = acc.astype(o_ref.dtype)


def _choose_m_tiling(m, tm_max):
    """Return (tile_m, padded_M, num_tiles); prefer exact 16-aligned splits."""
    if m <= tm_max:
        return m, m, 1                      # single full-M block, no padding
    num = pl.cdiv(m, tm_max)
    for n_tiles in range(num, min(4 * num, m // 16) + 1):
        tm = m // n_tiles
        if m % n_tiles == 0 and tm % 16 == 0:
            return tm, m, n_tiles           # exact split -> no pad / slice glue
    mp = _round_up(m, tm_max)
    return tm_max, mp, mp // tm_max


def matmul_bias_relu(a, w, b, *, apply_relu=True, out_dtype=jnp.float32,
                     tm_max=512, tn=None):
    """a: (M, K) bf16, w: (Kp, Np) bf16 (Kp,Np mult. of 128, Kp>=K, pre-padded),
    b: (1, Np) f32.  Returns (M, Np) out_dtype."""
    m, k = a.shape
    kp, n_p = w.shape
    assert kp >= k and kp % 128 == 0 and n_p % 128 == 0, (k, kp, n_p)
    assert tm_max % 16 == 0
    tn = n_p if tn is None else tn
    assert n_p % tn == 0 and tn % 128 == 0
    num_n = n_p // tn

    tm, mp, num_m = _choose_m_tiling(m, tm_max)
    if mp != m or kp != k:
        a = jnp.pad(a, ((0, mp - m), (0, kp - k)))

    out = pl.pallas_call(
        functools.partial(_mm_bias_relu_kernel, apply_relu=apply_relu),
        out_shape=jax.ShapeDtypeStruct((mp, n_p), out_dtype),
        grid_spec=pltpu.PrefetchScalarGridSpec(
            num_scalar_prefetch=0,
            grid=(num_m, num_n),
            in_specs=[
                pl.BlockSpec((tm, kp), lambda i, j: (i, 0)),  # A tile, full K
                pl.BlockSpec((kp, tn), lambda i, j: (0, j)),  # W tile (resident over i)
                pl.BlockSpec((1, tn), lambda i, j: (0, j)),   # bias row
            ],
            out_specs=pl.BlockSpec((tm, tn), lambda i, j: (i, j)),
        ),
        compiler_params=pltpu.CompilerParams(
            dimension_semantics=("parallel", "parallel"),     # megacore-friendly
        ),
    )(a, w, b)

    return out if mp == m else out[:m]


# ---------------------------------------------------------------------------
# Conv2d(+ReLU) = one fused patch-extraction op + one Pallas matmul kernel
# ---------------------------------------------------------------------------
def conv_relu(x, w_mat, b_row, *, ksize, stride, n_out):
    """x: (B, H, W, C) bf16; w_mat: (Kp, Np) bf16; b_row: (1, Np) f32."""
    bsz, h, w, c = x.shape
    oh = (h - ksize) // stride + 1
    ow = (w - ksize) // stride + 1
    # Single fused XLA op; output feature dim is ordered (input-channel major,
    # then kh, kw), i.e. exactly the PyTorch OIHW weight flatten order.
    patches = lax.conv_general_dilated_patches(
        x, (ksize, ksize), (stride, stride), "VALID",
        dimension_numbers=("NHWC", "HWIO", "NHWC"),
    )                                                      # (B, oh, ow, C*k*k) bf16
    a = patches.reshape(bsz * oh * ow, c * ksize * ksize)
    y = matmul_bias_relu(a, w_mat, b_row, apply_relu=True,
                         out_dtype=jnp.bfloat16)
    return y.reshape(bsz, oh, ow, -1)[..., :n_out]


# ---------------------------------------------------------------------------
# Parameters: raw PyTorch-layout f32 params + hoisted (one-time) kernel prep
# ---------------------------------------------------------------------------
def init_raw_params(key):
    """PyTorch-layout f32 parameters (Conv: OIHW, Linear: (out, in))."""
    ks = jax.random.split(key, 8)

    def conv_w(k, o, c, kh, kw):
        fan_in = c * kh * kw
        return jax.random.normal(k, (o, c, kh, kw), jnp.float32) * (fan_in ** -0.5)

    return {
        "c1_w": conv_w(ks[0], 32, 4, 8, 8),
        "c1_b": jax.random.normal(ks[1], (32,), jnp.float32) * 0.01,
        "c2_w": conv_w(ks[2], 64, 32, 4, 4),
        "c2_b": jax.random.normal(ks[3], (64,), jnp.float32) * 0.01,
        "c3_w": conv_w(ks[4], 64, 64, 3, 3),
        "c3_b": jax.random.normal(ks[5], (64,), jnp.float32) * 0.01,
        "fc_w": jax.random.normal(ks[6], (512, 3136), jnp.float32) * (3136 ** -0.5),
        "fc_b": jax.random.normal(ks[7], (512,), jnp.float32) * 0.01,
    }


def prepare_params(raw):
    """One-time weight prep, hoisted out of the forward pass: matmul layout,
    K/N padding to lane-dense multiples of 128, NHWC flatten order for the FC
    weight, bf16 cast of all matmul operands (f32 bias)."""

    def conv_prep(w, b):
        o, c, kh, kw = w.shape
        k = c * kh * kw
        kp = _round_up(k, 128)
        n_p = _round_up(o, 128)
        w_mat = w.reshape(o, k).T                              # (K, O); rows = (c, kh, kw)
        w_mat = jnp.pad(w_mat, ((0, kp - k), (0, n_p - o))).astype(jnp.bfloat16)
        b_row = jnp.pad(b, (0, n_p - o)).reshape(1, n_p).astype(jnp.float32)
        return w_mat, b_row

    c1_w, c1_b = conv_prep(raw["c1_w"], raw["c1_b"])
    c2_w, c2_b = conv_prep(raw["c2_w"], raw["c2_b"])
    c3_w, c3_b = conv_prep(raw["c3_w"], raw["c3_b"])

    # PyTorch flattens NCHW -> (c, h, w); our NHWC flatten is (h, w, c).
    fc_w = raw["fc_w"].reshape(512, 64, 7, 7).transpose(0, 2, 3, 1)
    fc_w = fc_w.reshape(512, 7 * 7 * 64).T                     # (3136, 512)
    fc_w = jnp.pad(fc_w, ((0, _round_up(3136, 128) - 3136), (0, 0)))
    fc_w = fc_w.astype(jnp.bfloat16)                           # (3200, 512)
    fc_b = raw["fc_b"].reshape(1, 512).astype(jnp.float32)

    return {"c1_w": c1_w, "c1_b": c1_b, "c2_w": c2_w, "c2_b": c2_b,
            "c3_w": c3_w, "c3_b": c3_b, "fc_w": fc_w, "fc_b": fc_b}


# ---------------------------------------------------------------------------
# Full model forward
# ---------------------------------------------------------------------------
def atari_model_forward(params, obs):
    """obs: (B, 4, 84, 84) f32 (NCHW, as in PyTorch) -> (B, 512) f32."""
    x = jnp.transpose(obs, (0, 2, 3, 1)).astype(jnp.bfloat16)   # NHWC, bf16 once
    x = conv_relu(x, params["c1_w"], params["c1_b"], ksize=8, stride=4, n_out=32)
    x = conv_relu(x, params["c2_w"], params["c2_b"], ksize=4, stride=2, n_out=64)
    x = conv_relu(x, params["c3_w"], params["c3_b"], ksize=3, stride=1, n_out=64)
    a = x.reshape(x.shape[0], -1)                               # (B, 3136), (h,w,c) order
    # FC: full-K (W stays VMEM-resident, 3.2 MB bf16), N split into 2x256
    # parallel lane-dense tiles so both v7x TensorCores can be used.
    return matmul_bias_relu(a, params["fc_w"], params["fc_b"],
                            apply_relu=True, out_dtype=jnp.float32, tn=256)


# ---------------------------------------------------------------------------
# Pure-JAX f32 reference (PyTorch semantics) for the correctness check
# ---------------------------------------------------------------------------
def reference_forward(raw, obs):
    dn = ("NCHW", "OIHW", "NCHW")

    def conv(x, w, b, s):
        y = lax.conv_general_dilated(x, w, (s, s), "VALID", dimension_numbers=dn)
        return jnp.maximum(y + b[None, :, None, None], 0.0)

    x = conv(obs, raw["c1_w"], raw["c1_b"], 4)
    x = conv(x, raw["c2_w"], raw["c2_b"], 2)
    x = conv(x, raw["c3_w"], raw["c3_b"], 1)
    x = x.reshape(x.shape[0], -1)
    return jnp.maximum(x @ raw["fc_w"].T + raw["fc_b"], 0.0)


if __name__ == "__main__":
    key = jax.random.PRNGKey(0)
    k_param, k_obs = jax.random.split(key)

    raw = init_raw_params(k_param)
    params = prepare_params(raw)            # hoisted, once per model
    # batch=2; spatial 84x84 / 4 channels are dictated by Linear(3136, 512).
    obs = jax.random.uniform(k_obs, (2, 4, 84, 84), jnp.float32)

    fwd = jax.jit(atari_model_forward)
    out = jax.block_until_ready(fwd(params, obs))
    assert out.shape == (2, 512), out.shape

    ref = jax.block_until_ready(reference_forward(raw, obs))
    max_err = float(jnp.max(jnp.abs(out - ref)))
    # bf16 MXU operands (f32 accumulation) vs f32 reference -> small drift.
    assert jnp.allclose(out, ref, rtol=5e-2, atol=5e-2), max_err

    print("KERNEL_OK")
</pallas_src>

<mosaic_0001>
module attributes {stable_mosaic.version = 11 : i64} {
  func.func @_mm_bias_relu_kernel(%arg0: i32, %arg1: i32, %arg2: memref<400x256xbf16, #tpu.memory_space<vmem>>, %arg3: memref<256x128xbf16, #tpu.memory_space<vmem>>, %arg4: memref<1x128xf32, #tpu.memory_space<vmem>>, %arg5: memref<400x128xbf16, #tpu.memory_space<vmem>>) attributes {dimension_semantics = [#tpu.dimension_semantics<parallel>, #tpu.dimension_semantics<parallel>], iteration_bounds = array<i64: 2, 1>, scalar_prefetch = 0 : i64, scratch_operands = 0 : i64, tpu.core_type = #tpu.core_type<tc>, window_params = [{transform_indices = @transform_0, window_bounds = array<i64: 400, 256>}, {transform_indices = @transform_1, window_bounds = array<i64: 256, 128>}, {transform_indices = @transform_2, window_bounds = array<i64: 1, 128>}, {transform_indices = @transform_3, window_bounds = array<i64: 400, 128>}]} {
    %c0 = arith.constant 0 : index
    %c0_0 = arith.constant 0 : index
    %0 = vector.load %arg2[%c0, %c0_0] : memref<400x256xbf16, #tpu.memory_space<vmem>>, vector<400x256xbf16>
    %c0_1 = arith.constant 0 : index
    %c0_2 = arith.constant 0 : index
    %1 = vector.load %arg3[%c0_1, %c0_2] : memref<256x128xbf16, #tpu.memory_space<vmem>>, vector<256x128xbf16>
    %cst = arith.constant dense<0.000000e+00> : vector<400x128xf32>
    %2 = tpu.matmul %0, %1, %cst {dimension_numbers = #tpu.dot_dimension_numbers<[1], [0], [0], [1], [0, 0, 1, 1], [], []>} : vector<400x256xbf16>, vector<256x128xbf16>, vector<400x128xf32> -> vector<400x128xf32>
    %c0_3 = arith.constant 0 : index
    %c0_4 = arith.constant 0 : index
    %3 = vector.load %arg4[%c0_3, %c0_4] : memref<1x128xf32, #tpu.memory_space<vmem>>, vector<1x128xf32>
    %4 = vector.broadcast %3 : vector<1x128xf32> to vector<400x128xf32>
    %5 = arith.addf %2, %4 : vector<400x128xf32>
    %cst_5 = arith.constant 0.000000e+00 : f32
    %6 = vector.broadcast %cst_5 : f32 to vector<400x128xf32>
    %7 = arith.maximumf %5, %6 : vector<400x128xf32>
    %8 = arith.truncf %7 : vector<400x128xf32> to vector<400x128xbf16>
    %c0_6 = arith.constant 0 : index
    %c0_7 = arith.constant 0 : index
    %9 = vector.load %arg5[%c0_6, %c0_7] : memref<400x128xbf16, #tpu.memory_space<vmem>>, vector<400x128xbf16>
    tpu.vector_store %arg5[%c0_6, %c0_7], %8 {strides = array<i32>} : memref<400x128xbf16, #tpu.memory_space<vmem>>, vector<400x128xbf16>,
    return
  }
  func.func @transform_0(%arg0: i32, %arg1: i32) -> (i32, i32) {
    %c0_i32 = arith.constant 0 : i32
    %c0_i32_0 = arith.constant 0 : i32
    return %arg0, %c0_i32 : i32, i32
  }
  func.func @transform_1(%arg0: i32, %arg1: i32) -> (i32, i32) {
    %c0_i32 = arith.constant 0 : i32
    %c0_i32_0 = arith.constant 0 : i32
    return %c0_i32, %arg1 : i32, i32
  }
  func.func @transform_2(%arg0: i32, %arg1: i32) -> (i32, i32) {
    %c0_i32 = arith.constant 0 : i32
    %c0_i32_0 = arith.constant 0 : i32
    return %c0_i32, %arg1 : i32, i32
  }
  func.func @transform_3(%arg0: i32, %arg1: i32) -> (i32, i32) {
    %c0_i32 = arith.constant 0 : i32
    return %arg0, %arg1 : i32, i32
  }
}

module attributes {stable_mosaic.version = 11 : i64} {
  func.func @_mm_bias_relu_kernel(%arg0: i32, %arg1: i32, %arg2: memref<162x512xbf16, #tpu.memory_space<vmem>>, %arg3: memref<512x128xbf16, #tpu.memory_space<vmem>>, %arg4: memref<1x128xf32, #tpu.memory_space<vmem>>, %arg5: memref<162x128xbf16, #tpu.memory_space<vmem>>) attributes {dimension_semantics = [#tpu.dimension_semantics<parallel>, #tpu.dimension_semantics<parallel>], iteration_bounds = array<i64: 1, 1>, scalar_prefetch = 0 : i64, scratch_operands = 0 : i64, tpu.core_type = #tpu.core_type<tc>, window_params = [{transform_indices = @transform_0, window_bounds = array<i64: 162, 512>}, {transform_indices = @transform_1, window_bounds = array<i64: 512, 128>}, {transform_indices = @transform_2, window_bounds = array<i64: 1, 128>}, {transform_indices = @transform_3, window_bounds = array<i64: 162, 128>}]} {
    %c0 = arith.constant 0 : index
    %c0_0 = arith.constant 0 : index
    %0 = vector.load %arg2[%c0, %c0_0] : memref<162x512xbf16, #tpu.memory_space<vmem>>, vector<162x512xbf16>
    %c0_1 = arith.constant 0 : index
    %c0_2 = arith.constant 0 : index
    %1 = vector.load %arg3[%c0_1, %c0_2] : memref<512x128xbf16, #tpu.memory_space<vmem>>, vector<512x128xbf16>
    %cst = arith.constant dense<0.000000e+00> : vector<162x128xf32>
    %2 = tpu.matmul %0, %1, %cst {dimension_numbers = #tpu.dot_dimension_numbers<[1], [0], [0], [1], [0, 0, 1, 1], [], []>} : vector<162x512xbf16>, vector<512x128xbf16>, vector<162x128xf32> -> vector<162x128xf32>
    %c0_3 = arith.constant 0 : index
    %c0_4 = arith.constant 0 : index
    %3 = vector.load %arg4[%c0_3, %c0_4] : memref<1x128xf32, #tpu.memory_space<vmem>>, vector<1x128xf32>
    %4 = vector.broadcast %3 : vector<1x128xf32> to vector<162x128xf32>
    %5 = arith.addf %2, %4 : vector<162x128xf32>
    %cst_5 = arith.constant 0.000000e+00 : f32
    %6 = vector.broadcast %cst_5 : f32 to vector<162x128xf32>
    %7 = arith.maximumf %5, %6 : vector<162x128xf32>
    %8 = arith.truncf %7 : vector<162x128xf32> to vector<162x128xbf16>
    %c0_6 = arith.constant 0 : index
    %c0_7 = arith.constant 0 : index
    %9 = vector.load %arg5[%c0_6, %c0_7] : memref<162x128xbf16, #tpu.memory_space<vmem>>, vector<162x128xbf16>
    tpu.vector_store %arg5[%c0_6, %c0_7], %8 {strides = array<i32>} : memref<162x128xbf16, #tpu.memory_space<vmem>>, vector<162x128xbf16>,
    return
  }
  func.func @transform_0(%arg0: i32, %arg1: i32) -> (i32, i32) {
    %c0_i32 = arith.constant 0 : i32
    %c0_i32_0 = arith.constant 0 : i32
    return %arg0, %c0_i32 : i32, i32
  }
  func.func @transform_1(%arg0: i32, %arg1: i32) -> (i32, i32) {
    %c0_i32 = arith.constant 0 : i32
    %c0_i32_0 = arith.constant 0 : i32
    return %c0_i32, %arg1 : i32, i32
  }
  func.func @transform_2(%arg0: i32, %arg1: i32) -> (i32, i32) {
    %c0_i32 = arith.constant 0 : i32
    %c0_i32_0 = arith.constant 0 : i32
    return %c0_i32, %arg1 : i32, i32
  }
  func.func @transform_3(%arg0: i32, %arg1: i32) -> (i32, i32) {
    %c0_i32 = arith.constant 0 : i32
    return %arg0, %arg1 : i32, i32
  }
}

module attributes {stable_mosaic.version = 11 : i64} {
  func.func @_mm_bias_relu_kernel(%arg0: i32, %arg1: i32, %arg2: memref<98x640xbf16, #tpu.memory_space<vmem>>, %arg3: memref<640x128xbf16, #tpu.memory_space<vmem>>, %arg4: memref<1x128xf32, #tpu.memory_space<vmem>>, %arg5: memref<98x128xbf16, #tpu.memory_space<vmem>>) attributes {dimension_semantics = [#tpu.dimension_semantics<parallel>, #tpu.dimension_semantics<parallel>], iteration_bounds = array<i64: 1, 1>, scalar_prefetch = 0 : i64, scratch_operands = 0 : i64, tpu.core_type = #tpu.core_type<tc>, window_params = [{transform_indices = @transform_0, window_bounds = array<i64: 98, 640>}, {transform_indices = @transform_1, window_bounds = array<i64: 640, 128>}, {transform_indices = @transform_2, window_bounds = array<i64: 1, 128>}, {transform_indices = @transform_3, window_bounds = array<i64: 98, 128>}]} {
    %c0 = arith.constant 0 : index
    %c0_0 = arith.constant 0 : index
    %0 = vector.load %arg2[%c0, %c0_0] : memref<98x640xbf16, #tpu.memory_space<vmem>>, vector<98x640xbf16>
    %c0_1 = arith.constant 0 : index
    %c0_2 = arith.constant 0 : index
    %1 = vector.load %arg3[%c0_1, %c0_2] : memref<640x128xbf16, #tpu.memory_space<vmem>>, vector<640x128xbf16>
    %cst = arith.constant dense<0.000000e+00> : vector<98x128xf32>
    %2 = tpu.matmul %0, %1, %cst {dimension_numbers = #tpu.dot_dimension_numbers<[1], [0], [0], [1], [0, 0, 1, 1], [], []>} : vector<98x640xbf16>, vector<640x128xbf16>, vector<98x128xf32> -> vector<98x128xf32>
    %c0_3 = arith.constant 0 : index
    %c0_4 = arith.constant 0 : index
    %3 = vector.load %arg4[%c0_3, %c0_4] : memref<1x128xf32, #tpu.memory_space<vmem>>, vector<1x128xf32>
    %4 = vector.broadcast %3 : vector<1x128xf32> to vector<98x128xf32>
    %5 = arith.addf %2, %4 : vector<98x128xf32>
    %cst_5 = arith.constant 0.000000e+00 : f32
    %6 = vector.broadcast %cst_5 : f32 to vector<98x128xf32>
    %7 = arith.maximumf %5, %6 : vector<98x128xf32>
    %8 = arith.truncf %7 : vector<98x128xf32> to vector<98x128xbf16>
    %c0_6 = arith.constant 0 : index
    %c0_7 = arith.constant 0 : index
    %9 = vector.load %arg5[%c0_6, %c0_7] : memref<98x128xbf16, #tpu.memory_space<vmem>>, vector<98x128xbf16>
    tpu.vector_store %arg5[%c0_6, %c0_7], %8 {strides = array<i32>} : memref<98x128xbf16, #tpu.memory_space<vmem>>, vector<98x128xbf16>,
    return
  }
  func.func @transform_0(%arg0: i32, %arg1: i32) -> (i32, i32) {
    %c0_i32 = arith.constant 0 : i32
    %c0_i32_0 = arith.constant 0 : i32
    return %arg0, %c0_i32 : i32, i32
  }
  func.func @transform_1(%arg0: i32, %arg1: i32) -> (i32, i32) {
    %c0_i32 = arith.constant 0 : i32
    %c0_i32_0 = arith.constant 0 : i32
    return %c0_i32, %arg1 : i32, i32
  }
  func.func @transform_2(%arg0: i32, %arg1: i32) -> (i32, i32) {
    %c0_i32 = arith.constant 0 : i32
    %c0_i32_0 = arith.constant 0 : i32
    return %c0_i32, %arg1 : i32, i32
  }
  func.func @transform_3(%arg0: i32, %arg1: i32) -> (i32, i32) {
    %c0_i32 = arith.constant 0 : i32
    return %arg0, %arg1 : i32, i32
  }
}

module attributes {stable_mosaic.version = 11 : i64} {
  func.func @_mm_bias_relu_kernel(%arg0: i32, %arg1: i32, %arg2: memref<2x3200xbf16, #tpu.memory_space<vmem>>, %arg3: memref<3200x256xbf16, #tpu.memory_space<vmem>>, %arg4: memref<1x256xf32, #tpu.memory_space<vmem>>, %arg5: memref<2x256xf32, #tpu.memory_space<vmem>>) attributes {dimension_semantics = [#tpu.dimension_semantics<parallel>, #tpu.dimension_semantics<parallel>], iteration_bounds = array<i64: 1, 2>, scalar_prefetch = 0 : i64, scratch_operands = 0 : i64, tpu.core_type = #tpu.core_type<tc>, window_params = [{transform_indices = @transform_0, window_bounds = array<i64: 2, 3200>}, {transform_indices = @transform_1, window_bounds = array<i64: 3200, 256>}, {transform_indices = @transform_2, window_bounds = array<i64: 1, 256>}, {transform_indices = @transform_3, window_bounds = array<i64: 2, 256>}]} {
    %c0 = arith.constant 0 : index
    %c0_0 = arith.constant 0 : index
    %0 = vector.load %arg2[%c0, %c0_0] : memref<2x3200xbf16, #tpu.memory_space<vmem>>, vector<2x3200xbf16>
    %c0_1 = arith.constant 0 : index
    %c0_2 = arith.constant 0 : index
    %1 = vector.load %arg3[%c0_1, %c0_2] : memref<3200x256xbf16, #tpu.memory_space<vmem>>, vector<3200x256xbf16>
    %cst = arith.constant dense<0.000000e+00> : vector<2x256xf32>
    %2 = tpu.matmul %0, %1, %cst {dimension_numbers = #tpu.dot_dimension_numbers<[1], [0], [0], [1], [0, 0, 1, 1], [], []>} : vector<2x3200xbf16>, vector<3200x256xbf16>, vector<2x256xf32> -> vector<2x256xf32>
    %c0_3 = arith.constant 0 : index
    %c0_4 = arith.constant 0 : index
    %3 = vector.load %arg4[%c0_3, %c0_4] : memref<1x256xf32, #tpu.memory_space<vmem>>, vector<1x256xf32>
    %4 = vector.broadcast %3 : vector<1x256xf32> to vector<2x256xf32>
    %5 = arith.addf %2, %4 : vector<2x256xf32>
    %cst_5 = arith.constant 0.000000e+00 : f32
    %6 = vector.broadcast %cst_5 : f32 to vector<2x256xf32>
    %7 = arith.maximumf %5, %6 : vector<2x256xf32>
    %c0_6 = arith.constant 0 : index
    %c0_7 = arith.constant 0 : index
    %8 = vector.load %arg5[%c0_6, %c0_7] : memref<2x256xf32, #tpu.memory_space<vmem>>, vector<2x256xf32>
    tpu.vector_store %arg5[%c0_6, %c0_7], %7 {strides = array<i32>} : memref<2x256xf32, #tpu.memory_space<vmem>>, vector<2x256xf32>,
    return
  }
  func.func @transform_0(%arg0: i32, %arg1: i32) -> (i32, i32) {
    %c0_i32 = arith.constant 0 : i32
    %c0_i32_0 = arith.constant 0 : i32
    return %arg0, %c0_i32 : i32, i32
  }
  func.func @transform_1(%arg0: i32, %arg1: i32) -> (i32, i32) {
    %c0_i32 = arith.constant 0 : i32
    %c0_i32_0 = arith.constant 0 : i32
    return %c0_i32, %arg1 : i32, i32
  }
  func.func @transform_2(%arg0: i32, %arg1: i32) -> (i32, i32) {
    %c0_i32 = arith.constant 0 : i32
    %c0_i32_0 = arith.constant 0 : i32
    return %c0_i32, %arg1 : i32, i32
  }
  func.func @transform_3(%arg0: i32, %arg1: i32) -> (i32, i32) {
    %c0_i32 = arith.constant 0 : i32
    return %arg0, %arg1 : i32, i32
  }
}

</mosaic_0001>

<llo_original>
// kernel: atari_model_forward.4
$region0: #{atari_model_forward.4}
  #allocation0 [shape = 'u32[]', space=smem, size = 0x4, offset = 0x4, fixed_abs, tag = 'smem constant byte address 0x4 - core index']
  #allocation1 [shape = 'u32[144,128]{1,0:T(1,128)}', space=vmem, size = 0x12000, scoped, tag = 'internal scratch']
  %s0 = inlined_call_operand.vmem [shape: bf16[800,256], index: 0, kind: input, shape index: {}]
  %s1 = inlined_call_operand.vmem [shape: bf16[256,128], index: 1, kind: input, shape index: {}]
  %s2 = inlined_call_operand.vmem [shape: f32[1,128], index: 2, kind: input, shape index: {}]
  %s3 = inlined_call_operand.vmem [shape: bf16[800,128], index: 3, kind: output, shape index: {}]
  %s4 = sld [smem:[#allocation0]]
  $region45: #{atari_model_forward.4} parent=0
    _
  %s6 = ssub.s32 1, %s4
  %s7 = scalar_select 0, %s6, %s4
  loop: start=0, step=1, limit=4
  $region2: #{atari_model_forward.4} parent=0 // loop_pre_header
    _
  $region3: #{atari_model_forward.4} parent=0 // loop_header
    %s9 = sphi 0, %s13
    %p10 = scmp.ge.s32.totalorder %s9, 4
    %s16 = sphi 0, %s28
    %s17 = sphi 0, %s24
    %s18 = sphi 0, %s16
    %s19 = sphi 0, %s17
    %s20 = sphi 0, %s18
    %s21 = sphi 0, %s19
    %s31 = sphi 0, %s33
    %s34 = sphi 0, %s31
    %s35 = sphi 0, %s34
    %s51 = sphi 0, %s35
    %s57 = sphi 0, %s59
    %s60 = sphi 0, %s57
    %s61 = sphi 0, %s60
    %s77 = sphi 0, %s61
    %s83 = sphi 0, %s85
    %s86 = sphi 0, %s83
    %s87 = sphi 0, %s86
    %s103 = sphi 0, %s87
    %s111 = sphi 0, %s113
    %s114 = sphi 0, %s111
    %s115 = sphi 0, %s114
    %s131 = sphi 0, %s115
  $region4: #{atari_model_forward.4} parent=0 // loop_header_branch
    %12 = sbr.rel (%p10) target = $region8
  $region5: #{atari_model_forward.4} parent=0 // loop_body
    %s14 = ssub.s32 %s9, 1
    %s15 = ssub.s32 %s9, 2
    %s22 = sadd.s32 1, %s17
    %p23 = scmp.ge.s32.totalorder %s22, 1
    %s24 = scalar_select %p23, 0, %s22
    %s25 = sadd.s32 1, %s16
    %s26 = scalar_select %p23, %s25, %s16
    %p27 = scmp.ge.s32.totalorder %s26, 2
    %s28 = scalar_select %p27, 0, %s26
    %s29 = ssub.s32 %s16, %s28
    %p30 = scmp.eq.s32.totalorder %s29, 0
    %s32 = sadd.s32 %s31, 1
    %s33 = scalar_select %p30, %s31, %s32
    %p36 = pneg %p30
    %p37 = scmp.eq.s32.totalorder %s9, 1
    %p38 = por %p36, %p37
    %p39 = scmp.ne.s32.totalorder %s31, %s34
    %p40 = scmp.eq.s32.totalorder %s9, 0
    %p41 = por %p39, %p40
    %p42 = scmp.ne.s32.totalorder %s31, %s34
    %p43 = scmp.eq.s32.totalorder %s14, 1
    %p44 = por %p42, %p43
    %p45 = scmp.ne.s32.totalorder %s34, %s35
    %p46 = scmp.eq.s32.totalorder %s14, 0
    %p47 = por %p45, %p46
    %p48 = scmp.ne.s32.totalorder %s34, %s35
    %p49 = scmp.eq.s32.totalorder %s15, 1
    %p50 = por %p48, %p49
    %p52 = scmp.ne.s32.totalorder %s35, %s51
    %p53 = scmp.eq.s32.totalorder %s15, 0
    %p54 = por %p52, %p53
    %s55 = ssub.s32 %s17, %s24
    %p56 = scmp.eq.s32.totalorder %s55, 0
    %s58 = sadd.s32 %s57, 1
    %s59 = scalar_select %p56, %s57, %s58
    %p62 = pneg %p56
    %p63 = scmp.eq.s32.totalorder %s9, 1
    %p64 = por %p62, %p63
    %p65 = scmp.ne.s32.totalorder %s57, %s60
    %p66 = scmp.eq.s32.totalorder %s9, 0
    %p67 = por %p65, %p66
    %p68 = scmp.ne.s32.totalorder %s57, %s60
    %p69 = scmp.eq.s32.totalorder %s14, 1
    %p70 = por %p68, %p69
    %p71 = scmp.ne.s32.totalorder %s60, %s61
    %p72 = scmp.eq.s32.totalorder %s14, 0
    %p73 = por %p71, %p72
    %p74 = scmp.ne.s32.totalorder %s60, %s61
    %p75 = scmp.eq.s32.totalorder %s15, 1
    %p76 = por %p74, %p75
    %p78 = scmp.ne.s32.totalorder %s61, %s77
    %p79 = scmp.eq.s32.totalorder %s15, 0
    %p80 = por %p78, %p79
    %s81 = ssub.s32 %s17, %s24
    %p82 = scmp.eq.s32.totalorder %s81, 0
    %s84 = sadd.s32 %s83, 1
    %s85 = scalar_select %p82, %s83, %s84
    %p88 = pneg %p82
    %p89 = scmp.eq.s32.totalorder %s9, 1
    %p90 = por %p88, %p89
    %p91 = scmp.ne.s32.totalorder %s83, %s86
    %p92 = scmp.eq.s32.totalorder %s9, 0
    %p93 = por %p91, %p92
    %p94 = scmp.ne.s32.totalorder %s83, %s86
    %p95 = scmp.eq.s32.totalorder %s14, 1
    %p96 = por %p94, %p95
    %p97 = scmp.ne.s32.totalorder %s86, %s87
    %p98 = scmp.eq.s32.totalorder %s14, 0
    %p99 = por %p97, %p98
    %p100 = scmp.ne.s32.totalorder %s86, %s87
    %p101 = scmp.eq.s32.totalorder %s15, 1
    %p102 = por %p100, %p101
    %p104 = scmp.ne.s32.totalorder %s87, %s103
    %p105 = scmp.eq.s32.totalorder %s15, 0
    %p106 = por %p104, %p105
    %s107 = ssub.s32 %s16, %s28
    %s108 = ssub.s32 %s17, %s24
    %s109 = sor.u32 %s107, %s108
    %p110 = scmp.eq.s32.totalorder %s109, 0
    %s112 = sadd.s32 %s111, 1
    %s113 = scalar_select %p110, %s111, %s112
    %p116 = pneg %p110
    %p117 = scmp.eq.s32.totalorder %s9, 1
    %p118 = por %p116, %p117
    %p119 = scmp.ne.s32.totalorder %s111, %s114
    %p120 = scmp.eq.s32.totalorder %s9, 0
    %p121 = por %p119, %p120
    %p122 = scmp.ne.s32.totalorder %s111, %s114
    %p123 = scmp.eq.s32.totalorder %s14, 1
    %p124 = por %p122, %p123
    %p125 = scmp.ne.s32.totalorder %s114, %s115
    %p126 = scmp.eq.s32.totalorder %s14, 0
    %p127 = por %p125, %p126
    %p128 = scmp.ne.s32.totalorder %s114, %s115
    %p129 = scmp.eq.s32.totalorder %s15, 1
    %p130 = por %p128, %p129
    %p132 = scmp.ne.s32.totalorder %s115, %s131
    %p133 = scmp.eq.s32.totalorder %s15, 0
    %p134 = por %p132, %p133
    %p135 = scmp.le.s32.totalorder 1, %s9
    %p136 = scmp.lt.s32.totalorder %s9, 3
    %p137 = pnand %p135, %p136
    %p138 = pneg %p137
    // Predicated region
    $region9: #{atari_model_forward.4} parent=5 // pred_check
      _
    $region10: #{atari_model_forward.4} parent=5 // pred_check_branch
      %140 = sbr.rel (%p137) target = $region12
    $region11: #{atari_model_forward.4} parent=5 // pred_region
      %s141 = ssub.s32 %s9, 1
      // Predicated region
      $region13: #{atari_model_forward.4} parent=11 // pred_check
        %p142 = pneg %p73
      $region14: #{atari_model_forward.4} parent=11 // pred_check_branch
        %144 = sbr.rel (%p142) target = $region16
      $region15: #{atari_model_forward.4} parent=11 // pred_region
        %p145 = scmp.lt.s32.totalorder %s19, 0
        %s146 = scalar_select %p145, %s19, 0
        %s147 = smul.addr %s146, 4
        %s148 = scalar_lea.vmem %s1, %s147
      $region16: #{atari_model_forward.4} parent=11 // pred_fallthru
        _
      // Predicated region
      $region17: #{atari_model_forward.4} parent=11 // pred_check
        %p149 = pneg %p99
      $region18: #{atari_model_forward.4} parent=11 // pred_check_branch
        %151 = sbr.rel (%p149) target = $region20
      $region19: #{atari_model_forward.4} parent=11 // pred_region
        %p152 = scmp.lt.s32.totalorder %s19, 0
        %s153 = scalar_select %p152, %s19, 0
        %s154 = scalar_lea.vmem %s2, %s153
      $region20: #{atari_model_forward.4} parent=11 // pred_fallthru
        _
    $region12: #{atari_model_forward.4} parent=5 // pred_fallthru
      _
    %p155 = scmp.lt.s32.totalorder %s9, 2
    // Predicated region
    $region21: #{atari_model_forward.4} parent=5 // pred_check
      %p156 = pneg %p155
    $region22: #{atari_model_forward.4} parent=5 // pred_check_branch
      %158 = sbr.rel (%p156) target = $region24
    $region23: #{atari_model_forward.4} parent=5 // pred_region
      // Predicated region
      $region25: #{atari_model_forward.4} parent=23 // pred_check
        %p159 = pneg %p41
      $region26: #{atari_model_forward.4} parent=23 // pred_check_branch
        %161 = sbr.rel (%p159) target = $region28
      $region27: #{atari_model_forward.4} parent=23 // pred_region
        %s162 = smul.u32 50, %s16
        %p163 = scmp.lt.s32.totalorder %s162, 99
        %s164 = scalar_select %p163, %s162, 99
        %s165 = smul.addr %s164, 2
        %s166 = smul.addr %s165, 4
        %s167 = scalar_lea.vmem %s0, %s166
        %s168 = smul.u32 50, %s16
      $region28: #{atari_model_forward.4} parent=23 // pred_fallthru
        _
    $region24: #{atari_model_forward.4} parent=5 // pred_fallthru
      _
    %p169 = scmp.le.s32.totalorder 1, %s9
    %p170 = scmp.lt.s32.totalorder %s9, 3
    %p171 = pnand %p169, %p170
    %p172 = pneg %p171
    // Predicated region
    $region29: #{atari_model_forward.4} parent=5 // pred_check
      _
    $region30: #{atari_model_forward.4} parent=5 // pred_check_branch
      %174 = sbr.rel (%p171) target = $region32
    $region31: #{atari_model_forward.4} parent=5 // pred_region
      %s175 = ssub.s32 %s9, 1
      %s176 = smul.u32 50, %s18
      %p177 = scmp.lt.s32.totalorder %s176, 99
      %s178 = scalar_select %p177, %s176, 99
      %s179 = smul.addr %s178, 2
      %s180 = smul.addr %s179, 4
      %s181 = scalar_lea.vmem %s0, %s180
      %p182 = pneg %p47
      %p183 = pneg %p44
      %p184 = scmp.lt.s32.totalorder %s19, 0
      %s185 = scalar_select %p184, %s19, 0
      %s186 = smul.addr %s185, 4
      %s187 = scalar_lea.vmem %s1, %s186
      %p188 = pneg %p73
      %p189 = pneg %p70
      %p190 = scmp.lt.s32.totalorder %s19, 0
      %s191 = scalar_select %p190, %s19, 0
      %s192 = scalar_lea.vmem %s2, %s191
      %p193 = pneg %p99
      %p194 = pneg %p96
      %p195 = pneg %p127
      %p196 = pneg %p124
      %s197 = smul.u32 50, %s18
      %p198 = scmp.lt.s32.totalorder %s197, 99
      %s199 = scalar_select %p198, %s197, 99
      %p200 = scmp.lt.s32.totalorder %s19, 0
      %s201 = scalar_select %p200, %s19, 0
      %s202 = sadd.s32 %s201, %s199
      %s203 = smul.addr %s202, 4
      %s204 = scalar_lea.vmem %s3, %s203
      %s205 = smul.u32 50, %s18
      %p206 = scmp.lt.s32.totalorder %s205, 99
      %s207 = scalar_select %p206, %s205, 99
      %s208 = smul.addr %s207, 2
      %s209 = smul.addr %s208, 4
      %s210 = scalar_lea.vmem %s0, %s209
      %s211 = smul.u32 50, %s18
      %p212 = scmp.lt.s32.totalorder %s19, 0
      %s213 = scalar_select %p212, %s19, 0
      %s214 = smul.addr %s213, 4
      %s215 = scalar_lea.vmem %s1, %s214
      %p216 = scmp.lt.s32.totalorder %s19, 0
      %s217 = scalar_select %p216, %s19, 0
      %s218 = scalar_lea.vmem %s2, %s217
      %s219 = smul.u32 50, %s18
      %p220 = scmp.lt.s32.totalorder %s219, 99
      %s221 = scalar_select %p220, %s219, 99
      %p222 = scmp.lt.s32.totalorder %s19, 0
      %s223 = scalar_select %p222, %s19, 0
      %s224 = sadd.s32 %s223, %s221
      %s225 = smul.addr %s224, 4
      %s226 = scalar_lea.vmem %s3, %s225
      %s227 = smul.u32 50, %s18
      %v229 = vld [vmem:[%s210] sm:$0xff]
      %v230 = vld [vmem:[%s210 + $0x8] sm:$0xff]
      %v231 = vld [vmem:[%s210 + $0x10] sm:$0xff]
      %v232 = vld [vmem:[%s210 + $0x18] sm:$0xff]
      %v233 = vld [vmem:[%s210 + $0x20] sm:$0xff]
      %v234 = vld [vmem:[%s210 + $0x28] sm:$0xff]
      %v235 = vld [vmem:[%s210 + $0x30] sm:$0xff]
      %v236 = vld [vmem:[%s210 + $0x38] sm:$0xff]
      %v237 = vld [vmem:[%s210 + $0x40] sm:$0xff]
      %v238 = vld [vmem:[%s210 + $0x48] sm:$0xff]
      %v239 = vld [vmem:[%s210 + $0x50] sm:$0xff]
      %v240 = vld [vmem:[%s210 + $0x58] sm:$0xff]
      %v241 = vld [vmem:[%s210 + $0x60] sm:$0xff]
      %v242 = vld [vmem:[%s210 + $0x68] sm:$0xff]
      %v243 = vld [vmem:[%s210 + $0x70] sm:$0xff]
      %v244 = vld [vmem:[%s210 + $0x78] sm:$0xff]
      %v245 = vld [vmem:[%s210 + $0x80] sm:$0xff]
      %v246 = vld [vmem:[%s210 + $0x88] sm:$0xff]
      %v247 = vld [vmem:[%s210 + $0x90] sm:$0xff]
      %v248 = vld [vmem:[%s210 + $0x98] sm:$0xff]
      %v249 = vld [vmem:[%s210 + $0xa0] sm:$0xff]
      %v250 = vld [vmem:[%s210 + $0xa8] sm:$0xff]
      %v251 = vld [vmem:[%s210 + $0xb0] sm:$0xff]
      %v252 = vld [vmem:[%s210 + $0xb8] sm:$0xff]
      %v253 = vld [vmem:[%s210 + $0xc0] sm:$0xff]
      %v254 = vld [vmem:[%s210 + $0xc8] sm:$0xff]
      %v255 = vld [vmem:[%s210 + $0xd0] sm:$0xff]
      %v256 = vld [vmem:[%s210 + $0xd8] sm:$0xff]
      %v257 = vld [vmem:[%s210 + $0xe0] sm:$0xff]
      %v258 = vld [vmem:[%s210 + $0xe8] sm:$0xff]
      %v259 = vld [vmem:[%s210 + $0xf0] sm:$0xff]
      %v260 = vld [vmem:[%s210 + $0xf8] sm:$0xff]
      %v261 = vld [vmem:[%s210 + $0x100] sm:$0xff]
      %v262 = vld [vmem:[%s210 + $0x108] sm:$0xff]
      %v263 = vld [vmem:[%s210 + $0x110] sm:$0xff]
      %v264 = vld [vmem:[%s210 + $0x118] sm:$0xff]
      %v265 = vld [vmem:[%s210 + $0x120] sm:$0xff]
      %v266 = vld [vmem:[%s210 + $0x128] sm:$0xff]
      %v267 = vld [vmem:[%s210 + $0x130] sm:$0xff]
      %v268 = vld [vmem:[%s210 + $0x138] sm:$0xff]
      %v269 = vld [vmem:[%s210 + $0x140] sm:$0xff]
      %v270 = vld [vmem:[%s210 + $0x148] sm:$0xff]
      %v271 = vld [vmem:[%s210 + $0x150] sm:$0xff]
      %v272 = vld [vmem:[%s210 + $0x158] sm:$0xff]
      %v273 = vld [vmem:[%s210 + $0x160] sm:$0xff]
      %v274 = vld [vmem:[%s210 + $0x168] sm:$0xff]
      %v275 = vld [vmem:[%s210 + $0x170] sm:$0xff]
      %v276 = vld [vmem:[%s210 + $0x178] sm:$0xff]
      %v277 = vld [vmem:[%s210 + $0x180] sm:$0xff]
      %v278 = vld [vmem:[%s210 + $0x188] sm:$0xff]
      %v279 = vld [vmem:[%s215] sm:$0xf]
      %v280 = vld [vmem:[%s215 + $0x4] sm:$0xf]
      %v281 = vld [vmem:[%s215 + $0x8] sm:$0xf]
      %v282 = vld [vmem:[%s215 + $0xc] sm:$0xf]
      %v283 = vld [vmem:[%s215 + $0x10] sm:$0xf]
      %v284 = vld [vmem:[%s215 + $0x14] sm:$0xf]
      %v285 = vld [vmem:[%s215 + $0x18] sm:$0xf]
      %v286 = vld [vmem:[%s215 + $0x1c] sm:$0xf]
      %v287 = vld [vmem:[%s215 + $0x20] sm:$0xf]
      %v288 = vld [vmem:[%s215 + $0x24] sm:$0xf]
      %v289 = vld [vmem:[%s215 + $0x28] sm:$0xf]
      %v290 = vld [vmem:[%s215 + $0x2c] sm:$0xf]
      %v291 = vld [vmem:[%s215 + $0x30] sm:$0xf]
      %v292 = vld [vmem:[%s215 + $0x34] sm:$0xf]
      %v293 = vld [vmem:[%s215 + $0x38] sm:$0xf]
      %v294 = vld [vmem:[%s215 + $0x3c] sm:$0xf]
      %v295 = vld [vmem:[%s215 + $0x40] sm:$0xf]
      %v296 = vld [vmem:[%s215 + $0x44] sm:$0xf]
      %v297 = vld [vmem:[%s215 + $0x48] sm:$0xf]
      %v298 = vld [vmem:[%s215 + $0x4c] sm:$0xf]
      %v299 = vld [vmem:[%s215 + $0x50] sm:$0xf]
      %v300 = vld [vmem:[%s215 + $0x54] sm:$0xf]
      %v301 = vld [vmem:[%s215 + $0x58] sm:$0xf]
      %v302 = vld [vmem:[%s215 + $0x5c] sm:$0xf]
      %v303 = vld [vmem:[%s215 + $0x60] sm:$0xf]
      %v304 = vld [vmem:[%s215 + $0x64] sm:$0xf]
      %v305 = vld [vmem:[%s215 + $0x68] sm:$0xf]
      %v306 = vld [vmem:[%s215 + $0x6c] sm:$0xf]
      %v307 = vld [vmem:[%s215 + $0x70] sm:$0xf]
      %v308 = vld [vmem:[%s215 + $0x74] sm:$0xf]
      %v309 = vld [vmem:[%s215 + $0x78] sm:$0xf]
      %v310 = vld [vmem:[%s215 + $0x7c] sm:$0xf]
      %v311 = vld [vmem:[%s218] sm:$0x1]
      %v313 = vlaneseq
      %v314 = vshrl.u32 %v313, 7
      %v315 = vsub.s32 0, %v314
      %v316 = vrot.slane %v311, %v315
      %v368 = vunpack.c.l.b16 %v229
      %v369 = vunpack.c.h.b16 %v229
      %v370 = vunpack.c.l.b16 %v230
      %v371 = vunpack.c.h.b16 %v230
      %v372 = vunpack.c.l.b16 %v231
      %v373 = vunpack.c.h.b16 %v231
      %v374 = vunpack.c.l.b16 %v232
      %v375 = vunpack.c.h.b16 %v232
      %v376 = vunpack.c.l.b16 %v233
      %v377 = vunpack.c.h.b16 %v233
      %v378 = vunpack.c.l.b16 %v234
      %v379 = vunpack.c.h.b16 %v234
      %v380 = vunpack.c.l.b16 %v235
      %v381 = vunpack.c.h.b16 %v235
      %v382 = vunpack.c.l.b16 %v236
      %v383 = vunpack.c.h.b16 %v236
      %v384 = vunpack.c.l.b16 %v237
      %v385 = vunpack.c.h.b16 %v237
      %v386 = vunpack.c.l.b16 %v238
      %v387 = vunpack.c.h.b16 %v238
      %v388 = vunpack.c.l.b16 %v239
      %v389 = vunpack.c.h.b16 %v239
      %v390 = vunpack.c.l.b16 %v240
      %v391 = vunpack.c.h.b16 %v240
      %v392 = vunpack.c.l.b16 %v241
      %v393 = vunpack.c.h.b16 %v241
      %v394 = vunpack.c.l.b16 %v242
      %v395 = vunpack.c.h.b16 %v242
      %v396 = vunpack.c.l.b16 %v243
      %v397 = vunpack.c.h.b16 %v243
      %v398 = vunpack.c.l.b16 %v244
      %v399 = vunpack.c.h.b16 %v244
      %v400 = vunpack.c.l.b16 %v245
      %v401 = vunpack.c.h.b16 %v245
      %v402 = vunpack.c.l.b16 %v246
      %v403 = vunpack.c.h.b16 %v246
      %v404 = vunpack.c.l.b16 %v247
      %v405 = vunpack.c.h.b16 %v247
      %v406 = vunpack.c.l.b16 %v248
      %v407 = vunpack.c.h.b16 %v248
      %v408 = vunpack.c.l.b16 %v249
      %v409 = vunpack.c.h.b16 %v249
      %v410 = vunpack.c.l.b16 %v250
      %v411 = vunpack.c.h.b16 %v250
      %v412 = vunpack.c.l.b16 %v251
      %v413 = vunpack.c.h.b16 %v251
      %v414 = vunpack.c.l.b16 %v252
      %v415 = vunpack.c.h.b16 %v252
      %v416 = vunpack.c.l.b16 %v253
      %v417 = vunpack.c.h.b16 %v253
      %v418 = vunpack.c.l.b16 %v254
      %v419 = vunpack.c.h.b16 %v254
      %v420 = vunpack.c.l.b16 %v255
      %v421 = vunpack.c.h.b16 %v255
      %v422 = vunpack.c.l.b16 %v256
      %v423 = vunpack.c.h.b16 %v256
      %v424 = vunpack.c.l.b16 %v257
      %v425 = vunpack.c.h.b16 %v257
      %v426 = vunpack.c.l.b16 %v258
      %v427 = vunpack.c.h.b16 %v258
      %v428 = vunpack.c.l.b16 %v259
      %v429 = vunpack.c.h.b16 %v259
      %v430 = vunpack.c.l.b16 %v260
      %v431 = vunpack.c.h.b16 %v260
      %v432 = vunpack.c.l.b16 %v261
      %v433 = vunpack.c.h.b16 %v261
      %v434 = vunpack.c.l.b16 %v262
      %v435 = vunpack.c.h.b16 %v262
      %v436 = vunpack.c.l.b16 %v263
      %v437 = vunpack.c.h.b16 %v263
      %v438 = vunpack.c.l.b16 %v264
      %v439 = vunpack.c.h.b16 %v264
      %v440 = vunpack.c.l.b16 %v265
      %v441 = vunpack.c.h.b16 %v265
      %v442 = vunpack.c.l.b16 %v266
      %v443 = vunpack.c.h.b16 %v266
      %v444 = vunpack.c.l.b16 %v267
      %v445 = vunpack.c.h.b16 %v267
      %v446 = vunpack.c.l.b16 %v268
      %v447 = vunpack.c.h.b16 %v268
      %v448 = vunpack.c.l.b16 %v269
      %v449 = vunpack.c.h.b16 %v269
      %v450 = vunpack.c.l.b16 %v270
      %v451 = vunpack.c.h.b16 %v270
      %v452 = vunpack.c.l.b16 %v271
      %v453 = vunpack.c.h.b16 %v271
      %v454 = vunpack.c.l.b16 %v272
      %v455 = vunpack.c.h.b16 %v272
      %v456 = vunpack.c.l.b16 %v273
      %v457 = vunpack.c.h.b16 %v273
      %v458 = vunpack.c.l.b16 %v274
      %v459 = vunpack.c.h.b16 %v274
      %v460 = vunpack.c.l.b16 %v275
      %v461 = vunpack.c.h.b16 %v275
      %v462 = vunpack.c.l.b16 %v276
      %v463 = vunpack.c.h.b16 %v276
      %v464 = vunpack.c.l.b16 %v277
      %v465 = vunpack.c.h.b16 %v277
      %v466 = vunpack.c.l.b16 %v278
      %v467 = vunpack.c.h.b16 %v278
      %v468 = vpack.c.b16 %v370, %v368
      %v469 = vpack.c.b16 %v371, %v369
      %v470 = vpack.c.b16 %v374, %v372
      %v471 = vpack.c.b16 %v375, %v373
      %v472 = vpack.c.b16 %v378, %v376
      %v473 = vpack.c.b16 %v379, %v377
      %v474 = vpack.c.b16 %v382, %v380
      %v475 = vpack.c.b16 %v383, %v381
      %v476 = vpack.c.b16 %v386, %v384
      %v477 = vpack.c.b16 %v387, %v385
      %v478 = vpack.c.b16 %v390, %v388
      %v479 = vpack.c.b16 %v391, %v389
      %v480 = vpack.c.b16 %v394, %v392
      %v481 = vpack.c.b16 %v395, %v393
      %v482 = vpack.c.b16 %v398, %v396
      %v483 = vpack.c.b16 %v399, %v397
      %v484 = vpack.c.b16 %v402, %v400
      %v485 = vpack.c.b16 %v403, %v401
      %v486 = vpack.c.b16 %v406, %v404
      %v487 = vpack.c.b16 %v407, %v405
      %v488 = vpack.c.b16 %v410, %v408
      %v489 = vpack.c.b16 %v411, %v409
      %v490 = vpack.c.b16 %v414, %v412
      %v491 = vpack.c.b16 %v415, %v413
      %v492 = vpack.c.b16 %v418, %v416
      %v493 = vpack.c.b16 %v419, %v417
      %v494 = vpack.c.b16 %v422, %v420
      %v495 = vpack.c.b16 %v423, %v421
      %v496 = vpack.c.b16 %v426, %v424
      %v497 = vpack.c.b16 %v427, %v425
      %v498 = vpack.c.b16 %v430, %v428
      %v499 = vpack.c.b16 %v431, %v429
      %v500 = vpack.c.b16 %v434, %v432
      %v501 = vpack.c.b16 %v435, %v433
      %v502 = vpack.c.b16 %v438, %v436
      %v503 = vpack.c.b16 %v439, %v437
      %v504 = vpack.c.b16 %v442, %v440
      %v505 = vpack.c.b16 %v443, %v441
      %v506 = vpack.c.b16 %v446, %v444
      %v507 = vpack.c.b16 %v447, %v445
      %v508 = vpack.c.b16 %v450, %v448
      %v509 = vpack.c.b16 %v451, %v449
      %v510 = vpack.c.b16 %v454, %v452
      %v511 = vpack.c.b16 %v455, %v453
      %v512 = vpack.c.b16 %v458, %v456
      %v513 = vpack.c.b16 %v459, %v457
      %v514 = vpack.c.b16 %v462, %v460
      %v515 = vpack.c.b16 %v463, %v461
      %v516 = vpack.c.b16 %v466, %v464
      %v517 = vpack.c.b16 %v467, %v465
      %v600 = vunpack.c.l.b16 %v279
      %v601 = vunpack.c.l.b16 %v280
      %v602 = vunpack.c.l.b16 %v281
      %v603 = vunpack.c.l.b16 %v282
      %v604 = vunpack.c.l.b16 %v283
      %v605 = vunpack.c.l.b16 %v284
      %v606 = vunpack.c.l.b16 %v285
      %v607 = vunpack.c.l.b16 %v286
      %v608 = vunpack.c.l.b16 %v287
      %v609 = vunpack.c.l.b16 %v288
      %v610 = vunpack.c.l.b16 %v289
      %v611 = vunpack.c.l.b16 %v290
      %v612 = vunpack.c.l.b16 %v291
      %v613 = vunpack.c.l.b16 %v292
      %v614 = vunpack.c.l.b16 %v293
      %v615 = vunpack.c.l.b16 %v294
      %v616 = vunpack.c.l.b16 %v295
      %v617 = vunpack.c.l.b16 %v296
      %v618 = vunpack.c.l.b16 %v297
      %v619 = vunpack.c.l.b16 %v298
      %v620 = vunpack.c.l.b16 %v299
      %v621 = vunpack.c.l.b16 %v300
      %v622 = vunpack.c.l.b16 %v301
      %v623 = vunpack.c.l.b16 %v302
      %v624 = vunpack.c.l.b16 %v303
      %v625 = vunpack.c.l.b16 %v304
      %v626 = vunpack.c.l.b16 %v305
      %v627 = vunpack.c.l.b16 %v306
      %v628 = vunpack.c.l.b16 %v307
      %v629 = vunpack.c.l.b16 %v308
      %v630 = vunpack.c.l.b16 %v309
      %v631 = vunpack.c.l.b16 %v310
      %v632 = vpack.c.b16 %v601, %v600
      %v633 = vpack.c.b16 %v603, %v602
      %v634 = vpack.c.b16 %v605, %v604
      %v635 = vpack.c.b16 %v607, %v606
      %v636 = vpack.c.b16 %v609, %v608
      %v637 = vpack.c.b16 %v611, %v610
      %v638 = vpack.c.b16 %v613, %v612
      %v639 = vpack.c.b16 %v615, %v614
      %v640 = vpack.c.b16 %v617, %v616
      %v641 = vpack.c.b16 %v619, %v618
      %v642 = vpack.c.b16 %v621, %v620
      %v643 = vpack.c.b16 %v623, %v622
      %v644 = vpack.c.b16 %v625, %v624
      %v645 = vpack.c.b16 %v627, %v626
      %v646 = vpack.c.b16 %v629, %v628
      %v647 = vpack.c.b16 %v631, %v630
      %664 = vmatprep.subr.bf16.mxu0 0
      %665 = vmatpush1.bf16.msra.mxu0 %v639
      %666 = vmatprep.subr.bf16.mxu0 0
      %667 = vmatpush1.bf16.msra.mxu0 %v638
      %668 = vmatprep.subr.bf16.mxu0 0
      %669 = vmatpush1.bf16.msra.mxu0 %v637
      %670 = vmatprep.subr.bf16.mxu0 0
      %671 = vmatpush1.bf16.msra.mxu0 %v636
      %672 = vmatprep.subr.bf16.mxu0 0
      %673 = vmatpush1.bf16.msra.mxu0 %v635
      %674 = vmatprep.subr.bf16.mxu0 0
      %675 = vmatpush1.bf16.msra.mxu0 %v634
      %676 = vmatprep.subr.bf16.mxu0 0
      %677 = vmatpush1.bf16.msra.mxu0 %v633
      %678 = vmatprep.subr.bf16.mxu0 0
      %679 = vmatpush1.bf16.msra.mxu0 %v632
      %680 = vmatprep.subr.bf16.mxu0 0
      %681 = vmatpush2.bf16.msra.mxu0 %v647
      %682 = vmatprep.subr.bf16.mxu0 0
      %683 = vmatpush2.bf16.msra.mxu0 %v646
      %684 = vmatprep.subr.bf16.mxu0 0
      %685 = vmatpush2.bf16.msra.mxu0 %v645
      %686 = vmatprep.subr.bf16.mxu0 0
      %687 = vmatpush2.bf16.msra.mxu0 %v644
      %688 = vmatprep.subr.bf16.mxu0 0
      %689 = vmatpush2.bf16.msra.mxu0 %v643
      %690 = vmatprep.subr.bf16.mxu0 0
      %691 = vmatpush2.bf16.msra.mxu0 %v642
      %692 = vmatprep.subr.bf16.mxu0 0
      %693 = vmatpush2.bf16.msra.mxu0 %v641
      %694 = vmatprep.subr.bf16.mxu0 0
      %695 = vmatpush2.bf16.msra.mxu0 %v640
      %696 = vmatprep.mubr.bf16.mxu0 %v469
      %697 = vmatmul.mubr.bf16.gmra.mxu0 %v468
      %v698 = vpop.f32.mrf.mxu0
      %v699 = vadd.f32 %v316, %v698
      %v700 = vpop.f32.mrf.mxu0
      %v701 = vpop.f32.mrf.mxu0
      %v702 = vadd.f32 %v316, %v701
      %v703 = vpop.f32.mrf.mxu0
      %704 = vmatprep.mubr.bf16.mxu0 %v471
      %705 = vmatmul.mubr.bf16.gmra.mxu0 %v470
      %v706 = vpop.f32.mrf.mxu0
      %v707 = vadd.f32 %v316, %v706
      %v708 = vpop.f32.mrf.mxu0
      %v709 = vpop.f32.mrf.mxu0
      %v710 = vadd.f32 %v316, %v709
      %v711 = vpop.f32.mrf.mxu0
      %712 = vmatprep.mubr.bf16.mxu0 %v473
      %713 = vmatmul.mubr.bf16.gmra.mxu0 %v472
      %v714 = vpop.f32.mrf.mxu0
      %v715 = vadd.f32 %v316, %v714
      %v716 = vpop.f32.mrf.mxu0
      %v717 = vpop.f32.mrf.mxu0
      %v718 = vadd.f32 %v316, %v717
      %v719 = vpop.f32.mrf.mxu0
      %720 = vmatprep.mubr.bf16.mxu0 %v475
      %721 = vmatmul.mubr.bf16.gmra.mxu0 %v474
      %v722 = vpop.f32.mrf.mxu0
      %v723 = vadd.f32 %v316, %v722
      %v724 = vpop.f32.mrf.mxu0
      %v725 = vpop.f32.mrf.mxu0
      %v726 = vadd.f32 %v316, %v725
      %v727 = vpop.f32.mrf.mxu0
      %728 = vmatprep.mubr.bf16.mxu0 %v477
      %729 = vmatmul.mubr.bf16.gmra.mxu0 %v476
      %v730 = vpop.f32.mrf.mxu0
      %v731 = vadd.f32 %v316, %v730
      %v732 = vpop.f32.mrf.mxu0
      %v733 = vpop.f32.mrf.mxu0
      %v734 = vadd.f32 %v316, %v733
      %v735 = vpop.f32.mrf.mxu0
      %736 = vmatprep.mubr.bf16.mxu0 %v479
      %737 = vmatmul.mubr.bf16.gmra.mxu0 %v478
      %v738 = vpop.f32.mrf.mxu0
      %v739 = vadd.f32 %v316, %v738
      %v740 = vpop.f32.mrf.mxu0
      %v741 = vpop.f32.mrf.mxu0
      %v742 = vadd.f32 %v316, %v741
      %v743 = vpop.f32.mrf.mxu0
      %744 = vmatprep.mubr.bf16.mxu0 %v481
      %745 = vmatmul.mubr.bf16.gmra.mxu0 %v480
      %v746 = vpop.f32.mrf.mxu0
      %v747 = vadd.f32 %v316, %v746
      %v748 = vpop.f32.mrf.mxu0
      %v749 = vpop.f32.mrf.mxu0
      %v750 = vadd.f32 %v316, %v749
      %v751 = vpop.f32.mrf.mxu0
      %752 = vmatprep.mubr.bf16.mxu0 %v483
      %753 = vmatmul.mubr.bf16.gmra.mxu0 %v482
      %v754 = vpop.f32.mrf.mxu0
      %v755 = vadd.f32 %v316, %v754
      %v756 = vpop.f32.mrf.mxu0
      %v757 = vpop.f32.mrf.mxu0
      %v758 = vadd.f32 %v316, %v757
      %v759 = vpop.f32.mrf.mxu0
      %760 = vmatprep.mubr.bf16.mxu0 %v485
      %761 = vmatmul.mubr.bf16.gmra.mxu0 %v484
      %v762 = vpop.f32.mrf.mxu0
      %v763 = vadd.f32 %v316, %v762
      %v764 = vpop.f32.mrf.mxu0
      %v765 = vpop.f32.mrf.mxu0
      %v766 = vadd.f32 %v316, %v765
      %v767 = vpop.f32.mrf.mxu0
      %768 = vmatprep.mubr.bf16.mxu0 %v487
      %769 = vmatmul.mubr.bf16.gmra.mxu0 %v486
      %v770 = vpop.f32.mrf.mxu0
      %v771 = vadd.f32 %v316, %v770
      %v772 = vpop.f32.mrf.mxu0
      %v773 = vpop.f32.mrf.mxu0
      %v774 = vadd.f32 %v316, %v773
      %v775 = vpop.f32.mrf.mxu0
      %776 = vmatprep.mubr.bf16.mxu0 %v489
      %777 = vmatmul.mubr.bf16.gmra.mxu0 %v488
      %v778 = vpop.f32.mrf.mxu0
      %v779 = vadd.f32 %v316, %v778
      %v780 = vpop.f32.mrf.mxu0
      %v781 = vpop.f32.mrf.mxu0
      %v782 = vadd.f32 %v316, %v781
      %v783 = vpop.f32.mrf.mxu0
      %784 = vmatprep.mubr.bf16.mxu0 %v491
      %785 = vmatmul.mubr.bf16.gmra.mxu0 %v490
      %v786 = vpop.f32.mrf.mxu0
      %v787 = vadd.f32 %v316, %v786
      %v788 = vpop.f32.mrf.mxu0
      %v789 = vpop.f32.mrf.mxu0
      %v790 = vadd.f32 %v316, %v789
      %v791 = vpop.f32.mrf.mxu0
      %792 = vmatprep.mubr.bf16.mxu0 %v493
      %793 = vmatmul.mubr.bf16.gmra.mxu0 %v492
      %v794 = vpop.f32.mrf.mxu0
      %v795 = vadd.f32 %v316, %v794
      %v796 = vpop.f32.mrf.mxu0
      %v797 = vpop.f32.mrf.mxu0
      %v798 = vadd.f32 %v316, %v797
      %v799 = vpop.f32.mrf.mxu0
      %800 = vmatprep.mubr.bf16.mxu0 %v495
      %801 = vmatmul.mubr.bf16.gmra.mxu0 %v494
      %v802 = vpop.f32.mrf.mxu0
      %v803 = vadd.f32 %v316, %v802
      %v804 = vpop.f32.mrf.mxu0
      %v805 = vpop.f32.mrf.mxu0
      %v806 = vadd.f32 %v316, %v805
      %v807 = vpop.f32.mrf.mxu0
      %808 = vmatprep.mubr.bf16.mxu0 %v497
      %809 = vmatmul.mubr.bf16.gmra.mxu0 %v496
      %v810 = vpop.f32.mrf.mxu0
      %v811 = vadd.f32 %v316, %v810
      %v812 = vpop.f32.mrf.mxu0
      %v813 = vpop.f32.mrf.mxu0
      %v814 = vadd.f32 %v316, %v813
      %v815 = vpop.f32.mrf.mxu0
      %816 = vmatprep.mubr.bf16.mxu0 %v499
      %817 = vmatmul.mubr.bf16.gmra.mxu0 %v498
      %v818 = vpop.f32.mrf.mxu0
      %v819 = vadd.f32 %v316, %v818
      %v820 = vpop.f32.mrf.mxu0
      %v821 = vpop.f32.mrf.mxu0
      %v822 = vadd.f32 %v316, %v821
      %v823 = vpop.f32.mrf.mxu0
      %824 = vmatprep.mubr.bf16.mxu0 %v501
      %825 = vmatmul.mubr.bf16.gmra.mxu0 %v500
      %v826 = vpop.f32.mrf.mxu0
      %v827 = vadd.f32 %v316, %v826
      %v828 = vpop.f32.mrf.mxu0
      %v829 = vpop.f32.mrf.mxu0
      %v830 = vadd.f32 %v316, %v829
      %v831 = vpop.f32.mrf.mxu0
      %832 = vmatprep.mubr.bf16.mxu0 %v503
      %833 = vmatmul.mubr.bf16.gmra.mxu0 %v502
      %v834 = vpop.f32.mrf.mxu0
      %v835 = vadd.f32 %v316, %v834
      %v836 = vpop.f32.mrf.mxu0
      %v837 = vpop.f32.mrf.mxu0
      %v838 = vadd.f32 %v316, %v837
      %v839 = vpop.f32.mrf.mxu0
      %840 = vmatprep.mubr.bf16.mxu0 %v505
      %841 = vmatmul.mubr.bf16.gmra.mxu0 %v504
      %v842 = vpop.f32.mrf.mxu0
      %v843 = vadd.f32 %v316, %v842
      %v844 = vpop.f32.mrf.mxu0
      %v845 = vpop.f32.mrf.mxu0
      %v846 = vadd.f32 %v316, %v845
      %v847 = vpop.f32.mrf.mxu0
      %848 = vmatprep.mubr.bf16.mxu0 %v507
      %849 = vmatmul.mubr.bf16.gmra.mxu0 %v506
      %v850 = vpop.f32.mrf.mxu0
      %v851 = vadd.f32 %v316, %v850
      %v852 = vpop.f32.mrf.mxu0
      %v853 = vpop.f32.mrf.mxu0
      %v854 = vadd.f32 %v316, %v853
      %v855 = vpop.f32.mrf.mxu0
      %856 = vmatprep.mubr.bf16.mxu0 %v509
      %857 = vmatmul.mubr.bf16.gmra.mxu0 %v508
      %v858 = vpop.f32.mrf.mxu0
      %v859 = vadd.f32 %v316, %v858
      %v860 = vpop.f32.mrf.mxu0
      %v861 = vpop.f32.mrf.mxu0
      %v862 = vadd.f32 %v316, %v861
      %v863 = vpop.f32.mrf.mxu0
      %864 = vmatprep.mubr.bf16.mxu0 %v511
      %865 = vmatmul.mubr.bf16.gmra.mxu0 %v510
      %v866 = vpop.f32.mrf.mxu0
      %v867 = vadd.f32 %v316, %v866
      %v868 = vpop.f32.mrf.mxu0
      %v869 = vpop.f32.mrf.mxu0
      %v870 = vadd.f32 %v316, %v869
      %v871 = vpop.f32.mrf.mxu0
      %872 = vmatprep.mubr.bf16.mxu0 %v513
      %873 = vmatmul.mubr.bf16.gmra.mxu0 %v512
      %v874 = vpop.f32.mrf.mxu0
      %v875 = vadd.f32 %v316, %v874
      %v876 = vpop.f32.mrf.mxu0
      %v877 = vpop.f32.mrf.mxu0
      %v878 = vadd.f32 %v316, %v877
      %v879 = vpop.f32.mrf.mxu0
      %880 = vmatprep.mubr.bf16.mxu0 %v515
      %881 = vmatmul.mubr.bf16.gmra.mxu0 %v514
      %v882 = vpop.f32.mrf.mxu0
      %v883 = vadd.f32 %v316, %v882
      %v884 = vpop.f32.mrf.mxu0
      %v885 = vpop.f32.mrf.mxu0
      %v886 = vadd.f32 %v316, %v885
      %v887 = vpop.f32.mrf.mxu0
      %888 = vmatprep.mubr.bf16.mxu0 %v517
      %889 = vmatmul.mubr.bf16.gmra.mxu0 %v516
      %v890 = vpop.f32.mrf.mxu0
      %v891 = vadd.f32 %v316, %v890
      %v892 = vpop.f32.mrf.mxu0
      %v893 = vpop.f32.mrf.mxu0
      %v894 = vadd.f32 %v316, %v893
      %v895 = vpop.f32.mrf.mxu0
      %896 = vdwg.mxu0
      %v897 = vmax.f32 %v699, 0.0
      %v898 = vmax.f32 %v702, 0.0
      %v899 = vmax.f32 %v707, 0.0
      %v900 = vmax.f32 %v710, 0.0
      %v901 = vmax.f32 %v715, 0.0
      %v902 = vmax.f32 %v718, 0.0
      %v903 = vmax.f32 %v723, 0.0
      %v904 = vmax.f32 %v726, 0.0
      %v905 = vmax.f32 %v731, 0.0
      %v906 = vmax.f32 %v734, 0.0
      %v907 = vmax.f32 %v739, 0.0
      %v908 = vmax.f32 %v742, 0.0
      %v909 = vmax.f32 %v747, 0.0
      %v910 = vmax.f32 %v750, 0.0
      %v911 = vmax.f32 %v755, 0.0
      %v912 = vmax.f32 %v758, 0.0
      %v913 = vmax.f32 %v763, 0.0
      %v914 = vmax.f32 %v766, 0.0
      %v915 = vmax.f32 %v771, 0.0
      %v916 = vmax.f32 %v774, 0.0
      %v917 = vmax.f32 %v779, 0.0
      %v918 = vmax.f32 %v782, 0.0
      %v919 = vmax.f32 %v787, 0.0
      %v920 = vmax.f32 %v790, 0.0
      %v921 = vmax.f32 %v795, 0.0
      %v922 = vmax.f32 %v798, 0.0
      %v923 = vmax.f32 %v803, 0.0
      %v924 = vmax.f32 %v806, 0.0
      %v925 = vmax.f32 %v811, 0.0
      %v926 = vmax.f32 %v814, 0.0
      %v927 = vmax.f32 %v819, 0.0
      %v928 = vmax.f32 %v822, 0.0
      %v929 = vmax.f32 %v827, 0.0
      %v930 = vmax.f32 %v830, 0.0
      %v931 = vmax.f32 %v835, 0.0
      %v932 = vmax.f32 %v838, 0.0
      %v933 = vmax.f32 %v843, 0.0
      %v934 = vmax.f32 %v846, 0.0
      %v935 = vmax.f32 %v851, 0.0
      %v936 = vmax.f32 %v854, 0.0
      %v937 = vmax.f32 %v859, 0.0
      %v938 = vmax.f32 %v862, 0.0
      %v939 = vmax.f32 %v867, 0.0
      %v940 = vmax.f32 %v870, 0.0
      %v941 = vmax.f32 %v875, 0.0
      %v942 = vmax.f32 %v878, 0.0
      %v943 = vmax.f32 %v883, 0.0
      %v944 = vmax.f32 %v886, 0.0
      %v945 = vmax.f32 %v891, 0.0
      %v946 = vmax.f32 %v894, 0.0
      %v947 = vpack.c.bf16 %v898, %v897
      %v948 = vpack.c.bf16 %v900, %v899
      %v949 = vpack.c.bf16 %v902, %v901
      %v950 = vpack.c.bf16 %v904, %v903
      %v951 = vpack.c.bf16 %v906, %v905
      %v952 = vpack.c.bf16 %v908, %v907
      %v953 = vpack.c.bf16 %v910, %v909
      %v954 = vpack.c.bf16 %v912, %v911
      %v955 = vpack.c.bf16 %v914, %v913
      %v956 = vpack.c.bf16 %v916, %v915
      %v957 = vpack.c.bf16 %v918, %v917
      %v958 = vpack.c.bf16 %v920, %v919
      %v959 = vpack.c.bf16 %v922, %v921
      %v960 = vpack.c.bf16 %v924, %v923
      %v961 = vpack.c.bf16 %v926, %v925
      %v962 = vpack.c.bf16 %v928, %v927
      %v963 = vpack.c.bf16 %v930, %v929
      %v964 = vpack.c.bf16 %v932, %v931
      %v965 = vpack.c.bf16 %v934, %v933
      %v966 = vpack.c.bf16 %v936, %v935
      %v967 = vpack.c.bf16 %v938, %v937
      %v968 = vpack.c.bf16 %v940, %v939
      %v969 = vpack.c.bf16 %v942, %v941
      %v970 = vpack.c.bf16 %v944, %v943
      %v971 = vpack.c.bf16 %v946, %v945
      %v997 = vunpack.c.l.b16 %v947
      %v998 = vunpack.c.h.b16 %v947
      %v999 = vunpack.c.l.b16 %v948
      %v1000 = vunpack.c.h.b16 %v948
      %v1001 = vunpack.c.l.b16 %v949
      %v1002 = vunpack.c.h.b16 %v949
      %v1003 = vunpack.c.l.b16 %v950
      %v1004 = vunpack.c.h.b16 %v950
      %v1005 = vunpack.c.l.b16 %v951
      %v1006 = vunpack.c.h.b16 %v951
      %v1007 = vunpack.c.l.b16 %v952
      %v1008 = vunpack.c.h.b16 %v952
      %v1009 = vunpack.c.l.b16 %v953
      %v1010 = vunpack.c.h.b16 %v953
      %v1011 = vunpack.c.l.b16 %v954
      %v1012 = vunpack.c.h.b16 %v954
      %v1013 = vunpack.c.l.b16 %v955
      %v1014 = vunpack.c.h.b16 %v955
      %v1015 = vunpack.c.l.b16 %v956
      %v1016 = vunpack.c.h.b16 %v956
      %v1017 = vunpack.c.l.b16 %v957
      %v1018 = vunpack.c.h.b16 %v957
      %v1019 = vunpack.c.l.b16 %v958
      %v1020 = vunpack.c.h.b16 %v958
      %v1021 = vunpack.c.l.b16 %v959
      %v1022 = vunpack.c.h.b16 %v959
      %v1023 = vunpack.c.l.b16 %v960
      %v1024 = vunpack.c.h.b16 %v960
      %v1025 = vunpack.c.l.b16 %v961
      %v1026 = vunpack.c.h.b16 %v961
      %v1027 = vunpack.c.l.b16 %v962
      %v1028 = vunpack.c.h.b16 %v962
      %v1029 = vunpack.c.l.b16 %v963
      %v1030 = vunpack.c.h.b16 %v963
      %v1031 = vunpack.c.l.b16 %v964
      %v1032 = vunpack.c.h.b16 %v964
      %v1033 = vunpack.c.l.b16 %v965
      %v1034 = vunpack.c.h.b16 %v965
      %v1035 = vunpack.c.l.b16 %v966
      %v1036 = vunpack.c.h.b16 %v966
      %v1037 = vunpack.c.l.b16 %v967
      %v1038 = vunpack.c.h.b16 %v967
      %v1039 = vunpack.c.l.b16 %v968
      %v1040 = vunpack.c.h.b16 %v968
      %v1041 = vunpack.c.l.b16 %v969
      %v1042 = vunpack.c.h.b16 %v969
      %v1043 = vunpack.c.l.b16 %v970
      %v1044 = vunpack.c.h.b16 %v970
      %v1045 = vunpack.c.l.b16 %v971
      %v1046 = vunpack.c.h.b16 %v971
      %v1047 = vpack.c.b16 %v997, %v997
      %v1048 = vpack.c.b16 %v998, %v998
      %v1049 = vpack.c.b16 %v999, %v999
      %v1050 = vpack.c.b16 %v1000, %v1000
      %v1051 = vpack.c.b16 %v1001, %v1001
      %v1052 = vpack.c.b16 %v1002, %v1002
      %v1053 = vpack.c.b16 %v1003, %v1003
      %v1054 = vpack.c.b16 %v1004, %v1004
      %v1055 = vpack.c.b16 %v1005, %v1005
      %v1056 = vpack.c.b16 %v1006, %v1006
      %v1057 = vpack.c.b16 %v1007, %v1007
      %v1058 = vpack.c.b16 %v1008, %v1008
      %v1059 = vpack.c.b16 %v1009, %v1009
      %v1060 = vpack.c.b16 %v1010, %v1010
      %v1061 = vpack.c.b16 %v1011, %v1011
      %v1062 = vpack.c.b16 %v1012, %v1012
      %v1063 = vpack.c.b16 %v1013, %v1013
      %v1064 = vpack.c.b16 %v1014, %v1014
      %v1065 = vpack.c.b16 %v1015, %v1015
      %v1066 = vpack.c.b16 %v1016, %v1016
      %v1067 = vpack.c.b16 %v1017, %v1017
      %v1068 = vpack.c.b16 %v1018, %v1018
      %v1069 = vpack.c.b16 %v1019, %v1019
      %v1070 = vpack.c.b16 %v1020, %v1020
      %v1071 = vpack.c.b16 %v1021, %v1021
      %v1072 = vpack.c.b16 %v1022, %v1022
      %v1073 = vpack.c.b16 %v1023, %v1023
      %v1074 = vpack.c.b16 %v1024, %v1024
      %v1075 = vpack.c.b16 %v1025, %v1025
      %v1076 = vpack.c.b16 %v1026, %v1026
      %v1077 = vpack.c.b16 %v1027, %v1027
      %v1078 = vpack.c.b16 %v1028, %v1028
      %v1079 = vpack.c.b16 %v1029, %v1029
      %v1080 = vpack.c.b16 %v1030, %v1030
      %v1081 = vpack.c.b16 %v1031, %v1031
      %v1082 = vpack.c.b16 %v1032, %v1032
      %v1083 = vpack.c.b16 %v1033, %v1033
      %v1084 = vpack.c.b16 %v1034, %v1034
      %v1085 = vpack.c.b16 %v1035, %v1035
      %v1086 = vpack.c.b16 %v1036, %v1036
      %v1087 = vpack.c.b16 %v1037, %v1037
      %v1088 = vpack.c.b16 %v1038, %v1038
      %v1089 = vpack.c.b16 %v1039, %v1039
      %v1090 = vpack.c.b16 %v1040, %v1040
      %v1091 = vpack.c.b16 %v1041, %v1041
      %v1092 = vpack.c.b16 %v1042, %v1042
      %v1093 = vpack.c.b16 %v1043, %v1043
      %v1094 = vpack.c.b16 %v1044, %v1044
      %v1095 = vpack.c.b16 %v1045, %v1045
      %v1096 = vpack.c.b16 %v1046, %v1046
      %1147 = vst [vmem:[%s226] sm:$0xf] %v1047
      %1148 = vst [vmem:[%s226 + $0x4] sm:$0xf] %v1048
      %1149 = vst [vmem:[%s226 + $0x8] sm:$0xf] %v1049
      %1150 = vst [vmem:[%s226 + $0xc] sm:$0xf] %v1050
      %1151 = vst [vmem:[%s226 + $0x10] sm:$0xf] %v1051
      %1152 = vst [vmem:[%s226 + $0x14] sm:$0xf] %v1052
      %1153 = vst [vmem:[%s226 + $0x18] sm:$0xf] %v1053
      %1154 = vst [vmem:[%s226 + $0x1c] sm:$0xf] %v1054
      %1155 = vst [vmem:[%s226 + $0x20] sm:$0xf] %v1055
      %1156 = vst [vmem:[%s226 + $0x24] sm:$0xf] %v1056
      %1157 = vst [vmem:[%s226 + $0x28] sm:$0xf] %v1057
      %1158 = vst [vmem:[%s226 + $0x2c] sm:$0xf] %v1058
      %1159 = vst [vmem:[%s226 + $0x30] sm:$0xf] %v1059
      %1160 = vst [vmem:[%s226 + $0x34] sm:$0xf] %v1060
      %1161 = vst [vmem:[%s226 + $0x38] sm:$0xf] %v1061
      %1162 = vst [vmem:[%s226 + $0x3c] sm:$0xf] %v1062
      %1163 = vst [vmem:[%s226 + $0x40] sm:$0xf] %v1063
      %1164 = vst [vmem:[%s226 + $0x44] sm:$0xf] %v1064
      %1165 = vst [vmem:[%s226 + $0x48] sm:$0xf] %v1065
      %1166 = vst [vmem:[%s226 + $0x4c] sm:$0xf] %v1066
      %1167 = vst [vmem:[%s226 + $0x50] sm:$0xf] %v1067
      %1168 = vst [vmem:[%s226 + $0x54] sm:$0xf] %v1068
      %1169 = vst [vmem:[%s226 + $0x58] sm:$0xf] %v1069
      %1170 = vst [vmem:[%s226 + $0x5c] sm:$0xf] %v1070
      %1171 = vst [vmem:[%s226 + $0x60] sm:$0xf] %v1071
      %1172 = vst [vmem:[%s226 + $0x64] sm:$0xf] %v1072
      %1173 = vst [vmem:[%s226 + $0x68] sm:$0xf] %v1073
      %1174 = vst [vmem:[%s226 + $0x6c] sm:$0xf] %v1074
      %1175 = vst [vmem:[%s226 + $0x70] sm:$0xf] %v1075
      %1176 = vst [vmem:[%s226 + $0x74] sm:$0xf] %v1076
      %1177 = vst [vmem:[%s226 + $0x78] sm:$0xf] %v1077
      %1178 = vst [vmem:[%s226 + $0x7c] sm:$0xf] %v1078
      %1179 = vst [vmem:[%s226 + $0x80] sm:$0xf] %v1079
      %1180 = vst [vmem:[%s226 + $0x84] sm:$0xf] %v1080
      %1181 = vst [vmem:[%s226 + $0x88] sm:$0xf] %v1081
      %1182 = vst [vmem:[%s226 + $0x8c] sm:$0xf] %v1082
      %1183 = vst [vmem:[%s226 + $0x90] sm:$0xf] %v1083
      %1184 = vst [vmem:[%s226 + $0x94] sm:$0xf] %v1084
      %1185 = vst [vmem:[%s226 + $0x98] sm:$0xf] %v1085
      %1186 = vst [vmem:[%s226 + $0x9c] sm:$0xf] %v1086
      %1187 = vst [vmem:[%s226 + $0xa0] sm:$0xf] %v1087
      %1188 = vst [vmem:[%s226 + $0xa4] sm:$0xf] %v1088
      %1189 = vst [vmem:[%s226 + $0xa8] sm:$0xf] %v1089
      %1190 = vst [vmem:[%s226 + $0xac] sm:$0xf] %v1090
      %1191 = vst [vmem:[%s226 + $0xb0] sm:$0xf] %v1091
      %1192 = vst [vmem:[%s226 + $0xb4] sm:$0xf] %v1092
      %1193 = vst [vmem:[%s226 + $0xb8] sm:$0xf] %v1093
      %1194 = vst [vmem:[%s226 + $0xbc] sm:$0xf] %v1094
      %1195 = vst [vmem:[%s226 + $0xc0] sm:$0xf] %v1095
      %1196 = vst [vmem:[%s226 + $0xc4] sm:$0xf] %v1096
      %s1197 = smul.u32 50, %s18
      %p1198 = scmp.lt.s32.totalorder %s1197, 99
      %s1199 = scalar_select %p1198, %s1197, 99
      %p1200 = scmp.lt.s32.totalorder %s19, 0
      %s1201 = scalar_select %p1200, %s19, 0
      %s1202 = sadd.s32 %s1201, %s1199
      %s1203 = smul.addr %s1202, 4
      %s1204 = scalar_lea.vmem %s3, %s1203
      // Predicated region
      $region33: #{atari_model_forward.4} parent=31 // pred_check
        %p1205 = pneg %p124
      $region34: #{atari_model_forward.4} parent=31 // pred_check_branch
        %1207 = sbr.rel (%p1205) target = $region36
      $region35: #{atari_model_forward.4} parent=31 // pred_region
        %s1208 = smul.u32 50, %s18
      $region36: #{atari_model_forward.4} parent=31 // pred_fallthru
        _
    $region32: #{atari_model_forward.4} parent=5 // pred_fallthru
      _
    %p1209 = scmp.le.s32.totalorder 2, %s9
    // Predicated region
    $region37: #{atari_model_forward.4} parent=5 // pred_check
      %p1210 = pneg %p1209
    $region38: #{atari_model_forward.4} parent=5 // pred_check_branch
      %1212 = sbr.rel (%p1210) target = $region40
    $region39: #{atari_model_forward.4} parent=5 // pred_region
      %s1213 = ssub.s32 %s9, 2
      // Predicated region
      $region41: #{atari_model_forward.4} parent=39 // pred_check
        %p1214 = pneg %p130
      $region42: #{atari_model_forward.4} parent=39 // pred_check_branch
        %1216 = sbr.rel (%p1214) target = $region44
      $region43: #{atari_model_forward.4} parent=39 // pred_region
        %s1217 = smul.u32 50, %s20
        %p1218 = scmp.lt.s32.totalorder %s1217, 99
        %s1219 = scalar_select %p1218, %s1217, 99
        %p1220 = scmp.lt.s32.totalorder %s21, 0
        %s1221 = scalar_select %p1220, %s21, 0
        %s1222 = sadd.s32 %s1221, %s1219
        %s1223 = smul.addr %s1222, 4
        %s1224 = scalar_lea.vmem %s3, %s1223
      $region44: #{atari_model_forward.4} parent=39 // pred_fallthru
        _
    $region40: #{atari_model_forward.4} parent=5 // pred_fallthru
      _
  $region6: #{atari_model_forward.4} parent=0 // loop_footer
    %s13 = sadd.s32 1, %s9
  $region7: #{atari_model_forward.4} parent=0 // loop_footer_branch
    %8 = sbr.rel target = $region3
  $region8: #{atari_model_forward.4} parent=0 // loop_exit
    _

// kernel: atari_model_forward.5
$region0: #{atari_model_forward.5}
  #allocation0 [shape = 'u32[]', space=smem, size = 0x4, offset = 0x4, fixed_abs, tag = 'smem constant byte address 0x4 - core index']
  #allocation1 [shape = 'u32[144,128]{1,0:T(1,128)}', space=vmem, size = 0x12000, scoped, tag = 'internal scratch']
  %s0 = inlined_call_operand.vmem [shape: bf16[162,512], index: 0, kind: input, shape index: {}]
  %s1 = inlined_call_operand.vmem [shape: bf16[512,128], index: 1, kind: input, shape index: {}]
  %s2 = inlined_call_operand.vmem [shape: f32[1,128], index: 2, kind: input, shape index: {}]
  %s3 = inlined_call_operand.vmem [shape: bf16[162,128], index: 3, kind: output, shape index: {}]
  %s4 = sld [smem:[#allocation0]]
  $region22: #{atari_model_forward.5} parent=0
    _
  %s6 = ssub.s32 1, %s4
  %s7 = scalar_select 0, %s6, %s4
  // Predicated region
  $region2: #{atari_model_forward.5} parent=0 // pred_check
    _
  $region3: #{atari_model_forward.5} parent=0 // pred_check_branch
    %9 = sbr.rel (0) target = $region5
  $region4: #{atari_model_forward.5} parent=0 // pred_region
    _
  $region5: #{atari_model_forward.5} parent=0 // pred_fallthru
    _
  // Predicated region
  $region6: #{atari_model_forward.5} parent=0 // pred_check
    _
  $region7: #{atari_model_forward.5} parent=0 // pred_check_branch
    %11 = sbr.rel (0) target = $region9
  $region8: #{atari_model_forward.5} parent=0 // pred_region
    _
  $region9: #{atari_model_forward.5} parent=0 // pred_fallthru
    _
  // Predicated region
  $region10: #{atari_model_forward.5} parent=0 // pred_check
    _
  $region11: #{atari_model_forward.5} parent=0 // pred_check_branch
    %13 = sbr.rel (0) target = $region13
  $region12: #{atari_model_forward.5} parent=0 // pred_region
    _
  $region13: #{atari_model_forward.5} parent=0 // pred_fallthru
    _
  %v15 = vld [vmem:[%s0] sm:$0xff]
  %v16 = vld [vmem:[%s0 + $0x8] sm:$0xff]
  %v17 = vld [vmem:[%s0 + $0x10] sm:$0xff]
  %v18 = vld [vmem:[%s0 + $0x18] sm:$0xff]
  %v19 = vld [vmem:[%s0 + $0x20] sm:$0xff]
  %v20 = vld [vmem:[%s0 + $0x28] sm:$0xff]
  %v21 = vld [vmem:[%s0 + $0x30] sm:$0xff]
  %v22 = vld [vmem:[%s0 + $0x38] sm:$0xff]
  %v23 = vld [vmem:[%s0 + $0x40] sm:$0xff]
  %v24 = vld [vmem:[%s0 + $0x48] sm:$0xff]
  %v25 = vld [vmem:[%s0 + $0x50] sm:$0xff]
  %v26 = vld [vmem:[%s0 + $0x58] sm:$0xff]
  %v27 = vld [vmem:[%s0 + $0x60] sm:$0xff]
  %v28 = vld [vmem:[%s0 + $0x68] sm:$0xff]
  %v29 = vld [vmem:[%s0 + $0x70] sm:$0xff]
  %v30 = vld [vmem:[%s0 + $0x78] sm:$0xff]
  %v31 = vld [vmem:[%s0 + $0x80] sm:$0xff]
  %v32 = vld [vmem:[%s0 + $0x88] sm:$0xff]
  %v33 = vld [vmem:[%s0 + $0x90] sm:$0xff]
  %v34 = vld [vmem:[%s0 + $0x98] sm:$0xff]
  %v35 = vld [vmem:[%s0 + $0xa0] sm:$0xff]
  %v36 = vld [vmem:[%s0 + $0xa8] sm:$0xff]
  %v37 = vld [vmem:[%s0 + $0xb0] sm:$0xff]
  %v38 = vld [vmem:[%s0 + $0xb8] sm:$0xff]
  %v39 = vld [vmem:[%s0 + $0xc0] sm:$0xff]
  %v40 = vld [vmem:[%s0 + $0xc8] sm:$0xff]
  %v41 = vld [vmem:[%s0 + $0xd0] sm:$0xff]
  %v42 = vld [vmem:[%s0 + $0xd8] sm:$0xff]
  %v43 = vld [vmem:[%s0 + $0xe0] sm:$0xff]
  %v44 = vld [vmem:[%s0 + $0xe8] sm:$0xff]
  %v45 = vld [vmem:[%s0 + $0xf0] sm:$0xff]
  %v46 = vld [vmem:[%s0 + $0xf8] sm:$0xff]
  %v47 = vld [vmem:[%s0 + $0x100] sm:$0xff]
  %v48 = vld [vmem:[%s0 + $0x108] sm:$0xff]
  %v49 = vld [vmem:[%s0 + $0x110] sm:$0xff]
  %v50 = vld [vmem:[%s0 + $0x118] sm:$0xff]
  %v51 = vld [vmem:[%s0 + $0x120] sm:$0xff]
  %v52 = vld [vmem:[%s0 + $0x128] sm:$0xff]
  %v53 = vld [vmem:[%s0 + $0x130] sm:$0xff]
  %v54 = vld [vmem:[%s0 + $0x138] sm:$0xff]
  %v55 = vld [vmem:[%s0 + $0x140] sm:$0x11]
  %v56 = vld [vmem:[%s0 + $0x148] sm:$0x11]
  %v57 = vld [vmem:[%s1] sm:$0xf]
  %v58 = vld [vmem:[%s1 + $0x4] sm:$0xf]
  %v59 = vld [vmem:[%s1 + $0x8] sm:$0xf]
  %v60 = vld [vmem:[%s1 + $0xc] sm:$0xf]
  %v61 = vld [vmem:[%s1 + $0x10] sm:$0xf]
  %v62 = vld [vmem:[%s1 + $0x14] sm:$0xf]
  %v63 = vld [vmem:[%s1 + $0x18] sm:$0xf]
  %v64 = vld [vmem:[%s1 + $0x1c] sm:$0xf]
  %v65 = vld [vmem:[%s1 + $0x20] sm:$0xf]
  %v66 = vld [vmem:[%s1 + $0x24] sm:$0xf]
  %v67 = vld [vmem:[%s1 + $0x28] sm:$0xf]
  %v68 = vld [vmem:[%s1 + $0x2c] sm:$0xf]
  %v69 = vld [vmem:[%s1 + $0x30] sm:$0xf]
  %v70 = vld [vmem:[%s1 + $0x34] sm:$0xf]
  %v71 = vld [vmem:[%s1 + $0x38] sm:$0xf]
  %v72 = vld [vmem:[%s1 + $0x3c] sm:$0xf]
  %v73 = vld [vmem:[%s1 + $0x40] sm:$0xf]
  %v74 = vld [vmem:[%s1 + $0x44] sm:$0xf]
  %v75 = vld [vmem:[%s1 + $0x48] sm:$0xf]
  %v76 = vld [vmem:[%s1 + $0x4c] sm:$0xf]
  %v77 = vld [vmem:[%s1 + $0x50] sm:$0xf]
  %v78 = vld [vmem:[%s1 + $0x54] sm:$0xf]
  %v79 = vld [vmem:[%s1 + $0x58] sm:$0xf]
  %v80 = vld [vmem:[%s1 + $0x5c] sm:$0xf]
  %v81 = vld [vmem:[%s1 + $0x60] sm:$0xf]
  %v82 = vld [vmem:[%s1 + $0x64] sm:$0xf]
  %v83 = vld [vmem:[%s1 + $0x68] sm:$0xf]
  %v84 = vld [vmem:[%s1 + $0x6c] sm:$0xf]
  %v85 = vld [vmem:[%s1 + $0x70] sm:$0xf]
  %v86 = vld [vmem:[%s1 + $0x74] sm:$0xf]
  %v87 = vld [vmem:[%s1 + $0x78] sm:$0xf]
  %v88 = vld [vmem:[%s1 + $0x7c] sm:$0xf]
  %v89 = vld [vmem:[%s1 + $0x80] sm:$0xf]
  %v90 = vld [vmem:[%s1 + $0x84] sm:$0xf]
  %v91 = vld [vmem:[%s1 + $0x88] sm:$0xf]
  %v92 = vld [vmem:[%s1 + $0x8c] sm:$0xf]
  %v93 = vld [vmem:[%s1 + $0x90] sm:$0xf]
  %v94 = vld [vmem:[%s1 + $0x94] sm:$0xf]
  %v95 = vld [vmem:[%s1 + $0x98] sm:$0xf]
  %v96 = vld [vmem:[%s1 + $0x9c] sm:$0xf]
  %v97 = vld [vmem:[%s1 + $0xa0] sm:$0xf]
  %v98 = vld [vmem:[%s1 + $0xa4] sm:$0xf]
  %v99 = vld [vmem:[%s1 + $0xa8] sm:$0xf]
  %v100 = vld [vmem:[%s1 + $0xac] sm:$0xf]
  %v101 = vld [vmem:[%s1 + $0xb0] sm:$0xf]
  %v102 = vld [vmem:[%s1 + $0xb4] sm:$0xf]
  %v103 = vld [vmem:[%s1 + $0xb8] sm:$0xf]
  %v104 = vld [vmem:[%s1 + $0xbc] sm:$0xf]
  %v105 = vld [vmem:[%s1 + $0xc0] sm:$0xf]
  %v106 = vld [vmem:[%s1 + $0xc4] sm:$0xf]
  %v107 = vld [vmem:[%s1 + $0xc8] sm:$0xf]
  %v108 = vld [vmem:[%s1 + $0xcc] sm:$0xf]
  %v109 = vld [vmem:[%s1 + $0xd0] sm:$0xf]
  %v110 = vld [vmem:[%s1 + $0xd4] sm:$0xf]
  %v111 = vld [vmem:[%s1 + $0xd8] sm:$0xf]
  %v112 = vld [vmem:[%s1 + $0xdc] sm:$0xf]
  %v113 = vld [vmem:[%s1 + $0xe0] sm:$0xf]
  %v114 = vld [vmem:[%s1 + $0xe4] sm:$0xf]
  %v115 = vld [vmem:[%s1 + $0xe8] sm:$0xf]
  %v116 = vld [vmem:[%s1 + $0xec] sm:$0xf]
  %v117 = vld [vmem:[%s1 + $0xf0] sm:$0xf]
  %v118 = vld [vmem:[%s1 + $0xf4] sm:$0xf]
  %v119 = vld [vmem:[%s1 + $0xf8] sm:$0xf]
  %v120 = vld [vmem:[%s1 + $0xfc] sm:$0xf]
  %v121 = vld [vmem:[%s2] sm:$0x1]
  %v123 = vlaneseq
  %v124 = vshrl.u32 %v123, 7
  %v125 = vsub.s32 0, %v124
  %v126 = vrot.slane %v121, %v125
  %v170 = vunpack.c.l.b16 %v15
  %v171 = vunpack.c.h.b16 %v15
  %v172 = vunpack.c.l.b16 %v16
  %v173 = vunpack.c.h.b16 %v16
  %v174 = vunpack.c.l.b16 %v17
  %v175 = vunpack.c.h.b16 %v17
  %v176 = vunpack.c.l.b16 %v18
  %v177 = vunpack.c.h.b16 %v18
  %v178 = vunpack.c.l.b16 %v19
  %v179 = vunpack.c.h.b16 %v19
  %v180 = vunpack.c.l.b16 %v20
  %v181 = vunpack.c.h.b16 %v20
  %v182 = vunpack.c.l.b16 %v21
  %v183 = vunpack.c.h.b16 %v21
  %v184 = vunpack.c.l.b16 %v22
  %v185 = vunpack.c.h.b16 %v22
  %v186 = vunpack.c.l.b16 %v23
  %v187 = vunpack.c.h.b16 %v23
  %v188 = vunpack.c.l.b16 %v24
  %v189 = vunpack.c.h.b16 %v24
  %v190 = vunpack.c.l.b16 %v25
  %v191 = vunpack.c.h.b16 %v25
  %v192 = vunpack.c.l.b16 %v26
  %v193 = vunpack.c.h.b16 %v26
  %v194 = vunpack.c.l.b16 %v27
  %v195 = vunpack.c.h.b16 %v27
  %v196 = vunpack.c.l.b16 %v28
  %v197 = vunpack.c.h.b16 %v28
  %v198 = vunpack.c.l.b16 %v29
  %v199 = vunpack.c.h.b16 %v29
  %v200 = vunpack.c.l.b16 %v30
  %v201 = vunpack.c.h.b16 %v30
  %v202 = vunpack.c.l.b16 %v31
  %v203 = vunpack.c.h.b16 %v31
  %v204 = vunpack.c.l.b16 %v32
  %v205 = vunpack.c.h.b16 %v32
  %v206 = vunpack.c.l.b16 %v33
  %v207 = vunpack.c.h.b16 %v33
  %v208 = vunpack.c.l.b16 %v34
  %v209 = vunpack.c.h.b16 %v34
  %v210 = vunpack.c.l.b16 %v35
  %v211 = vunpack.c.h.b16 %v35
  %v212 = vunpack.c.l.b16 %v36
  %v213 = vunpack.c.h.b16 %v36
  %v214 = vunpack.c.l.b16 %v37
  %v215 = vunpack.c.h.b16 %v37
  %v216 = vunpack.c.l.b16 %v38
  %v217 = vunpack.c.h.b16 %v38
  %v218 = vunpack.c.l.b16 %v39
  %v219 = vunpack.c.h.b16 %v39
  %v220 = vunpack.c.l.b16 %v40
  %v221 = vunpack.c.h.b16 %v40
  %v222 = vunpack.c.l.b16 %v41
  %v223 = vunpack.c.h.b16 %v41
  %v224 = vunpack.c.l.b16 %v42
  %v225 = vunpack.c.h.b16 %v42
  %v226 = vunpack.c.l.b16 %v43
  %v227 = vunpack.c.h.b16 %v43
  %v228 = vunpack.c.l.b16 %v44
  %v229 = vunpack.c.h.b16 %v44
  %v230 = vunpack.c.l.b16 %v45
  %v231 = vunpack.c.h.b16 %v45
  %v232 = vunpack.c.l.b16 %v46
  %v233 = vunpack.c.h.b16 %v46
  %v234 = vunpack.c.l.b16 %v47
  %v235 = vunpack.c.h.b16 %v47
  %v236 = vunpack.c.l.b16 %v48
  %v237 = vunpack.c.h.b16 %v48
  %v238 = vunpack.c.l.b16 %v49
  %v239 = vunpack.c.h.b16 %v49
  %v240 = vunpack.c.l.b16 %v50
  %v241 = vunpack.c.h.b16 %v50
  %v242 = vunpack.c.l.b16 %v51
  %v243 = vunpack.c.h.b16 %v51
  %v244 = vunpack.c.l.b16 %v52
  %v245 = vunpack.c.h.b16 %v52
  %v246 = vunpack.c.l.b16 %v53
  %v247 = vunpack.c.h.b16 %v53
  %v248 = vunpack.c.l.b16 %v54
  %v249 = vunpack.c.h.b16 %v54
  %v250 = vunpack.c.l.b16 %v55
  %v251 = vunpack.c.h.b16 %v55
  %v252 = vunpack.c.l.b16 %v56
  %v253 = vunpack.c.h.b16 %v56
  %v254 = vpack.c.b16 %v174, %v170
  %v255 = vpack.c.b16 %v175, %v171
  %v256 = vpack.c.b16 %v176, %v172
  %v257 = vpack.c.b16 %v177, %v173
  %v258 = vpack.c.b16 %v182, %v178
  %v259 = vpack.c.b16 %v183, %v179
  %v260 = vpack.c.b16 %v184, %v180
  %v261 = vpack.c.b16 %v185, %v181
  %v262 = vpack.c.b16 %v190, %v186
  %v263 = vpack.c.b16 %v191, %v187
  %v264 = vpack.c.b16 %v192, %v188
  %v265 = vpack.c.b16 %v193, %v189
  %v266 = vpack.c.b16 %v198, %v194
  %v267 = vpack.c.b16 %v199, %v195
  %v268 = vpack.c.b16 %v200, %v196
  %v269 = vpack.c.b16 %v201, %v197
  %v270 = vpack.c.b16 %v206, %v202
  %v271 = vpack.c.b16 %v207, %v203
  %v272 = vpack.c.b16 %v208, %v204
  %v273 = vpack.c.b16 %v209, %v205
  %v274 = vpack.c.b16 %v214, %v210
  %v275 = vpack.c.b16 %v215, %v211
  %v276 = vpack.c.b16 %v216, %v212
  %v277 = vpack.c.b16 %v217, %v213
  %v278 = vpack.c.b16 %v222, %v218
  %v279 = vpack.c.b16 %v223, %v219
  %v280 = vpack.c.b16 %v224, %v220
  %v281 = vpack.c.b16 %v225, %v221
  %v282 = vpack.c.b16 %v230, %v226
  %v283 = vpack.c.b16 %v231, %v227
  %v284 = vpack.c.b16 %v232, %v228
  %v285 = vpack.c.b16 %v233, %v229
  %v286 = vpack.c.b16 %v238, %v234
  %v287 = vpack.c.b16 %v239, %v235
  %v288 = vpack.c.b16 %v240, %v236
  %v289 = vpack.c.b16 %v241, %v237
  %v290 = vpack.c.b16 %v246, %v242
  %v291 = vpack.c.b16 %v247, %v243
  %v292 = vpack.c.b16 %v248, %v244
  %v293 = vpack.c.b16 %v249, %v245
  %v294 = vpack.c.b16 %v250, %v250
  %v295 = vpack.c.b16 %v251, %v251
  %v296 = vpack.c.b16 %v252, %v252
  %v297 = vpack.c.b16 %v253, %v253
  %v406 = vunpack.c.l.b16 %v57
  %v407 = vunpack.c.l.b16 %v58
  %v408 = vunpack.c.l.b16 %v59
  %v409 = vunpack.c.l.b16 %v60
  %v410 = vunpack.c.l.b16 %v61
  %v411 = vunpack.c.l.b16 %v62
  %v412 = vunpack.c.l.b16 %v63
  %v413 = vunpack.c.l.b16 %v64
  %v414 = vunpack.c.l.b16 %v65
  %v415 = vunpack.c.l.b16 %v66
  %v416 = vunpack.c.l.b16 %v67
  %v417 = vunpack.c.l.b16 %v68
  %v418 = vunpack.c.l.b16 %v69
  %v419 = vunpack.c.l.b16 %v70
  %v420 = vunpack.c.l.b16 %v71
  %v421 = vunpack.c.l.b16 %v72
  %v422 = vunpack.c.l.b16 %v73
  %v423 = vunpack.c.l.b16 %v74
  %v424 = vunpack.c.l.b16 %v75
  %v425 = vunpack.c.l.b16 %v76
  %v426 = vunpack.c.l.b16 %v77
  %v427 = vunpack.c.l.b16 %v78
  %v428 = vunpack.c.l.b16 %v79
  %v429 = vunpack.c.l.b16 %v80
  %v430 = vunpack.c.l.b16 %v81
  %v431 = vunpack.c.l.b16 %v82
  %v432 = vunpack.c.l.b16 %v83
  %v433 = vunpack.c.l.b16 %v84
  %v434 = vunpack.c.l.b16 %v85
  %v435 = vunpack.c.l.b16 %v86
  %v436 = vunpack.c.l.b16 %v87
  %v437 = vunpack.c.l.b16 %v88
  %v438 = vunpack.c.l.b16 %v89
  %v439 = vunpack.c.l.b16 %v90
  %v440 = vunpack.c.l.b16 %v91
  %v441 = vunpack.c.l.b16 %v92
  %v442 = vunpack.c.l.b16 %v93
  %v443 = vunpack.c.l.b16 %v94
  %v444 = vunpack.c.l.b16 %v95
  %v445 = vunpack.c.l.b16 %v96
  %v446 = vunpack.c.l.b16 %v97
  %v447 = vunpack.c.l.b16 %v98
  %v448 = vunpack.c.l.b16 %v99
  %v449 = vunpack.c.l.b16 %v100
  %v450 = vunpack.c.l.b16 %v101
  %v451 = vunpack.c.l.b16 %v102
  %v452 = vunpack.c.l.b16 %v103
  %v453 = vunpack.c.l.b16 %v104
  %v454 = vunpack.c.l.b16 %v105
  %v455 = vunpack.c.l.b16 %v106
  %v456 = vunpack.c.l.b16 %v107
  %v457 = vunpack.c.l.b16 %v108
  %v458 = vunpack.c.l.b16 %v109
  %v459 = vunpack.c.l.b16 %v110
  %v460 = vunpack.c.l.b16 %v111
  %v461 = vunpack.c.l.b16 %v112
  %v462 = vunpack.c.l.b16 %v113
  %v463 = vunpack.c.l.b16 %v114
  %v464 = vunpack.c.l.b16 %v115
  %v465 = vunpack.c.l.b16 %v116
  %v466 = vunpack.c.l.b16 %v117
  %v467 = vunpack.c.l.b16 %v118
  %v468 = vunpack.c.l.b16 %v119
  %v469 = vunpack.c.l.b16 %v120
  %v470 = vpack.c.b16 %v407, %v406
  %v471 = vpack.c.b16 %v409, %v408
  %v472 = vpack.c.b16 %v411, %v410
  %v473 = vpack.c.b16 %v413, %v412
  %v474 = vpack.c.b16 %v415, %v414
  %v475 = vpack.c.b16 %v417, %v416
  %v476 = vpack.c.b16 %v419, %v418
  %v477 = vpack.c.b16 %v421, %v420
  %v478 = vpack.c.b16 %v423, %v422
  %v479 = vpack.c.b16 %v425, %v424
  %v480 = vpack.c.b16 %v427, %v426
  %v481 = vpack.c.b16 %v429, %v428
  %v482 = vpack.c.b16 %v431, %v430
  %v483 = vpack.c.b16 %v433, %v432
  %v484 = vpack.c.b16 %v435, %v434
  %v485 = vpack.c.b16 %v437, %v436
  %v486 = vpack.c.b16 %v439, %v438
  %v487 = vpack.c.b16 %v441, %v440
  %v488 = vpack.c.b16 %v443, %v442
  %v489 = vpack.c.b16 %v445, %v444
  %v490 = vpack.c.b16 %v447, %v446
  %v491 = vpack.c.b16 %v449, %v448
  %v492 = vpack.c.b16 %v451, %v450
  %v493 = vpack.c.b16 %v453, %v452
  %v494 = vpack.c.b16 %v455, %v454
  %v495 = vpack.c.b16 %v457, %v456
  %v496 = vpack.c.b16 %v459, %v458
  %v497 = vpack.c.b16 %v461, %v460
  %v498 = vpack.c.b16 %v463, %v462
  %v499 = vpack.c.b16 %v465, %v464
  %v500 = vpack.c.b16 %v467, %v466
  %v501 = vpack.c.b16 %v469, %v468
  %534 = vmatprep.subr.bf16.mxu0 0
  %535 = vmatpush1.bf16.msra.mxu0 %v477
  %536 = vmatprep.subr.bf16.mxu0 0
  %537 = vmatpush1.bf16.msra.mxu0 %v476
  %538 = vmatprep.subr.bf16.mxu0 0
  %539 = vmatpush1.bf16.msra.mxu0 %v475
  %540 = vmatprep.subr.bf16.mxu0 0
  %541 = vmatpush1.bf16.msra.mxu0 %v474
  %542 = vmatprep.subr.bf16.mxu0 0
  %543 = vmatpush1.bf16.msra.mxu0 %v473
  %544 = vmatprep.subr.bf16.mxu0 0
  %545 = vmatpush1.bf16.msra.mxu0 %v472
  %546 = vmatprep.subr.bf16.mxu0 0
  %547 = vmatpush1.bf16.msra.mxu0 %v471
  %548 = vmatprep.subr.bf16.mxu0 0
  %549 = vmatpush1.bf16.msra.mxu0 %v470
  %550 = vmatprep.subr.bf16.mxu0 0
  %551 = vmatpush2.bf16.msra.mxu0 %v485
  %552 = vmatprep.subr.bf16.mxu0 0
  %553 = vmatpush2.bf16.msra.mxu0 %v484
  %554 = vmatprep.subr.bf16.mxu0 0
  %555 = vmatpush2.bf16.msra.mxu0 %v483
  %556 = vmatprep.subr.bf16.mxu0 0
  %557 = vmatpush2.bf16.msra.mxu0 %v482
  %558 = vmatprep.subr.bf16.mxu0 0
  %559 = vmatpush2.bf16.msra.mxu0 %v481
  %560 = vmatprep.subr.bf16.mxu0 0
  %561 = vmatpush2.bf16.msra.mxu0 %v480
  %562 = vmatprep.subr.bf16.mxu0 0
  %563 = vmatpush2.bf16.msra.mxu0 %v479
  %564 = vmatprep.subr.bf16.mxu0 0
  %565 = vmatpush2.bf16.msra.mxu0 %v478
  %566 = vmatprep.mubr.bf16.mxu0 %v255
  %567 = vmatmul.mubr.bf16.gmra.mxu0 %v254
  %v568 = vpop.f32.mrf.mxu0
  %v569 = vadd.f32 %v126, %v568
  %v570 = vpop.f32.mrf.mxu0
  %v571 = vpop.f32.mrf.mxu0
  %v572 = vadd.f32 %v126, %v571
  %v573 = vpop.f32.mrf.mxu0
  %574 = vmatprep.mubr.bf16.mxu0 %v259
  %575 = vmatmul.mubr.bf16.gmra.mxu0 %v258
  %v576 = vpop.f32.mrf.mxu0
  %v577 = vadd.f32 %v126, %v576
  %v578 = vpop.f32.mrf.mxu0
  %v579 = vpop.f32.mrf.mxu0
  %v580 = vadd.f32 %v126, %v579
  %v581 = vpop.f32.mrf.mxu0
  %582 = vmatprep.mubr.bf16.mxu0 %v263
  %583 = vmatmul.mubr.bf16.gmra.mxu0 %v262
  %v584 = vpop.f32.mrf.mxu0
  %v585 = vadd.f32 %v126, %v584
  %v586 = vpop.f32.mrf.mxu0
  %v587 = vpop.f32.mrf.mxu0
  %v588 = vadd.f32 %v126, %v587
  %v589 = vpop.f32.mrf.mxu0
  %590 = vmatprep.mubr.bf16.mxu0 %v267
  %591 = vmatmul.mubr.bf16.gmra.mxu0 %v266
  %v592 = vpop.f32.mrf.mxu0
  %v593 = vadd.f32 %v126, %v592
  %v594 = vpop.f32.mrf.mxu0
  %v595 = vpop.f32.mrf.mxu0
  %v596 = vadd.f32 %v126, %v595
  %v597 = vpop.f32.mrf.mxu0
  %598 = vmatprep.mubr.bf16.mxu0 %v271
  %599 = vmatmul.mubr.bf16.gmra.mxu0 %v270
  %v600 = vpop.f32.mrf.mxu0
  %v601 = vadd.f32 %v126, %v600
  %v602 = vpop.f32.mrf.mxu0
  %v603 = vpop.f32.mrf.mxu0
  %v604 = vadd.f32 %v126, %v603
  %v605 = vpop.f32.mrf.mxu0
  %606 = vmatprep.mubr.bf16.mxu0 %v275
  %607 = vmatmul.mubr.bf16.gmra.mxu0 %v274
  %v608 = vpop.f32.mrf.mxu0
  %v609 = vadd.f32 %v126, %v608
  %v610 = vpop.f32.mrf.mxu0
  %v611 = vpop.f32.mrf.mxu0
  %v612 = vadd.f32 %v126, %v611
  %v613 = vpop.f32.mrf.mxu0
  %614 = vmatprep.mubr.bf16.mxu0 %v279
  %615 = vmatmul.mubr.bf16.gmra.mxu0 %v278
  %v616 = vpop.f32.mrf.mxu0
  %v617 = vadd.f32 %v126, %v616
  %v618 = vpop.f32.mrf.mxu0
  %v619 = vpop.f32.mrf.mxu0
  %v620 = vadd.f32 %v126, %v619
  %v621 = vpop.f32.mrf.mxu0
  %622 = vmatprep.mubr.bf16.mxu0 %v283
  %623 = vmatmul.mubr.bf16.gmra.mxu0 %v282
  %v624 = vpop.f32.mrf.mxu0
  %v625 = vadd.f32 %v126, %v624
  %v626 = vpop.f32.mrf.mxu0
  %v627 = vpop.f32.mrf.mxu0
  %v628 = vadd.f32 %v126, %v627
  %v629 = vpop.f32.mrf.mxu0
  %630 = vmatprep.mubr.bf16.mxu0 %v287
  %631 = vmatmul.mubr.bf16.gmra.mxu0 %v286
  %v632 = vpop.f32.mrf.mxu0
  %v633 = vadd.f32 %v126, %v632
  %v634 = vpop.f32.mrf.mxu0
  %v635 = vpop.f32.mrf.mxu0
  %v636 = vadd.f32 %v126, %v635
  %v637 = vpop.f32.mrf.mxu0
  %638 = vmatprep.mubr.bf16.mxu0 %v291
  %639 = vmatmul.mubr.bf16.gmra.mxu0 %v290
  %v640 = vpop.f32.mrf.mxu0
  %v641 = vadd.f32 %v126, %v640
  %v642 = vpop.f32.mrf.mxu0
  %v643 = vpop.f32.mrf.mxu0
  %v644 = vadd.f32 %v126, %v643
  %v645 = vpop.f32.mrf.mxu0
  %646 = vmatprep.mubr.bf16.mxu0 %v295
  %647 = vmatmul.mubr.bf16.gmra.mxu0 %v294
  %v648 = vpop.f32.mrf.mxu0
  %v649 = vadd.f32 %v126, %v648
  %v650 = vpop.f32.mrf.mxu0
  %v651 = vpop.f32.mrf.mxu0
  %v652 = vpop.f32.mrf.mxu0
  %653 = vdwg.mxu0
  %654 = vmatprep.subr.bf16.mxu0 0
  %655 = vmatpush1.bf16.msra.mxu0 %v493
  %656 = vmatprep.subr.bf16.mxu0 0
  %657 = vmatpush1.bf16.msra.mxu0 %v492
  %658 = vmatprep.subr.bf16.mxu0 0
  %659 = vmatpush1.bf16.msra.mxu0 %v491
  %660 = vmatprep.subr.bf16.mxu0 0
  %661 = vmatpush1.bf16.msra.mxu0 %v490
  %662 = vmatprep.subr.bf16.mxu0 0
  %663 = vmatpush1.bf16.msra.mxu0 %v489
  %664 = vmatprep.subr.bf16.mxu0 0
  %665 = vmatpush1.bf16.msra.mxu0 %v488
  %666 = vmatprep.subr.bf16.mxu0 0
  %667 = vmatpush1.bf16.msra.mxu0 %v487
  %668 = vmatprep.subr.bf16.mxu0 0
  %669 = vmatpush1.bf16.msra.mxu0 %v486
  %670 = vmatprep.subr.bf16.mxu0 0
  %671 = vmatpush2.bf16.msra.mxu0 %v501
  %672 = vmatprep.subr.bf16.mxu0 0
  %673 = vmatpush2.bf16.msra.mxu0 %v500
  %674 = vmatprep.subr.bf16.mxu0 0
  %675 = vmatpush2.bf16.msra.mxu0 %v499
  %676 = vmatprep.subr.bf16.mxu0 0
  %677 = vmatpush2.bf16.msra.mxu0 %v498
  %678 = vmatprep.subr.bf16.mxu0 0
  %679 = vmatpush2.bf16.msra.mxu0 %v497
  %680 = vmatprep.subr.bf16.mxu0 0
  %681 = vmatpush2.bf16.msra.mxu0 %v496
  %682 = vmatprep.subr.bf16.mxu0 0
  %683 = vmatpush2.bf16.msra.mxu0 %v495
  %684 = vmatprep.subr.bf16.mxu0 0
  %685 = vmatpush2.bf16.msra.mxu0 %v494
  %686 = vmatprep.mubr.bf16.mxu0 %v257
  %687 = vmatmul.mubr.bf16.gmra.mxu0 %v256
  %v688 = vpop.f32.mrf.mxu0
  %v689 = vadd.f32 %v569, %v688
  %v690 = vpop.f32.mrf.mxu0
  %v691 = vpop.f32.mrf.mxu0
  %v692 = vadd.f32 %v572, %v691
  %v693 = vpop.f32.mrf.mxu0
  %694 = vmatprep.mubr.bf16.mxu0 %v261
  %695 = vmatmul.mubr.bf16.gmra.mxu0 %v260
  %v696 = vpop.f32.mrf.mxu0
  %v697 = vadd.f32 %v577, %v696
  %v698 = vpop.f32.mrf.mxu0
  %v699 = vpop.f32.mrf.mxu0
  %v700 = vadd.f32 %v580, %v699
  %v701 = vpop.f32.mrf.mxu0
  %702 = vmatprep.mubr.bf16.mxu0 %v265
  %703 = vmatmul.mubr.bf16.gmra.mxu0 %v264
  %v704 = vpop.f32.mrf.mxu0
  %v705 = vadd.f32 %v585, %v704
  %v706 = vpop.f32.mrf.mxu0
  %v707 = vpop.f32.mrf.mxu0
  %v708 = vadd.f32 %v588, %v707
  %v709 = vpop.f32.mrf.mxu0
  %710 = vmatprep.mubr.bf16.mxu0 %v269
  %711 = vmatmul.mubr.bf16.gmra.mxu0 %v268
  %v712 = vpop.f32.mrf.mxu0
  %v713 = vadd.f32 %v593, %v712
  %v714 = vpop.f32.mrf.mxu0
  %v715 = vpop.f32.mrf.mxu0
  %v716 = vadd.f32 %v596, %v715
  %v717 = vpop.f32.mrf.mxu0
  %718 = vmatprep.mubr.bf16.mxu0 %v273
  %719 = vmatmul.mubr.bf16.gmra.mxu0 %v272
  %v720 = vpop.f32.mrf.mxu0
  %v721 = vadd.f32 %v601, %v720
  %v722 = vpop.f32.mrf.mxu0
  %v723 = vpop.f32.mrf.mxu0
  %v724 = vadd.f32 %v604, %v723
  %v725 = vpop.f32.mrf.mxu0
  %726 = vmatprep.mubr.bf16.mxu0 %v277
  %727 = vmatmul.mubr.bf16.gmra.mxu0 %v276
  %v728 = vpop.f32.mrf.mxu0
  %v729 = vadd.f32 %v609, %v728
  %v730 = vpop.f32.mrf.mxu0
  %v731 = vpop.f32.mrf.mxu0
  %v732 = vadd.f32 %v612, %v731
  %v733 = vpop.f32.mrf.mxu0
  %734 = vmatprep.mubr.bf16.mxu0 %v281
  %735 = vmatmul.mubr.bf16.gmra.mxu0 %v280
  %v736 = vpop.f32.mrf.mxu0
  %v737 = vadd.f32 %v617, %v736
  %v738 = vpop.f32.mrf.mxu0
  %v739 = vpop.f32.mrf.mxu0
  %v740 = vadd.f32 %v620, %v739
  %v741 = vpop.f32.mrf.mxu0
  %742 = vmatprep.mubr.bf16.mxu0 %v285
  %743 = vmatmul.mubr.bf16.gmra.mxu0 %v284
  %v744 = vpop.f32.mrf.mxu0
  %v745 = vadd.f32 %v625, %v744
  %v746 = vpop.f32.mrf.mxu0
  %v747 = vpop.f32.mrf.mxu0
  %v748 = vadd.f32 %v628, %v747
  %v749 = vpop.f32.mrf.mxu0
  %750 = vmatprep.mubr.bf16.mxu0 %v289
  %751 = vmatmul.mubr.bf16.gmra.mxu0 %v288
  %v752 = vpop.f32.mrf.mxu0
  %v753 = vadd.f32 %v633, %v752
  %v754 = vpop.f32.mrf.mxu0
  %v755 = vpop.f32.mrf.mxu0
  %v756 = vadd.f32 %v636, %v755
  %v757 = vpop.f32.mrf.mxu0
  %758 = vmatprep.mubr.bf16.mxu0 %v293
  %759 = vmatmul.mubr.bf16.gmra.mxu0 %v292
  %v760 = vpop.f32.mrf.mxu0
  %v761 = vadd.f32 %v641, %v760
  %v762 = vpop.f32.mrf.mxu0
  %v763 = vpop.f32.mrf.mxu0
  %v764 = vadd.f32 %v644, %v763
  %v765 = vpop.f32.mrf.mxu0
  %766 = vmatprep.mubr.bf16.mxu0 %v297
  %767 = vmatmul.mubr.bf16.gmra.mxu0 %v296
  %v768 = vpop.f32.mrf.mxu0
  %v769 = vadd.f32 %v649, %v768
  %v770 = vpop.f32.mrf.mxu0
  %v771 = vpop.f32.mrf.mxu0
  %v772 = vpop.f32.mrf.mxu0
  %773 = vdwg.mxu0
  %v774 = vmax.f32 %v689, 0.0
  %v775 = vmax.f32 %v692, 0.0
  %v776 = vmax.f32 %v697, 0.0
  %v777 = vmax.f32 %v700, 0.0
  %v778 = vmax.f32 %v705, 0.0
  %v779 = vmax.f32 %v708, 0.0
  %v780 = vmax.f32 %v713, 0.0
  %v781 = vmax.f32 %v716, 0.0
  %v782 = vmax.f32 %v721, 0.0
  %v783 = vmax.f32 %v724, 0.0
  %v784 = vmax.f32 %v729, 0.0
  %v785 = vmax.f32 %v732, 0.0
  %v786 = vmax.f32 %v737, 0.0
  %v787 = vmax.f32 %v740, 0.0
  %v788 = vmax.f32 %v745, 0.0
  %v789 = vmax.f32 %v748, 0.0
  %v790 = vmax.f32 %v753, 0.0
  %v791 = vmax.f32 %v756, 0.0
  %v792 = vmax.f32 %v761, 0.0
  %v793 = vmax.f32 %v764, 0.0
  %v794 = vmax.f32 %v769, 0.0
  %v795 = vpack.c.bf16 %v775, %v774
  %v796 = vpack.c.bf16 %v777, %v776
  %v797 = vpack.c.bf16 %v779, %v778
  %v798 = vpack.c.bf16 %v781, %v780
  %v799 = vpack.c.bf16 %v783, %v782
  %v800 = vpack.c.bf16 %v785, %v784
  %v801 = vpack.c.bf16 %v787, %v786
  %v802 = vpack.c.bf16 %v789, %v788
  %v803 = vpack.c.bf16 %v791, %v790
  %v804 = vpack.c.bf16 %v793, %v792
  %v805 = vpack.c.bf16 %v794, %v794
  %v817 = vunpack.c.l.b16 %v795
  %v818 = vunpack.c.h.b16 %v795
  %v819 = vunpack.c.l.b16 %v796
  %v820 = vunpack.c.h.b16 %v796
  %v821 = vunpack.c.l.b16 %v797
  %v822 = vunpack.c.h.b16 %v797
  %v823 = vunpack.c.l.b16 %v798
  %v824 = vunpack.c.h.b16 %v798
  %v825 = vunpack.c.l.b16 %v799
  %v826 = vunpack.c.h.b16 %v799
  %v827 = vunpack.c.l.b16 %v800
  %v828 = vunpack.c.h.b16 %v800
  %v829 = vunpack.c.l.b16 %v801
  %v830 = vunpack.c.h.b16 %v801
  %v831 = vunpack.c.l.b16 %v802
  %v832 = vunpack.c.h.b16 %v802
  %v833 = vunpack.c.l.b16 %v803
  %v834 = vunpack.c.h.b16 %v803
  %v835 = vunpack.c.l.b16 %v804
  %v836 = vunpack.c.h.b16 %v804
  %v837 = vunpack.c.l.b16 %v805
  %v838 = vpack.c.b16 %v817, %v817
  %v839 = vpack.c.b16 %v818, %v818
  %v840 = vpack.c.b16 %v819, %v819
  %v841 = vpack.c.b16 %v820, %v820
  %v842 = vpack.c.b16 %v821, %v821
  %v843 = vpack.c.b16 %v822, %v822
  %v844 = vpack.c.b16 %v823, %v823
  %v845 = vpack.c.b16 %v824, %v824
  %v846 = vpack.c.b16 %v825, %v825
  %v847 = vpack.c.b16 %v826, %v826
  %v848 = vpack.c.b16 %v827, %v827
  %v849 = vpack.c.b16 %v828, %v828
  %v850 = vpack.c.b16 %v829, %v829
  %v851 = vpack.c.b16 %v830, %v830
  %v852 = vpack.c.b16 %v831, %v831
  %v853 = vpack.c.b16 %v832, %v832
  %v854 = vpack.c.b16 %v833, %v833
  %v855 = vpack.c.b16 %v834, %v834
  %v856 = vpack.c.b16 %v835, %v835
  %v857 = vpack.c.b16 %v836, %v836
  %v858 = vpack.c.b16 %v837, %v837
  %880 = vst [vmem:[%s3] sm:$0xf] %v838
  %881 = vst [vmem:[%s3 + $0x4] sm:$0xf] %v839
  %882 = vst [vmem:[%s3 + $0x8] sm:$0xf] %v840
  %883 = vst [vmem:[%s3 + $0xc] sm:$0xf] %v841
  %884 = vst [vmem:[%s3 + $0x10] sm:$0xf] %v842
  %885 = vst [vmem:[%s3 + $0x14] sm:$0xf] %v843
  %886 = vst [vmem:[%s3 + $0x18] sm:$0xf] %v844
  %887 = vst [vmem:[%s3 + $0x1c] sm:$0xf] %v845
  %888 = vst [vmem:[%s3 + $0x20] sm:$0xf] %v846
  %889 = vst [vmem:[%s3 + $0x24] sm:$0xf] %v847
  %890 = vst [vmem:[%s3 + $0x28] sm:$0xf] %v848
  %891 = vst [vmem:[%s3 + $0x2c] sm:$0xf] %v849
  %892 = vst [vmem:[%s3 + $0x30] sm:$0xf] %v850
  %893 = vst [vmem:[%s3 + $0x34] sm:$0xf] %v851
  %894 = vst [vmem:[%s3 + $0x38] sm:$0xf] %v852
  %895 = vst [vmem:[%s3 + $0x3c] sm:$0xf] %v853
  %896 = vst [vmem:[%s3 + $0x40] sm:$0xf] %v854
  %897 = vst [vmem:[%s3 + $0x44] sm:$0xf] %v855
  %898 = vst [vmem:[%s3 + $0x48] sm:$0xf] %v856
  %899 = vst [vmem:[%s3 + $0x4c] sm:$0xf] %v857
  %900 = vst [vmem:[%s3 + $0x50] sm:$0x1] %v858
  // Predicated region
  $region14: #{atari_model_forward.5} parent=0 // pred_check
    _
  $region15: #{atari_model_forward.5} parent=0 // pred_check_branch
    %902 = sbr.rel (0) target = $region17
  $region16: #{atari_model_forward.5} parent=0 // pred_region
    _
  $region17: #{atari_model_forward.5} parent=0 // pred_fallthru
    _
  // Predicated region
  $region18: #{atari_model_forward.5} parent=0 // pred_check
    _
  $region19: #{atari_model_forward.5} parent=0 // pred_check_branch
    %904 = sbr.rel (0) target = $region21
  $region20: #{atari_model_forward.5} parent=0 // pred_region
    _
  $region21: #{atari_model_forward.5} parent=0 // pred_fallthru
    _

// kernel: atari_model_forward.6
$region0: #{atari_model_forward.6}
  #allocation0 [shape = 'u32[]', space=smem, size = 0x4, offset = 0x4, fixed_abs, tag = 'smem constant byte address 0x4 - core index']
  #allocation1 [shape = 'u32[144,128]{1,0:T(1,128)}', space=vmem, size = 0x12000, scoped, tag = 'internal scratch']
  %s0 = inlined_call_operand.vmem [shape: bf16[98,640], index: 0, kind: input, shape index: {}]
  %s1 = inlined_call_operand.vmem [shape: bf16[640,128], index: 1, kind: input, shape index: {}]
  %s2 = inlined_call_operand.vmem [shape: f32[1,128], index: 2, kind: input, shape index: {}]
  %s3 = inlined_call_operand.vmem [shape: bf16[98,128], index: 3, kind: output, shape index: {}]
  %s4 = sld [smem:[#allocation0]]
  $region22: #{atari_model_forward.6} parent=0
    _
  %s6 = ssub.s32 1, %s4
  %s7 = scalar_select 0, %s6, %s4
  // Predicated region
  $region2: #{atari_model_forward.6} parent=0 // pred_check
    _
  $region3: #{atari_model_forward.6} parent=0 // pred_check_branch
    %9 = sbr.rel (0) target = $region5
  $region4: #{atari_model_forward.6} parent=0 // pred_region
    _
  $region5: #{atari_model_forward.6} parent=0 // pred_fallthru
    _
  // Predicated region
  $region6: #{atari_model_forward.6} parent=0 // pred_check
    _
  $region7: #{atari_model_forward.6} parent=0 // pred_check_branch
    %11 = sbr.rel (0) target = $region9
  $region8: #{atari_model_forward.6} parent=0 // pred_region
    _
  $region9: #{atari_model_forward.6} parent=0 // pred_fallthru
    _
  // Predicated region
  $region10: #{atari_model_forward.6} parent=0 // pred_check
    _
  $region11: #{atari_model_forward.6} parent=0 // pred_check_branch
    %13 = sbr.rel (0) target = $region13
  $region12: #{atari_model_forward.6} parent=0 // pred_region
    _
  $region13: #{atari_model_forward.6} parent=0 // pred_fallthru
    _
  %v15 = vld [vmem:[%s0] sm:$0xff]
  %v16 = vld [vmem:[%s0 + $0x8] sm:$0xff]
  %v17 = vld [vmem:[%s0 + $0x10] sm:$0xf]
  %v18 = vld [vmem:[%s0 + $0x14] sm:$0xff]
  %v19 = vld [vmem:[%s0 + $0x1c] sm:$0xff]
  %v20 = vld [vmem:[%s0 + $0x24] sm:$0xf]
  %v21 = vld [vmem:[%s0 + $0x28] sm:$0xff]
  %v22 = vld [vmem:[%s0 + $0x30] sm:$0xff]
  %v23 = vld [vmem:[%s0 + $0x38] sm:$0xf]
  %v24 = vld [vmem:[%s0 + $0x3c] sm:$0xff]
  %v25 = vld [vmem:[%s0 + $0x44] sm:$0xff]
  %v26 = vld [vmem:[%s0 + $0x4c] sm:$0xf]
  %v27 = vld [vmem:[%s0 + $0x50] sm:$0xff]
  %v28 = vld [vmem:[%s0 + $0x58] sm:$0xff]
  %v29 = vld [vmem:[%s0 + $0x60] sm:$0xf]
  %v30 = vld [vmem:[%s0 + $0x64] sm:$0xff]
  %v31 = vld [vmem:[%s0 + $0x6c] sm:$0xff]
  %v32 = vld [vmem:[%s0 + $0x74] sm:$0xf]
  %v33 = vld [vmem:[%s0 + $0x78] sm:$0xff]
  %v34 = vld [vmem:[%s0 + $0x80] sm:$0xff]
  %v35 = vld [vmem:[%s0 + $0x88] sm:$0xf]
  %v36 = vld [vmem:[%s0 + $0x8c] sm:$0xff]
  %v37 = vld [vmem:[%s0 + $0x94] sm:$0xff]
  %v38 = vld [vmem:[%s0 + $0x9c] sm:$0xf]
  %v39 = vld [vmem:[%s0 + $0xa0] sm:$0xff]
  %v40 = vld [vmem:[%s0 + $0xa8] sm:$0xff]
  %v41 = vld [vmem:[%s0 + $0xb0] sm:$0xf]
  %v42 = vld [vmem:[%s0 + $0xb4] sm:$0xff]
  %v43 = vld [vmem:[%s0 + $0xbc] sm:$0xff]
  %v44 = vld [vmem:[%s0 + $0xc4] sm:$0xf]
  %v45 = vld [vmem:[%s0 + $0xc8] sm:$0xff]
  %v46 = vld [vmem:[%s0 + $0xd0] sm:$0xff]
  %v47 = vld [vmem:[%s0 + $0xd8] sm:$0xf]
  %v48 = vld [vmem:[%s0 + $0xdc] sm:$0xff]
  %v49 = vld [vmem:[%s0 + $0xe4] sm:$0xff]
  %v50 = vld [vmem:[%s0 + $0xec] sm:$0xf]
  %v51 = vld [vmem:[%s0 + $0xf0] sm:$0x11]
  %v52 = vld [vmem:[%s0 + $0xf8] sm:$0x11]
  %v53 = vld [vmem:[%s0 + $0x100] sm:$0x1]
  %v54 = vld [vmem:[%s1] sm:$0xf]
  %v55 = vld [vmem:[%s1 + $0x4] sm:$0xf]
  %v56 = vld [vmem:[%s1 + $0x8] sm:$0xf]
  %v57 = vld [vmem:[%s1 + $0xc] sm:$0xf]
  %v58 = vld [vmem:[%s1 + $0x10] sm:$0xf]
  %v59 = vld [vmem:[%s1 + $0x14] sm:$0xf]
  %v60 = vld [vmem:[%s1 + $0x18] sm:$0xf]
  %v61 = vld [vmem:[%s1 + $0x1c] sm:$0xf]
  %v62 = vld [vmem:[%s1 + $0x20] sm:$0xf]
  %v63 = vld [vmem:[%s1 + $0x24] sm:$0xf]
  %v64 = vld [vmem:[%s1 + $0x28] sm:$0xf]
  %v65 = vld [vmem:[%s1 + $0x2c] sm:$0xf]
  %v66 = vld [vmem:[%s1 + $0x30] sm:$0xf]
  %v67 = vld [vmem:[%s1 + $0x34] sm:$0xf]
  %v68 = vld [vmem:[%s1 + $0x38] sm:$0xf]
  %v69 = vld [vmem:[%s1 + $0x3c] sm:$0xf]
  %v70 = vld [vmem:[%s1 + $0x40] sm:$0xf]
  %v71 = vld [vmem:[%s1 + $0x44] sm:$0xf]
  %v72 = vld [vmem:[%s1 + $0x48] sm:$0xf]
  %v73 = vld [vmem:[%s1 + $0x4c] sm:$0xf]
  %v74 = vld [vmem:[%s1 + $0x50] sm:$0xf]
  %v75 = vld [vmem:[%s1 + $0x54] sm:$0xf]
  %v76 = vld [vmem:[%s1 + $0x58] sm:$0xf]
  %v77 = vld [vmem:[%s1 + $0x5c] sm:$0xf]
  %v78 = vld [vmem:[%s1 + $0x60] sm:$0xf]
  %v79 = vld [vmem:[%s1 + $0x64] sm:$0xf]
  %v80 = vld [vmem:[%s1 + $0x68] sm:$0xf]
  %v81 = vld [vmem:[%s1 + $0x6c] sm:$0xf]
  %v82 = vld [vmem:[%s1 + $0x70] sm:$0xf]
  %v83 = vld [vmem:[%s1 + $0x74] sm:$0xf]
  %v84 = vld [vmem:[%s1 + $0x78] sm:$0xf]
  %v85 = vld [vmem:[%s1 + $0x7c] sm:$0xf]
  %v86 = vld [vmem:[%s1 + $0x80] sm:$0xf]
  %v87 = vld [vmem:[%s1 + $0x84] sm:$0xf]
  %v88 = vld [vmem:[%s1 + $0x88] sm:$0xf]
  %v89 = vld [vmem:[%s1 + $0x8c] sm:$0xf]
  %v90 = vld [vmem:[%s1 + $0x90] sm:$0xf]
  %v91 = vld [vmem:[%s1 + $0x94] sm:$0xf]
  %v92 = vld [vmem:[%s1 + $0x98] sm:$0xf]
  %v93 = vld [vmem:[%s1 + $0x9c] sm:$0xf]
  %v94 = vld [vmem:[%s1 + $0xa0] sm:$0xf]
  %v95 = vld [vmem:[%s1 + $0xa4] sm:$0xf]
  %v96 = vld [vmem:[%s1 + $0xa8] sm:$0xf]
  %v97 = vld [vmem:[%s1 + $0xac] sm:$0xf]
  %v98 = vld [vmem:[%s1 + $0xb0] sm:$0xf]
  %v99 = vld [vmem:[%s1 + $0xb4] sm:$0xf]
  %v100 = vld [vmem:[%s1 + $0xb8] sm:$0xf]
  %v101 = vld [vmem:[%s1 + $0xbc] sm:$0xf]
  %v102 = vld [vmem:[%s1 + $0xc0] sm:$0xf]
  %v103 = vld [vmem:[%s1 + $0xc4] sm:$0xf]
  %v104 = vld [vmem:[%s1 + $0xc8] sm:$0xf]
  %v105 = vld [vmem:[%s1 + $0xcc] sm:$0xf]
  %v106 = vld [vmem:[%s1 + $0xd0] sm:$0xf]
  %v107 = vld [vmem:[%s1 + $0xd4] sm:$0xf]
  %v108 = vld [vmem:[%s1 + $0xd8] sm:$0xf]
  %v109 = vld [vmem:[%s1 + $0xdc] sm:$0xf]
  %v110 = vld [vmem:[%s1 + $0xe0] sm:$0xf]
  %v111 = vld [vmem:[%s1 + $0xe4] sm:$0xf]
  %v112 = vld [vmem:[%s1 + $0xe8] sm:$0xf]
  %v113 = vld [vmem:[%s1 + $0xec] sm:$0xf]
  %v114 = vld [vmem:[%s1 + $0xf0] sm:$0xf]
  %v115 = vld [vmem:[%s1 + $0xf4] sm:$0xf]
  %v116 = vld [vmem:[%s1 + $0xf8] sm:$0xf]
  %v117 = vld [vmem:[%s1 + $0xfc] sm:$0xf]
  %v118 = vld [vmem:[%s1 + $0x100] sm:$0xf]
  %v119 = vld [vmem:[%s1 + $0x104] sm:$0xf]
  %v120 = vld [vmem:[%s1 + $0x108] sm:$0xf]
  %v121 = vld [vmem:[%s1 + $0x10c] sm:$0xf]
  %v122 = vld [vmem:[%s1 + $0x110] sm:$0xf]
  %v123 = vld [vmem:[%s1 + $0x114] sm:$0xf]
  %v124 = vld [vmem:[%s1 + $0x118] sm:$0xf]
  %v125 = vld [vmem:[%s1 + $0x11c] sm:$0xf]
  %v126 = vld [vmem:[%s1 + $0x120] sm:$0xf]
  %v127 = vld [vmem:[%s1 + $0x124] sm:$0xf]
  %v128 = vld [vmem:[%s1 + $0x128] sm:$0xf]
  %v129 = vld [vmem:[%s1 + $0x12c] sm:$0xf]
  %v130 = vld [vmem:[%s1 + $0x130] sm:$0xf]
  %v131 = vld [vmem:[%s1 + $0x134] sm:$0xf]
  %v132 = vld [vmem:[%s1 + $0x138] sm:$0xf]
  %v133 = vld [vmem:[%s1 + $0x13c] sm:$0xf]
  %v134 = vld [vmem:[%s2] sm:$0x1]
  %v136 = vlaneseq
  %v137 = vshrl.u32 %v136, 7
  %v138 = vsub.s32 0, %v137
  %v139 = vrot.slane %v134, %v138
  %v180 = vunpack.c.l.b16 %v15
  %v181 = vunpack.c.h.b16 %v15
  %v182 = vunpack.c.l.b16 %v16
  %v183 = vunpack.c.h.b16 %v16
  %v184 = vunpack.c.l.b16 %v17
  %v185 = vunpack.c.l.b16 %v18
  %v186 = vunpack.c.h.b16 %v18
  %v187 = vunpack.c.l.b16 %v19
  %v188 = vunpack.c.h.b16 %v19
  %v189 = vunpack.c.l.b16 %v20
  %v190 = vunpack.c.l.b16 %v21
  %v191 = vunpack.c.h.b16 %v21
  %v192 = vunpack.c.l.b16 %v22
  %v193 = vunpack.c.h.b16 %v22
  %v194 = vunpack.c.l.b16 %v23
  %v195 = vunpack.c.l.b16 %v24
  %v196 = vunpack.c.h.b16 %v24
  %v197 = vunpack.c.l.b16 %v25
  %v198 = vunpack.c.h.b16 %v25
  %v199 = vunpack.c.l.b16 %v26
  %v200 = vunpack.c.l.b16 %v27
  %v201 = vunpack.c.h.b16 %v27
  %v202 = vunpack.c.l.b16 %v28
  %v203 = vunpack.c.h.b16 %v28
  %v204 = vunpack.c.l.b16 %v29
  %v205 = vunpack.c.l.b16 %v30
  %v206 = vunpack.c.h.b16 %v30
  %v207 = vunpack.c.l.b16 %v31
  %v208 = vunpack.c.h.b16 %v31
  %v209 = vunpack.c.l.b16 %v32
  %v210 = vunpack.c.l.b16 %v33
  %v211 = vunpack.c.h.b16 %v33
  %v212 = vunpack.c.l.b16 %v34
  %v213 = vunpack.c.h.b16 %v34
  %v214 = vunpack.c.l.b16 %v35
  %v215 = vunpack.c.l.b16 %v36
  %v216 = vunpack.c.h.b16 %v36
  %v217 = vunpack.c.l.b16 %v37
  %v218 = vunpack.c.h.b16 %v37
  %v219 = vunpack.c.l.b16 %v38
  %v220 = vunpack.c.l.b16 %v39
  %v221 = vunpack.c.h.b16 %v39
  %v222 = vunpack.c.l.b16 %v40
  %v223 = vunpack.c.h.b16 %v40
  %v224 = vunpack.c.l.b16 %v41
  %v225 = vunpack.c.l.b16 %v42
  %v226 = vunpack.c.h.b16 %v42
  %v227 = vunpack.c.l.b16 %v43
  %v228 = vunpack.c.h.b16 %v43
  %v229 = vunpack.c.l.b16 %v44
  %v230 = vunpack.c.l.b16 %v45
  %v231 = vunpack.c.h.b16 %v45
  %v232 = vunpack.c.l.b16 %v46
  %v233 = vunpack.c.h.b16 %v46
  %v234 = vunpack.c.l.b16 %v47
  %v235 = vunpack.c.l.b16 %v48
  %v236 = vunpack.c.h.b16 %v48
  %v237 = vunpack.c.l.b16 %v49
  %v238 = vunpack.c.h.b16 %v49
  %v239 = vunpack.c.l.b16 %v50
  %v240 = vunpack.c.l.b16 %v51
  %v241 = vunpack.c.h.b16 %v51
  %v242 = vunpack.c.l.b16 %v52
  %v243 = vunpack.c.h.b16 %v52
  %v244 = vunpack.c.l.b16 %v53
  %v245 = vpack.c.b16 %v185, %v180
  %v246 = vpack.c.b16 %v186, %v181
  %v247 = vpack.c.b16 %v187, %v182
  %v248 = vpack.c.b16 %v188, %v183
  %v249 = vpack.c.b16 %v189, %v184
  %v250 = vpack.c.b16 %v195, %v190
  %v251 = vpack.c.b16 %v196, %v191
  %v252 = vpack.c.b16 %v197, %v192
  %v253 = vpack.c.b16 %v198, %v193
  %v254 = vpack.c.b16 %v199, %v194
  %v255 = vpack.c.b16 %v205, %v200
  %v256 = vpack.c.b16 %v206, %v201
  %v257 = vpack.c.b16 %v207, %v202
  %v258 = vpack.c.b16 %v208, %v203
  %v259 = vpack.c.b16 %v209, %v204
  %v260 = vpack.c.b16 %v215, %v210
  %v261 = vpack.c.b16 %v216, %v211
  %v262 = vpack.c.b16 %v217, %v212
  %v263 = vpack.c.b16 %v218, %v213
  %v264 = vpack.c.b16 %v219, %v214
  %v265 = vpack.c.b16 %v225, %v220
  %v266 = vpack.c.b16 %v226, %v221
  %v267 = vpack.c.b16 %v227, %v222
  %v268 = vpack.c.b16 %v228, %v223
  %v269 = vpack.c.b16 %v229, %v224
  %v270 = vpack.c.b16 %v235, %v230
  %v271 = vpack.c.b16 %v236, %v231
  %v272 = vpack.c.b16 %v237, %v232
  %v273 = vpack.c.b16 %v238, %v233
  %v274 = vpack.c.b16 %v239, %v234
  %v275 = vpack.c.b16 %v240, %v240
  %v276 = vpack.c.b16 %v241, %v241
  %v277 = vpack.c.b16 %v242, %v242
  %v278 = vpack.c.b16 %v243, %v243
  %v279 = vpack.c.b16 %v244, %v244
  %v395 = vunpack.c.l.b16 %v54
  %v396 = vunpack.c.l.b16 %v55
  %v397 = vunpack.c.l.b16 %v56
  %v398 = vunpack.c.l.b16 %v57
  %v399 = vunpack.c.l.b16 %v58
  %v400 = vunpack.c.l.b16 %v59
  %v401 = vunpack.c.l.b16 %v60
  %v402 = vunpack.c.l.b16 %v61
  %v403 = vunpack.c.l.b16 %v62
  %v404 = vunpack.c.l.b16 %v63
  %v405 = vunpack.c.l.b16 %v64
  %v406 = vunpack.c.l.b16 %v65
  %v407 = vunpack.c.l.b16 %v66
  %v408 = vunpack.c.l.b16 %v67
  %v409 = vunpack.c.l.b16 %v68
  %v410 = vunpack.c.l.b16 %v69
  %v411 = vunpack.c.l.b16 %v70
  %v412 = vunpack.c.l.b16 %v71
  %v413 = vunpack.c.l.b16 %v72
  %v414 = vunpack.c.l.b16 %v73
  %v415 = vunpack.c.l.b16 %v74
  %v416 = vunpack.c.l.b16 %v75
  %v417 = vunpack.c.l.b16 %v76
  %v418 = vunpack.c.l.b16 %v77
  %v419 = vunpack.c.l.b16 %v78
  %v420 = vunpack.c.l.b16 %v79
  %v421 = vunpack.c.l.b16 %v80
  %v422 = vunpack.c.l.b16 %v81
  %v423 = vunpack.c.l.b16 %v82
  %v424 = vunpack.c.l.b16 %v83
  %v425 = vunpack.c.l.b16 %v84
  %v426 = vunpack.c.l.b16 %v85
  %v427 = vunpack.c.l.b16 %v86
  %v428 = vunpack.c.l.b16 %v87
  %v429 = vunpack.c.l.b16 %v88
  %v430 = vunpack.c.l.b16 %v89
  %v431 = vunpack.c.l.b16 %v90
  %v432 = vunpack.c.l.b16 %v91
  %v433 = vunpack.c.l.b16 %v92
  %v434 = vunpack.c.l.b16 %v93
  %v435 = vunpack.c.l.b16 %v94
  %v436 = vunpack.c.l.b16 %v95
  %v437 = vunpack.c.l.b16 %v96
  %v438 = vunpack.c.l.b16 %v97
  %v439 = vunpack.c.l.b16 %v98
  %v440 = vunpack.c.l.b16 %v99
  %v441 = vunpack.c.l.b16 %v100
  %v442 = vunpack.c.l.b16 %v101
  %v443 = vunpack.c.l.b16 %v102
  %v444 = vunpack.c.l.b16 %v103
  %v445 = vunpack.c.l.b16 %v104
  %v446 = vunpack.c.l.b16 %v105
  %v447 = vunpack.c.l.b16 %v106
  %v448 = vunpack.c.l.b16 %v107
  %v449 = vunpack.c.l.b16 %v108
  %v450 = vunpack.c.l.b16 %v109
  %v451 = vunpack.c.l.b16 %v110
  %v452 = vunpack.c.l.b16 %v111
  %v453 = vunpack.c.l.b16 %v112
  %v454 = vunpack.c.l.b16 %v113
  %v455 = vunpack.c.l.b16 %v114
  %v456 = vunpack.c.l.b16 %v115
  %v457 = vunpack.c.l.b16 %v116
  %v458 = vunpack.c.l.b16 %v117
  %v459 = vunpack.c.l.b16 %v118
  %v460 = vunpack.c.l.b16 %v119
  %v461 = vunpack.c.l.b16 %v120
  %v462 = vunpack.c.l.b16 %v121
  %v463 = vunpack.c.l.b16 %v122
  %v464 = vunpack.c.l.b16 %v123
  %v465 = vunpack.c.l.b16 %v124
  %v466 = vunpack.c.l.b16 %v125
  %v467 = vunpack.c.l.b16 %v126
  %v468 = vunpack.c.l.b16 %v127
  %v469 = vunpack.c.l.b16 %v128
  %v470 = vunpack.c.l.b16 %v129
  %v471 = vunpack.c.l.b16 %v130
  %v472 = vunpack.c.l.b16 %v131
  %v473 = vunpack.c.l.b16 %v132
  %v474 = vunpack.c.l.b16 %v133
  %v475 = vpack.c.b16 %v396, %v395
  %v476 = vpack.c.b16 %v398, %v397
  %v477 = vpack.c.b16 %v400, %v399
  %v478 = vpack.c.b16 %v402, %v401
  %v479 = vpack.c.b16 %v404, %v403
  %v480 = vpack.c.b16 %v406, %v405
  %v481 = vpack.c.b16 %v408, %v407
  %v482 = vpack.c.b16 %v410, %v409
  %v483 = vpack.c.b16 %v412, %v411
  %v484 = vpack.c.b16 %v414, %v413
  %v485 = vpack.c.b16 %v416, %v415
  %v486 = vpack.c.b16 %v418, %v417
  %v487 = vpack.c.b16 %v420, %v419
  %v488 = vpack.c.b16 %v422, %v421
  %v489 = vpack.c.b16 %v424, %v423
  %v490 = vpack.c.b16 %v426, %v425
  %v491 = vpack.c.b16 %v428, %v427
  %v492 = vpack.c.b16 %v430, %v429
  %v493 = vpack.c.b16 %v432, %v431
  %v494 = vpack.c.b16 %v434, %v433
  %v495 = vpack.c.b16 %v436, %v435
  %v496 = vpack.c.b16 %v438, %v437
  %v497 = vpack.c.b16 %v440, %v439
  %v498 = vpack.c.b16 %v442, %v441
  %v499 = vpack.c.b16 %v444, %v443
  %v500 = vpack.c.b16 %v446, %v445
  %v501 = vpack.c.b16 %v448, %v447
  %v502 = vpack.c.b16 %v450, %v449
  %v503 = vpack.c.b16 %v452, %v451
  %v504 = vpack.c.b16 %v454, %v453
  %v505 = vpack.c.b16 %v456, %v455
  %v506 = vpack.c.b16 %v458, %v457
  %v507 = vpack.c.b16 %v460, %v459
  %v508 = vpack.c.b16 %v462, %v461
  %v509 = vpack.c.b16 %v464, %v463
  %v510 = vpack.c.b16 %v466, %v465
  %v511 = vpack.c.b16 %v468, %v467
  %v512 = vpack.c.b16 %v470, %v469
  %v513 = vpack.c.b16 %v472, %v471
  %v514 = vpack.c.b16 %v474, %v473
  %555 = vmatprep.subr.bf16.mxu0 0
  %556 = vmatpush1.bf16.msra.mxu0 %v482
  %557 = vmatprep.subr.bf16.mxu0 0
  %558 = vmatpush1.bf16.msra.mxu0 %v481
  %559 = vmatprep.subr.bf16.mxu0 0
  %560 = vmatpush1.bf16.msra.mxu0 %v480
  %561 = vmatprep.subr.bf16.mxu0 0
  %562 = vmatpush1.bf16.msra.mxu0 %v479
  %563 = vmatprep.subr.bf16.mxu0 0
  %564 = vmatpush1.bf16.msra.mxu0 %v478
  %565 = vmatprep.subr.bf16.mxu0 0
  %566 = vmatpush1.bf16.msra.mxu0 %v477
  %567 = vmatprep.subr.bf16.mxu0 0
  %568 = vmatpush1.bf16.msra.mxu0 %v476
  %569 = vmatprep.subr.bf16.mxu0 0
  %570 = vmatpush1.bf16.msra.mxu0 %v475
  %571 = vmatprep.subr.bf16.mxu0 0
  %572 = vmatpush2.bf16.msra.mxu0 %v490
  %573 = vmatprep.subr.bf16.mxu0 0
  %574 = vmatpush2.bf16.msra.mxu0 %v489
  %575 = vmatprep.subr.bf16.mxu0 0
  %576 = vmatpush2.bf16.msra.mxu0 %v488
  %577 = vmatprep.subr.bf16.mxu0 0
  %578 = vmatpush2.bf16.msra.mxu0 %v487
  %579 = vmatprep.subr.bf16.mxu0 0
  %580 = vmatpush2.bf16.msra.mxu0 %v486
  %581 = vmatprep.subr.bf16.mxu0 0
  %582 = vmatpush2.bf16.msra.mxu0 %v485
  %583 = vmatprep.subr.bf16.mxu0 0
  %584 = vmatpush2.bf16.msra.mxu0 %v484
  %585 = vmatprep.subr.bf16.mxu0 0
  %586 = vmatpush2.bf16.msra.mxu0 %v483
  %587 = vmatprep.mubr.bf16.mxu0 %v246
  %588 = vmatmul.mubr.bf16.gmra.mxu0 %v245
  %v589 = vpop.f32.mrf.mxu0
  %v590 = vadd.f32 %v139, %v589
  %v591 = vpop.f32.mrf.mxu0
  %v592 = vpop.f32.mrf.mxu0
  %v593 = vadd.f32 %v139, %v592
  %v594 = vpop.f32.mrf.mxu0
  %595 = vmatprep.mubr.bf16.mxu0 %v251
  %596 = vmatmul.mubr.bf16.gmra.mxu0 %v250
  %v597 = vpop.f32.mrf.mxu0
  %v598 = vadd.f32 %v139, %v597
  %v599 = vpop.f32.mrf.mxu0
  %v600 = vpop.f32.mrf.mxu0
  %v601 = vadd.f32 %v139, %v600
  %v602 = vpop.f32.mrf.mxu0
  %603 = vmatprep.mubr.bf16.mxu0 %v256
  %604 = vmatmul.mubr.bf16.gmra.mxu0 %v255
  %v605 = vpop.f32.mrf.mxu0
  %v606 = vadd.f32 %v139, %v605
  %v607 = vpop.f32.mrf.mxu0
  %v608 = vpop.f32.mrf.mxu0
  %v609 = vadd.f32 %v139, %v608
  %v610 = vpop.f32.mrf.mxu0
  %611 = vmatprep.mubr.bf16.mxu0 %v261
  %612 = vmatmul.mubr.bf16.gmra.mxu0 %v260
  %v613 = vpop.f32.mrf.mxu0
  %v614 = vadd.f32 %v139, %v613
  %v615 = vpop.f32.mrf.mxu0
  %v616 = vpop.f32.mrf.mxu0
  %v617 = vadd.f32 %v139, %v616
  %v618 = vpop.f32.mrf.mxu0
  %619 = vmatprep.mubr.bf16.mxu0 %v266
  %620 = vmatmul.mubr.bf16.gmra.mxu0 %v265
  %v621 = vpop.f32.mrf.mxu0
  %v622 = vadd.f32 %v139, %v621
  %v623 = vpop.f32.mrf.mxu0
  %v624 = vpop.f32.mrf.mxu0
  %v625 = vadd.f32 %v139, %v624
  %v626 = vpop.f32.mrf.mxu0
  %627 = vmatprep.mubr.bf16.mxu0 %v271
  %628 = vmatmul.mubr.bf16.gmra.mxu0 %v270
  %v629 = vpop.f32.mrf.mxu0
  %v630 = vadd.f32 %v139, %v629
  %v631 = vpop.f32.mrf.mxu0
  %v632 = vpop.f32.mrf.mxu0
  %v633 = vadd.f32 %v139, %v632
  %v634 = vpop.f32.mrf.mxu0
  %635 = vmatprep.mubr.bf16.mxu0 %v276
  %636 = vmatmul.mubr.bf16.gmra.mxu0 %v275
  %v637 = vpop.f32.mrf.mxu0
  %v638 = vadd.f32 %v139, %v637
  %v639 = vpop.f32.mrf.mxu0
  %v640 = vpop.f32.mrf.mxu0
  %v641 = vpop.f32.mrf.mxu0
  %642 = vdwg.mxu0
  %643 = vmatprep.subr.bf16.mxu0 0
  %644 = vmatpush1.bf16.msra.mxu0 %v498
  %645 = vmatprep.subr.bf16.mxu0 0
  %646 = vmatpush1.bf16.msra.mxu0 %v497
  %647 = vmatprep.subr.bf16.mxu0 0
  %648 = vmatpush1.bf16.msra.mxu0 %v496
  %649 = vmatprep.subr.bf16.mxu0 0
  %650 = vmatpush1.bf16.msra.mxu0 %v495
  %651 = vmatprep.subr.bf16.mxu0 0
  %652 = vmatpush1.bf16.msra.mxu0 %v494
  %653 = vmatprep.subr.bf16.mxu0 0
  %654 = vmatpush1.bf16.msra.mxu0 %v493
  %655 = vmatprep.subr.bf16.mxu0 0
  %656 = vmatpush1.bf16.msra.mxu0 %v492
  %657 = vmatprep.subr.bf16.mxu0 0
  %658 = vmatpush1.bf16.msra.mxu0 %v491
  %659 = vmatprep.subr.bf16.mxu0 0
  %660 = vmatpush2.bf16.msra.mxu0 %v506
  %661 = vmatprep.subr.bf16.mxu0 0
  %662 = vmatpush2.bf16.msra.mxu0 %v505
  %663 = vmatprep.subr.bf16.mxu0 0
  %664 = vmatpush2.bf16.msra.mxu0 %v504
  %665 = vmatprep.subr.bf16.mxu0 0
  %666 = vmatpush2.bf16.msra.mxu0 %v503
  %667 = vmatprep.subr.bf16.mxu0 0
  %668 = vmatpush2.bf16.msra.mxu0 %v502
  %669 = vmatprep.subr.bf16.mxu0 0
  %670 = vmatpush2.bf16.msra.mxu0 %v501
  %671 = vmatprep.subr.bf16.mxu0 0
  %672 = vmatpush2.bf16.msra.mxu0 %v500
  %673 = vmatprep.subr.bf16.mxu0 0
  %674 = vmatpush2.bf16.msra.mxu0 %v499
  %675 = vmatprep.mubr.bf16.mxu0 %v248
  %676 = vmatmul.mubr.bf16.gmra.mxu0 %v247
  %v677 = vpop.f32.mrf.mxu0
  %v678 = vadd.f32 %v590, %v677
  %v679 = vpop.f32.mrf.mxu0
  %v680 = vpop.f32.mrf.mxu0
  %v681 = vadd.f32 %v593, %v680
  %v682 = vpop.f32.mrf.mxu0
  %683 = vmatprep.mubr.bf16.mxu0 %v253
  %684 = vmatmul.mubr.bf16.gmra.mxu0 %v252
  %v685 = vpop.f32.mrf.mxu0
  %v686 = vadd.f32 %v598, %v685
  %v687 = vpop.f32.mrf.mxu0
  %v688 = vpop.f32.mrf.mxu0
  %v689 = vadd.f32 %v601, %v688
  %v690 = vpop.f32.mrf.mxu0
  %691 = vmatprep.mubr.bf16.mxu0 %v258
  %692 = vmatmul.mubr.bf16.gmra.mxu0 %v257
  %v693 = vpop.f32.mrf.mxu0
  %v694 = vadd.f32 %v606, %v693
  %v695 = vpop.f32.mrf.mxu0
  %v696 = vpop.f32.mrf.mxu0
  %v697 = vadd.f32 %v609, %v696
  %v698 = vpop.f32.mrf.mxu0
  %699 = vmatprep.mubr.bf16.mxu0 %v263
  %700 = vmatmul.mubr.bf16.gmra.mxu0 %v262
  %v701 = vpop.f32.mrf.mxu0
  %v702 = vadd.f32 %v614, %v701
  %v703 = vpop.f32.mrf.mxu0
  %v704 = vpop.f32.mrf.mxu0
  %v705 = vadd.f32 %v617, %v704
  %v706 = vpop.f32.mrf.mxu0
  %707 = vmatprep.mubr.bf16.mxu0 %v268
  %708 = vmatmul.mubr.bf16.gmra.mxu0 %v267
  %v709 = vpop.f32.mrf.mxu0
  %v710 = vadd.f32 %v622, %v709
  %v711 = vpop.f32.mrf.mxu0
  %v712 = vpop.f32.mrf.mxu0
  %v713 = vadd.f32 %v625, %v712
  %v714 = vpop.f32.mrf.mxu0
  %715 = vmatprep.mubr.bf16.mxu0 %v273
  %716 = vmatmul.mubr.bf16.gmra.mxu0 %v272
  %v717 = vpop.f32.mrf.mxu0
  %v718 = vadd.f32 %v630, %v717
  %v719 = vpop.f32.mrf.mxu0
  %v720 = vpop.f32.mrf.mxu0
  %v721 = vadd.f32 %v633, %v720
  %v722 = vpop.f32.mrf.mxu0
  %723 = vmatprep.mubr.bf16.mxu0 %v278
  %724 = vmatmul.mubr.bf16.gmra.mxu0 %v277
  %v725 = vpop.f32.mrf.mxu0
  %v726 = vadd.f32 %v638, %v725
  %v727 = vpop.f32.mrf.mxu0
  %v728 = vpop.f32.mrf.mxu0
  %v729 = vpop.f32.mrf.mxu0
  %730 = vdwg.mxu0
  %731 = vmatprep.subr.bf16.mxu0 0
  %732 = vmatpush1.bf16.msra.mxu0 %v514
  %733 = vmatprep.subr.bf16.mxu0 0
  %734 = vmatpush1.bf16.msra.mxu0 %v513
  %735 = vmatprep.subr.bf16.mxu0 0
  %736 = vmatpush1.bf16.msra.mxu0 %v512
  %737 = vmatprep.subr.bf16.mxu0 0
  %738 = vmatpush1.bf16.msra.mxu0 %v511
  %739 = vmatprep.subr.bf16.mxu0 0
  %740 = vmatpush1.bf16.msra.mxu0 %v510
  %741 = vmatprep.subr.bf16.mxu0 0
  %742 = vmatpush1.bf16.msra.mxu0 %v509
  %743 = vmatprep.subr.bf16.mxu0 0
  %744 = vmatpush1.bf16.msra.mxu0 %v508
  %745 = vmatprep.subr.bf16.mxu0 0
  %746 = vmatpush1.bf16.msra.mxu0 %v507
  %747 = vmatprep.subr.bf16.mxu0 0
  %748 = vmatpush2.bf16.msra.mxu0 0
  %749 = vmatprep.subr.bf16.mxu0 0
  %750 = vmatpush2.bf16.msra.mxu0 0
  %751 = vmatprep.subr.bf16.mxu0 0
  %752 = vmatpush2.bf16.msra.mxu0 0
  %753 = vmatprep.subr.bf16.mxu0 0
  %754 = vmatpush2.bf16.msra.mxu0 0
  %755 = vmatprep.subr.bf16.mxu0 0
  %756 = vmatpush2.bf16.msra.mxu0 0
  %757 = vmatprep.subr.bf16.mxu0 0
  %758 = vmatpush2.bf16.msra.mxu0 0
  %759 = vmatprep.subr.bf16.mxu0 0
  %760 = vmatpush2.bf16.msra.mxu0 0
  %761 = vmatprep.subr.bf16.mxu0 0
  %762 = vmatpush2.bf16.msra.mxu0 0
  %763 = vmatprep.mubr.bf16.mxu0 0
  %764 = vmatmul.mubr.bf16.gmra.mxu0 %v249
  %v765 = vpop.f32.mrf.mxu0
  %v766 = vadd.f32 %v678, %v765
  %v767 = vpop.f32.mrf.mxu0
  %v768 = vpop.f32.mrf.mxu0
  %v769 = vadd.f32 %v681, %v768
  %v770 = vpop.f32.mrf.mxu0
  %771 = vmatprep.mubr.bf16.mxu0 0
  %772 = vmatmul.mubr.bf16.gmra.mxu0 %v254
  %v773 = vpop.f32.mrf.mxu0
  %v774 = vadd.f32 %v686, %v773
  %v775 = vpop.f32.mrf.mxu0
  %v776 = vpop.f32.mrf.mxu0
  %v777 = vadd.f32 %v689, %v776
  %v778 = vpop.f32.mrf.mxu0
  %779 = vmatprep.mubr.bf16.mxu0 0
  %780 = vmatmul.mubr.bf16.gmra.mxu0 %v259
  %v781 = vpop.f32.mrf.mxu0
  %v782 = vadd.f32 %v694, %v781
  %v783 = vpop.f32.mrf.mxu0
  %v784 = vpop.f32.mrf.mxu0
  %v785 = vadd.f32 %v697, %v784
  %v786 = vpop.f32.mrf.mxu0
  %787 = vmatprep.mubr.bf16.mxu0 0
  %788 = vmatmul.mubr.bf16.gmra.mxu0 %v264
  %v789 = vpop.f32.mrf.mxu0
  %v790 = vadd.f32 %v702, %v789
  %v791 = vpop.f32.mrf.mxu0
  %v792 = vpop.f32.mrf.mxu0
  %v793 = vadd.f32 %v705, %v792
  %v794 = vpop.f32.mrf.mxu0
  %795 = vmatprep.mubr.bf16.mxu0 0
  %796 = vmatmul.mubr.bf16.gmra.mxu0 %v269
  %v797 = vpop.f32.mrf.mxu0
  %v798 = vadd.f32 %v710, %v797
  %v799 = vpop.f32.mrf.mxu0
  %v800 = vpop.f32.mrf.mxu0
  %v801 = vadd.f32 %v713, %v800
  %v802 = vpop.f32.mrf.mxu0
  %803 = vmatprep.mubr.bf16.mxu0 0
  %804 = vmatmul.mubr.bf16.gmra.mxu0 %v274
  %v805 = vpop.f32.mrf.mxu0
  %v806 = vadd.f32 %v718, %v805
  %v807 = vpop.f32.mrf.mxu0
  %v808 = vpop.f32.mrf.mxu0
  %v809 = vadd.f32 %v721, %v808
  %v810 = vpop.f32.mrf.mxu0
  %811 = vmatprep.mubr.bf16.mxu0 0
  %812 = vmatmul.mubr.bf16.gmra.mxu0 %v279
  %v813 = vpop.f32.mrf.mxu0
  %v814 = vadd.f32 %v726, %v813
  %v815 = vpop.f32.mrf.mxu0
  %v816 = vpop.f32.mrf.mxu0
  %v817 = vpop.f32.mrf.mxu0
  %818 = vdwg.mxu0
  %v819 = vmax.f32 %v766, 0.0
  %v820 = vmax.f32 %v769, 0.0
  %v821 = vmax.f32 %v774, 0.0
  %v822 = vmax.f32 %v777, 0.0
  %v823 = vmax.f32 %v782, 0.0
  %v824 = vmax.f32 %v785, 0.0
  %v825 = vmax.f32 %v790, 0.0
  %v826 = vmax.f32 %v793, 0.0
  %v827 = vmax.f32 %v798, 0.0
  %v828 = vmax.f32 %v801, 0.0
  %v829 = vmax.f32 %v806, 0.0
  %v830 = vmax.f32 %v809, 0.0
  %v831 = vmax.f32 %v814, 0.0
  %v832 = vpack.c.bf16 %v820, %v819
  %v833 = vpack.c.bf16 %v822, %v821
  %v834 = vpack.c.bf16 %v824, %v823
  %v835 = vpack.c.bf16 %v826, %v825
  %v836 = vpack.c.bf16 %v828, %v827
  %v837 = vpack.c.bf16 %v830, %v829
  %v838 = vpack.c.bf16 %v831, %v831
  %v846 = vunpack.c.l.b16 %v832
  %v847 = vunpack.c.h.b16 %v832
  %v848 = vunpack.c.l.b16 %v833
  %v849 = vunpack.c.h.b16 %v833
  %v850 = vunpack.c.l.b16 %v834
  %v851 = vunpack.c.h.b16 %v834
  %v852 = vunpack.c.l.b16 %v835
  %v853 = vunpack.c.h.b16 %v835
  %v854 = vunpack.c.l.b16 %v836
  %v855 = vunpack.c.h.b16 %v836
  %v856 = vunpack.c.l.b16 %v837
  %v857 = vunpack.c.h.b16 %v837
  %v858 = vunpack.c.l.b16 %v838
  %v859 = vpack.c.b16 %v846, %v846
  %v860 = vpack.c.b16 %v847, %v847
  %v861 = vpack.c.b16 %v848, %v848
  %v862 = vpack.c.b16 %v849, %v849
  %v863 = vpack.c.b16 %v850, %v850
  %v864 = vpack.c.b16 %v851, %v851
  %v865 = vpack.c.b16 %v852, %v852
  %v866 = vpack.c.b16 %v853, %v853
  %v867 = vpack.c.b16 %v854, %v854
  %v868 = vpack.c.b16 %v855, %v855
  %v869 = vpack.c.b16 %v856, %v856
  %v870 = vpack.c.b16 %v857, %v857
  %v871 = vpack.c.b16 %v858, %v858
  %885 = vst [vmem:[%s3] sm:$0xf] %v859
  %886 = vst [vmem:[%s3 + $0x4] sm:$0xf] %v860
  %887 = vst [vmem:[%s3 + $0x8] sm:$0xf] %v861
  %888 = vst [vmem:[%s3 + $0xc] sm:$0xf] %v862
  %889 = vst [vmem:[%s3 + $0x10] sm:$0xf] %v863
  %890 = vst [vmem:[%s3 + $0x14] sm:$0xf] %v864
  %891 = vst [vmem:[%s3 + $0x18] sm:$0xf] %v865
  %892 = vst [vmem:[%s3 + $0x1c] sm:$0xf] %v866
  %893 = vst [vmem:[%s3 + $0x20] sm:$0xf] %v867
  %894 = vst [vmem:[%s3 + $0x24] sm:$0xf] %v868
  %895 = vst [vmem:[%s3 + $0x28] sm:$0xf] %v869
  %896 = vst [vmem:[%s3 + $0x2c] sm:$0xf] %v870
  %897 = vst [vmem:[%s3 + $0x30] sm:$0x1] %v871
  // Predicated region
  $region14: #{atari_model_forward.6} parent=0 // pred_check
    _
  $region15: #{atari_model_forward.6} parent=0 // pred_check_branch
    %899 = sbr.rel (0) target = $region17
  $region16: #{atari_model_forward.6} parent=0 // pred_region
    _
  $region17: #{atari_model_forward.6} parent=0 // pred_fallthru
    _
  // Predicated region
  $region18: #{atari_model_forward.6} parent=0 // pred_check
    _
  $region19: #{atari_model_forward.6} parent=0 // pred_check_branch
    %901 = sbr.rel (0) target = $region21
  $region20: #{atari_model_forward.6} parent=0 // pred_region
    _
  $region21: #{atari_model_forward.6} parent=0 // pred_fallthru
    _

// kernel: atari_model_forward.7
$region0: #{atari_model_forward.7}
  #allocation0 [shape = 'u32[]', space=smem, size = 0x4, offset = 0x4, fixed_abs, tag = 'smem constant byte address 0x4 - core index']
  #allocation1 [shape = 'u32[144,128]{1,0:T(1,128)}', space=vmem, size = 0x12000, scoped, tag = 'internal scratch']
  %s0 = inlined_call_operand.vmem [shape: bf16[2,3200], index: 0, kind: input, shape index: {}]
  %s1 = inlined_call_operand.vmem [shape: bf16[3200,512], index: 1, kind: input, shape index: {}]
  %s2 = inlined_call_operand.vmem [shape: f32[1,512], index: 2, kind: input, shape index: {}]
  %s3 = inlined_call_operand.hbm [shape: f32[2,512], index: 3, kind: output, shape index: {}]
  %s4 = sld [smem:[#allocation0]]
  $region83: #{atari_model_forward.7} parent=0
    _
  %s6 = ssub.s32 1, %s4
  %s7 = scalar_select 0, %s6, %s4
  $region1: #{atari_model_forward.7} parent=0
    #allocation2 [shape = 'u8[3276800]{0}', space=vmem, size = 0x320000, scoped, tag = 'input window, operand 1']
    #allocation3 [shape = 'u8[4096]{0}', space=vmem, size = 0x1000, scoped, tag = 'output window, operand 0']
    #allocation4 [shape = 's32[2]{0}', space=sflag, size = 0x8, scoped, tag = 'scoped memory for atari_model_forward.7']
    %8 = vsyncpa [#allocation4], 0
    %s9 = scalar_lea.sflag [#allocation4], 1
    %10 = vsyncpa %s9, 0
    loop: start=0, step=1, limit=4
    $region2: #{atari_model_forward.7} parent=1 // loop_pre_header
      _
    $region3: #{atari_model_forward.7} parent=1 // loop_header
      %s12 = sphi 0, %s16
      %p13 = scmp.ge.s32.totalorder %s12, 4
      %s19 = sphi 0, %s31
      %s20 = sphi 0, %s27
      %s21 = sphi 0, %s19
      %s22 = sphi 0, %s20
      %s23 = sphi 0, %s21
      %s24 = sphi 0, %s22
      %s34 = sphi 0, %s36
      %s37 = sphi 0, %s34
      %s38 = sphi 0, %s37
      %s54 = sphi 0, %s38
      %s60 = sphi 0, %s62
      %s63 = sphi 0, %s60
      %s64 = sphi 0, %s63
      %s80 = sphi 0, %s64
      %s86 = sphi 0, %s88
      %s89 = sphi 0, %s86
      %s90 = sphi 0, %s89
      %s106 = sphi 0, %s90
      %s114 = sphi 0, %s116
      %s117 = sphi 0, %s114
      %s118 = sphi 0, %s117
      %s134 = sphi 0, %s118
    $region4: #{atari_model_forward.7} parent=1 // loop_header_branch
      %15 = sbr.rel (%p13) target = $region8
    $region5: #{atari_model_forward.7} parent=1 // loop_body
      %s17 = ssub.s32 %s12, 1
      %s18 = ssub.s32 %s12, 2
      %s25 = sadd.s32 1, %s20
      %p26 = scmp.ge.s32.totalorder %s25, 2
      %s27 = scalar_select %p26, 0, %s25
      %s28 = sadd.s32 1, %s19
      %s29 = scalar_select %p26, %s28, %s19
      %p30 = scmp.ge.s32.totalorder %s29, 1
      %s31 = scalar_select %p30, 0, %s29
      %s32 = ssub.s32 %s19, %s31
      %p33 = scmp.eq.s32.totalorder %s32, 0
      %s35 = sadd.s32 %s34, 1
      %s36 = scalar_select %p33, %s34, %s35
      %p39 = pneg %p33
      %p40 = scmp.eq.s32.totalorder %s12, 1
      %p41 = por %p39, %p40
      %p42 = scmp.ne.s32.totalorder %s34, %s37
      %p43 = scmp.eq.s32.totalorder %s12, 0
      %p44 = por %p42, %p43
      %p45 = scmp.ne.s32.totalorder %s34, %s37
      %p46 = scmp.eq.s32.totalorder %s17, 1
      %p47 = por %p45, %p46
      %p48 = scmp.ne.s32.totalorder %s37, %s38
      %p49 = scmp.eq.s32.totalorder %s17, 0
      %p50 = por %p48, %p49
      %p51 = scmp.ne.s32.totalorder %s37, %s38
      %p52 = scmp.eq.s32.totalorder %s18, 1
      %p53 = por %p51, %p52
      %p55 = scmp.ne.s32.totalorder %s38, %s54
      %p56 = scmp.eq.s32.totalorder %s18, 0
      %p57 = por %p55, %p56
      %s58 = ssub.s32 %s20, %s27
      %p59 = scmp.eq.s32.totalorder %s58, 0
      %s61 = sadd.s32 %s60, 1
      %s62 = scalar_select %p59, %s60, %s61
      %p65 = pneg %p59
      %p66 = scmp.eq.s32.totalorder %s12, 1
      %p67 = por %p65, %p66
      %p68 = scmp.ne.s32.totalorder %s60, %s63
      %p69 = scmp.eq.s32.totalorder %s12, 0
      %p70 = por %p68, %p69
      %p71 = scmp.ne.s32.totalorder %s60, %s63
      %p72 = scmp.eq.s32.totalorder %s17, 1
      %p73 = por %p71, %p72
      %p74 = scmp.ne.s32.totalorder %s63, %s64
      %p75 = scmp.eq.s32.totalorder %s17, 0
      %p76 = por %p74, %p75
      %p77 = scmp.ne.s32.totalorder %s63, %s64
      %p78 = scmp.eq.s32.totalorder %s18, 1
      %p79 = por %p77, %p78
      %p81 = scmp.ne.s32.totalorder %s64, %s80
      %p82 = scmp.eq.s32.totalorder %s18, 0
      %p83 = por %p81, %p82
      %s84 = ssub.s32 %s20, %s27
      %p85 = scmp.eq.s32.totalorder %s84, 0
      %s87 = sadd.s32 %s86, 1
      %s88 = scalar_select %p85, %s86, %s87
      %p91 = pneg %p85
      %p92 = scmp.eq.s32.totalorder %s12, 1
      %p93 = por %p91, %p92
      %p94 = scmp.ne.s32.totalorder %s86, %s89
      %p95 = scmp.eq.s32.totalorder %s12, 0
      %p96 = por %p94, %p95
      %p97 = scmp.ne.s32.totalorder %s86, %s89
      %p98 = scmp.eq.s32.totalorder %s17, 1
      %p99 = por %p97, %p98
      %p100 = scmp.ne.s32.totalorder %s89, %s90
      %p101 = scmp.eq.s32.totalorder %s17, 0
      %p102 = por %p100, %p101
      %p103 = scmp.ne.s32.totalorder %s89, %s90
      %p104 = scmp.eq.s32.totalorder %s18, 1
      %p105 = por %p103, %p104
      %p107 = scmp.ne.s32.totalorder %s90, %s106
      %p108 = scmp.eq.s32.totalorder %s18, 0
      %p109 = por %p107, %p108
      %s110 = ssub.s32 %s19, %s31
      %s111 = ssub.s32 %s20, %s27
      %s112 = sor.u32 %s110, %s111
      %p113 = scmp.eq.s32.totalorder %s112, 0
      %s115 = sadd.s32 %s114, 1
      %s116 = scalar_select %p113, %s114, %s115
      %p119 = pneg %p113
      %p120 = scmp.eq.s32.totalorder %s12, 1
      %p121 = por %p119, %p120
      %p122 = scmp.ne.s32.totalorder %s114, %s117
      %p123 = scmp.eq.s32.totalorder %s12, 0
      %p124 = por %p122, %p123
      %p125 = scmp.ne.s32.totalorder %s114, %s117
      %p126 = scmp.eq.s32.totalorder %s17, 1
      %p127 = por %p125, %p126
      %p128 = scmp.ne.s32.totalorder %s117, %s118
      %p129 = scmp.eq.s32.totalorder %s17, 0
      %p130 = por %p128, %p129
      %p131 = scmp.ne.s32.totalorder %s117, %s118
      %p132 = scmp.eq.s32.totalorder %s18, 1
      %p133 = por %p131, %p132
      %p135 = scmp.ne.s32.totalorder %s118, %s134
      %p136 = scmp.eq.s32.totalorder %s18, 0
      %p137 = por %p135, %p136
      %p138 = scmp.le.s32.totalorder 1, %s12
      %p139 = scmp.lt.s32.totalorder %s12, 3
      %p140 = pnand %p138, %p139
      %p141 = pneg %p140
      // Predicated region
      $region9: #{atari_model_forward.7} parent=5 // pred_check
        _
      $region10: #{atari_model_forward.7} parent=5 // pred_check_branch
        %143 = sbr.rel (%p140) target = $region12
      $region11: #{atari_model_forward.7} parent=5 // pred_region
        %s144 = ssub.s32 %s12, 1
        // Predicated region
        $region13: #{atari_model_forward.7} parent=11 // pred_check
          %p145 = pneg %p50
        $region14: #{atari_model_forward.7} parent=11 // pred_check_branch
          %147 = sbr.rel (%p145) target = $region16
        $region15: #{atari_model_forward.7} parent=11 // pred_region
          %p148 = scmp.lt.s32.totalorder %s21, 0
          %s149 = scalar_select %p148, %s21, 0
          %s150 = smul.addr %s149, 25
          %s151 = scalar_lea.vmem %s0, %s150
        $region16: #{atari_model_forward.7} parent=11 // pred_fallthru
          _
      $region12: #{atari_model_forward.7} parent=5 // pred_fallthru
        _
      %p152 = scmp.lt.s32.totalorder %s12, 2
      // Predicated region
      $region17: #{atari_model_forward.7} parent=5 // pred_check
        %p153 = pneg %p152
      $region18: #{atari_model_forward.7} parent=5 // pred_check_branch
        %155 = sbr.rel (%p153) target = $region20
      $region19: #{atari_model_forward.7} parent=5 // pred_region
        // Predicated region
        $region21: #{atari_model_forward.7} parent=19 // pred_check
          %p156 = pneg %p70
        $region22: #{atari_model_forward.7} parent=19 // pred_check_branch
          %158 = sbr.rel (%p156) target = $region24
        $region23: #{atari_model_forward.7} parent=19 // pred_region
          %s159 = sand.u32 %s60, 1
          %s160 = sand.u32 %s60, 1
          %s161 = smul.addr %s160, 3200
          %s162 = scalar_lea.vmem [#allocation2], %s161
          %s163 = smul.u32 2, %s20
          %s164 = smul.addr %s163, 4
          %s165 = scalar_lea.vmem %s1, %s164
          // Predicated region
          $region25: #{atari_model_forward.7} parent=23 // pred_check
            _
          $region26: #{atari_model_forward.7} parent=23 // pred_check_branch
            %167 = sbr.rel (0) target = $region28
          $region27: #{atari_model_forward.7} parent=23 // pred_region
            // Predicated region
            $region29: #{atari_model_forward.7} parent=27 // pred_check
              _
            $region30: #{atari_model_forward.7} parent=27 // pred_check_branch
              %169 = sbr.rel (0) target = $region32
            $region31: #{atari_model_forward.7} parent=27 // pred_region
              // Predicated region
              $region44: #{atari_model_forward.7} parent=31 // pred_check
                _
              $region45: #{atari_model_forward.7} parent=31 // pred_check_branch
                %983 = sbr.rel (0) target = $region47
              $region46: #{atari_model_forward.7} parent=31 // pred_region
                loop: start=0, step=1, limit=1
                $region48: #{atari_model_forward.7} parent=46 // loop_pre_header
                  _
                $region49: #{atari_model_forward.7} parent=46 // loop_header
                  %s985 = sphi 0, %s989
                  %p986 = scmp.ge.s32.totalorder %s985, 1
                  %s990 = sphi %s165, %s165
                  %s991 = sphi %s162, %s162
                $region50: #{atari_model_forward.7} parent=46 // loop_header_branch
                  %988 = sbr.rel (%p986) target = $region54
                $region51: #{atari_model_forward.7} parent=46 // loop_body
                  %v992 = vld [vmem:[%s990] sm:$0xff]
                  %993 = vst [vmem:[%s991] sm:$0xff] %v992
                  %v994 = vld [vmem:[%s990 + $0x10] sm:$0xff]
                  %995 = vst [vmem:[%s991 + $0x8] sm:$0xff] %v994
                  %v996 = vld [vmem:[%s990 + $0x20] sm:$0xff]
                  %997 = vst [vmem:[%s991 + $0x10] sm:$0xff] %v996
                  %v998 = vld [vmem:[%s990 + $0x30] sm:$0xff]
                  %999 = vst [vmem:[%s991 + $0x18] sm:$0xff] %v998
                  %v1000 = vld [vmem:[%s990 + $0x40] sm:$0xff]
                  %1001 = vst [vmem:[%s991 + $0x20] sm:$0xff] %v1000
                  %v1002 = vld [vmem:[%s990 + $0x50] sm:$0xff]
                  %1003 = vst [vmem:[%s991 + $0x28] sm:$0xff] %v1002
                  %v1004 = vld [vmem:[%s990 + $0x60] sm:$0xff]
                  %1005 = vst [vmem:[%s991 + $0x30] sm:$0xff] %v1004
                  %v1006 = vld [vmem:[%s990 + $0x70] sm:$0xff]
                  %1007 = vst [vmem:[%s991 + $0x38] sm:$0xff] %v1006
                  %v1008 = vld [vmem:[%s990 + $0x80] sm:$0xff]
                  %1009 = vst [vmem:[%s991 + $0x40] sm:$0xff] %v1008
                  %v1010 = vld [vmem:[%s990 + $0x90] sm:$0xff]
                  %1011 = vst [vmem:[%s991 + $0x48] sm:$0xff] %v1010
                  %v1012 = vld [vmem:[%s990 + $0xa0] sm:$0xff]
                  %1013 = vst [vmem:[%s991 + $0x50] sm:$0xff] %v1012
                  %v1014 = vld [vmem:[%s990 + $0xb0] sm:$0xff]
                  %1015 = vst [vmem:[%s991 + $0x58] sm:$0xff] %v1014
                  %v1016 = vld [vmem:[%s990 + $0xc0] sm:$0xff]
                  %1017 = vst [vmem:[%s991 + $0x60] sm:$0xff] %v1016
                  %v1018 = vld [vmem:[%s990 + $0xd0] sm:$0xff]
                  %1019 = vst [vmem:[%s991 + $0x68] sm:$0xff] %v1018
                  %v1020 = vld [vmem:[%s990 + $0xe0] sm:$0xff]
                  %1021 = vst [vmem:[%s991 + $0x70] sm:$0xff] %v1020
                  %v1022 = vld [vmem:[%s990 + $0xf0] sm:$0xff]
                  %1023 = vst [vmem:[%s991 + $0x78] sm:$0xff] %v1022
                  %v1024 = vld [vmem:[%s990 + $0x100] sm:$0xff]
                  %1025 = vst [vmem:[%s991 + $0x80] sm:$0xff] %v1024
                  %v1026 = vld [vmem:[%s990 + $0x110] sm:$0xff]
                  %1027 = vst [vmem:[%s991 + $0x88] sm:$0xff] %v1026
                  %v1028 = vld [vmem:[%s990 + $0x120] sm:$0xff]
                  %1029 = vst [vmem:[%s991 + $0x90] sm:$0xff] %v1028
                  %v1030 = vld [vmem:[%s990 + $0x130] sm:$0xff]
                  %1031 = vst [vmem:[%s991 + $0x98] sm:$0xff] %v1030
                  %v1032 = vld [vmem:[%s990 + $0x140] sm:$0xff]
                  %1033 = vst [vmem:[%s991 + $0xa0] sm:$0xff] %v1032
                  %v1034 = vld [vmem:[%s990 + $0x150] sm:$0xff]
                  %1035 = vst [vmem:[%s991 + $0xa8] sm:$0xff] %v1034
                  %v1036 = vld [vmem:[%s990 + $0x160] sm:$0xff]
                  %1037 = vst [vmem:[%s991 + $0xb0] sm:$0xff] %v1036
                  %v1038 = vld [vmem:[%s990 + $0x170] sm:$0xff]
                  %1039 = vst [vmem:[%s991 + $0xb8] sm:$0xff] %v1038
                  %v1040 = vld [vmem:[%s990 + $0x180] sm:$0xff]
                  %1041 = vst [vmem:[%s991 + $0xc0] sm:$0xff] %v1040
                  %v1042 = vld [vmem:[%s990 + $0x190] sm:$0xff]
                  %1043 = vst [vmem:[%s991 + $0xc8] sm:$0xff] %v1042
                  %v1044 = vld [vmem:[%s990 + $0x1a0] sm:$0xff]
                  %1045 = vst [vmem:[%s991 + $0xd0] sm:$0xff] %v1044
                  %v1046 = vld [vmem:[%s990 + $0x1b0] sm:$0xff]
                  %1047 = vst [vmem:[%s991 + $0xd8] sm:$0xff] %v1046
                  %v1048 = vld [vmem:[%s990 + $0x1c0] sm:$0xff]
                  %1049 = vst [vmem:[%s991 + $0xe0] sm:$0xff] %v1048
                  %v1050 = vld [vmem:[%s990 + $0x1d0] sm:$0xff]
                  %1051 = vst [vmem:[%s991 + $0xe8] sm:$0xff] %v1050
                  %v1052 = vld [vmem:[%s990 + $0x1e0] sm:$0xff]
                  %1053 = vst [vmem:[%s991 + $0xf0] sm:$0xff] %v1052
                  %v1054 = vld [vmem:[%s990 + $0x1f0] sm:$0xff]
                  %1055 = vst [vmem:[%s991 + $0xf8] sm:$0xff] %v1054
                  %v1056 = vld [vmem:[%s990 + $0x200] sm:$0xff]
                  %1057 = vst [vmem:[%s991 + $0x100] sm:$0xff] %v1056
                  %v1058 = vld [vmem:[%s990 + $0x210] sm:$0xff]
                  %1059 = vst [vmem:[%s991 + $0x108] sm:$0xff] %v1058
                  %v1060 = vld [vmem:[%s990 + $0x220] sm:$0xff]
                  %1061 = vst [vmem:[%s991 + $0x110] sm:$0xff] %v1060
                  %v1062 = vld [vmem:[%s990 + $0x230] sm:$0xff]
                  %1063 = vst [vmem:[%s991 + $0x118] sm:$0xff] %v1062
                  %v1064 = vld [vmem:[%s990 + $0x240] sm:$0xff]
                  %1065 = vst [vmem:[%s991 + $0x120] sm:$0xff] %v1064
                  %v1066 = vld [vmem:[%s990 + $0x250] sm:$0xff]
                  %1067 = vst [vmem:[%s991 + $0x128] sm:$0xff] %v1066
                  %v1068 = vld [vmem:[%s990 + $0x260] sm:$0xff]
                  %1069 = vst [vmem:[%s991 + $0x130] sm:$0xff] %v1068
                  %v1070 = vld [vmem:[%s990 + $0x270] sm:$0xff]
                  %1071 = vst [vmem:[%s991 + $0x138] sm:$0xff] %v1070
                  %v1072 = vld [vmem:[%s990 + $0x280] sm:$0xff]
                  %1073 = vst [vmem:[%s991 + $0x140] sm:$0xff] %v1072
                  %v1074 = vld [vmem:[%s990 + $0x290] sm:$0xff]
                  %1075 = vst [vmem:[%s991 + $0x148] sm:$0xff] %v1074
                  %v1076 = vld [vmem:[%s990 + $0x2a0] sm:$0xff]
                  %1077 = vst [vmem:[%s991 + $0x150] sm:$0xff] %v1076
                  %v1078 = vld [vmem:[%s990 + $0x2b0] sm:$0xff]
                  %1079 = vst [vmem:[%s991 + $0x158] sm:$0xff] %v1078
                  %v1080 = vld [vmem:[%s990 + $0x2c0] sm:$0xff]
                  %1081 = vst [vmem:[%s991 + $0x160] sm:$0xff] %v1080
                  %v1082 = vld [vmem:[%s990 + $0x2d0] sm:$0xff]
                  %1083 = vst [vmem:[%s991 + $0x168] sm:$0xff] %v1082
                  %v1084 = vld [vmem:[%s990 + $0x2e0] sm:$0xff]
                  %1085 = vst [vmem:[%s991 + $0x170] sm:$0xff] %v1084
                  %v1086 = vld [vmem:[%s990 + $0x2f0] sm:$0xff]
                  %1087 = vst [vmem:[%s991 + $0x178] sm:$0xff] %v1086
                  %v1088 = vld [vmem:[%s990 + $0x300] sm:$0xff]
                  %1089 = vst [vmem:[%s991 + $0x180] sm:$0xff] %v1088
                  %v1090 = vld [vmem:[%s990 + $0x310] sm:$0xff]
                  %1091 = vst [vmem:[%s991 + $0x188] sm:$0xff] %v1090
                  %v1092 = vld [vmem:[%s990 + $0x320] sm:$0xff]
                  %1093 = vst [vmem:[%s991 + $0x190] sm:$0xff] %v1092
                  %v1094 = vld [vmem:[%s990 + $0x330] sm:$0xff]
                  %1095 = vst [vmem:[%s991 + $0x198] sm:$0xff] %v1094
                  %v1096 = vld [vmem:[%s990 + $0x340] sm:$0xff]
                  %1097 = vst [vmem:[%s991 + $0x1a0] sm:$0xff] %v1096
                  %v1098 = vld [vmem:[%s990 + $0x350] sm:$0xff]
                  %1099 = vst [vmem:[%s991 + $0x1a8] sm:$0xff] %v1098
                  %v1100 = vld [vmem:[%s990 + $0x360] sm:$0xff]
                  %1101 = vst [vmem:[%s991 + $0x1b0] sm:$0xff] %v1100
                  %v1102 = vld [vmem:[%s990 + $0x370] sm:$0xff]
                  %1103 = vst [vmem:[%s991 + $0x1b8] sm:$0xff] %v1102
                  %v1104 = vld [vmem:[%s990 + $0x380] sm:$0xff]
                  %1105 = vst [vmem:[%s991 + $0x1c0] sm:$0xff] %v1104
                  %v1106 = vld [vmem:[%s990 + $0x390] sm:$0xff]
                  %1107 = vst [vmem:[%s991 + $0x1c8] sm:$0xff] %v1106
                  %v1108 = vld [vmem:[%s990 + $0x3a0] sm:$0xff]
                  %1109 = vst [vmem:[%s991 + $0x1d0] sm:$0xff] %v1108
                  %v1110 = vld [vmem:[%s990 + $0x3b0] sm:$0xff]
                  %1111 = vst [vmem:[%s991 + $0x1d8] sm:$0xff] %v1110
                  %v1112 = vld [vmem:[%s990 + $0x3c0] sm:$0xff]
                  %1113 = vst [vmem:[%s991 + $0x1e0] sm:$0xff] %v1112
                  %v1114 = vld [vmem:[%s990 + $0x3d0] sm:$0xff]
                  %1115 = vst [vmem:[%s991 + $0x1e8] sm:$0xff] %v1114
                  %v1116 = vld [vmem:[%s990 + $0x3e0] sm:$0xff]
                  %1117 = vst [vmem:[%s991 + $0x1f0] sm:$0xff] %v1116
                  %v1118 = vld [vmem:[%s990 + $0x3f0] sm:$0xff]
                  %1119 = vst [vmem:[%s991 + $0x1f8] sm:$0xff] %v1118
                  %v1120 = vld [vmem:[%s990 + $0x400] sm:$0xff]
                  %1121 = vst [vmem:[%s991 + $0x200] sm:$0xff] %v1120
                  %v1122 = vld [vmem:[%s990 + $0x410] sm:$0xff]
                  %1123 = vst [vmem:[%s991 + $0x208] sm:$0xff] %v1122
                  %v1124 = vld [vmem:[%s990 + $0x420] sm:$0xff]
                  %1125 = vst [vmem:[%s991 + $0x210] sm:$0xff] %v1124
                  %v1126 = vld [vmem:[%s990 + $0x430] sm:$0xff]
                  %1127 = vst [vmem:[%s991 + $0x218] sm:$0xff] %v1126
                  %v1128 = vld [vmem:[%s990 + $0x440] sm:$0xff]
                  %1129 = vst [vmem:[%s991 + $0x220] sm:$0xff] %v1128
                  %v1130 = vld [vmem:[%s990 + $0x450] sm:$0xff]
                  %1131 = vst [vmem:[%s991 + $0x228] sm:$0xff] %v1130
                  %v1132 = vld [vmem:[%s990 + $0x460] sm:$0xff]
                  %1133 = vst [vmem:[%s991 + $0x230] sm:$0xff] %v1132
                  %v1134 = vld [vmem:[%s990 + $0x470] sm:$0xff]
                  %1135 = vst [vmem:[%s991 + $0x238] sm:$0xff] %v1134
                  %v1136 = vld [vmem:[%s990 + $0x480] sm:$0xff]
                  %1137 = vst [vmem:[%s991 + $0x240] sm:$0xff] %v1136
                  %v1138 = vld [vmem:[%s990 + $0x490] sm:$0xff]
                  %1139 = vst [vmem:[%s991 + $0x248] sm:$0xff] %v1138
                  %v1140 = vld [vmem:[%s990 + $0x4a0] sm:$0xff]
                  %1141 = vst [vmem:[%s991 + $0x250] sm:$0xff] %v1140
                  %v1142 = vld [vmem:[%s990 + $0x4b0] sm:$0xff]
                  %1143 = vst [vmem:[%s991 + $0x258] sm:$0xff] %v1142
                  %v1144 = vld [vmem:[%s990 + $0x4c0] sm:$0xff]
                  %1145 = vst [vmem:[%s991 + $0x260] sm:$0xff] %v1144
                  %v1146 = vld [vmem:[%s990 + $0x4d0] sm:$0xff]
                  %1147 = vst [vmem:[%s991 + $0x268] sm:$0xff] %v1146
                  %v1148 = vld [vmem:[%s990 + $0x4e0] sm:$0xff]
                  %1149 = vst [vmem:[%s991 + $0x270] sm:$0xff] %v1148
                  %v1150 = vld [vmem:[%s990 + $0x4f0] sm:$0xff]
                  %1151 = vst [vmem:[%s991 + $0x278] sm:$0xff] %v1150
                  %v1152 = vld [vmem:[%s990 + $0x500] sm:$0xff]
                  %1153 = vst [vmem:[%s991 + $0x280] sm:$0xff] %v1152
                  %v1154 = vld [vmem:[%s990 + $0x510] sm:$0xff]
                  %1155 = vst [vmem:[%s991 + $0x288] sm:$0xff] %v1154
                  %v1156 = vld [vmem:[%s990 + $0x520] sm:$0xff]
                  %1157 = vst [vmem:[%s991 + $0x290] sm:$0xff] %v1156
                  %v1158 = vld [vmem:[%s990 + $0x530] sm:$0xff]
                  %1159 = vst [vmem:[%s991 + $0x298] sm:$0xff] %v1158
                  %v1160 = vld [vmem:[%s990 + $0x540] sm:$0xff]
                  %1161 = vst [vmem:[%s991 + $0x2a0] sm:$0xff] %v1160
                  %v1162 = vld [vmem:[%s990 + $0x550] sm:$0xff]
                  %1163 = vst [vmem:[%s991 + $0x2a8] sm:$0xff] %v1162
                  %v1164 = vld [vmem:[%s990 + $0x560] sm:$0xff]
                  %1165 = vst [vmem:[%s991 + $0x2b0] sm:$0xff] %v1164
                  %v1166 = vld [vmem:[%s990 + $0x570] sm:$0xff]
                  %1167 = vst [vmem:[%s991 + $0x2b8] sm:$0xff] %v1166
                  %v1168 = vld [vmem:[%s990 + $0x580] sm:$0xff]
                  %1169 = vst [vmem:[%s991 + $0x2c0] sm:$0xff] %v1168
                  %v1170 = vld [vmem:[%s990 + $0x590] sm:$0xff]
                  %1171 = vst [vmem:[%s991 + $0x2c8] sm:$0xff] %v1170
                  %v1172 = vld [vmem:[%s990 + $0x5a0] sm:$0xff]
                  %1173 = vst [vmem:[%s991 + $0x2d0] sm:$0xff] %v1172
                  %v1174 = vld [vmem:[%s990 + $0x5b0] sm:$0xff]
                  %1175 = vst [vmem:[%s991 + $0x2d8] sm:$0xff] %v1174
                  %v1176 = vld [vmem:[%s990 + $0x5c0] sm:$0xff]
                  %1177 = vst [vmem:[%s991 + $0x2e0] sm:$0xff] %v1176
                  %v1178 = vld [vmem:[%s990 + $0x5d0] sm:$0xff]
                  %1179 = vst [vmem:[%s991 + $0x2e8] sm:$0xff] %v1178
                  %v1180 = vld [vmem:[%s990 + $0x5e0] sm:$0xff]
                  %1181 = vst [vmem:[%s991 + $0x2f0] sm:$0xff] %v1180
                  %v1182 = vld [vmem:[%s990 + $0x5f0] sm:$0xff]
                  %1183 = vst [vmem:[%s991 + $0x2f8] sm:$0xff] %v1182
                  %v1184 = vld [vmem:[%s990 + $0x600] sm:$0xff]
                  %1185 = vst [vmem:[%s991 + $0x300] sm:$0xff] %v1184
                  %v1186 = vld [vmem:[%s990 + $0x610] sm:$0xff]
                  %1187 = vst [vmem:[%s991 + $0x308] sm:$0xff] %v1186
                  %v1188 = vld [vmem:[%s990 + $0x620] sm:$0xff]
                  %1189 = vst [vmem:[%s991 + $0x310] sm:$0xff] %v1188
                  %v1190 = vld [vmem:[%s990 + $0x630] sm:$0xff]
                  %1191 = vst [vmem:[%s991 + $0x318] sm:$0xff] %v1190
                  %v1192 = vld [vmem:[%s990 + $0x640] sm:$0xff]
                  %1193 = vst [vmem:[%s991 + $0x320] sm:$0xff] %v1192
                  %v1194 = vld [vmem:[%s990 + $0x650] sm:$0xff]
                  %1195 = vst [vmem:[%s991 + $0x328] sm:$0xff] %v1194
                  %v1196 = vld [vmem:[%s990 + $0x660] sm:$0xff]
                  %1197 = vst [vmem:[%s991 + $0x330] sm:$0xff] %v1196
                  %v1198 = vld [vmem:[%s990 + $0x670] sm:$0xff]
                  %1199 = vst [vmem:[%s991 + $0x338] sm:$0xff] %v1198
                  %v1200 = vld [vmem:[%s990 + $0x680] sm:$0xff]
                  %1201 = vst [vmem:[%s991 + $0x340] sm:$0xff] %v1200
                  %v1202 = vld [vmem:[%s990 + $0x690] sm:$0xff]
                  %1203 = vst [vmem:[%s991 + $0x348] sm:$0xff] %v1202
                  %v1204 = vld [vmem:[%s990 + $0x6a0] sm:$0xff]
                  %1205 = vst [vmem:[%s991 + $0x350] sm:$0xff] %v1204
                  %v1206 = vld [vmem:[%s990 + $0x6b0] sm:$0xff]
                  %1207 = vst [vmem:[%s991 + $0x358] sm:$0xff] %v1206
                  %v1208 = vld [vmem:[%s990 + $0x6c0] sm:$0xff]
                  %1209 = vst [vmem:[%s991 + $0x360] sm:$0xff] %v1208
                  %v1210 = vld [vmem:[%s990 + $0x6d0] sm:$0xff]
                  %1211 = vst [vmem:[%s991 + $0x368] sm:$0xff] %v1210
                  %v1212 = vld [vmem:[%s990 + $0x6e0] sm:$0xff]
                  %1213 = vst [vmem:[%s991 + $0x370] sm:$0xff] %v1212
                  %v1214 = vld [vmem:[%s990 + $0x6f0] sm:$0xff]
                  %1215 = vst [vmem:[%s991 + $0x378] sm:$0xff] %v1214
                  %v1216 = vld [vmem:[%s990 + $0x700] sm:$0xff]
                  %1217 = vst [vmem:[%s991 + $0x380] sm:$0xff] %v1216
                  %v1218 = vld [vmem:[%s990 + $0x710] sm:$0xff]
                  %1219 = vst [vmem:[%s991 + $0x388] sm:$0xff] %v1218
                  %v1220 = vld [vmem:[%s990 + $0x720] sm:$0xff]
                  %1221 = vst [vmem:[%s991 + $0x390] sm:$0xff] %v1220
                  %v1222 = vld [vmem:[%s990 + $0x730] sm:$0xff]
                  %1223 = vst [vmem:[%s991 + $0x398] sm:$0xff] %v1222
                  %v1224 = vld [vmem:[%s990 + $0x740] sm:$0xff]
                  %1225 = vst [vmem:[%s991 + $0x3a0] sm:$0xff] %v1224
                  %v1226 = vld [vmem:[%s990 + $0x750] sm:$0xff]
                  %1227 = vst [vmem:[%s991 + $0x3a8] sm:$0xff] %v1226
                  %v1228 = vld [vmem:[%s990 + $0x760] sm:$0xff]
                  %1229 = vst [vmem:[%s991 + $0x3b0] sm:$0xff] %v1228
                  %v1230 = vld [vmem:[%s990 + $0x770] sm:$0xff]
                  %1231 = vst [vmem:[%s991 + $0x3b8] sm:$0xff] %v1230
                  %v1232 = vld [vmem:[%s990 + $0x780] sm:$0xff]
                  %1233 = vst [vmem:[%s991 + $0x3c0] sm:$0xff] %v1232
                  %v1234 = vld [vmem:[%s990 + $0x790] sm:$0xff]
                  %1235 = vst [vmem:[%s991 + $0x3c8] sm:$0xff] %v1234
                  %v1236 = vld [vmem:[%s990 + $0x7a0] sm:$0xff]
                  %1237 = vst [vmem:[%s991 + $0x3d0] sm:$0xff] %v1236
                  %v1238 = vld [vmem:[%s990 + $0x7b0] sm:$0xff]
                  %1239 = vst [vmem:[%s991 + $0x3d8] sm:$0xff] %v1238
                  %v1240 = vld [vmem:[%s990 + $0x7c0] sm:$0xff]
                  %1241 = vst [vmem:[%s991 + $0x3e0] sm:$0xff] %v1240
                  %v1242 = vld [vmem:[%s990 + $0x7d0] sm:$0xff]
                  %1243 = vst [vmem:[%s991 + $0x3e8] sm:$0xff] %v1242
                  %v1244 = vld [vmem:[%s990 + $0x7e0] sm:$0xff]
                  %1245 = vst [vmem:[%s991 + $0x3f0] sm:$0xff] %v1244
                  %v1246 = vld [vmem:[%s990 + $0x7f0] sm:$0xff]
                  %1247 = vst [vmem:[%s991 + $0x3f8] sm:$0xff] %v1246
                  %v1248 = vld [vmem:[%s990 + $0x800] sm:$0xff]
                  %1249 = vst [vmem:[%s991 + $0x400] sm:$0xff] %v1248
                  %v1250 = vld [vmem:[%s990 + $0x810] sm:$0xff]
                  %1251 = vst [vmem:[%s991 + $0x408] sm:$0xff] %v1250
                  %v1252 = vld [vmem:[%s990 + $0x820] sm:$0xff]
                  %1253 = vst [vmem:[%s991 + $0x410] sm:$0xff] %v1252
                  %v1254 = vld [vmem:[%s990 + $0x830] sm:$0xff]
                  %1255 = vst [vmem:[%s991 + $0x418] sm:$0xff] %v1254
                  %v1256 = vld [vmem:[%s990 + $0x840] sm:$0xff]
                  %1257 = vst [vmem:[%s991 + $0x420] sm:$0xff] %v1256
                  %v1258 = vld [vmem:[%s990 + $0x850] sm:$0xff]
                  %1259 = vst [vmem:[%s991 + $0x428] sm:$0xff] %v1258
                  %v1260 = vld [vmem:[%s990 + $0x860] sm:$0xff]
                  %1261 = vst [vmem:[%s991 + $0x430] sm:$0xff] %v1260
                  %v1262 = vld [vmem:[%s990 + $0x870] sm:$0xff]
                  %1263 = vst [vmem:[%s991 + $0x438] sm:$0xff] %v1262
                  %v1264 = vld [vmem:[%s990 + $0x880] sm:$0xff]
                  %1265 = vst [vmem:[%s991 + $0x440] sm:$0xff] %v1264
                  %v1266 = vld [vmem:[%s990 + $0x890] sm:$0xff]
                  %1267 = vst [vmem:[%s991 + $0x448] sm:$0xff] %v1266
                  %v1268 = vld [vmem:[%s990 + $0x8a0] sm:$0xff]
                  %1269 = vst [vmem:[%s991 + $0x450] sm:$0xff] %v1268
                  %v1270 = vld [vmem:[%s990 + $0x8b0] sm:$0xff]
                  %1271 = vst [vmem:[%s991 + $0x458] sm:$0xff] %v1270
                  %v1272 = vld [vmem:[%s990 + $0x8c0] sm:$0xff]
                  %1273 = vst [vmem:[%s991 + $0x460] sm:$0xff] %v1272
                  %v1274 = vld [vmem:[%s990 + $0x8d0] sm:$0xff]
                  %1275 = vst [vmem:[%s991 + $0x468] sm:$0xff] %v1274
                  %v1276 = vld [vmem:[%s990 + $0x8e0] sm:$0xff]
                  %1277 = vst [vmem:[%s991 + $0x470] sm:$0xff] %v1276
                  %v1278 = vld [vmem:[%s990 + $0x8f0] sm:$0xff]
                  %1279 = vst [vmem:[%s991 + $0x478] sm:$0xff] %v1278
                  %v1280 = vld [vmem:[%s990 + $0x900] sm:$0xff]
                  %1281 = vst [vmem:[%s991 + $0x480] sm:$0xff] %v1280
                  %v1282 = vld [vmem:[%s990 + $0x910] sm:$0xff]
                  %1283 = vst [vmem:[%s991 + $0x488] sm:$0xff] %v1282
                  %v1284 = vld [vmem:[%s990 + $0x920] sm:$0xff]
                  %1285 = vst [vmem:[%s991 + $0x490] sm:$0xff] %v1284
                  %v1286 = vld [vmem:[%s990 + $0x930] sm:$0xff]
                  %1287 = vst [vmem:[%s991 + $0x498] sm:$0xff] %v1286
                  %v1288 = vld [vmem:[%s990 + $0x940] sm:$0xff]
                  %1289 = vst [vmem:[%s991 + $0x4a0] sm:$0xff] %v1288
                  %v1290 = vld [vmem:[%s990 + $0x950] sm:$0xff]
                  %1291 = vst [vmem:[%s991 + $0x4a8] sm:$0xff] %v1290
                  %v1292 = vld [vmem:[%s990 + $0x960] sm:$0xff]
                  %1293 = vst [vmem:[%s991 + $0x4b0] sm:$0xff] %v1292
                  %v1294 = vld [vmem:[%s990 + $0x970] sm:$0xff]
                  %1295 = vst [vmem:[%s991 + $0x4b8] sm:$0xff] %v1294
                  %v1296 = vld [vmem:[%s990 + $0x980] sm:$0xff]
                  %1297 = vst [vmem:[%s991 + $0x4c0] sm:$0xff] %v1296
                  %v1298 = vld [vmem:[%s990 + $0x990] sm:$0xff]
                  %1299 = vst [vmem:[%s991 + $0x4c8] sm:$0xff] %v1298
                  %v1300 = vld [vmem:[%s990 + $0x9a0] sm:$0xff]
                  %1301 = vst [vmem:[%s991 + $0x4d0] sm:$0xff] %v1300
                  %v1302 = vld [vmem:[%s990 + $0x9b0] sm:$0xff]
                  %1303 = vst [vmem:[%s991 + $0x4d8] sm:$0xff] %v1302
                  %v1304 = vld [vmem:[%s990 + $0x9c0] sm:$0xff]
                  %1305 = vst [vmem:[%s991 + $0x4e0] sm:$0xff] %v1304
                  %v1306 = vld [vmem:[%s990 + $0x9d0] sm:$0xff]
                  %1307 = vst [vmem:[%s991 + $0x4e8] sm:$0xff] %v1306
                  %v1308 = vld [vmem:[%s990 + $0x9e0] sm:$0xff]
                  %1309 = vst [vmem:[%s991 + $0x4f0] sm:$0xff] %v1308
                  %v1310 = vld [vmem:[%s990 + $0x9f0] sm:$0xff]
                  %1311 = vst [vmem:[%s991 + $0x4f8] sm:$0xff] %v1310
                  %v1312 = vld [vmem:[%s990 + $0xa00] sm:$0xff]
                  %1313 = vst [vmem:[%s991 + $0x500] sm:$0xff] %v1312
                  %v1314 = vld [vmem:[%s990 + $0xa10] sm:$0xff]
                  %1315 = vst [vmem:[%s991 + $0x508] sm:$0xff] %v1314
                  %v1316 = vld [vmem:[%s990 + $0xa20] sm:$0xff]
                  %1317 = vst [vmem:[%s991 + $0x510] sm:$0xff] %v1316
                  %v1318 = vld [vmem:[%s990 + $0xa30] sm:$0xff]
                  %1319 = vst [vmem:[%s991 + $0x518] sm:$0xff] %v1318
                  %v1320 = vld [vmem:[%s990 + $0xa40] sm:$0xff]
                  %1321 = vst [vmem:[%s991 + $0x520] sm:$0xff] %v1320
                  %v1322 = vld [vmem:[%s990 + $0xa50] sm:$0xff]
                  %1323 = vst [vmem:[%s991 + $0x528] sm:$0xff] %v1322
                  %v1324 = vld [vmem:[%s990 + $0xa60] sm:$0xff]
                  %1325 = vst [vmem:[%s991 + $0x530] sm:$0xff] %v1324
                  %v1326 = vld [vmem:[%s990 + $0xa70] sm:$0xff]
                  %1327 = vst [vmem:[%s991 + $0x538] sm:$0xff] %v1326
                  %v1328 = vld [vmem:[%s990 + $0xa80] sm:$0xff]
                  %1329 = vst [vmem:[%s991 + $0x540] sm:$0xff] %v1328
                  %v1330 = vld [vmem:[%s990 + $0xa90] sm:$0xff]
                  %1331 = vst [vmem:[%s991 + $0x548] sm:$0xff] %v1330
                  %v1332 = vld [vmem:[%s990 + $0xaa0] sm:$0xff]
                  %1333 = vst [vmem:[%s991 + $0x550] sm:$0xff] %v1332
                  %v1334 = vld [vmem:[%s990 + $0xab0] sm:$0xff]
                  %1335 = vst [vmem:[%s991 + $0x558] sm:$0xff] %v1334
                  %v1336 = vld [vmem:[%s990 + $0xac0] sm:$0xff]
                  %1337 = vst [vmem:[%s991 + $0x560] sm:$0xff] %v1336
                  %v1338 = vld [vmem:[%s990 + $0xad0] sm:$0xff]
                  %1339 = vst [vmem:[%s991 + $0x568] sm:$0xff] %v1338
                  %v1340 = vld [vmem:[%s990 + $0xae0] sm:$0xff]
                  %1341 = vst [vmem:[%s991 + $0x570] sm:$0xff] %v1340
                  %v1342 = vld [vmem:[%s990 + $0xaf0] sm:$0xff]
                  %1343 = vst [vmem:[%s991 + $0x578] sm:$0xff] %v1342
                  %v1344 = vld [vmem:[%s990 + $0xb00] sm:$0xff]
                  %1345 = vst [vmem:[%s991 + $0x580] sm:$0xff] %v1344
                  %v1346 = vld [vmem:[%s990 + $0xb10] sm:$0xff]
                  %1347 = vst [vmem:[%s991 + $0x588] sm:$0xff] %v1346
                  %v1348 = vld [vmem:[%s990 + $0xb20] sm:$0xff]
                  %1349 = vst [vmem:[%s991 + $0x590] sm:$0xff] %v1348
                  %v1350 = vld [vmem:[%s990 + $0xb30] sm:$0xff]
                  %1351 = vst [vmem:[%s991 + $0x598] sm:$0xff] %v1350
                  %v1352 = vld [vmem:[%s990 + $0xb40] sm:$0xff]
                  %1353 = vst [vmem:[%s991 + $0x5a0] sm:$0xff] %v1352
                  %v1354 = vld [vmem:[%s990 + $0xb50] sm:$0xff]
                  %1355 = vst [vmem:[%s991 + $0x5a8] sm:$0xff] %v1354
                  %v1356 = vld [vmem:[%s990 + $0xb60] sm:$0xff]
                  %1357 = vst [vmem:[%s991 + $0x5b0] sm:$0xff] %v1356
                  %v1358 = vld [vmem:[%s990 + $0xb70] sm:$0xff]
                  %1359 = vst [vmem:[%s991 + $0x5b8] sm:$0xff] %v1358
                  %v1360 = vld [vmem:[%s990 + $0xb80] sm:$0xff]
                  %1361 = vst [vmem:[%s991 + $0x5c0] sm:$0xff] %v1360
                  %v1362 = vld [vmem:[%s990 + $0xb90] sm:$0xff]
                  %1363 = vst [vmem:[%s991 + $0x5c8] sm:$0xff] %v1362
                  %v1364 = vld [vmem:[%s990 + $0xba0] sm:$0xff]
                  %1365 = vst [vmem:[%s991 + $0x5d0] sm:$0xff] %v1364
                  %v1366 = vld [vmem:[%s990 + $0xbb0] sm:$0xff]
                  %1367 = vst [vmem:[%s991 + $0x5d8] sm:$0xff] %v1366
                  %v1368 = vld [vmem:[%s990 + $0xbc0] sm:$0xff]
                  %1369 = vst [vmem:[%s991 + $0x5e0] sm:$0xff] %v1368
                  %v1370 = vld [vmem:[%s990 + $0xbd0] sm:$0xff]
                  %1371 = vst [vmem:[%s991 + $0x5e8] sm:$0xff] %v1370
                  %v1372 = vld [vmem:[%s990 + $0xbe0] sm:$0xff]
                  %1373 = vst [vmem:[%s991 + $0x5f0] sm:$0xff] %v1372
                  %v1374 = vld [vmem:[%s990 + $0xbf0] sm:$0xff]
                  %1375 = vst [vmem:[%s991 + $0x5f8] sm:$0xff] %v1374
                  %v1376 = vld [vmem:[%s990 + $0xc00] sm:$0xff]
                  %1377 = vst [vmem:[%s991 + $0x600] sm:$0xff] %v1376
                  %v1378 = vld [vmem:[%s990 + $0xc10] sm:$0xff]
                  %1379 = vst [vmem:[%s991 + $0x608] sm:$0xff] %v1378
                  %v1380 = vld [vmem:[%s990 + $0xc20] sm:$0xff]
                  %1381 = vst [vmem:[%s991 + $0x610] sm:$0xff] %v1380
                  %v1382 = vld [vmem:[%s990 + $0xc30] sm:$0xff]
                  %1383 = vst [vmem:[%s991 + $0x618] sm:$0xff] %v1382
                  %v1384 = vld [vmem:[%s990 + $0xc40] sm:$0xff]
                  %1385 = vst [vmem:[%s991 + $0x620] sm:$0xff] %v1384
                  %v1386 = vld [vmem:[%s990 + $0xc50] sm:$0xff]
                  %1387 = vst [vmem:[%s991 + $0x628] sm:$0xff] %v1386
                  %v1388 = vld [vmem:[%s990 + $0xc60] sm:$0xff]
                  %1389 = vst [vmem:[%s991 + $0x630] sm:$0xff] %v1388
                  %v1390 = vld [vmem:[%s990 + $0xc70] sm:$0xff]
                  %1391 = vst [vmem:[%s991 + $0x638] sm:$0xff] %v1390
                  %v1392 = vld [vmem:[%s990 + $0xc80] sm:$0xff]
                  %1393 = vst [vmem:[%s991 + $0x640] sm:$0xff] %v1392
                  %v1394 = vld [vmem:[%s990 + $0xc90] sm:$0xff]
                  %1395 = vst [vmem:[%s991 + $0x648] sm:$0xff] %v1394
                  %v1396 = vld [vmem:[%s990 + $0xca0] sm:$0xff]
                  %1397 = vst [vmem:[%s991 + $0x650] sm:$0xff] %v1396
                  %v1398 = vld [vmem:[%s990 + $0xcb0] sm:$0xff]
                  %1399 = vst [vmem:[%s991 + $0x658] sm:$0xff] %v1398
                  %v1400 = vld [vmem:[%s990 + $0xcc0] sm:$0xff]
                  %1401 = vst [vmem:[%s991 + $0x660] sm:$0xff] %v1400
                  %v1402 = vld [vmem:[%s990 + $0xcd0] sm:$0xff]
                  %1403 = vst [vmem:[%s991 + $0x668] sm:$0xff] %v1402
                  %v1404 = vld [vmem:[%s990 + $0xce0] sm:$0xff]
                  %1405 = vst [vmem:[%s991 + $0x670] sm:$0xff] %v1404
                  %v1406 = vld [vmem:[%s990 + $0xcf0] sm:$0xff]
                  %1407 = vst [vmem:[%s991 + $0x678] sm:$0xff] %v1406
                  %v1408 = vld [vmem:[%s990 + $0xd00] sm:$0xff]
                  %1409 = vst [vmem:[%s991 + $0x680] sm:$0xff] %v1408
                  %v1410 = vld [vmem:[%s990 + $0xd10] sm:$0xff]
                  %1411 = vst [vmem:[%s991 + $0x688] sm:$0xff] %v1410
                  %v1412 = vld [vmem:[%s990 + $0xd20] sm:$0xff]
                  %1413 = vst [vmem:[%s991 + $0x690] sm:$0xff] %v1412
                  %v1414 = vld [vmem:[%s990 + $0xd30] sm:$0xff]
                  %1415 = vst [vmem:[%s991 + $0x698] sm:$0xff] %v1414
                  %v1416 = vld [vmem:[%s990 + $0xd40] sm:$0xff]
                  %1417 = vst [vmem:[%s991 + $0x6a0] sm:$0xff] %v1416
                  %v1418 = vld [vmem:[%s990 + $0xd50] sm:$0xff]
                  %1419 = vst [vmem:[%s991 + $0x6a8] sm:$0xff] %v1418
                  %v1420 = vld [vmem:[%s990 + $0xd60] sm:$0xff]
                  %1421 = vst [vmem:[%s991 + $0x6b0] sm:$0xff] %v1420
                  %v1422 = vld [vmem:[%s990 + $0xd70] sm:$0xff]
                  %1423 = vst [vmem:[%s991 + $0x6b8] sm:$0xff] %v1422
                  %v1424 = vld [vmem:[%s990 + $0xd80] sm:$0xff]
                  %1425 = vst [vmem:[%s991 + $0x6c0] sm:$0xff] %v1424
                  %v1426 = vld [vmem:[%s990 + $0xd90] sm:$0xff]
                  %1427 = vst [vmem:[%s991 + $0x6c8] sm:$0xff] %v1426
                  %v1428 = vld [vmem:[%s990 + $0xda0] sm:$0xff]
                  %1429 = vst [vmem:[%s991 + $0x6d0] sm:$0xff] %v1428
                  %v1430 = vld [vmem:[%s990 + $0xdb0] sm:$0xff]
                  %1431 = vst [vmem:[%s991 + $0x6d8] sm:$0xff] %v1430
                  %v1432 = vld [vmem:[%s990 + $0xdc0] sm:$0xff]
                  %1433 = vst [vmem:[%s991 + $0x6e0] sm:$0xff] %v1432
                  %v1434 = vld [vmem:[%s990 + $0xdd0] sm:$0xff]
                  %1435 = vst [vmem:[%s991 + $0x6e8] sm:$0xff] %v1434
                  %v1436 = vld [vmem:[%s990 + $0xde0] sm:$0xff]
                  %1437 = vst [vmem:[%s991 + $0x6f0] sm:$0xff] %v1436
                  %v1438 = vld [vmem:[%s990 + $0xdf0] sm:$0xff]
                  %1439 = vst [vmem:[%s991 + $0x6f8] sm:$0xff] %v1438
                  %v1440 = vld [vmem:[%s990 + $0xe00] sm:$0xff]
                  %1441 = vst [vmem:[%s991 + $0x700] sm:$0xff] %v1440
                  %v1442 = vld [vmem:[%s990 + $0xe10] sm:$0xff]
                  %1443 = vst [vmem:[%s991 + $0x708] sm:$0xff] %v1442
                  %v1444 = vld [vmem:[%s990 + $0xe20] sm:$0xff]
                  %1445 = vst [vmem:[%s991 + $0x710] sm:$0xff] %v1444
                  %v1446 = vld [vmem:[%s990 + $0xe30] sm:$0xff]
                  %1447 = vst [vmem:[%s991 + $0x718] sm:$0xff] %v1446
                  %v1448 = vld [vmem:[%s990 + $0xe40] sm:$0xff]
                  %1449 = vst [vmem:[%s991 + $0x720] sm:$0xff] %v1448
                  %v1450 = vld [vmem:[%s990 + $0xe50] sm:$0xff]
                  %1451 = vst [vmem:[%s991 + $0x728] sm:$0xff] %v1450
                  %v1452 = vld [vmem:[%s990 + $0xe60] sm:$0xff]
                  %1453 = vst [vmem:[%s991 + $0x730] sm:$0xff] %v1452
                  %v1454 = vld [vmem:[%s990 + $0xe70] sm:$0xff]
                  %1455 = vst [vmem:[%s991 + $0x738] sm:$0xff] %v1454
                  %v1456 = vld [vmem:[%s990 + $0xe80] sm:$0xff]
                  %1457 = vst [vmem:[%s991 + $0x740] sm:$0xff] %v1456
                  %v1458 = vld [vmem:[%s990 + $0xe90] sm:$0xff]
                  %1459 = vst [vmem:[%s991 + $0x748] sm:$0xff] %v1458
                  %v1460 = vld [vmem:[%s990 + $0xea0] sm:$0xff]
                  %1461 = vst [vmem:[%s991 + $0x750] sm:$0xff] %v1460
                  %v1462 = vld [vmem:[%s990 + $0xeb0] sm:$0xff]
                  %1463 = vst [vmem:[%s991 + $0x758] sm:$0xff] %v1462
                  %v1464 = vld [vmem:[%s990 + $0xec0] sm:$0xff]
                  %1465 = vst [vmem:[%s991 + $0x760] sm:$0xff] %v1464
                  %v1466 = vld [vmem:[%s990 + $0xed0] sm:$0xff]
                  %1467 = vst [vmem:[%s991 + $0x768] sm:$0xff] %v1466
                  %v1468 = vld [vmem:[%s990 + $0xee0] sm:$0xff]
                  %1469 = vst [vmem:[%s991 + $0x770] sm:$0xff] %v1468
                  %v1470 = vld [vmem:[%s990 + $0xef0] sm:$0xff]
                  %1471 = vst [vmem:[%s991 + $0x778] sm:$0xff] %v1470
                  %v1472 = vld [vmem:[%s990 + $0xf00] sm:$0xff]
                  %1473 = vst [vmem:[%s991 + $0x780] sm:$0xff] %v1472
                  %v1474 = vld [vmem:[%s990 + $0xf10] sm:$0xff]
                  %1475 = vst [vmem:[%s991 + $0x788] sm:$0xff] %v1474
                  %v1476 = vld [vmem:[%s990 + $0xf20] sm:$0xff]
                  %1477 = vst [vmem:[%s991 + $0x790] sm:$0xff] %v1476
                  %v1478 = vld [vmem:[%s990 + $0xf30] sm:$0xff]
                  %1479 = vst [vmem:[%s991 + $0x798] sm:$0xff] %v1478
                  %v1480 = vld [vmem:[%s990 + $0xf40] sm:$0xff]
                  %1481 = vst [vmem:[%s991 + $0x7a0] sm:$0xff] %v1480
                  %v1482 = vld [vmem:[%s990 + $0xf50] sm:$0xff]
                  %1483 = vst [vmem:[%s991 + $0x7a8] sm:$0xff] %v1482
                  %v1484 = vld [vmem:[%s990 + $0xf60] sm:$0xff]
                  %1485 = vst [vmem:[%s991 + $0x7b0] sm:$0xff] %v1484
                  %v1486 = vld [vmem:[%s990 + $0xf70] sm:$0xff]
                  %1487 = vst [vmem:[%s991 + $0x7b8] sm:$0xff] %v1486
                  %v1488 = vld [vmem:[%s990 + $0xf80] sm:$0xff]
                  %1489 = vst [vmem:[%s991 + $0x7c0] sm:$0xff] %v1488
                  %v1490 = vld [vmem:[%s990 + $0xf90] sm:$0xff]
                  %1491 = vst [vmem:[%s991 + $0x7c8] sm:$0xff] %v1490
                  %v1492 = vld [vmem:[%s990 + $0xfa0] sm:$0xff]
                  %1493 = vst [vmem:[%s991 + $0x7d0] sm:$0xff] %v1492
                  %v1494 = vld [vmem:[%s990 + $0xfb0] sm:$0xff]
                  %1495 = vst [vmem:[%s991 + $0x7d8] sm:$0xff] %v1494
                  %v1496 = vld [vmem:[%s990 + $0xfc0] sm:$0xff]
                  %1497 = vst [vmem:[%s991 + $0x7e0] sm:$0xff] %v1496
                  %v1498 = vld [vmem:[%s990 + $0xfd0] sm:$0xff]
                  %1499 = vst [vmem:[%s991 + $0x7e8] sm:$0xff] %v1498
                  %v1500 = vld [vmem:[%s990 + $0xfe0] sm:$0xff]
                  %1501 = vst [vmem:[%s991 + $0x7f0] sm:$0xff] %v1500
                  %v1502 = vld [vmem:[%s990 + $0xff0] sm:$0xff]
                  %1503 = vst [vmem:[%s991 + $0x7f8] sm:$0xff] %v1502
                  %v1504 = vld [vmem:[%s990 + $0x1000] sm:$0xff]
                  %1505 = vst [vmem:[%s991 + $0x800] sm:$0xff] %v1504
                  %v1506 = vld [vmem:[%s990 + $0x1010] sm:$0xff]
                  %1507 = vst [vmem:[%s991 + $0x808] sm:$0xff] %v1506
                  %v1508 = vld [vmem:[%s990 + $0x1020] sm:$0xff]
                  %1509 = vst [vmem:[%s991 + $0x810] sm:$0xff] %v1508
                  %v1510 = vld [vmem:[%s990 + $0x1030] sm:$0xff]
                  %1511 = vst [vmem:[%s991 + $0x818] sm:$0xff] %v1510
                  %v1512 = vld [vmem:[%s990 + $0x1040] sm:$0xff]
                  %1513 = vst [vmem:[%s991 + $0x820] sm:$0xff] %v1512
                  %v1514 = vld [vmem:[%s990 + $0x1050] sm:$0xff]
                  %1515 = vst [vmem:[%s991 + $0x828] sm:$0xff] %v1514
                  %v1516 = vld [vmem:[%s990 + $0x1060] sm:$0xff]
                  %1517 = vst [vmem:[%s991 + $0x830] sm:$0xff] %v1516
                  %v1518 = vld [vmem:[%s990 + $0x1070] sm:$0xff]
                  %1519 = vst [vmem:[%s991 + $0x838] sm:$0xff] %v1518
                  %v1520 = vld [vmem:[%s990 + $0x1080] sm:$0xff]
                  %1521 = vst [vmem:[%s991 + $0x840] sm:$0xff] %v1520
                  %v1522 = vld [vmem:[%s990 + $0x1090] sm:$0xff]
                  %1523 = vst [vmem:[%s991 + $0x848] sm:$0xff] %v1522
                  %v1524 = vld [vmem:[%s990 + $0x10a0] sm:$0xff]
                  %1525 = vst [vmem:[%s991 + $0x850] sm:$0xff] %v1524
                  %v1526 = vld [vmem:[%s990 + $0x10b0] sm:$0xff]
                  %1527 = vst [vmem:[%s991 + $0x858] sm:$0xff] %v1526
                  %v1528 = vld [vmem:[%s990 + $0x10c0] sm:$0xff]
                  %1529 = vst [vmem:[%s991 + $0x860] sm:$0xff] %v1528
                  %v1530 = vld [vmem:[%s990 + $0x10d0] sm:$0xff]
                  %1531 = vst [vmem:[%s991 + $0x868] sm:$0xff] %v1530
                  %v1532 = vld [vmem:[%s990 + $0x10e0] sm:$0xff]
                  %1533 = vst [vmem:[%s991 + $0x870] sm:$0xff] %v1532
                  %v1534 = vld [vmem:[%s990 + $0x10f0] sm:$0xff]
                  %1535 = vst [vmem:[%s991 + $0x878] sm:$0xff] %v1534
                  %v1536 = vld [vmem:[%s990 + $0x1100] sm:$0xff]
                  %1537 = vst [vmem:[%s991 + $0x880] sm:$0xff] %v1536
                  %v1538 = vld [vmem:[%s990 + $0x1110] sm:$0xff]
                  %1539 = vst [vmem:[%s991 + $0x888] sm:$0xff] %v1538
                  %v1540 = vld [vmem:[%s990 + $0x1120] sm:$0xff]
                  %1541 = vst [vmem:[%s991 + $0x890] sm:$0xff] %v1540
                  %v1542 = vld [vmem:[%s990 + $0x1130] sm:$0xff]
                  %1543 = vst [vmem:[%s991 + $0x898] sm:$0xff] %v1542
                  %v1544 = vld [vmem:[%s990 + $0x1140] sm:$0xff]
                  %1545 = vst [vmem:[%s991 + $0x8a0] sm:$0xff] %v1544
                  %v1546 = vld [vmem:[%s990 + $0x1150] sm:$0xff]
                  %1547 = vst [vmem:[%s991 + $0x8a8] sm:$0xff] %v1546
                  %v1548 = vld [vmem:[%s990 + $0x1160] sm:$0xff]
                  %1549 = vst [vmem:[%s991 + $0x8b0] sm:$0xff] %v1548
                  %v1550 = vld [vmem:[%s990 + $0x1170] sm:$0xff]
                  %1551 = vst [vmem:[%s991 + $0x8b8] sm:$0xff] %v1550
                  %v1552 = vld [vmem:[%s990 + $0x1180] sm:$0xff]
                  %1553 = vst [vmem:[%s991 + $0x8c0] sm:$0xff] %v1552
                  %v1554 = vld [vmem:[%s990 + $0x1190] sm:$0xff]
                  %1555 = vst [vmem:[%s991 + $0x8c8] sm:$0xff] %v1554
                  %v1556 = vld [vmem:[%s990 + $0x11a0] sm:$0xff]
                  %1557 = vst [vmem:[%s991 + $0x8d0] sm:$0xff] %v1556
                  %v1558 = vld [vmem:[%s990 + $0x11b0] sm:$0xff]
                  %1559 = vst [vmem:[%s991 + $0x8d8] sm:$0xff] %v1558
                  %v1560 = vld [vmem:[%s990 + $0x11c0] sm:$0xff]
                  %1561 = vst [vmem:[%s991 + $0x8e0] sm:$0xff] %v1560
                  %v1562 = vld [vmem:[%s990 + $0x11d0] sm:$0xff]
                  %1563 = vst [vmem:[%s991 + $0x8e8] sm:$0xff] %v1562
                  %v1564 = vld [vmem:[%s990 + $0x11e0] sm:$0xff]
                  %1565 = vst [vmem:[%s991 + $0x8f0] sm:$0xff] %v1564
                  %v1566 = vld [vmem:[%s990 + $0x11f0] sm:$0xff]
                  %1567 = vst [vmem:[%s991 + $0x8f8] sm:$0xff] %v1566
                  %v1568 = vld [vmem:[%s990 + $0x1200] sm:$0xff]
                  %1569 = vst [vmem:[%s991 + $0x900] sm:$0xff] %v1568
                  %v1570 = vld [vmem:[%s990 + $0x1210] sm:$0xff]
                  %1571 = vst [vmem:[%s991 + $0x908] sm:$0xff] %v1570
                  %v1572 = vld [vmem:[%s990 + $0x1220] sm:$0xff]
                  %1573 = vst [vmem:[%s991 + $0x910] sm:$0xff] %v1572
                  %v1574 = vld [vmem:[%s990 + $0x1230] sm:$0xff]
                  %1575 = vst [vmem:[%s991 + $0x918] sm:$0xff] %v1574
                  %v1576 = vld [vmem:[%s990 + $0x1240] sm:$0xff]
                  %1577 = vst [vmem:[%s991 + $0x920] sm:$0xff] %v1576
                  %v1578 = vld [vmem:[%s990 + $0x1250] sm:$0xff]
                  %1579 = vst [vmem:[%s991 + $0x928] sm:$0xff] %v1578
                  %v1580 = vld [vmem:[%s990 + $0x1260] sm:$0xff]
                  %1581 = vst [vmem:[%s991 + $0x930] sm:$0xff] %v1580
                  %v1582 = vld [vmem:[%s990 + $0x1270] sm:$0xff]
                  %1583 = vst [vmem:[%s991 + $0x938] sm:$0xff] %v1582
                  %v1584 = vld [vmem:[%s990 + $0x1280] sm:$0xff]
                  %1585 = vst [vmem:[%s991 + $0x940] sm:$0xff] %v1584
                  %v1586 = vld [vmem:[%s990 + $0x1290] sm:$0xff]
                  %1587 = vst [vmem:[%s991 + $0x948] sm:$0xff] %v1586
                  %v1588 = vld [vmem:[%s990 + $0x12a0] sm:$0xff]
                  %1589 = vst [vmem:[%s991 + $0x950] sm:$0xff] %v1588
                  %v1590 = vld [vmem:[%s990 + $0x12b0] sm:$0xff]
                  %1591 = vst [vmem:[%s991 + $0x958] sm:$0xff] %v1590
                  %v1592 = vld [vmem:[%s990 + $0x12c0] sm:$0xff]
                  %1593 = vst [vmem:[%s991 + $0x960] sm:$0xff] %v1592
                  %v1594 = vld [vmem:[%s990 + $0x12d0] sm:$0xff]
                  %1595 = vst [vmem:[%s991 + $0x968] sm:$0xff] %v1594
                  %v1596 = vld [vmem:[%s990 + $0x12e0] sm:$0xff]
                  %1597 = vst [vmem:[%s991 + $0x970] sm:$0xff] %v1596
                  %v1598 = vld [vmem:[%s990 + $0x12f0] sm:$0xff]
                  %1599 = vst [vmem:[%s991 + $0x978] sm:$0xff] %v1598
                  %v1600 = vld [vmem:[%s990 + $0x1300] sm:$0xff]
                  %1601 = vst [vmem:[%s991 + $0x980] sm:$0xff] %v1600
                  %v1602 = vld [vmem:[%s990 + $0x1310] sm:$0xff]
                  %1603 = vst [vmem:[%s991 + $0x988] sm:$0xff] %v1602
                  %v1604 = vld [vmem:[%s990 + $0x1320] sm:$0xff]
                  %1605 = vst [vmem:[%s991 + $0x990] sm:$0xff] %v1604
                  %v1606 = vld [vmem:[%s990 + $0x1330] sm:$0xff]
                  %1607 = vst [vmem:[%s991 + $0x998] sm:$0xff] %v1606
                  %v1608 = vld [vmem:[%s990 + $0x1340] sm:$0xff]
                  %1609 = vst [vmem:[%s991 + $0x9a0] sm:$0xff] %v1608
                  %v1610 = vld [vmem:[%s990 + $0x1350] sm:$0xff]
                  %1611 = vst [vmem:[%s991 + $0x9a8] sm:$0xff] %v1610
                  %v1612 = vld [vmem:[%s990 + $0x1360] sm:$0xff]
                  %1613 = vst [vmem:[%s991 + $0x9b0] sm:$0xff] %v1612
                  %v1614 = vld [vmem:[%s990 + $0x1370] sm:$0xff]
                  %1615 = vst [vmem:[%s991 + $0x9b8] sm:$0xff] %v1614
                  %v1616 = vld [vmem:[%s990 + $0x1380] sm:$0xff]
                  %1617 = vst [vmem:[%s991 + $0x9c0] sm:$0xff] %v1616
                  %v1618 = vld [vmem:[%s990 + $0x1390] sm:$0xff]
                  %1619 = vst [vmem:[%s991 + $0x9c8] sm:$0xff] %v1618
                  %v1620 = vld [vmem:[%s990 + $0x13a0] sm:$0xff]
                  %1621 = vst [vmem:[%s991 + $0x9d0] sm:$0xff] %v1620
                  %v1622 = vld [vmem:[%s990 + $0x13b0] sm:$0xff]
                  %1623 = vst [vmem:[%s991 + $0x9d8] sm:$0xff] %v1622
                  %v1624 = vld [vmem:[%s990 + $0x13c0] sm:$0xff]
                  %1625 = vst [vmem:[%s991 + $0x9e0] sm:$0xff] %v1624
                  %v1626 = vld [vmem:[%s990 + $0x13d0] sm:$0xff]
                  %1627 = vst [vmem:[%s991 + $0x9e8] sm:$0xff] %v1626
                  %v1628 = vld [vmem:[%s990 + $0x13e0] sm:$0xff]
                  %1629 = vst [vmem:[%s991 + $0x9f0] sm:$0xff] %v1628
                  %v1630 = vld [vmem:[%s990 + $0x13f0] sm:$0xff]
                  %1631 = vst [vmem:[%s991 + $0x9f8] sm:$0xff] %v1630
                  %v1632 = vld [vmem:[%s990 + $0x1400] sm:$0xff]
                  %1633 = vst [vmem:[%s991 + $0xa00] sm:$0xff] %v1632
                  %v1634 = vld [vmem:[%s990 + $0x1410] sm:$0xff]
                  %1635 = vst [vmem:[%s991 + $0xa08] sm:$0xff] %v1634
                  %v1636 = vld [vmem:[%s990 + $0x1420] sm:$0xff]
                  %1637 = vst [vmem:[%s991 + $0xa10] sm:$0xff] %v1636
                  %v1638 = vld [vmem:[%s990 + $0x1430] sm:$0xff]
                  %1639 = vst [vmem:[%s991 + $0xa18] sm:$0xff] %v1638
                  %v1640 = vld [vmem:[%s990 + $0x1440] sm:$0xff]
                  %1641 = vst [vmem:[%s991 + $0xa20] sm:$0xff] %v1640
                  %v1642 = vld [vmem:[%s990 + $0x1450] sm:$0xff]
                  %1643 = vst [vmem:[%s991 + $0xa28] sm:$0xff] %v1642
                  %v1644 = vld [vmem:[%s990 + $0x1460] sm:$0xff]
                  %1645 = vst [vmem:[%s991 + $0xa30] sm:$0xff] %v1644
                  %v1646 = vld [vmem:[%s990 + $0x1470] sm:$0xff]
                  %1647 = vst [vmem:[%s991 + $0xa38] sm:$0xff] %v1646
                  %v1648 = vld [vmem:[%s990 + $0x1480] sm:$0xff]
                  %1649 = vst [vmem:[%s991 + $0xa40] sm:$0xff] %v1648
                  %v1650 = vld [vmem:[%s990 + $0x1490] sm:$0xff]
                  %1651 = vst [vmem:[%s991 + $0xa48] sm:$0xff] %v1650
                  %v1652 = vld [vmem:[%s990 + $0x14a0] sm:$0xff]
                  %1653 = vst [vmem:[%s991 + $0xa50] sm:$0xff] %v1652
                  %v1654 = vld [vmem:[%s990 + $0x14b0] sm:$0xff]
                  %1655 = vst [vmem:[%s991 + $0xa58] sm:$0xff] %v1654
                  %v1656 = vld [vmem:[%s990 + $0x14c0] sm:$0xff]
                  %1657 = vst [vmem:[%s991 + $0xa60] sm:$0xff] %v1656
                  %v1658 = vld [vmem:[%s990 + $0x14d0] sm:$0xff]
                  %1659 = vst [vmem:[%s991 + $0xa68] sm:$0xff] %v1658
                  %v1660 = vld [vmem:[%s990 + $0x14e0] sm:$0xff]
                  %1661 = vst [vmem:[%s991 + $0xa70] sm:$0xff] %v1660
                  %v1662 = vld [vmem:[%s990 + $0x14f0] sm:$0xff]
                  %1663 = vst [vmem:[%s991 + $0xa78] sm:$0xff] %v1662
                  %v1664 = vld [vmem:[%s990 + $0x1500] sm:$0xff]
                  %1665 = vst [vmem:[%s991 + $0xa80] sm:$0xff] %v1664
                  %v1666 = vld [vmem:[%s990 + $0x1510] sm:$0xff]
                  %1667 = vst [vmem:[%s991 + $0xa88] sm:$0xff] %v1666
                  %v1668 = vld [vmem:[%s990 + $0x1520] sm:$0xff]
                  %1669 = vst [vmem:[%s991 + $0xa90] sm:$0xff] %v1668
                  %v1670 = vld [vmem:[%s990 + $0x1530] sm:$0xff]
                  %1671 = vst [vmem:[%s991 + $0xa98] sm:$0xff] %v1670
                  %v1672 = vld [vmem:[%s990 + $0x1540] sm:$0xff]
                  %1673 = vst [vmem:[%s991 + $0xaa0] sm:$0xff] %v1672
                  %v1674 = vld [vmem:[%s990 + $0x1550] sm:$0xff]
                  %1675 = vst [vmem:[%s991 + $0xaa8] sm:$0xff] %v1674
                  %v1676 = vld [vmem:[%s990 + $0x1560] sm:$0xff]
                  %1677 = vst [vmem:[%s991 + $0xab0] sm:$0xff] %v1676
                  %v1678 = vld [vmem:[%s990 + $0x1570] sm:$0xff]
                  %1679 = vst [vmem:[%s991 + $0xab8] sm:$0xff] %v1678
                  %v1680 = vld [vmem:[%s990 + $0x1580] sm:$0xff]
                  %1681 = vst [vmem:[%s991 + $0xac0] sm:$0xff] %v1680
                  %v1682 = vld [vmem:[%s990 + $0x1590] sm:$0xff]
                  %1683 = vst [vmem:[%s991 + $0xac8] sm:$0xff] %v1682
                  %v1684 = vld [vmem:[%s990 + $0x15a0] sm:$0xff]
                  %1685 = vst [vmem:[%s991 + $0xad0] sm:$0xff] %v1684
                  %v1686 = vld [vmem:[%s990 + $0x15b0] sm:$0xff]
                  %1687 = vst [vmem:[%s991 + $0xad8] sm:$0xff] %v1686
                  %v1688 = vld [vmem:[%s990 + $0x15c0] sm:$0xff]
                  %1689 = vst [vmem:[%s991 + $0xae0] sm:$0xff] %v1688
                  %v1690 = vld [vmem:[%s990 + $0x15d0] sm:$0xff]
                  %1691 = vst [vmem:[%s991 + $0xae8] sm:$0xff] %v1690
                  %v1692 = vld [vmem:[%s990 + $0x15e0] sm:$0xff]
                  %1693 = vst [vmem:[%s991 + $0xaf0] sm:$0xff] %v1692
                  %v1694 = vld [vmem:[%s990 + $0x15f0] sm:$0xff]
                  %1695 = vst [vmem:[%s991 + $0xaf8] sm:$0xff] %v1694
                  %v1696 = vld [vmem:[%s990 + $0x1600] sm:$0xff]
                  %1697 = vst [vmem:[%s991 + $0xb00] sm:$0xff] %v1696
                  %v1698 = vld [vmem:[%s990 + $0x1610] sm:$0xff]
                  %1699 = vst [vmem:[%s991 + $0xb08] sm:$0xff] %v1698
                  %v1700 = vld [vmem:[%s990 + $0x1620] sm:$0xff]
                  %1701 = vst [vmem:[%s991 + $0xb10] sm:$0xff] %v1700
                  %v1702 = vld [vmem:[%s990 + $0x1630] sm:$0xff]
                  %1703 = vst [vmem:[%s991 + $0xb18] sm:$0xff] %v1702
                  %v1704 = vld [vmem:[%s990 + $0x1640] sm:$0xff]
                  %1705 = vst [vmem:[%s991 + $0xb20] sm:$0xff] %v1704
                  %v1706 = vld [vmem:[%s990 + $0x1650] sm:$0xff]
                  %1707 = vst [vmem:[%s991 + $0xb28] sm:$0xff] %v1706
                  %v1708 = vld [vmem:[%s990 + $0x1660] sm:$0xff]
                  %1709 = vst [vmem:[%s991 + $0xb30] sm:$0xff] %v1708
                  %v1710 = vld [vmem:[%s990 + $0x1670] sm:$0xff]
                  %1711 = vst [vmem:[%s991 + $0xb38] sm:$0xff] %v1710
                  %v1712 = vld [vmem:[%s990 + $0x1680] sm:$0xff]
                  %1713 = vst [vmem:[%s991 + $0xb40] sm:$0xff] %v1712
                  %v1714 = vld [vmem:[%s990 + $0x1690] sm:$0xff]
                  %1715 = vst [vmem:[%s991 + $0xb48] sm:$0xff] %v1714
                  %v1716 = vld [vmem:[%s990 + $0x16a0] sm:$0xff]
                  %1717 = vst [vmem:[%s991 + $0xb50] sm:$0xff] %v1716
                  %v1718 = vld [vmem:[%s990 + $0x16b0] sm:$0xff]
                  %1719 = vst [vmem:[%s991 + $0xb58] sm:$0xff] %v1718
                  %v1720 = vld [vmem:[%s990 + $0x16c0] sm:$0xff]
                  %1721 = vst [vmem:[%s991 + $0xb60] sm:$0xff] %v1720
                  %v1722 = vld [vmem:[%s990 + $0x16d0] sm:$0xff]
                  %1723 = vst [vmem:[%s991 + $0xb68] sm:$0xff] %v1722
                  %v1724 = vld [vmem:[%s990 + $0x16e0] sm:$0xff]
                  %1725 = vst [vmem:[%s991 + $0xb70] sm:$0xff] %v1724
                  %v1726 = vld [vmem:[%s990 + $0x16f0] sm:$0xff]
                  %1727 = vst [vmem:[%s991 + $0xb78] sm:$0xff] %v1726
                  %v1728 = vld [vmem:[%s990 + $0x1700] sm:$0xff]
                  %1729 = vst [vmem:[%s991 + $0xb80] sm:$0xff] %v1728
                  %v1730 = vld [vmem:[%s990 + $0x1710] sm:$0xff]
                  %1731 = vst [vmem:[%s991 + $0xb88] sm:$0xff] %v1730
                  %v1732 = vld [vmem:[%s990 + $0x1720] sm:$0xff]
                  %1733 = vst [vmem:[%s991 + $0xb90] sm:$0xff] %v1732
                  %v1734 = vld [vmem:[%s990 + $0x1730] sm:$0xff]
                  %1735 = vst [vmem:[%s991 + $0xb98] sm:$0xff] %v1734
                  %v1736 = vld [vmem:[%s990 + $0x1740] sm:$0xff]
                  %1737 = vst [vmem:[%s991 + $0xba0] sm:$0xff] %v1736
                  %v1738 = vld [vmem:[%s990 + $0x1750] sm:$0xff]
                  %1739 = vst [vmem:[%s991 + $0xba8] sm:$0xff] %v1738
                  %v1740 = vld [vmem:[%s990 + $0x1760] sm:$0xff]
                  %1741 = vst [vmem:[%s991 + $0xbb0] sm:$0xff] %v1740
                  %v1742 = vld [vmem:[%s990 + $0x1770] sm:$0xff]
                  %1743 = vst [vmem:[%s991 + $0xbb8] sm:$0xff] %v1742
                  %v1744 = vld [vmem:[%s990 + $0x1780] sm:$0xff]
                  %1745 = vst [vmem:[%s991 + $0xbc0] sm:$0xff] %v1744
                  %v1746 = vld [vmem:[%s990 + $0x1790] sm:$0xff]
                  %1747 = vst [vmem:[%s991 + $0xbc8] sm:$0xff] %v1746
                  %v1748 = vld [vmem:[%s990 + $0x17a0] sm:$0xff]
                  %1749 = vst [vmem:[%s991 + $0xbd0] sm:$0xff] %v1748
                  %v1750 = vld [vmem:[%s990 + $0x17b0] sm:$0xff]
                  %1751 = vst [vmem:[%s991 + $0xbd8] sm:$0xff] %v1750
                  %v1752 = vld [vmem:[%s990 + $0x17c0] sm:$0xff]
                  %1753 = vst [vmem:[%s991 + $0xbe0] sm:$0xff] %v1752
                  %v1754 = vld [vmem:[%s990 + $0x17d0] sm:$0xff]
                  %1755 = vst [vmem:[%s991 + $0xbe8] sm:$0xff] %v1754
                  %v1756 = vld [vmem:[%s990 + $0x17e0] sm:$0xff]
                  %1757 = vst [vmem:[%s991 + $0xbf0] sm:$0xff] %v1756
                  %v1758 = vld [vmem:[%s990 + $0x17f0] sm:$0xff]
                  %1759 = vst [vmem:[%s991 + $0xbf8] sm:$0xff] %v1758
                  %v1760 = vld [vmem:[%s990 + $0x1800] sm:$0xff]
                  %1761 = vst [vmem:[%s991 + $0xc00] sm:$0xff] %v1760
                  %v1762 = vld [vmem:[%s990 + $0x1810] sm:$0xff]
                  %1763 = vst [vmem:[%s991 + $0xc08] sm:$0xff] %v1762
                  %v1764 = vld [vmem:[%s990 + $0x1820] sm:$0xff]
                  %1765 = vst [vmem:[%s991 + $0xc10] sm:$0xff] %v1764
                  %v1766 = vld [vmem:[%s990 + $0x1830] sm:$0xff]
                  %1767 = vst [vmem:[%s991 + $0xc18] sm:$0xff] %v1766
                  %v1768 = vld [vmem:[%s990 + $0x1840] sm:$0xff]
                  %1769 = vst [vmem:[%s991 + $0xc20] sm:$0xff] %v1768
                  %v1770 = vld [vmem:[%s990 + $0x1850] sm:$0xff]
                  %1771 = vst [vmem:[%s991 + $0xc28] sm:$0xff] %v1770
                  %v1772 = vld [vmem:[%s990 + $0x1860] sm:$0xff]
                  %1773 = vst [vmem:[%s991 + $0xc30] sm:$0xff] %v1772
                  %v1774 = vld [vmem:[%s990 + $0x1870] sm:$0xff]
                  %1775 = vst [vmem:[%s991 + $0xc38] sm:$0xff] %v1774
                  %v1776 = vld [vmem:[%s990 + $0x1880] sm:$0xff]
                  %1777 = vst [vmem:[%s991 + $0xc40] sm:$0xff] %v1776
                  %v1778 = vld [vmem:[%s990 + $0x1890] sm:$0xff]
                  %1779 = vst [vmem:[%s991 + $0xc48] sm:$0xff] %v1778
                  %v1780 = vld [vmem:[%s990 + $0x18a0] sm:$0xff]
                  %1781 = vst [vmem:[%s991 + $0xc50] sm:$0xff] %v1780
                  %v1782 = vld [vmem:[%s990 + $0x18b0] sm:$0xff]
                  %1783 = vst [vmem:[%s991 + $0xc58] sm:$0xff] %v1782
                  %v1784 = vld [vmem:[%s990 + $0x18c0] sm:$0xff]
                  %1785 = vst [vmem:[%s991 + $0xc60] sm:$0xff] %v1784
                  %v1786 = vld [vmem:[%s990 + $0x18d0] sm:$0xff]
                  %1787 = vst [vmem:[%s991 + $0xc68] sm:$0xff] %v1786
                  %v1788 = vld [vmem:[%s990 + $0x18e0] sm:$0xff]
                  %1789 = vst [vmem:[%s991 + $0xc70] sm:$0xff] %v1788
                  %v1790 = vld [vmem:[%s990 + $0x18f0] sm:$0xff]
                  %1791 = vst [vmem:[%s991 + $0xc78] sm:$0xff] %v1790
                $region52: #{atari_model_forward.7} parent=46 // loop_footer
                  %s989 = sadd.s32 1, %s985
                $region53: #{atari_model_forward.7} parent=46 // loop_footer_branch
                  %984 = sbr.rel target = $region49
                $region54: #{atari_model_forward.7} parent=46 // loop_exit
                  _
              $region47: #{atari_model_forward.7} parent=31 // pred_fallthru
                _
              // Predicated region
              $region55: #{atari_model_forward.7} parent=31 // pred_check
                _
              $region56: #{atari_model_forward.7} parent=31 // pred_check_branch
                %1793 = sbr.rel target = $region58
              $region57: #{atari_model_forward.7} parent=31 // pred_region
                _
              $region58: #{atari_model_forward.7} parent=31 // pred_fallthru
                _
            $region32: #{atari_model_forward.7} parent=27 // pred_fallthru
              _
            // Predicated region
            $region33: #{atari_model_forward.7} parent=27 // pred_check
              _
            $region34: #{atari_model_forward.7} parent=27 // pred_check_branch
              %171 = sbr.rel target = $region36
            $region35: #{atari_model_forward.7} parent=27 // pred_region
              %s173 = ssub.s32 256, 1
              loop: start=0, step=1, limit=1
              $region37: #{atari_model_forward.7} parent=35 // loop_pre_header
                _
              $region38: #{atari_model_forward.7} parent=35 // loop_header
                %s175 = sphi 0, %s179
                %p176 = scmp.ge.s32.totalorder %s175, 1
                %s180 = sphi %s165, %s165
                %s181 = sphi %s162, %s162
              $region39: #{atari_model_forward.7} parent=35 // loop_header_branch
                %178 = sbr.rel (%p176) target = $region43
              $region40: #{atari_model_forward.7} parent=35 // loop_body
                %v182 = vld [vmem:[%s180] sm:%s173]
                %183 = vst [vmem:[%s181] sm:%s173] %v182
                %v184 = vld [vmem:[%s180 + $0x10] sm:%s173]
                %185 = vst [vmem:[%s181 + $0x8] sm:%s173] %v184
                %v186 = vld [vmem:[%s180 + $0x20] sm:%s173]
                %187 = vst [vmem:[%s181 + $0x10] sm:%s173] %v186
                %v188 = vld [vmem:[%s180 + $0x30] sm:%s173]
                %189 = vst [vmem:[%s181 + $0x18] sm:%s173] %v188
                %v190 = vld [vmem:[%s180 + $0x40] sm:%s173]
                %191 = vst [vmem:[%s181 + $0x20] sm:%s173] %v190
                %v192 = vld [vmem:[%s180 + $0x50] sm:%s173]
                %193 = vst [vmem:[%s181 + $0x28] sm:%s173] %v192
                %v194 = vld [vmem:[%s180 + $0x60] sm:%s173]
                %195 = vst [vmem:[%s181 + $0x30] sm:%s173] %v194
                %v196 = vld [vmem:[%s180 + $0x70] sm:%s173]
                %197 = vst [vmem:[%s181 + $0x38] sm:%s173] %v196
                %v198 = vld [vmem:[%s180 + $0x80] sm:%s173]
                %199 = vst [vmem:[%s181 + $0x40] sm:%s173] %v198
                %v200 = vld [vmem:[%s180 + $0x90] sm:%s173]
                %201 = vst [vmem:[%s181 + $0x48] sm:%s173] %v200
                %v202 = vld [vmem:[%s180 + $0xa0] sm:%s173]
                %203 = vst [vmem:[%s181 + $0x50] sm:%s173] %v202
                %v204 = vld [vmem:[%s180 + $0xb0] sm:%s173]
                %205 = vst [vmem:[%s181 + $0x58] sm:%s173] %v204
                %v206 = vld [vmem:[%s180 + $0xc0] sm:%s173]
                %207 = vst [vmem:[%s181 + $0x60] sm:%s173] %v206
                %v208 = vld [vmem:[%s180 + $0xd0] sm:%s173]
                %209 = vst [vmem:[%s181 + $0x68] sm:%s173] %v208
                %v210 = vld [vmem:[%s180 + $0xe0] sm:%s173]
                %211 = vst [vmem:[%s181 + $0x70] sm:%s173] %v210
                %v212 = vld [vmem:[%s180 + $0xf0] sm:%s173]
                %213 = vst [vmem:[%s181 + $0x78] sm:%s173] %v212
                %v214 = vld [vmem:[%s180 + $0x100] sm:%s173]
                %215 = vst [vmem:[%s181 + $0x80] sm:%s173] %v214
                %v216 = vld [vmem:[%s180 + $0x110] sm:%s173]
                %217 = vst [vmem:[%s181 + $0x88] sm:%s173] %v216
                %v218 = vld [vmem:[%s180 + $0x120] sm:%s173]
                %219 = vst [vmem:[%s181 + $0x90] sm:%s173] %v218
                %v220 = vld [vmem:[%s180 + $0x130] sm:%s173]
                %221 = vst [vmem:[%s181 + $0x98] sm:%s173] %v220
                %v222 = vld [vmem:[%s180 + $0x140] sm:%s173]
                %223 = vst [vmem:[%s181 + $0xa0] sm:%s173] %v222
                %v224 = vld [vmem:[%s180 + $0x150] sm:%s173]
                %225 = vst [vmem:[%s181 + $0xa8] sm:%s173] %v224
                %v226 = vld [vmem:[%s180 + $0x160] sm:%s173]
                %227 = vst [vmem:[%s181 + $0xb0] sm:%s173] %v226
                %v228 = vld [vmem:[%s180 + $0x170] sm:%s173]
                %229 = vst [vmem:[%s181 + $0xb8] sm:%s173] %v228
                %v230 = vld [vmem:[%s180 + $0x180] sm:%s173]
                %231 = vst [vmem:[%s181 + $0xc0] sm:%s173] %v230
                %v232 = vld [vmem:[%s180 + $0x190] sm:%s173]
                %233 = vst [vmem:[%s181 + $0xc8] sm:%s173] %v232
                %v234 = vld [vmem:[%s180 + $0x1a0] sm:%s173]
                %235 = vst [vmem:[%s181 + $0xd0] sm:%s173] %v234
                %v236 = vld [vmem:[%s180 + $0x1b0] sm:%s173]
                %237 = vst [vmem:[%s181 + $0xd8] sm:%s173] %v236
                %v238 = vld [vmem:[%s180 + $0x1c0] sm:%s173]
                %239 = vst [vmem:[%s181 + $0xe0] sm:%s173] %v238
                %v240 = vld [vmem:[%s180 + $0x1d0] sm:%s173]
                %241 = vst [vmem:[%s181 + $0xe8] sm:%s173] %v240
                %v242 = vld [vmem:[%s180 + $0x1e0] sm:%s173]
                %243 = vst [vmem:[%s181 + $0xf0] sm:%s173] %v242
                %v244 = vld [vmem:[%s180 + $0x1f0] sm:%s173]
                %245 = vst [vmem:[%s181 + $0xf8] sm:%s173] %v244
                %v246 = vld [vmem:[%s180 + $0x200] sm:%s173]
                %247 = vst [vmem:[%s181 + $0x100] sm:%s173] %v246
                %v248 = vld [vmem:[%s180 + $0x210] sm:%s173]
                %249 = vst [vmem:[%s181 + $0x108] sm:%s173] %v248
                %v250 = vld [vmem:[%s180 + $0x220] sm:%s173]
                %251 = vst [vmem:[%s181 + $0x110] sm:%s173] %v250
                %v252 = vld [vmem:[%s180 + $0x230] sm:%s173]
                %253 = vst [vmem:[%s181 + $0x118] sm:%s173] %v252
                %v254 = vld [vmem:[%s180 + $0x240] sm:%s173]
                %255 = vst [vmem:[%s181 + $0x120] sm:%s173] %v254
                %v256 = vld [vmem:[%s180 + $0x250] sm:%s173]
                %257 = vst [vmem:[%s181 + $0x128] sm:%s173] %v256
                %v258 = vld [vmem:[%s180 + $0x260] sm:%s173]
                %259 = vst [vmem:[%s181 + $0x130] sm:%s173] %v258
                %v260 = vld [vmem:[%s180 + $0x270] sm:%s173]
                %261 = vst [vmem:[%s181 + $0x138] sm:%s173] %v260
                %v262 = vld [vmem:[%s180 + $0x280] sm:%s173]
                %263 = vst [vmem:[%s181 + $0x140] sm:%s173] %v262
                %v264 = vld [vmem:[%s180 + $0x290] sm:%s173]
                %265 = vst [vmem:[%s181 + $0x148] sm:%s173] %v264
                %v266 = vld [vmem:[%s180 + $0x2a0] sm:%s173]
                %267 = vst [vmem:[%s181 + $0x150] sm:%s173] %v266
                %v268 = vld [vmem:[%s180 + $0x2b0] sm:%s173]
                %269 = vst [vmem:[%s181 + $0x158] sm:%s173] %v268
                %v270 = vld [vmem:[%s180 + $0x2c0] sm:%s173]
                %271 = vst [vmem:[%s181 + $0x160] sm:%s173] %v270
                %v272 = vld [vmem:[%s180 + $0x2d0] sm:%s173]
                %273 = vst [vmem:[%s181 + $0x168] sm:%s173] %v272
                %v274 = vld [vmem:[%s180 + $0x2e0] sm:%s173]
                %275 = vst [vmem:[%s181 + $0x170] sm:%s173] %v274
                %v276 = vld [vmem:[%s180 + $0x2f0] sm:%s173]
                %277 = vst [vmem:[%s181 + $0x178] sm:%s173] %v276
                %v278 = vld [vmem:[%s180 + $0x300] sm:%s173]
                %279 = vst [vmem:[%s181 + $0x180] sm:%s173] %v278
                %v280 = vld [vmem:[%s180 + $0x310] sm:%s173]
                %281 = vst [vmem:[%s181 + $0x188] sm:%s173] %v280
                %v282 = vld [vmem:[%s180 + $0x320] sm:%s173]
                %283 = vst [vmem:[%s181 + $0x190] sm:%s173] %v282
                %v284 = vld [vmem:[%s180 + $0x330] sm:%s173]
                %285 = vst [vmem:[%s181 + $0x198] sm:%s173] %v284
                %v286 = vld [vmem:[%s180 + $0x340] sm:%s173]
                %287 = vst [vmem:[%s181 + $0x1a0] sm:%s173] %v286
                %v288 = vld [vmem:[%s180 + $0x350] sm:%s173]
                %289 = vst [vmem:[%s181 + $0x1a8] sm:%s173] %v288
                %v290 = vld [vmem:[%s180 + $0x360] sm:%s173]
                %291 = vst [vmem:[%s181 + $0x1b0] sm:%s173] %v290
                %v292 = vld [vmem:[%s180 + $0x370] sm:%s173]
                %293 = vst [vmem:[%s181 + $0x1b8] sm:%s173] %v292
                %v294 = vld [vmem:[%s180 + $0x380] sm:%s173]
                %295 = vst [vmem:[%s181 + $0x1c0] sm:%s173] %v294
                %v296 = vld [vmem:[%s180 + $0x390] sm:%s173]
                %297 = vst [vmem:[%s181 + $0x1c8] sm:%s173] %v296
                %v298 = vld [vmem:[%s180 + $0x3a0] sm:%s173]
                %299 = vst [vmem:[%s181 + $0x1d0] sm:%s173] %v298
                %v300 = vld [vmem:[%s180 + $0x3b0] sm:%s173]
                %301 = vst [vmem:[%s181 + $0x1d8] sm:%s173] %v300
                %v302 = vld [vmem:[%s180 + $0x3c0] sm:%s173]
                %303 = vst [vmem:[%s181 + $0x1e0] sm:%s173] %v302
                %v304 = vld [vmem:[%s180 + $0x3d0] sm:%s173]
                %305 = vst [vmem:[%s181 + $0x1e8] sm:%s173] %v304
                %v306 = vld [vmem:[%s180 + $0x3e0] sm:%s173]
                %307 = vst [vmem:[%s181 + $0x1f0] sm:%s173] %v306
                %v308 = vld [vmem:[%s180 + $0x3f0] sm:%s173]
                %309 = vst [vmem:[%s181 + $0x1f8] sm:%s173] %v308
                %v310 = vld [vmem:[%s180 + $0x400] sm:%s173]
                %311 = vst [vmem:[%s181 + $0x200] sm:%s173] %v310
                %v312 = vld [vmem:[%s180 + $0x410] sm:%s173]
                %313 = vst [vmem:[%s181 + $0x208] sm:%s173] %v312
                %v314 = vld [vmem:[%s180 + $0x420] sm:%s173]
                %315 = vst [vmem:[%s181 + $0x210] sm:%s173] %v314
                %v316 = vld [vmem:[%s180 + $0x430] sm:%s173]
                %317 = vst [vmem:[%s181 + $0x218] sm:%s173] %v316
                %v318 = vld [vmem:[%s180 + $0x440] sm:%s173]
                %319 = vst [vmem:[%s181 + $0x220] sm:%s173] %v318
                %v320 = vld [vmem:[%s180 + $0x450] sm:%s173]
                %321 = vst [vmem:[%s181 + $0x228] sm:%s173] %v320
                %v322 = vld [vmem:[%s180 + $0x460] sm:%s173]
                %323 = vst [vmem:[%s181 + $0x230] sm:%s173] %v322
                %v324 = vld [vmem:[%s180 + $0x470] sm:%s173]
                %325 = vst [vmem:[%s181 + $0x238] sm:%s173] %v324
                %v326 = vld [vmem:[%s180 + $0x480] sm:%s173]
                %327 = vst [vmem:[%s181 + $0x240] sm:%s173] %v326
                %v328 = vld [vmem:[%s180 + $0x490] sm:%s173]
                %329 = vst [vmem:[%s181 + $0x248] sm:%s173] %v328
                %v330 = vld [vmem:[%s180 + $0x4a0] sm:%s173]
                %331 = vst [vmem:[%s181 + $0x250] sm:%s173] %v330
                %v332 = vld [vmem:[%s180 + $0x4b0] sm:%s173]
                %333 = vst [vmem:[%s181 + $0x258] sm:%s173] %v332
                %v334 = vld [vmem:[%s180 + $0x4c0] sm:%s173]
                %335 = vst [vmem:[%s181 + $0x260] sm:%s173] %v334
                %v336 = vld [vmem:[%s180 + $0x4d0] sm:%s173]
                %337 = vst [vmem:[%s181 + $0x268] sm:%s173] %v336
                %v338 = vld [vmem:[%s180 + $0x4e0] sm:%s173]
                %339 = vst [vmem:[%s181 + $0x270] sm:%s173] %v338
                %v340 = vld [vmem:[%s180 + $0x4f0] sm:%s173]
                %341 = vst [vmem:[%s181 + $0x278] sm:%s173] %v340
                %v342 = vld [vmem:[%s180 + $0x500] sm:%s173]
                %343 = vst [vmem:[%s181 + $0x280] sm:%s173] %v342
                %v344 = vld [vmem:[%s180 + $0x510] sm:%s173]
                %345 = vst [vmem:[%s181 + $0x288] sm:%s173] %v344
                %v346 = vld [vmem:[%s180 + $0x520] sm:%s173]
                %347 = vst [vmem:[%s181 + $0x290] sm:%s173] %v346
                %v348 = vld [vmem:[%s180 + $0x530] sm:%s173]
                %349 = vst [vmem:[%s181 + $0x298] sm:%s173] %v348
                %v350 = vld [vmem:[%s180 + $0x540] sm:%s173]
                %351 = vst [vmem:[%s181 + $0x2a0] sm:%s173] %v350
                %v352 = vld [vmem:[%s180 + $0x550] sm:%s173]
                %353 = vst [vmem:[%s181 + $0x2a8] sm:%s173] %v352
                %v354 = vld [vmem:[%s180 + $0x560] sm:%s173]
                %355 = vst [vmem:[%s181 + $0x2b0] sm:%s173] %v354
                %v356 = vld [vmem:[%s180 + $0x570] sm:%s173]
                %357 = vst [vmem:[%s181 + $0x2b8] sm:%s173] %v356
                %v358 = vld [vmem:[%s180 + $0x580] sm:%s173]
                %359 = vst [vmem:[%s181 + $0x2c0] sm:%s173] %v358
                %v360 = vld [vmem:[%s180 + $0x590] sm:%s173]
                %361 = vst [vmem:[%s181 + $0x2c8] sm:%s173] %v360
                %v362 = vld [vmem:[%s180 + $0x5a0] sm:%s173]
                %363 = vst [vmem:[%s181 + $0x2d0] sm:%s173] %v362
                %v364 = vld [vmem:[%s180 + $0x5b0] sm:%s173]
                %365 = vst [vmem:[%s181 + $0x2d8] sm:%s173] %v364
                %v366 = vld [vmem:[%s180 + $0x5c0] sm:%s173]
                %367 = vst [vmem:[%s181 + $0x2e0] sm:%s173] %v366
                %v368 = vld [vmem:[%s180 + $0x5d0] sm:%s173]
                %369 = vst [vmem:[%s181 + $0x2e8] sm:%s173] %v368
                %v370 = vld [vmem:[%s180 + $0x5e0] sm:%s173]
                %371 = vst [vmem:[%s181 + $0x2f0] sm:%s173] %v370
                %v372 = vld [vmem:[%s180 + $0x5f0] sm:%s173]
                %373 = vst [vmem:[%s181 + $0x2f8] sm:%s173] %v372
                %v374 = vld [vmem:[%s180 + $0x600] sm:%s173]
                %375 = vst [vmem:[%s181 + $0x300] sm:%s173] %v374
                %v376 = vld [vmem:[%s180 + $0x610] sm:%s173]
                %377 = vst [vmem:[%s181 + $0x308] sm:%s173] %v376
                %v378 = vld [vmem:[%s180 + $0x620] sm:%s173]
                %379 = vst [vmem:[%s181 + $0x310] sm:%s173] %v378
                %v380 = vld [vmem:[%s180 + $0x630] sm:%s173]
                %381 = vst [vmem:[%s181 + $0x318] sm:%s173] %v380
                %v382 = vld [vmem:[%s180 + $0x640] sm:%s173]
                %383 = vst [vmem:[%s181 + $0x320] sm:%s173] %v382
                %v384 = vld [vmem:[%s180 + $0x650] sm:%s173]
                %385 = vst [vmem:[%s181 + $0x328] sm:%s173] %v384
                %v386 = vld [vmem:[%s180 + $0x660] sm:%s173]
                %387 = vst [vmem:[%s181 + $0x330] sm:%s173] %v386
                %v388 = vld [vmem:[%s180 + $0x670] sm:%s173]
                %389 = vst [vmem:[%s181 + $0x338] sm:%s173] %v388
                %v390 = vld [vmem:[%s180 + $0x680] sm:%s173]
                %391 = vst [vmem:[%s181 + $0x340] sm:%s173] %v390
                %v392 = vld [vmem:[%s180 + $0x690] sm:%s173]
                %393 = vst [vmem:[%s181 + $0x348] sm:%s173] %v392
                %v394 = vld [vmem:[%s180 + $0x6a0] sm:%s173]
                %395 = vst [vmem:[%s181 + $0x350] sm:%s173] %v394
                %v396 = vld [vmem:[%s180 + $0x6b0] sm:%s173]
                %397 = vst [vmem:[%s181 + $0x358] sm:%s173] %v396
                %v398 = vld [vmem:[%s180 + $0x6c0] sm:%s173]
                %399 = vst [vmem:[%s181 + $0x360] sm:%s173] %v398
                %v400 = vld [vmem:[%s180 + $0x6d0] sm:%s173]
                %401 = vst [vmem:[%s181 + $0x368] sm:%s173] %v400
                %v402 = vld [vmem:[%s180 + $0x6e0] sm:%s173]
                %403 = vst [vmem:[%s181 + $0x370] sm:%s173] %v402
                %v404 = vld [vmem:[%s180 + $0x6f0] sm:%s173]
                %405 = vst [vmem:[%s181 + $0x378] sm:%s173] %v404
                %v406 = vld [vmem:[%s180 + $0x700] sm:%s173]
                %407 = vst [vmem:[%s181 + $0x380] sm:%s173] %v406
                %v408 = vld [vmem:[%s180 + $0x710] sm:%s173]
                %409 = vst [vmem:[%s181 + $0x388] sm:%s173] %v408
                %v410 = vld [vmem:[%s180 + $0x720] sm:%s173]
                %411 = vst [vmem:[%s181 + $0x390] sm:%s173] %v410
                %v412 = vld [vmem:[%s180 + $0x730] sm:%s173]
                %413 = vst [vmem:[%s181 + $0x398] sm:%s173] %v412
                %v414 = vld [vmem:[%s180 + $0x740] sm:%s173]
                %415 = vst [vmem:[%s181 + $0x3a0] sm:%s173] %v414
                %v416 = vld [vmem:[%s180 + $0x750] sm:%s173]
                %417 = vst [vmem:[%s181 + $0x3a8] sm:%s173] %v416
                %v418 = vld [vmem:[%s180 + $0x760] sm:%s173]
                %419 = vst [vmem:[%s181 + $0x3b0] sm:%s173] %v418
                %v420 = vld [vmem:[%s180 + $0x770] sm:%s173]
                %421 = vst [vmem:[%s181 + $0x3b8] sm:%s173] %v420
                %v422 = vld [vmem:[%s180 + $0x780] sm:%s173]
                %423 = vst [vmem:[%s181 + $0x3c0] sm:%s173] %v422
                %v424 = vld [vmem:[%s180 + $0x790] sm:%s173]
                %425 = vst [vmem:[%s181 + $0x3c8] sm:%s173] %v424
                %v426 = vld [vmem:[%s180 + $0x7a0] sm:%s173]
                %427 = vst [vmem:[%s181 + $0x3d0] sm:%s173] %v426
                %v428 = vld [vmem:[%s180 + $0x7b0] sm:%s173]
                %429 = vst [vmem:[%s181 + $0x3d8] sm:%s173] %v428
                %v430 = vld [vmem:[%s180 + $0x7c0] sm:%s173]
                %431 = vst [vmem:[%s181 + $0x3e0] sm:%s173] %v430
                %v432 = vld [vmem:[%s180 + $0x7d0] sm:%s173]
                %433 = vst [vmem:[%s181 + $0x3e8] sm:%s173] %v432
                %v434 = vld [vmem:[%s180 + $0x7e0] sm:%s173]
                %435 = vst [vmem:[%s181 + $0x3f0] sm:%s173] %v434
                %v436 = vld [vmem:[%s180 + $0x7f0] sm:%s173]
                %437 = vst [vmem:[%s181 + $0x3f8] sm:%s173] %v436
                %v438 = vld [vmem:[%s180 + $0x800] sm:%s173]
                %439 = vst [vmem:[%s181 + $0x400] sm:%s173] %v438
                %v440 = vld [vmem:[%s180 + $0x810] sm:%s173]
                %441 = vst [vmem:[%s181 + $0x408] sm:%s173] %v440
                %v442 = vld [vmem:[%s180 + $0x820] sm:%s173]
                %443 = vst [vmem:[%s181 + $0x410] sm:%s173] %v442
                %v444 = vld [vmem:[%s180 + $0x830] sm:%s173]
                %445 = vst [vmem:[%s181 + $0x418] sm:%s173] %v444
                %v446 = vld [vmem:[%s180 + $0x840] sm:%s173]
                %447 = vst [vmem:[%s181 + $0x420] sm:%s173] %v446
                %v448 = vld [vmem:[%s180 + $0x850] sm:%s173]
                %449 = vst [vmem:[%s181 + $0x428] sm:%s173] %v448
                %v450 = vld [vmem:[%s180 + $0x860] sm:%s173]
                %451 = vst [vmem:[%s181 + $0x430] sm:%s173] %v450
                %v452 = vld [vmem:[%s180 + $0x870] sm:%s173]
                %453 = vst [vmem:[%s181 + $0x438] sm:%s173] %v452
                %v454 = vld [vmem:[%s180 + $0x880] sm:%s173]
                %455 = vst [vmem:[%s181 + $0x440] sm:%s173] %v454
                %v456 = vld [vmem:[%s180 + $0x890] sm:%s173]
                %457 = vst [vmem:[%s181 + $0x448] sm:%s173] %v456
                %v458 = vld [vmem:[%s180 + $0x8a0] sm:%s173]
                %459 = vst [vmem:[%s181 + $0x450] sm:%s173] %v458
                %v460 = vld [vmem:[%s180 + $0x8b0] sm:%s173]
                %461 = vst [vmem:[%s181 + $0x458] sm:%s173] %v460
                %v462 = vld [vmem:[%s180 + $0x8c0] sm:%s173]
                %463 = vst [vmem:[%s181 + $0x460] sm:%s173] %v462
                %v464 = vld [vmem:[%s180 + $0x8d0] sm:%s173]
                %465 = vst [vmem:[%s181 + $0x468] sm:%s173] %v464
                %v466 = vld [vmem:[%s180 + $0x8e0] sm:%s173]
                %467 = vst [vmem:[%s181 + $0x470] sm:%s173] %v466
                %v468 = vld [vmem:[%s180 + $0x8f0] sm:%s173]
                %469 = vst [vmem:[%s181 + $0x478] sm:%s173] %v468
                %v470 = vld [vmem:[%s180 + $0x900] sm:%s173]
                %471 = vst [vmem:[%s181 + $0x480] sm:%s173] %v470
                %v472 = vld [vmem:[%s180 + $0x910] sm:%s173]
                %473 = vst [vmem:[%s181 + $0x488] sm:%s173] %v472
                %v474 = vld [vmem:[%s180 + $0x920] sm:%s173]
                %475 = vst [vmem:[%s181 + $0x490] sm:%s173] %v474
                %v476 = vld [vmem:[%s180 + $0x930] sm:%s173]
                %477 = vst [vmem:[%s181 + $0x498] sm:%s173] %v476
                %v478 = vld [vmem:[%s180 + $0x940] sm:%s173]
                %479 = vst [vmem:[%s181 + $0x4a0] sm:%s173] %v478
                %v480 = vld [vmem:[%s180 + $0x950] sm:%s173]
                %481 = vst [vmem:[%s181 + $0x4a8] sm:%s173] %v480
                %v482 = vld [vmem:[%s180 + $0x960] sm:%s173]
                %483 = vst [vmem:[%s181 + $0x4b0] sm:%s173] %v482
                %v484 = vld [vmem:[%s180 + $0x970] sm:%s173]
                %485 = vst [vmem:[%s181 + $0x4b8] sm:%s173] %v484
                %v486 = vld [vmem:[%s180 + $0x980] sm:%s173]
                %487 = vst [vmem:[%s181 + $0x4c0] sm:%s173] %v486
                %v488 = vld [vmem:[%s180 + $0x990] sm:%s173]
                %489 = vst [vmem:[%s181 + $0x4c8] sm:%s173] %v488
                %v490 = vld [vmem:[%s180 + $0x9a0] sm:%s173]
                %491 = vst [vmem:[%s181 + $0x4d0] sm:%s173] %v490
                %v492 = vld [vmem:[%s180 + $0x9b0] sm:%s173]
                %493 = vst [vmem:[%s181 + $0x4d8] sm:%s173] %v492
                %v494 = vld [vmem:[%s180 + $0x9c0] sm:%s173]
                %495 = vst [vmem:[%s181 + $0x4e0] sm:%s173] %v494
                %v496 = vld [vmem:[%s180 + $0x9d0] sm:%s173]
                %497 = vst [vmem:[%s181 + $0x4e8] sm:%s173] %v496
                %v498 = vld [vmem:[%s180 + $0x9e0] sm:%s173]
                %499 = vst [vmem:[%s181 + $0x4f0] sm:%s173] %v498
                %v500 = vld [vmem:[%s180 + $0x9f0] sm:%s173]
                %501 = vst [vmem:[%s181 + $0x4f8] sm:%s173] %v500
                %v502 = vld [vmem:[%s180 + $0xa00] sm:%s173]
                %503 = vst [vmem:[%s181 + $0x500] sm:%s173] %v502
                %v504 = vld [vmem:[%s180 + $0xa10] sm:%s173]
                %505 = vst [vmem:[%s181 + $0x508] sm:%s173] %v504
                %v506 = vld [vmem:[%s180 + $0xa20] sm:%s173]
                %507 = vst [vmem:[%s181 + $0x510] sm:%s173] %v506
                %v508 = vld [vmem:[%s180 + $0xa30] sm:%s173]
                %509 = vst [vmem:[%s181 + $0x518] sm:%s173] %v508
                %v510 = vld [vmem:[%s180 + $0xa40] sm:%s173]
                %511 = vst [vmem:[%s181 + $0x520] sm:%s173] %v510
                %v512 = vld [vmem:[%s180 + $0xa50] sm:%s173]
                %513 = vst [vmem:[%s181 + $0x528] sm:%s173] %v512
                %v514 = vld [vmem:[%s180 + $0xa60] sm:%s173]
                %515 = vst [vmem:[%s181 + $0x530] sm:%s173] %v514
                %v516 = vld [vmem:[%s180 + $0xa70] sm:%s173]
                %517 = vst [vmem:[%s181 + $0x538] sm:%s173] %v516
                %v518 = vld [vmem:[%s180 + $0xa80] sm:%s173]
                %519 = vst [vmem:[%s181 + $0x540] sm:%s173] %v518
                %v520 = vld [vmem:[%s180 + $0xa90] sm:%s173]
                %521 = vst [vmem:[%s181 + $0x548] sm:%s173] %v520
                %v522 = vld [vmem:[%s180 + $0xaa0] sm:%s173]
                %523 = vst [vmem:[%s181 + $0x550] sm:%s173] %v522
                %v524 = vld [vmem:[%s180 + $0xab0] sm:%s173]
                %525 = vst [vmem:[%s181 + $0x558] sm:%s173] %v524
                %v526 = vld [vmem:[%s180 + $0xac0] sm:%s173]
                %527 = vst [vmem:[%s181 + $0x560] sm:%s173] %v526
                %v528 = vld [vmem:[%s180 + $0xad0] sm:%s173]
                %529 = vst [vmem:[%s181 + $0x568] sm:%s173] %v528
                %v530 = vld [vmem:[%s180 + $0xae0] sm:%s173]
                %531 = vst [vmem:[%s181 + $0x570] sm:%s173] %v530
                %v532 = vld [vmem:[%s180 + $0xaf0] sm:%s173]
                %533 = vst [vmem:[%s181 + $0x578] sm:%s173] %v532
                %v534 = vld [vmem:[%s180 + $0xb00] sm:%s173]
                %535 = vst [vmem:[%s181 + $0x580] sm:%s173] %v534
                %v536 = vld [vmem:[%s180 + $0xb10] sm:%s173]
                %537 = vst [vmem:[%s181 + $0x588] sm:%s173] %v536
                %v538 = vld [vmem:[%s180 + $0xb20] sm:%s173]
                %539 = vst [vmem:[%s181 + $0x590] sm:%s173] %v538
                %v540 = vld [vmem:[%s180 + $0xb30] sm:%s173]
                %541 = vst [vmem:[%s181 + $0x598] sm:%s173] %v540
                %v542 = vld [vmem:[%s180 + $0xb40] sm:%s173]
                %543 = vst [vmem:[%s181 + $0x5a0] sm:%s173] %v542
                %v544 = vld [vmem:[%s180 + $0xb50] sm:%s173]
                %545 = vst [vmem:[%s181 + $0x5a8] sm:%s173] %v544
                %v546 = vld [vmem:[%s180 + $0xb60] sm:%s173]
                %547 = vst [vmem:[%s181 + $0x5b0] sm:%s173] %v546
                %v548 = vld [vmem:[%s180 + $0xb70] sm:%s173]
                %549 = vst [vmem:[%s181 + $0x5b8] sm:%s173] %v548
                %v550 = vld [vmem:[%s180 + $0xb80] sm:%s173]
                %551 = vst [vmem:[%s181 + $0x5c0] sm:%s173] %v550
                %v552 = vld [vmem:[%s180 + $0xb90] sm:%s173]
                %553 = vst [vmem:[%s181 + $0x5c8] sm:%s173] %v552
                %v554 = vld [vmem:[%s180 + $0xba0] sm:%s173]
                %555 = vst [vmem:[%s181 + $0x5d0] sm:%s173] %v554
                %v556 = vld [vmem:[%s180 + $0xbb0] sm:%s173]
                %557 = vst [vmem:[%s181 + $0x5d8] sm:%s173] %v556
                %v558 = vld [vmem:[%s180 + $0xbc0] sm:%s173]
                %559 = vst [vmem:[%s181 + $0x5e0] sm:%s173] %v558
                %v560 = vld [vmem:[%s180 + $0xbd0] sm:%s173]
                %561 = vst [vmem:[%s181 + $0x5e8] sm:%s173] %v560
                %v562 = vld [vmem:[%s180 + $0xbe0] sm:%s173]
                %563 = vst [vmem:[%s181 + $0x5f0] sm:%s173] %v562
                %v564 = vld [vmem:[%s180 + $0xbf0] sm:%s173]
                %565 = vst [vmem:[%s181 + $0x5f8] sm:%s173] %v564
                %v566 = vld [vmem:[%s180 + $0xc00] sm:%s173]
                %567 = vst [vmem:[%s181 + $0x600] sm:%s173] %v566
                %v568 = vld [vmem:[%s180 + $0xc10] sm:%s173]
                %569 = vst [vmem:[%s181 + $0x608] sm:%s173] %v568
                %v570 = vld [vmem:[%s180 + $0xc20] sm:%s173]
                %571 = vst [vmem:[%s181 + $0x610] sm:%s173] %v570
                %v572 = vld [vmem:[%s180 + $0xc30] sm:%s173]
                %573 = vst [vmem:[%s181 + $0x618] sm:%s173] %v572
                %v574 = vld [vmem:[%s180 + $0xc40] sm:%s173]
                %575 = vst [vmem:[%s181 + $0x620] sm:%s173] %v574
                %v576 = vld [vmem:[%s180 + $0xc50] sm:%s173]
                %577 = vst [vmem:[%s181 + $0x628] sm:%s173] %v576
                %v578 = vld [vmem:[%s180 + $0xc60] sm:%s173]
                %579 = vst [vmem:[%s181 + $0x630] sm:%s173] %v578
                %v580 = vld [vmem:[%s180 + $0xc70] sm:%s173]
                %581 = vst [vmem:[%s181 + $0x638] sm:%s173] %v580
                %v582 = vld [vmem:[%s180 + $0xc80] sm:%s173]
                %583 = vst [vmem:[%s181 + $0x640] sm:%s173] %v582
                %v584 = vld [vmem:[%s180 + $0xc90] sm:%s173]
                %585 = vst [vmem:[%s181 + $0x648] sm:%s173] %v584
                %v586 = vld [vmem:[%s180 + $0xca0] sm:%s173]
                %587 = vst [vmem:[%s181 + $0x650] sm:%s173] %v586
                %v588 = vld [vmem:[%s180 + $0xcb0] sm:%s173]
                %589 = vst [vmem:[%s181 + $0x658] sm:%s173] %v588
                %v590 = vld [vmem:[%s180 + $0xcc0] sm:%s173]
                %591 = vst [vmem:[%s181 + $0x660] sm:%s173] %v590
                %v592 = vld [vmem:[%s180 + $0xcd0] sm:%s173]
                %593 = vst [vmem:[%s181 + $0x668] sm:%s173] %v592
                %v594 = vld [vmem:[%s180 + $0xce0] sm:%s173]
                %595 = vst [vmem:[%s181 + $0x670] sm:%s173] %v594
                %v596 = vld [vmem:[%s180 + $0xcf0] sm:%s173]
                %597 = vst [vmem:[%s181 + $0x678] sm:%s173] %v596
                %v598 = vld [vmem:[%s180 + $0xd00] sm:%s173]
                %599 = vst [vmem:[%s181 + $0x680] sm:%s173] %v598
                %v600 = vld [vmem:[%s180 + $0xd10] sm:%s173]
                %601 = vst [vmem:[%s181 + $0x688] sm:%s173] %v600
                %v602 = vld [vmem:[%s180 + $0xd20] sm:%s173]
                %603 = vst [vmem:[%s181 + $0x690] sm:%s173] %v602
                %v604 = vld [vmem:[%s180 + $0xd30] sm:%s173]
                %605 = vst [vmem:[%s181 + $0x698] sm:%s173] %v604
                %v606 = vld [vmem:[%s180 + $0xd40] sm:%s173]
                %607 = vst [vmem:[%s181 + $0x6a0] sm:%s173] %v606
                %v608 = vld [vmem:[%s180 + $0xd50] sm:%s173]
                %609 = vst [vmem:[%s181 + $0x6a8] sm:%s173] %v608
                %v610 = vld [vmem:[%s180 + $0xd60] sm:%s173]
                %611 = vst [vmem:[%s181 + $0x6b0] sm:%s173] %v610
                %v612 = vld [vmem:[%s180 + $0xd70] sm:%s173]
                %613 = vst [vmem:[%s181 + $0x6b8] sm:%s173] %v612
                %v614 = vld [vmem:[%s180 + $0xd80] sm:%s173]
                %615 = vst [vmem:[%s181 + $0x6c0] sm:%s173] %v614
                %v616 = vld [vmem:[%s180 + $0xd90] sm:%s173]
                %617 = vst [vmem:[%s181 + $0x6c8] sm:%s173] %v616
                %v618 = vld [vmem:[%s180 + $0xda0] sm:%s173]
                %619 = vst [vmem:[%s181 + $0x6d0] sm:%s173] %v618
                %v620 = vld [vmem:[%s180 + $0xdb0] sm:%s173]
                %621 = vst [vmem:[%s181 + $0x6d8] sm:%s173] %v620
                %v622 = vld [vmem:[%s180 + $0xdc0] sm:%s173]
                %623 = vst [vmem:[%s181 + $0x6e0] sm:%s173] %v622
                %v624 = vld [vmem:[%s180 + $0xdd0] sm:%s173]
                %625 = vst [vmem:[%s181 + $0x6e8] sm:%s173] %v624
                %v626 = vld [vmem:[%s180 + $0xde0] sm:%s173]
                %627 = vst [vmem:[%s181 + $0x6f0] sm:%s173] %v626
                %v628 = vld [vmem:[%s180 + $0xdf0] sm:%s173]
                %629 = vst [vmem:[%s181 + $0x6f8] sm:%s173] %v628
                %v630 = vld [vmem:[%s180 + $0xe00] sm:%s173]
                %631 = vst [vmem:[%s181 + $0x700] sm:%s173] %v630
                %v632 = vld [vmem:[%s180 + $0xe10] sm:%s173]
                %633 = vst [vmem:[%s181 + $0x708] sm:%s173] %v632
                %v634 = vld [vmem:[%s180 + $0xe20] sm:%s173]
                %635 = vst [vmem:[%s181 + $0x710] sm:%s173] %v634
                %v636 = vld [vmem:[%s180 + $0xe30] sm:%s173]
                %637 = vst [vmem:[%s181 + $0x718] sm:%s173] %v636
                %v638 = vld [vmem:[%s180 + $0xe40] sm:%s173]
                %639 = vst [vmem:[%s181 + $0x720] sm:%s173] %v638
                %v640 = vld [vmem:[%s180 + $0xe50] sm:%s173]
                %641 = vst [vmem:[%s181 + $0x728] sm:%s173] %v640
                %v642 = vld [vmem:[%s180 + $0xe60] sm:%s173]
                %643 = vst [vmem:[%s181 + $0x730] sm:%s173] %v642
                %v644 = vld [vmem:[%s180 + $0xe70] sm:%s173]
                %645 = vst [vmem:[%s181 + $0x738] sm:%s173] %v644
                %v646 = vld [vmem:[%s180 + $0xe80] sm:%s173]
                %647 = vst [vmem:[%s181 + $0x740] sm:%s173] %v646
                %v648 = vld [vmem:[%s180 + $0xe90] sm:%s173]
                %649 = vst [vmem:[%s181 + $0x748] sm:%s173] %v648
                %v650 = vld [vmem:[%s180 + $0xea0] sm:%s173]
                %651 = vst [vmem:[%s181 + $0x750] sm:%s173] %v650
                %v652 = vld [vmem:[%s180 + $0xeb0] sm:%s173]
                %653 = vst [vmem:[%s181 + $0x758] sm:%s173] %v652
                %v654 = vld [vmem:[%s180 + $0xec0] sm:%s173]
                %655 = vst [vmem:[%s181 + $0x760] sm:%s173] %v654
                %v656 = vld [vmem:[%s180 + $0xed0] sm:%s173]
                %657 = vst [vmem:[%s181 + $0x768] sm:%s173] %v656
                %v658 = vld [vmem:[%s180 + $0xee0] sm:%s173]
                %659 = vst [vmem:[%s181 + $0x770] sm:%s173] %v658
                %v660 = vld [vmem:[%s180 + $0xef0] sm:%s173]
                %661 = vst [vmem:[%s181 + $0x778] sm:%s173] %v660
                %v662 = vld [vmem:[%s180 + $0xf00] sm:%s173]
                %663 = vst [vmem:[%s181 + $0x780] sm:%s173] %v662
                %v664 = vld [vmem:[%s180 + $0xf10] sm:%s173]
                %665 = vst [vmem:[%s181 + $0x788] sm:%s173] %v664
                %v666 = vld [vmem:[%s180 + $0xf20] sm:%s173]
                %667 = vst [vmem:[%s181 + $0x790] sm:%s173] %v666
                %v668 = vld [vmem:[%s180 + $0xf30] sm:%s173]
                %669 = vst [vmem:[%s181 + $0x798] sm:%s173] %v668
                %v670 = vld [vmem:[%s180 + $0xf40] sm:%s173]
                %671 = vst [vmem:[%s181 + $0x7a0] sm:%s173] %v670
                %v672 = vld [vmem:[%s180 + $0xf50] sm:%s173]
                %673 = vst [vmem:[%s181 + $0x7a8] sm:%s173] %v672
                %v674 = vld [vmem:[%s180 + $0xf60] sm:%s173]
                %675 = vst [vmem:[%s181 + $0x7b0] sm:%s173] %v674
                %v676 = vld [vmem:[%s180 + $0xf70] sm:%s173]
                %677 = vst [vmem:[%s181 + $0x7b8] sm:%s173] %v676
                %v678 = vld [vmem:[%s180 + $0xf80] sm:%s173]
                %679 = vst [vmem:[%s181 + $0x7c0] sm:%s173] %v678
                %v680 = vld [vmem:[%s180 + $0xf90] sm:%s173]
                %681 = vst [vmem:[%s181 + $0x7c8] sm:%s173] %v680
                %v682 = vld [vmem:[%s180 + $0xfa0] sm:%s173]
                %683 = vst [vmem:[%s181 + $0x7d0] sm:%s173] %v682
                %v684 = vld [vmem:[%s180 + $0xfb0] sm:%s173]
                %685 = vst [vmem:[%s181 + $0x7d8] sm:%s173] %v684
                %v686 = vld [vmem:[%s180 + $0xfc0] sm:%s173]
                %687 = vst [vmem:[%s181 + $0x7e0] sm:%s173] %v686
                %v688 = vld [vmem:[%s180 + $0xfd0] sm:%s173]
                %689 = vst [vmem:[%s181 + $0x7e8] sm:%s173] %v688
                %v690 = vld [vmem:[%s180 + $0xfe0] sm:%s173]
                %691 = vst [vmem:[%s181 + $0x7f0] sm:%s173] %v690
                %v692 = vld [vmem:[%s180 + $0xff0] sm:%s173]
                %693 = vst [vmem:[%s181 + $0x7f8] sm:%s173] %v692
                %v694 = vld [vmem:[%s180 + $0x1000] sm:%s173]
                %695 = vst [vmem:[%s181 + $0x800] sm:%s173] %v694
                %v696 = vld [vmem:[%s180 + $0x1010] sm:%s173]
                %697 = vst [vmem:[%s181 + $0x808] sm:%s173] %v696
                %v698 = vld [vmem:[%s180 + $0x1020] sm:%s173]
                %699 = vst [vmem:[%s181 + $0x810] sm:%s173] %v698
                %v700 = vld [vmem:[%s180 + $0x1030] sm:%s173]
                %701 = vst [vmem:[%s181 + $0x818] sm:%s173] %v700
                %v702 = vld [vmem:[%s180 + $0x1040] sm:%s173]
                %703 = vst [vmem:[%s181 + $0x820] sm:%s173] %v702
                %v704 = vld [vmem:[%s180 + $0x1050] sm:%s173]
                %705 = vst [vmem:[%s181 + $0x828] sm:%s173] %v704
                %v706 = vld [vmem:[%s180 + $0x1060] sm:%s173]
                %707 = vst [vmem:[%s181 + $0x830] sm:%s173] %v706
                %v708 = vld [vmem:[%s180 + $0x1070] sm:%s173]
                %709 = vst [vmem:[%s181 + $0x838] sm:%s173] %v708
                %v710 = vld [vmem:[%s180 + $0x1080] sm:%s173]
                %711 = vst [vmem:[%s181 + $0x840] sm:%s173] %v710
                %v712 = vld [vmem:[%s180 + $0x1090] sm:%s173]
                %713 = vst [vmem:[%s181 + $0x848] sm:%s173] %v712
                %v714 = vld [vmem:[%s180 + $0x10a0] sm:%s173]
                %715 = vst [vmem:[%s181 + $0x850] sm:%s173] %v714
                %v716 = vld [vmem:[%s180 + $0x10b0] sm:%s173]
                %717 = vst [vmem:[%s181 + $0x858] sm:%s173] %v716
                %v718 = vld [vmem:[%s180 + $0x10c0] sm:%s173]
                %719 = vst [vmem:[%s181 + $0x860] sm:%s173] %v718
                %v720 = vld [vmem:[%s180 + $0x10d0] sm:%s173]
                %721 = vst [vmem:[%s181 + $0x868] sm:%s173] %v720
                %v722 = vld [vmem:[%s180 + $0x10e0] sm:%s173]
                %723 = vst [vmem:[%s181 + $0x870] sm:%s173] %v722
                %v724 = vld [vmem:[%s180 + $0x10f0] sm:%s173]
                %725 = vst [vmem:[%s181 + $0x878] sm:%s173] %v724
                %v726 = vld [vmem:[%s180 + $0x1100] sm:%s173]
                %727 = vst [vmem:[%s181 + $0x880] sm:%s173] %v726
                %v728 = vld [vmem:[%s180 + $0x1110] sm:%s173]
                %729 = vst [vmem:[%s181 + $0x888] sm:%s173] %v728
                %v730 = vld [vmem:[%s180 + $0x1120] sm:%s173]
                %731 = vst [vmem:[%s181 + $0x890] sm:%s173] %v730
                %v732 = vld [vmem:[%s180 + $0x1130] sm:%s173]
                %733 = vst [vmem:[%s181 + $0x898] sm:%s173] %v732
                %v734 = vld [vmem:[%s180 + $0x1140] sm:%s173]
                %735 = vst [vmem:[%s181 + $0x8a0] sm:%s173] %v734
                %v736 = vld [vmem:[%s180 + $0x1150] sm:%s173]
                %737 = vst [vmem:[%s181 + $0x8a8] sm:%s173] %v736
                %v738 = vld [vmem:[%s180 + $0x1160] sm:%s173]
                %739 = vst [vmem:[%s181 + $0x8b0] sm:%s173] %v738
                %v740 = vld [vmem:[%s180 + $0x1170] sm:%s173]
                %741 = vst [vmem:[%s181 + $0x8b8] sm:%s173] %v740
                %v742 = vld [vmem:[%s180 + $0x1180] sm:%s173]
                %743 = vst [vmem:[%s181 + $0x8c0] sm:%s173] %v742
                %v744 = vld [vmem:[%s180 + $0x1190] sm:%s173]
                %745 = vst [vmem:[%s181 + $0x8c8] sm:%s173] %v744
                %v746 = vld [vmem:[%s180 + $0x11a0] sm:%s173]
                %747 = vst [vmem:[%s181 + $0x8d0] sm:%s173] %v746
                %v748 = vld [vmem:[%s180 + $0x11b0] sm:%s173]
                %749 = vst [vmem:[%s181 + $0x8d8] sm:%s173] %v748
                %v750 = vld [vmem:[%s180 + $0x11c0] sm:%s173]
                %751 = vst [vmem:[%s181 + $0x8e0] sm:%s173] %v750
                %v752 = vld [vmem:[%s180 + $0x11d0] sm:%s173]
                %753 = vst [vmem:[%s181 + $0x8e8] sm:%s173] %v752
                %v754 = vld [vmem:[%s180 + $0x11e0] sm:%s173]
                %755 = vst [vmem:[%s181 + $0x8f0] sm:%s173] %v754
                %v756 = vld [vmem:[%s180 + $0x11f0] sm:%s173]
                %757 = vst [vmem:[%s181 + $0x8f8] sm:%s173] %v756
                %v758 = vld [vmem:[%s180 + $0x1200] sm:%s173]
                %759 = vst [vmem:[%s181 + $0x900] sm:%s173] %v758
                %v760 = vld [vmem:[%s180 + $0x1210] sm:%s173]
                %761 = vst [vmem:[%s181 + $0x908] sm:%s173] %v760
                %v762 = vld [vmem:[%s180 + $0x1220] sm:%s173]
                %763 = vst [vmem:[%s181 + $0x910] sm:%s173] %v762
                %v764 = vld [vmem:[%s180 + $0x1230] sm:%s173]
                %765 = vst [vmem:[%s181 + $0x918] sm:%s173] %v764
                %v766 = vld [vmem:[%s180 + $0x1240] sm:%s173]
                %767 = vst [vmem:[%s181 + $0x920] sm:%s173] %v766
                %v768 = vld [vmem:[%s180 + $0x1250] sm:%s173]
                %769 = vst [vmem:[%s181 + $0x928] sm:%s173] %v768
                %v770 = vld [vmem:[%s180 + $0x1260] sm:%s173]
                %771 = vst [vmem:[%s181 + $0x930] sm:%s173] %v770
                %v772 = vld [vmem:[%s180 + $0x1270] sm:%s173]
                %773 = vst [vmem:[%s181 + $0x938] sm:%s173] %v772
                %v774 = vld [vmem:[%s180 + $0x1280] sm:%s173]
                %775 = vst [vmem:[%s181 + $0x940] sm:%s173] %v774
                %v776 = vld [vmem:[%s180 + $0x1290] sm:%s173]
                %777 = vst [vmem:[%s181 + $0x948] sm:%s173] %v776
                %v778 = vld [vmem:[%s180 + $0x12a0] sm:%s173]
                %779 = vst [vmem:[%s181 + $0x950] sm:%s173] %v778
                %v780 = vld [vmem:[%s180 + $0x12b0] sm:%s173]
                %781 = vst [vmem:[%s181 + $0x958] sm:%s173] %v780
                %v782 = vld [vmem:[%s180 + $0x12c0] sm:%s173]
                %783 = vst [vmem:[%s181 + $0x960] sm:%s173] %v782
                %v784 = vld [vmem:[%s180 + $0x12d0] sm:%s173]
                %785 = vst [vmem:[%s181 + $0x968] sm:%s173] %v784
                %v786 = vld [vmem:[%s180 + $0x12e0] sm:%s173]
                %787 = vst [vmem:[%s181 + $0x970] sm:%s173] %v786
                %v788 = vld [vmem:[%s180 + $0x12f0] sm:%s173]
                %789 = vst [vmem:[%s181 + $0x978] sm:%s173] %v788
                %v790 = vld [vmem:[%s180 + $0x1300] sm:%s173]
                %791 = vst [vmem:[%s181 + $0x980] sm:%s173] %v790
                %v792 = vld [vmem:[%s180 + $0x1310] sm:%s173]
                %793 = vst [vmem:[%s181 + $0x988] sm:%s173] %v792
                %v794 = vld [vmem:[%s180 + $0x1320] sm:%s173]
                %795 = vst [vmem:[%s181 + $0x990] sm:%s173] %v794
                %v796 = vld [vmem:[%s180 + $0x1330] sm:%s173]
                %797 = vst [vmem:[%s181 + $0x998] sm:%s173] %v796
                %v798 = vld [vmem:[%s180 + $0x1340] sm:%s173]
                %799 = vst [vmem:[%s181 + $0x9a0] sm:%s173] %v798
                %v800 = vld [vmem:[%s180 + $0x1350] sm:%s173]
                %801 = vst [vmem:[%s181 + $0x9a8] sm:%s173] %v800
                %v802 = vld [vmem:[%s180 + $0x1360] sm:%s173]
                %803 = vst [vmem:[%s181 + $0x9b0] sm:%s173] %v802
                %v804 = vld [vmem:[%s180 + $0x1370] sm:%s173]
                %805 = vst [vmem:[%s181 + $0x9b8] sm:%s173] %v804
                %v806 = vld [vmem:[%s180 + $0x1380] sm:%s173]
                %807 = vst [vmem:[%s181 + $0x9c0] sm:%s173] %v806
                %v808 = vld [vmem:[%s180 + $0x1390] sm:%s173]
                %809 = vst [vmem:[%s181 + $0x9c8] sm:%s173] %v808
                %v810 = vld [vmem:[%s180 + $0x13a0] sm:%s173]
                %811 = vst [vmem:[%s181 + $0x9d0] sm:%s173] %v810
                %v812 = vld [vmem:[%s180 + $0x13b0] sm:%s173]
                %813 = vst [vmem:[%s181 + $0x9d8] sm:%s173] %v812
                %v814 = vld [vmem:[%s180 + $0x13c0] sm:%s173]
                %815 = vst [vmem:[%s181 + $0x9e0] sm:%s173] %v814
                %v816 = vld [vmem:[%s180 + $0x13d0] sm:%s173]
                %817 = vst [vmem:[%s181 + $0x9e8] sm:%s173] %v816
                %v818 = vld [vmem:[%s180 + $0x13e0] sm:%s173]
                %819 = vst [vmem:[%s181 + $0x9f0] sm:%s173] %v818
                %v820 = vld [vmem:[%s180 + $0x13f0] sm:%s173]
                %821 = vst [vmem:[%s181 + $0x9f8] sm:%s173] %v820
                %v822 = vld [vmem:[%s180 + $0x1400] sm:%s173]
                %823 = vst [vmem:[%s181 + $0xa00] sm:%s173] %v822
                %v824 = vld [vmem:[%s180 + $0x1410] sm:%s173]
                %825 = vst [vmem:[%s181 + $0xa08] sm:%s173] %v824
                %v826 = vld [vmem:[%s180 + $0x1420] sm:%s173]
                %827 = vst [vmem:[%s181 + $0xa10] sm:%s173] %v826
                %v828 = vld [vmem:[%s180 + $0x1430] sm:%s173]
                %829 = vst [vmem:[%s181 + $0xa18] sm:%s173] %v828
                %v830 = vld [vmem:[%s180 + $0x1440] sm:%s173]
                %831 = vst [vmem:[%s181 + $0xa20] sm:%s173] %v830
                %v832 = vld [vmem:[%s180 + $0x1450] sm:%s173]
                %833 = vst [vmem:[%s181 + $0xa28] sm:%s173] %v832
                %v834 = vld [vmem:[%s180 + $0x1460] sm:%s173]
                %835 = vst [vmem:[%s181 + $0xa30] sm:%s173] %v834
                %v836 = vld [vmem:[%s180 + $0x1470] sm:%s173]
                %837 = vst [vmem:[%s181 + $0xa38] sm:%s173] %v836
                %v838 = vld [vmem:[%s180 + $0x1480] sm:%s173]
                %839 = vst [vmem:[%s181 + $0xa40] sm:%s173] %v838
                %v840 = vld [vmem:[%s180 + $0x1490] sm:%s173]
                %841 = vst [vmem:[%s181 + $0xa48] sm:%s173] %v840
                %v842 = vld [vmem:[%s180 + $0x14a0] sm:%s173]
                %843 = vst [vmem:[%s181 + $0xa50] sm:%s173] %v842
                %v844 = vld [vmem:[%s180 + $0x14b0] sm:%s173]
                %845 = vst [vmem:[%s181 + $0xa58] sm:%s173] %v844
                %v846 = vld [vmem:[%s180 + $0x14c0] sm:%s173]
                %847 = vst [vmem:[%s181 + $0xa60] sm:%s173] %v846
                %v848 = vld [vmem:[%s180 + $0x14d0] sm:%s173]
                %849 = vst [vmem:[%s181 + $0xa68] sm:%s173] %v848
                %v850 = vld [vmem:[%s180 + $0x14e0] sm:%s173]
                %851 = vst [vmem:[%s181 + $0xa70] sm:%s173] %v850
                %v852 = vld [vmem:[%s180 + $0x14f0] sm:%s173]
                %853 = vst [vmem:[%s181 + $0xa78] sm:%s173] %v852
                %v854 = vld [vmem:[%s180 + $0x1500] sm:%s173]
                %855 = vst [vmem:[%s181 + $0xa80] sm:%s173] %v854
                %v856 = vld [vmem:[%s180 + $0x1510] sm:%s173]
                %857 = vst [vmem:[%s181 + $0xa88] sm:%s173] %v856
                %v858 = vld [vmem:[%s180 + $0x1520] sm:%s173]
                %859 = vst [vmem:[%s181 + $0xa90] sm:%s173] %v858
                %v860 = vld [vmem:[%s180 + $0x1530] sm:%s173]
                %861 = vst [vmem:[%s181 + $0xa98] sm:%s173] %v860
                %v862 = vld [vmem:[%s180 + $0x1540] sm:%s173]
                %863 = vst [vmem:[%s181 + $0xaa0] sm:%s173] %v862
                %v864 = vld [vmem:[%s180 + $0x1550] sm:%s173]
                %865 = vst [vmem:[%s181 + $0xaa8] sm:%s173] %v864
                %v866 = vld [vmem:[%s180 + $0x1560] sm:%s173]
                %867 = vst [vmem:[%s181 + $0xab0] sm:%s173] %v866
                %v868 = vld [vmem:[%s180 + $0x1570] sm:%s173]
                %869 = vst [vmem:[%s181 + $0xab8] sm:%s173] %v868
                %v870 = vld [vmem:[%s180 + $0x1580] sm:%s173]
                %871 = vst [vmem:[%s181 + $0xac0] sm:%s173] %v870
                %v872 = vld [vmem:[%s180 + $0x1590] sm:%s173]
                %873 = vst [vmem:[%s181 + $0xac8] sm:%s173] %v872
                %v874 = vld [vmem:[%s180 + $0x15a0] sm:%s173]
                %875 = vst [vmem:[%s181 + $0xad0] sm:%s173] %v874
                %v876 = vld [vmem:[%s180 + $0x15b0] sm:%s173]
                %877 = vst [vmem:[%s181 + $0xad8] sm:%s173] %v876
                %v878 = vld [vmem:[%s180 + $0x15c0] sm:%s173]
                %879 = vst [vmem:[%s181 + $0xae0] sm:%s173] %v878
                %v880 = vld [vmem:[%s180 + $0x15d0] sm:%s173]
                %881 = vst [vmem:[%s181 + $0xae8] sm:%s173] %v880
                %v882 = vld [vmem:[%s180 + $0x15e0] sm:%s173]
                %883 = vst [vmem:[%s181 + $0xaf0] sm:%s173] %v882
                %v884 = vld [vmem:[%s180 + $0x15f0] sm:%s173]
                %885 = vst [vmem:[%s181 + $0xaf8] sm:%s173] %v884
                %v886 = vld [vmem:[%s180 + $0x1600] sm:%s173]
                %887 = vst [vmem:[%s181 + $0xb00] sm:%s173] %v886
                %v888 = vld [vmem:[%s180 + $0x1610] sm:%s173]
                %889 = vst [vmem:[%s181 + $0xb08] sm:%s173] %v888
                %v890 = vld [vmem:[%s180 + $0x1620] sm:%s173]
                %891 = vst [vmem:[%s181 + $0xb10] sm:%s173] %v890
                %v892 = vld [vmem:[%s180 + $0x1630] sm:%s173]
                %893 = vst [vmem:[%s181 + $0xb18] sm:%s173] %v892
                %v894 = vld [vmem:[%s180 + $0x1640] sm:%s173]
                %895 = vst [vmem:[%s181 + $0xb20] sm:%s173] %v894
                %v896 = vld [vmem:[%s180 + $0x1650] sm:%s173]
                %897 = vst [vmem:[%s181 + $0xb28] sm:%s173] %v896
                %v898 = vld [vmem:[%s180 + $0x1660] sm:%s173]
                %899 = vst [vmem:[%s181 + $0xb30] sm:%s173] %v898
                %v900 = vld [vmem:[%s180 + $0x1670] sm:%s173]
                %901 = vst [vmem:[%s181 + $0xb38] sm:%s173] %v900
                %v902 = vld [vmem:[%s180 + $0x1680] sm:%s173]
                %903 = vst [vmem:[%s181 + $0xb40] sm:%s173] %v902
                %v904 = vld [vmem:[%s180 + $0x1690] sm:%s173]
                %905 = vst [vmem:[%s181 + $0xb48] sm:%s173] %v904
                %v906 = vld [vmem:[%s180 + $0x16a0] sm:%s173]
                %907 = vst [vmem:[%s181 + $0xb50] sm:%s173] %v906
                %v908 = vld [vmem:[%s180 + $0x16b0] sm:%s173]
                %909 = vst [vmem:[%s181 + $0xb58] sm:%s173] %v908
                %v910 = vld [vmem:[%s180 + $0x16c0] sm:%s173]
                %911 = vst [vmem:[%s181 + $0xb60] sm:%s173] %v910
                %v912 = vld [vmem:[%s180 + $0x16d0] sm:%s173]
                %913 = vst [vmem:[%s181 + $0xb68] sm:%s173] %v912
                %v914 = vld [vmem:[%s180 + $0x16e0] sm:%s173]
                %915 = vst [vmem:[%s181 + $0xb70] sm:%s173] %v914
                %v916 = vld [vmem:[%s180 + $0x16f0] sm:%s173]
                %917 = vst [vmem:[%s181 + $0xb78] sm:%s173] %v916
                %v918 = vld [vmem:[%s180 + $0x1700] sm:%s173]
                %919 = vst [vmem:[%s181 + $0xb80] sm:%s173] %v918
                %v920 = vld [vmem:[%s180 + $0x1710] sm:%s173]
                %921 = vst [vmem:[%s181 + $0xb88] sm:%s173] %v920
                %v922 = vld [vmem:[%s180 + $0x1720] sm:%s173]
                %923 = vst [vmem:[%s181 + $0xb90] sm:%s173] %v922
                %v924 = vld [vmem:[%s180 + $0x1730] sm:%s173]
                %925 = vst [vmem:[%s181 + $0xb98] sm:%s173] %v924
                %v926 = vld [vmem:[%s180 + $0x1740] sm:%s173]
                %927 = vst [vmem:[%s181 + $0xba0] sm:%s173] %v926
                %v928 = vld [vmem:[%s180 + $0x1750] sm:%s173]
                %929 = vst [vmem:[%s181 + $0xba8] sm:%s173] %v928
                %v930 = vld [vmem:[%s180 + $0x1760] sm:%s173]
                %931 = vst [vmem:[%s181 + $0xbb0] sm:%s173] %v930
                %v932 = vld [vmem:[%s180 + $0x1770] sm:%s173]
                %933 = vst [vmem:[%s181 + $0xbb8] sm:%s173] %v932
                %v934 = vld [vmem:[%s180 + $0x1780] sm:%s173]
                %935 = vst [vmem:[%s181 + $0xbc0] sm:%s173] %v934
                %v936 = vld [vmem:[%s180 + $0x1790] sm:%s173]
                %937 = vst [vmem:[%s181 + $0xbc8] sm:%s173] %v936
                %v938 = vld [vmem:[%s180 + $0x17a0] sm:%s173]
                %939 = vst [vmem:[%s181 + $0xbd0] sm:%s173] %v938
                %v940 = vld [vmem:[%s180 + $0x17b0] sm:%s173]
                %941 = vst [vmem:[%s181 + $0xbd8] sm:%s173] %v940
                %v942 = vld [vmem:[%s180 + $0x17c0] sm:%s173]
                %943 = vst [vmem:[%s181 + $0xbe0] sm:%s173] %v942
                %v944 = vld [vmem:[%s180 + $0x17d0] sm:%s173]
                %945 = vst [vmem:[%s181 + $0xbe8] sm:%s173] %v944
                %v946 = vld [vmem:[%s180 + $0x17e0] sm:%s173]
                %947 = vst [vmem:[%s181 + $0xbf0] sm:%s173] %v946
                %v948 = vld [vmem:[%s180 + $0x17f0] sm:%s173]
                %949 = vst [vmem:[%s181 + $0xbf8] sm:%s173] %v948
                %v950 = vld [vmem:[%s180 + $0x1800] sm:%s173]
                %951 = vst [vmem:[%s181 + $0xc00] sm:%s173] %v950
                %v952 = vld [vmem:[%s180 + $0x1810] sm:%s173]
                %953 = vst [vmem:[%s181 + $0xc08] sm:%s173] %v952
                %v954 = vld [vmem:[%s180 + $0x1820] sm:%s173]
                %955 = vst [vmem:[%s181 + $0xc10] sm:%s173] %v954
                %v956 = vld [vmem:[%s180 + $0x1830] sm:%s173]
                %957 = vst [vmem:[%s181 + $0xc18] sm:%s173] %v956
                %v958 = vld [vmem:[%s180 + $0x1840] sm:%s173]
                %959 = vst [vmem:[%s181 + $0xc20] sm:%s173] %v958
                %v960 = vld [vmem:[%s180 + $0x1850] sm:%s173]
                %961 = vst [vmem:[%s181 + $0xc28] sm:%s173] %v960
                %v962 = vld [vmem:[%s180 + $0x1860] sm:%s173]
                %963 = vst [vmem:[%s181 + $0xc30] sm:%s173] %v962
                %v964 = vld [vmem:[%s180 + $0x1870] sm:%s173]
                %965 = vst [vmem:[%s181 + $0xc38] sm:%s173] %v964
                %v966 = vld [vmem:[%s180 + $0x1880] sm:%s173]
                %967 = vst [vmem:[%s181 + $0xc40] sm:%s173] %v966
                %v968 = vld [vmem:[%s180 + $0x1890] sm:%s173]
                %969 = vst [vmem:[%s181 + $0xc48] sm:%s173] %v968
                %v970 = vld [vmem:[%s180 + $0x18a0] sm:%s173]
                %971 = vst [vmem:[%s181 + $0xc50] sm:%s173] %v970
                %v972 = vld [vmem:[%s180 + $0x18b0] sm:%s173]
                %973 = vst [vmem:[%s181 + $0xc58] sm:%s173] %v972
                %v974 = vld [vmem:[%s180 + $0x18c0] sm:%s173]
                %975 = vst [vmem:[%s181 + $0xc60] sm:%s173] %v974
                %v976 = vld [vmem:[%s180 + $0x18d0] sm:%s173]
                %977 = vst [vmem:[%s181 + $0xc68] sm:%s173] %v976
                %v978 = vld [vmem:[%s180 + $0x18e0] sm:%s173]
                %979 = vst [vmem:[%s181 + $0xc70] sm:%s173] %v978
                %v980 = vld [vmem:[%s180 + $0x18f0] sm:%s173]
                %981 = vst [vmem:[%s181 + $0xc78] sm:%s173] %v980
              $region41: #{atari_model_forward.7} parent=35 // loop_footer
                %s179 = sadd.s32 1, %s175
              $region42: #{atari_model_forward.7} parent=35 // loop_footer_branch
                %174 = sbr.rel target = $region38
              $region43: #{atari_model_forward.7} parent=35 // loop_exit
                _
            $region36: #{atari_model_forward.7} parent=27 // pred_fallthru
              _
          $region28: #{atari_model_forward.7} parent=23 // pred_fallthru
            _
          %1794 = vnop
        $region24: #{atari_model_forward.7} parent=19 // pred_fallthru
          _
        // Predicated region
        $region59: #{atari_model_forward.7} parent=19 // pred_check
          %p1795 = pneg %p96
        $region60: #{atari_model_forward.7} parent=19 // pred_check_branch
          %1797 = sbr.rel (%p1795) target = $region62
        $region61: #{atari_model_forward.7} parent=19 // pred_region
          %s1798 = smul.u32 2, %s20
          %p1799 = scmp.lt.s32.totalorder %s1798, 3
          %s1800 = scalar_select %p1799, %s1798, 3
          %s1801 = scalar_lea.vmem %s2, %s1800
          %s1802 = smul.u32 2, %s20
        $region62: #{atari_model_forward.7} parent=19 // pred_fallthru
          _
      $region20: #{atari_model_forward.7} parent=5 // pred_fallthru
        _
      %p1803 = scmp.le.s32.totalorder 1, %s12
      %p1804 = scmp.lt.s32.totalorder %s12, 3
      %p1805 = pnand %p1803, %p1804
      %p1806 = pneg %p1805
      // Predicated region
      $region63: #{atari_model_forward.7} parent=5 // pred_check
        _
      $region64: #{atari_model_forward.7} parent=5 // pred_check_branch
        %1808 = sbr.rel (%p1805) target = $region66
      $region65: #{atari_model_forward.7} parent=5 // pred_region
        %s1809 = ssub.s32 %s12, 1
        %s1810 = sand.u32 %s63, 1
        %s1811 = sand.u32 %s63, 1
        %s1812 = smul.addr %s1811, 3200
        %s1813 = scalar_lea.vmem [#allocation2], %s1812
        // Predicated region
        $region67: #{atari_model_forward.7} parent=65 // pred_check
          %p1814 = pneg %p76
        $region68: #{atari_model_forward.7} parent=65 // pred_check_branch
          %1816 = sbr.rel (%p1814) target = $region70
        $region69: #{atari_model_forward.7} parent=65 // pred_region
          _
        $region70: #{atari_model_forward.7} parent=65 // pred_fallthru
          _
        %p1817 = scmp.lt.s32.totalorder %s21, 0
        %s1818 = scalar_select %p1817, %s21, 0
        %s1819 = smul.addr %s1818, 25
        %s1820 = scalar_lea.vmem %s0, %s1819
        %p1821 = pneg %p50
        %p1822 = pneg %p47
        %s1823 = sand.u32 %s63, 1
        %s1824 = sand.u32 %s63, 1
        %s1825 = smul.addr %s1824, 3200
        %s1826 = scalar_lea.vmem [#allocation2], %s1825
        %p1827 = pneg %p76
        %p1828 = pneg %p73
        %s1829 = smul.u32 2, %s22
        %p1830 = scmp.lt.s32.totalorder %s1829, 3
        %s1831 = scalar_select %p1830, %s1829, 3
        %s1832 = scalar_lea.vmem %s2, %s1831
        %p1833 = pneg %p102
        %p1834 = pneg %p99
        %p1835 = pneg %p130
        %p1836 = pneg %p127
        %s1837 = sand.u32 %s117, 1
        %s1838 = scalar_lea.sflag [#allocation4], %s1837
        %s1839 = sand.u32 %s117, 1
        %s1840 = smul.addr %s1839, 4
        %s1841 = scalar_lea.vmem [#allocation3], %s1840
        %p1842 = scmp.lt.s32.totalorder %s21, 0
        %s1843 = scalar_select %p1842, %s21, 0
        %s1844 = smul.addr %s1843, 25
        %s1845 = scalar_lea.vmem %s0, %s1844
        %s1846 = smul.u32 2, %s22
        %s1847 = smul.u32 2, %s22
        %p1848 = scmp.lt.s32.totalorder %s1847, 3
        %s1849 = scalar_select %p1848, %s1847, 3
        %s1850 = scalar_lea.vmem %s2, %s1849
        %s1851 = smul.u32 2, %s22
        %s1852 = smul.u32 2, %s22
        %v1854 = vld [vmem:[%s1845] sm:$0xff]
        %v1855 = vld [vmem:[%s1845 + $0x8] sm:$0xff]
        %v1856 = vld [vmem:[%s1845 + $0x10] sm:$0xff]
        %v1857 = vld [vmem:[%s1845 + $0x18] sm:$0x1]
        %v1858 = vld [vmem:[%s1813] sm:$0xff]
        %v1859 = vld [vmem:[%s1813 + $0x8] sm:$0xff]
        %v1860 = vld [vmem:[%s1813 + $0x10] sm:$0xff]
        %v1861 = vld [vmem:[%s1813 + $0x18] sm:$0xff]
        %v1862 = vld [vmem:[%s1813 + $0x20] sm:$0xff]
        %v1863 = vld [vmem:[%s1813 + $0x28] sm:$0xff]
        %v1864 = vld [vmem:[%s1813 + $0x30] sm:$0xff]
        %v1865 = vld [vmem:[%s1813 + $0x38] sm:$0xff]
        %v1866 = vld [vmem:[%s1813 + $0x40] sm:$0xff]
        %v1867 = vld [vmem:[%s1813 + $0x48] sm:$0xff]
        %v1868 = vld [vmem:[%s1813 + $0x50] sm:$0xff]
        %v1869 = vld [vmem:[%s1813 + $0x58] sm:$0xff]
        %v1870 = vld [vmem:[%s1813 + $0x60] sm:$0xff]
        %v1871 = vld [vmem:[%s1813 + $0x68] sm:$0xff]
        %v1872 = vld [vmem:[%s1813 + $0x70] sm:$0xff]
        %v1873 = vld [vmem:[%s1813 + $0x78] sm:$0xff]
        %v1874 = vld [vmem:[%s1813 + $0x80] sm:$0xff]
        %v1875 = vld [vmem:[%s1813 + $0x88] sm:$0xff]
        %v1876 = vld [vmem:[%s1813 + $0x90] sm:$0xff]
        %v1877 = vld [vmem:[%s1813 + $0x98] sm:$0xff]
        %v1878 = vld [vmem:[%s1813 + $0xa0] sm:$0xff]
        %v1879 = vld [vmem:[%s1813 + $0xa8] sm:$0xff]
        %v1880 = vld [vmem:[%s1813 + $0xb0] sm:$0xff]
        %v1881 = vld [vmem:[%s1813 + $0xb8] sm:$0xff]
        %v1882 = vld [vmem:[%s1813 + $0xc0] sm:$0xff]
        %v1883 = vld [vmem:[%s1813 + $0xc8] sm:$0xff]
        %v1884 = vld [vmem:[%s1813 + $0xd0] sm:$0xff]
        %v1885 = vld [vmem:[%s1813 + $0xd8] sm:$0xff]
        %v1886 = vld [vmem:[%s1813 + $0xe0] sm:$0xff]
        %v1887 = vld [vmem:[%s1813 + $0xe8] sm:$0xff]
        %v1888 = vld [vmem:[%s1813 + $0xf0] sm:$0xff]
        %v1889 = vld [vmem:[%s1813 + $0xf8] sm:$0xff]
        %v1890 = vld [vmem:[%s1813 + $0x100] sm:$0xff]
        %v1891 = vld [vmem:[%s1813 + $0x108] sm:$0xff]
        %v1892 = vld [vmem:[%s1813 + $0x110] sm:$0xff]
        %v1893 = vld [vmem:[%s1813 + $0x118] sm:$0xff]
        %v1894 = vld [vmem:[%s1813 + $0x120] sm:$0xff]
        %v1895 = vld [vmem:[%s1813 + $0x128] sm:$0xff]
        %v1896 = vld [vmem:[%s1813 + $0x130] sm:$0xff]
        %v1897 = vld [vmem:[%s1813 + $0x138] sm:$0xff]
        %v1898 = vld [vmem:[%s1813 + $0x140] sm:$0xff]
        %v1899 = vld [vmem:[%s1813 + $0x148] sm:$0xff]
        %v1900 = vld [vmem:[%s1813 + $0x150] sm:$0xff]
        %v1901 = vld [vmem:[%s1813 + $0x158] sm:$0xff]
        %v1902 = vld [vmem:[%s1813 + $0x160] sm:$0xff]
        %v1903 = vld [vmem:[%s1813 + $0x168] sm:$0xff]
        %v1904 = vld [vmem:[%s1813 + $0x170] sm:$0xff]
        %v1905 = vld [vmem:[%s1813 + $0x178] sm:$0xff]
        %v1906 = vld [vmem:[%s1813 + $0x180] sm:$0xff]
        %v1907 = vld [vmem:[%s1813 + $0x188] sm:$0xff]
        %v1908 = vld [vmem:[%s1813 + $0x190] sm:$0xff]
        %v1909 = vld [vmem:[%s1813 + $0x198] sm:$0xff]
        %v1910 = vld [vmem:[%s1813 + $0x1a0] sm:$0xff]
        %v1911 = vld [vmem:[%s1813 + $0x1a8] sm:$0xff]
        %v1912 = vld [vmem:[%s1813 + $0x1b0] sm:$0xff]
        %v1913 = vld [vmem:[%s1813 + $0x1b8] sm:$0xff]
        %v1914 = vld [vmem:[%s1813 + $0x1c0] sm:$0xff]
        %v1915 = vld [vmem:[%s1813 + $0x1c8] sm:$0xff]
        %v1916 = vld [vmem:[%s1813 + $0x1d0] sm:$0xff]
        %v1917 = vld [vmem:[%s1813 + $0x1d8] sm:$0xff]
        %v1918 = vld [vmem:[%s1813 + $0x1e0] sm:$0xff]
        %v1919 = vld [vmem:[%s1813 + $0x1e8] sm:$0xff]
        %v1920 = vld [vmem:[%s1813 + $0x1f0] sm:$0xff]
        %v1921 = vld [vmem:[%s1813 + $0x1f8] sm:$0xff]
        %v1922 = vld [vmem:[%s1813 + $0x200] sm:$0xff]
        %v1923 = vld [vmem:[%s1813 + $0x208] sm:$0xff]
        %v1924 = vld [vmem:[%s1813 + $0x210] sm:$0xff]
        %v1925 = vld [vmem:[%s1813 + $0x218] sm:$0xff]
        %v1926 = vld [vmem:[%s1813 + $0x220] sm:$0xff]
        %v1927 = vld [vmem:[%s1813 + $0x228] sm:$0xff]
        %v1928 = vld [vmem:[%s1813 + $0x230] sm:$0xff]
        %v1929 = vld [vmem:[%s1813 + $0x238] sm:$0xff]
        %v1930 = vld [vmem:[%s1813 + $0x240] sm:$0xff]
        %v1931 = vld [vmem:[%s1813 + $0x248] sm:$0xff]
        %v1932 = vld [vmem:[%s1813 + $0x250] sm:$0xff]
        %v1933 = vld [vmem:[%s1813 + $0x258] sm:$0xff]
        %v1934 = vld [vmem:[%s1813 + $0x260] sm:$0xff]
        %v1935 = vld [vmem:[%s1813 + $0x268] sm:$0xff]
        %v1936 = vld [vmem:[%s1813 + $0x270] sm:$0xff]
        %v1937 = vld [vmem:[%s1813 + $0x278] sm:$0xff]
        %v1938 = vld [vmem:[%s1813 + $0x280] sm:$0xff]
        %v1939 = vld [vmem:[%s1813 + $0x288] sm:$0xff]
        %v1940 = vld [vmem:[%s1813 + $0x290] sm:$0xff]
        %v1941 = vld [vmem:[%s1813 + $0x298] sm:$0xff]
        %v1942 = vld [vmem:[%s1813 + $0x2a0] sm:$0xff]
        %v1943 = vld [vmem:[%s1813 + $0x2a8] sm:$0xff]
        %v1944 = vld [vmem:[%s1813 + $0x2b0] sm:$0xff]
        %v1945 = vld [vmem:[%s1813 + $0x2b8] sm:$0xff]
        %v1946 = vld [vmem:[%s1813 + $0x2c0] sm:$0xff]
        %v1947 = vld [vmem:[%s1813 + $0x2c8] sm:$0xff]
        %v1948 = vld [vmem:[%s1813 + $0x2d0] sm:$0xff]
        %v1949 = vld [vmem:[%s1813 + $0x2d8] sm:$0xff]
        %v1950 = vld [vmem:[%s1813 + $0x2e0] sm:$0xff]
        %v1951 = vld [vmem:[%s1813 + $0x2e8] sm:$0xff]
        %v1952 = vld [vmem:[%s1813 + $0x2f0] sm:$0xff]
        %v1953 = vld [vmem:[%s1813 + $0x2f8] sm:$0xff]
        %v1954 = vld [vmem:[%s1813 + $0x300] sm:$0xff]
        %v1955 = vld [vmem:[%s1813 + $0x308] sm:$0xff]
        %v1956 = vld [vmem:[%s1813 + $0x310] sm:$0xff]
        %v1957 = vld [vmem:[%s1813 + $0x318] sm:$0xff]
        %v1958 = vld [vmem:[%s1813 + $0x320] sm:$0xff]
        %v1959 = vld [vmem:[%s1813 + $0x328] sm:$0xff]
        %v1960 = vld [vmem:[%s1813 + $0x330] sm:$0xff]
        %v1961 = vld [vmem:[%s1813 + $0x338] sm:$0xff]
        %v1962 = vld [vmem:[%s1813 + $0x340] sm:$0xff]
        %v1963 = vld [vmem:[%s1813 + $0x348] sm:$0xff]
        %v1964 = vld [vmem:[%s1813 + $0x350] sm:$0xff]
        %v1965 = vld [vmem:[%s1813 + $0x358] sm:$0xff]
        %v1966 = vld [vmem:[%s1813 + $0x360] sm:$0xff]
        %v1967 = vld [vmem:[%s1813 + $0x368] sm:$0xff]
        %v1968 = vld [vmem:[%s1813 + $0x370] sm:$0xff]
        %v1969 = vld [vmem:[%s1813 + $0x378] sm:$0xff]
        %v1970 = vld [vmem:[%s1813 + $0x380] sm:$0xff]
        %v1971 = vld [vmem:[%s1813 + $0x388] sm:$0xff]
        %v1972 = vld [vmem:[%s1813 + $0x390] sm:$0xff]
        %v1973 = vld [vmem:[%s1813 + $0x398] sm:$0xff]
        %v1974 = vld [vmem:[%s1813 + $0x3a0] sm:$0xff]
        %v1975 = vld [vmem:[%s1813 + $0x3a8] sm:$0xff]
        %v1976 = vld [vmem:[%s1813 + $0x3b0] sm:$0xff]
        %v1977 = vld [vmem:[%s1813 + $0x3b8] sm:$0xff]
        %v1978 = vld [vmem:[%s1813 + $0x3c0] sm:$0xff]
        %v1979 = vld [vmem:[%s1813 + $0x3c8] sm:$0xff]
        %v1980 = vld [vmem:[%s1813 + $0x3d0] sm:$0xff]
        %v1981 = vld [vmem:[%s1813 + $0x3d8] sm:$0xff]
        %v1982 = vld [vmem:[%s1813 + $0x3e0] sm:$0xff]
        %v1983 = vld [vmem:[%s1813 + $0x3e8] sm:$0xff]
        %v1984 = vld [vmem:[%s1813 + $0x3f0] sm:$0xff]
        %v1985 = vld [vmem:[%s1813 + $0x3f8] sm:$0xff]
        %v1986 = vld [vmem:[%s1813 + $0x400] sm:$0xff]
        %v1987 = vld [vmem:[%s1813 + $0x408] sm:$0xff]
        %v1988 = vld [vmem:[%s1813 + $0x410] sm:$0xff]
        %v1989 = vld [vmem:[%s1813 + $0x418] sm:$0xff]
        %v1990 = vld [vmem:[%s1813 + $0x420] sm:$0xff]
        %v1991 = vld [vmem:[%s1813 + $0x428] sm:$0xff]
        %v1992 = vld [vmem:[%s1813 + $0x430] sm:$0xff]
        %v1993 = vld [vmem:[%s1813 + $0x438] sm:$0xff]
        %v1994 = vld [vmem:[%s1813 + $0x440] sm:$0xff]
        %v1995 = vld [vmem:[%s1813 + $0x448] sm:$0xff]
        %v1996 = vld [vmem:[%s1813 + $0x450] sm:$0xff]
        %v1997 = vld [vmem:[%s1813 + $0x458] sm:$0xff]
        %v1998 = vld [vmem:[%s1813 + $0x460] sm:$0xff]
        %v1999 = vld [vmem:[%s1813 + $0x468] sm:$0xff]
        %v2000 = vld [vmem:[%s1813 + $0x470] sm:$0xff]
        %v2001 = vld [vmem:[%s1813 + $0x478] sm:$0xff]
        %v2002 = vld [vmem:[%s1813 + $0x480] sm:$0xff]
        %v2003 = vld [vmem:[%s1813 + $0x488] sm:$0xff]
        %v2004 = vld [vmem:[%s1813 + $0x490] sm:$0xff]
        %v2005 = vld [vmem:[%s1813 + $0x498] sm:$0xff]
        %v2006 = vld [vmem:[%s1813 + $0x4a0] sm:$0xff]
        %v2007 = vld [vmem:[%s1813 + $0x4a8] sm:$0xff]
        %v2008 = vld [vmem:[%s1813 + $0x4b0] sm:$0xff]
        %v2009 = vld [vmem:[%s1813 + $0x4b8] sm:$0xff]
        %v2010 = vld [vmem:[%s1813 + $0x4c0] sm:$0xff]
        %v2011 = vld [vmem:[%s1813 + $0x4c8] sm:$0xff]
        %v2012 = vld [vmem:[%s1813 + $0x4d0] sm:$0xff]
        %v2013 = vld [vmem:[%s1813 + $0x4d8] sm:$0xff]
        %v2014 = vld [vmem:[%s1813 + $0x4e0] sm:$0xff]
        %v2015 = vld [vmem:[%s1813 + $0x4e8] sm:$0xff]
        %v2016 = vld [vmem:[%s1813 + $0x4f0] sm:$0xff]
        %v2017 = vld [vmem:[%s1813 + $0x4f8] sm:$0xff]
        %v2018 = vld [vmem:[%s1813 + $0x500] sm:$0xff]
        %v2019 = vld [vmem:[%s1813 + $0x508] sm:$0xff]
        %v2020 = vld [vmem:[%s1813 + $0x510] sm:$0xff]
        %v2021 = vld [vmem:[%s1813 + $0x518] sm:$0xff]
        %v2022 = vld [vmem:[%s1813 + $0x520] sm:$0xff]
        %v2023 = vld [vmem:[%s1813 + $0x528] sm:$0xff]
        %v2024 = vld [vmem:[%s1813 + $0x530] sm:$0xff]
        %v2025 = vld [vmem:[%s1813 + $0x538] sm:$0xff]
        %v2026 = vld [vmem:[%s1813 + $0x540] sm:$0xff]
        %v2027 = vld [vmem:[%s1813 + $0x548] sm:$0xff]
        %v2028 = vld [vmem:[%s1813 + $0x550] sm:$0xff]
        %v2029 = vld [vmem:[%s1813 + $0x558] sm:$0xff]
        %v2030 = vld [vmem:[%s1813 + $0x560] sm:$0xff]
        %v2031 = vld [vmem:[%s1813 + $0x568] sm:$0xff]
        %v2032 = vld [vmem:[%s1813 + $0x570] sm:$0xff]
        %v2033 = vld [vmem:[%s1813 + $0x578] sm:$0xff]
        %v2034 = vld [vmem:[%s1813 + $0x580] sm:$0xff]
        %v2035 = vld [vmem:[%s1813 + $0x588] sm:$0xff]
        %v2036 = vld [vmem:[%s1813 + $0x590] sm:$0xff]
        %v2037 = vld [vmem:[%s1813 + $0x598] sm:$0xff]
        %v2038 = vld [vmem:[%s1813 + $0x5a0] sm:$0xff]
        %v2039 = vld [vmem:[%s1813 + $0x5a8] sm:$0xff]
        %v2040 = vld [vmem:[%s1813 + $0x5b0] sm:$0xff]
        %v2041 = vld [vmem:[%s1813 + $0x5b8] sm:$0xff]
        %v2042 = vld [vmem:[%s1813 + $0x5c0] sm:$0xff]
        %v2043 = vld [vmem:[%s1813 + $0x5c8] sm:$0xff]
        %v2044 = vld [vmem:[%s1813 + $0x5d0] sm:$0xff]
        %v2045 = vld [vmem:[%s1813 + $0x5d8] sm:$0xff]
        %v2046 = vld [vmem:[%s1813 + $0x5e0] sm:$0xff]
        %v2047 = vld [vmem:[%s1813 + $0x5e8] sm:$0xff]
        %v2048 = vld [vmem:[%s1813 + $0x5f0] sm:$0xff]
        %v2049 = vld [vmem:[%s1813 + $0x5f8] sm:$0xff]
        %v2050 = vld [vmem:[%s1813 + $0x600] sm:$0xff]
        %v2051 = vld [vmem:[%s1813 + $0x608] sm:$0xff]
        %v2052 = vld [vmem:[%s1813 + $0x610] sm:$0xff]
        %v2053 = vld [vmem:[%s1813 + $0x618] sm:$0xff]
        %v2054 = vld [vmem:[%s1813 + $0x620] sm:$0xff]
        %v2055 = vld [vmem:[%s1813 + $0x628] sm:$0xff]
        %v2056 = vld [vmem:[%s1813 + $0x630] sm:$0xff]
        %v2057 = vld [vmem:[%s1813 + $0x638] sm:$0xff]
        %v2058 = vld [vmem:[%s1813 + $0x640] sm:$0xff]
        %v2059 = vld [vmem:[%s1813 + $0x648] sm:$0xff]
        %v2060 = vld [vmem:[%s1813 + $0x650] sm:$0xff]
        %v2061 = vld [vmem:[%s1813 + $0x658] sm:$0xff]
        %v2062 = vld [vmem:[%s1813 + $0x660] sm:$0xff]
        %v2063 = vld [vmem:[%s1813 + $0x668] sm:$0xff]
        %v2064 = vld [vmem:[%s1813 + $0x670] sm:$0xff]
        %v2065 = vld [vmem:[%s1813 + $0x678] sm:$0xff]
        %v2066 = vld [vmem:[%s1813 + $0x680] sm:$0xff]
        %v2067 = vld [vmem:[%s1813 + $0x688] sm:$0xff]
        %v2068 = vld [vmem:[%s1813 + $0x690] sm:$0xff]
        %v2069 = vld [vmem:[%s1813 + $0x698] sm:$0xff]
        %v2070 = vld [vmem:[%s1813 + $0x6a0] sm:$0xff]
        %v2071 = vld [vmem:[%s1813 + $0x6a8] sm:$0xff]
        %v2072 = vld [vmem:[%s1813 + $0x6b0] sm:$0xff]
        %v2073 = vld [vmem:[%s1813 + $0x6b8] sm:$0xff]
        %v2074 = vld [vmem:[%s1813 + $0x6c0] sm:$0xff]
        %v2075 = vld [vmem:[%s1813 + $0x6c8] sm:$0xff]
        %v2076 = vld [vmem:[%s1813 + $0x6d0] sm:$0xff]
        %v2077 = vld [vmem:[%s1813 + $0x6d8] sm:$0xff]
        %v2078 = vld [vmem:[%s1813 + $0x6e0] sm:$0xff]
        %v2079 = vld [vmem:[%s1813 + $0x6e8] sm:$0xff]
        %v2080 = vld [vmem:[%s1813 + $0x6f0] sm:$0xff]
        %v2081 = vld [vmem:[%s1813 + $0x6f8] sm:$0xff]
        %v2082 = vld [vmem:[%s1813 + $0x700] sm:$0xff]
        %v2083 = vld [vmem:[%s1813 + $0x708] sm:$0xff]
        %v2084 = vld [vmem:[%s1813 + $0x710] sm:$0xff]
        %v2085 = vld [vmem:[%s1813 + $0x718] sm:$0xff]
        %v2086 = vld [vmem:[%s1813 + $0x720] sm:$0xff]
        %v2087 = vld [vmem:[%s1813 + $0x728] sm:$0xff]
        %v2088 = vld [vmem:[%s1813 + $0x730] sm:$0xff]
        %v2089 = vld [vmem:[%s1813 + $0x738] sm:$0xff]
        %v2090 = vld [vmem:[%s1813 + $0x740] sm:$0xff]
        %v2091 = vld [vmem:[%s1813 + $0x748] sm:$0xff]
        %v2092 = vld [vmem:[%s1813 + $0x750] sm:$0xff]
        %v2093 = vld [vmem:[%s1813 + $0x758] sm:$0xff]
        %v2094 = vld [vmem:[%s1813 + $0x760] sm:$0xff]
        %v2095 = vld [vmem:[%s1813 + $0x768] sm:$0xff]
        %v2096 = vld [vmem:[%s1813 + $0x770] sm:$0xff]
        %v2097 = vld [vmem:[%s1813 + $0x778] sm:$0xff]
        %v2098 = vld [vmem:[%s1813 + $0x780] sm:$0xff]
        %v2099 = vld [vmem:[%s1813 + $0x788] sm:$0xff]
        %v2100 = vld [vmem:[%s1813 + $0x790] sm:$0xff]
        %v2101 = vld [vmem:[%s1813 + $0x798] sm:$0xff]
        %v2102 = vld [vmem:[%s1813 + $0x7a0] sm:$0xff]
        %v2103 = vld [vmem:[%s1813 + $0x7a8] sm:$0xff]
        %v2104 = vld [vmem:[%s1813 + $0x7b0] sm:$0xff]
        %v2105 = vld [vmem:[%s1813 + $0x7b8] sm:$0xff]
        %v2106 = vld [vmem:[%s1813 + $0x7c0] sm:$0xff]
        %v2107 = vld [vmem:[%s1813 + $0x7c8] sm:$0xff]
        %v2108 = vld [vmem:[%s1813 + $0x7d0] sm:$0xff]
        %v2109 = vld [vmem:[%s1813 + $0x7d8] sm:$0xff]
        %v2110 = vld [vmem:[%s1813 + $0x7e0] sm:$0xff]
        %v2111 = vld [vmem:[%s1813 + $0x7e8] sm:$0xff]
        %v2112 = vld [vmem:[%s1813 + $0x7f0] sm:$0xff]
        %v2113 = vld [vmem:[%s1813 + $0x7f8] sm:$0xff]
        %v2114 = vld [vmem:[%s1813 + $0x800] sm:$0xff]
        %v2115 = vld [vmem:[%s1813 + $0x808] sm:$0xff]
        %v2116 = vld [vmem:[%s1813 + $0x810] sm:$0xff]
        %v2117 = vld [vmem:[%s1813 + $0x818] sm:$0xff]
        %v2118 = vld [vmem:[%s1813 + $0x820] sm:$0xff]
        %v2119 = vld [vmem:[%s1813 + $0x828] sm:$0xff]
        %v2120 = vld [vmem:[%s1813 + $0x830] sm:$0xff]
        %v2121 = vld [vmem:[%s1813 + $0x838] sm:$0xff]
        %v2122 = vld [vmem:[%s1813 + $0x840] sm:$0xff]
        %v2123 = vld [vmem:[%s1813 + $0x848] sm:$0xff]
        %v2124 = vld [vmem:[%s1813 + $0x850] sm:$0xff]
        %v2125 = vld [vmem:[%s1813 + $0x858] sm:$0xff]
        %v2126 = vld [vmem:[%s1813 + $0x860] sm:$0xff]
        %v2127 = vld [vmem:[%s1813 + $0x868] sm:$0xff]
        %v2128 = vld [vmem:[%s1813 + $0x870] sm:$0xff]
        %v2129 = vld [vmem:[%s1813 + $0x878] sm:$0xff]
        %v2130 = vld [vmem:[%s1813 + $0x880] sm:$0xff]
        %v2131 = vld [vmem:[%s1813 + $0x888] sm:$0xff]
        %v2132 = vld [vmem:[%s1813 + $0x890] sm:$0xff]
        %v2133 = vld [vmem:[%s1813 + $0x898] sm:$0xff]
        %v2134 = vld [vmem:[%s1813 + $0x8a0] sm:$0xff]
        %v2135 = vld [vmem:[%s1813 + $0x8a8] sm:$0xff]
        %v2136 = vld [vmem:[%s1813 + $0x8b0] sm:$0xff]
        %v2137 = vld [vmem:[%s1813 + $0x8b8] sm:$0xff]
        %v2138 = vld [vmem:[%s1813 + $0x8c0] sm:$0xff]
        %v2139 = vld [vmem:[%s1813 + $0x8c8] sm:$0xff]
        %v2140 = vld [vmem:[%s1813 + $0x8d0] sm:$0xff]
        %v2141 = vld [vmem:[%s1813 + $0x8d8] sm:$0xff]
        %v2142 = vld [vmem:[%s1813 + $0x8e0] sm:$0xff]
        %v2143 = vld [vmem:[%s1813 + $0x8e8] sm:$0xff]
        %v2144 = vld [vmem:[%s1813 + $0x8f0] sm:$0xff]
        %v2145 = vld [vmem:[%s1813 + $0x8f8] sm:$0xff]
        %v2146 = vld [vmem:[%s1813 + $0x900] sm:$0xff]
        %v2147 = vld [vmem:[%s1813 + $0x908] sm:$0xff]
        %v2148 = vld [vmem:[%s1813 + $0x910] sm:$0xff]
        %v2149 = vld [vmem:[%s1813 + $0x918] sm:$0xff]
        %v2150 = vld [vmem:[%s1813 + $0x920] sm:$0xff]
        %v2151 = vld [vmem:[%s1813 + $0x928] sm:$0xff]
        %v2152 = vld [vmem:[%s1813 + $0x930] sm:$0xff]
        %v2153 = vld [vmem:[%s1813 + $0x938] sm:$0xff]
        %v2154 = vld [vmem:[%s1813 + $0x940] sm:$0xff]
        %v2155 = vld [vmem:[%s1813 + $0x948] sm:$0xff]
        %v2156 = vld [vmem:[%s1813 + $0x950] sm:$0xff]
        %v2157 = vld [vmem:[%s1813 + $0x958] sm:$0xff]
        %v2158 = vld [vmem:[%s1813 + $0x960] sm:$0xff]
        %v2159 = vld [vmem:[%s1813 + $0x968] sm:$0xff]
        %v2160 = vld [vmem:[%s1813 + $0x970] sm:$0xff]
        %v2161 = vld [vmem:[%s1813 + $0x978] sm:$0xff]
        %v2162 = vld [vmem:[%s1813 + $0x980] sm:$0xff]
        %v2163 = vld [vmem:[%s1813 + $0x988] sm:$0xff]
        %v2164 = vld [vmem:[%s1813 + $0x990] sm:$0xff]
        %v2165 = vld [vmem:[%s1813 + $0x998] sm:$0xff]
        %v2166 = vld [vmem:[%s1813 + $0x9a0] sm:$0xff]
        %v2167 = vld [vmem:[%s1813 + $0x9a8] sm:$0xff]
        %v2168 = vld [vmem:[%s1813 + $0x9b0] sm:$0xff]
        %v2169 = vld [vmem:[%s1813 + $0x9b8] sm:$0xff]
        %v2170 = vld [vmem:[%s1813 + $0x9c0] sm:$0xff]
        %v2171 = vld [vmem:[%s1813 + $0x9c8] sm:$0xff]
        %v2172 = vld [vmem:[%s1813 + $0x9d0] sm:$0xff]
        %v2173 = vld [vmem:[%s1813 + $0x9d8] sm:$0xff]
        %v2174 = vld [vmem:[%s1813 + $0x9e0] sm:$0xff]
        %v2175 = vld [vmem:[%s1813 + $0x9e8] sm:$0xff]
        %v2176 = vld [vmem:[%s1813 + $0x9f0] sm:$0xff]
        %v2177 = vld [vmem:[%s1813 + $0x9f8] sm:$0xff]
        %v2178 = vld [vmem:[%s1813 + $0xa00] sm:$0xff]
        %v2179 = vld [vmem:[%s1813 + $0xa08] sm:$0xff]
        %v2180 = vld [vmem:[%s1813 + $0xa10] sm:$0xff]
        %v2181 = vld [vmem:[%s1813 + $0xa18] sm:$0xff]
        %v2182 = vld [vmem:[%s1813 + $0xa20] sm:$0xff]
        %v2183 = vld [vmem:[%s1813 + $0xa28] sm:$0xff]
        %v2184 = vld [vmem:[%s1813 + $0xa30] sm:$0xff]
        %v2185 = vld [vmem:[%s1813 + $0xa38] sm:$0xff]
        %v2186 = vld [vmem:[%s1813 + $0xa40] sm:$0xff]
        %v2187 = vld [vmem:[%s1813 + $0xa48] sm:$0xff]
        %v2188 = vld [vmem:[%s1813 + $0xa50] sm:$0xff]
        %v2189 = vld [vmem:[%s1813 + $0xa58] sm:$0xff]
        %v2190 = vld [vmem:[%s1813 + $0xa60] sm:$0xff]
        %v2191 = vld [vmem:[%s1813 + $0xa68] sm:$0xff]
        %v2192 = vld [vmem:[%s1813 + $0xa70] sm:$0xff]
        %v2193 = vld [vmem:[%s1813 + $0xa78] sm:$0xff]
        %v2194 = vld [vmem:[%s1813 + $0xa80] sm:$0xff]
        %v2195 = vld [vmem:[%s1813 + $0xa88] sm:$0xff]
        %v2196 = vld [vmem:[%s1813 + $0xa90] sm:$0xff]
        %v2197 = vld [vmem:[%s1813 + $0xa98] sm:$0xff]
        %v2198 = vld [vmem:[%s1813 + $0xaa0] sm:$0xff]
        %v2199 = vld [vmem:[%s1813 + $0xaa8] sm:$0xff]
        %v2200 = vld [vmem:[%s1813 + $0xab0] sm:$0xff]
        %v2201 = vld [vmem:[%s1813 + $0xab8] sm:$0xff]
        %v2202 = vld [vmem:[%s1813 + $0xac0] sm:$0xff]
        %v2203 = vld [vmem:[%s1813 + $0xac8] sm:$0xff]
        %v2204 = vld [vmem:[%s1813 + $0xad0] sm:$0xff]
        %v2205 = vld [vmem:[%s1813 + $0xad8] sm:$0xff]
        %v2206 = vld [vmem:[%s1813 + $0xae0] sm:$0xff]
        %v2207 = vld [vmem:[%s1813 + $0xae8] sm:$0xff]
        %v2208 = vld [vmem:[%s1813 + $0xaf0] sm:$0xff]
        %v2209 = vld [vmem:[%s1813 + $0xaf8] sm:$0xff]
        %v2210 = vld [vmem:[%s1813 + $0xb00] sm:$0xff]
        %v2211 = vld [vmem:[%s1813 + $0xb08] sm:$0xff]
        %v2212 = vld [vmem:[%s1813 + $0xb10] sm:$0xff]
        %v2213 = vld [vmem:[%s1813 + $0xb18] sm:$0xff]
        %v2214 = vld [vmem:[%s1813 + $0xb20] sm:$0xff]
        %v2215 = vld [vmem:[%s1813 + $0xb28] sm:$0xff]
        %v2216 = vld [vmem:[%s1813 + $0xb30] sm:$0xff]
        %v2217 = vld [vmem:[%s1813 + $0xb38] sm:$0xff]
        %v2218 = vld [vmem:[%s1813 + $0xb40] sm:$0xff]
        %v2219 = vld [vmem:[%s1813 + $0xb48] sm:$0xff]
        %v2220 = vld [vmem:[%s1813 + $0xb50] sm:$0xff]
        %v2221 = vld [vmem:[%s1813 + $0xb58] sm:$0xff]
        %v2222 = vld [vmem:[%s1813 + $0xb60] sm:$0xff]
        %v2223 = vld [vmem:[%s1813 + $0xb68] sm:$0xff]
        %v2224 = vld [vmem:[%s1813 + $0xb70] sm:$0xff]
        %v2225 = vld [vmem:[%s1813 + $0xb78] sm:$0xff]
        %v2226 = vld [vmem:[%s1813 + $0xb80] sm:$0xff]
        %v2227 = vld [vmem:[%s1813 + $0xb88] sm:$0xff]
        %v2228 = vld [vmem:[%s1813 + $0xb90] sm:$0xff]
        %v2229 = vld [vmem:[%s1813 + $0xb98] sm:$0xff]
        %v2230 = vld [vmem:[%s1813 + $0xba0] sm:$0xff]
        %v2231 = vld [vmem:[%s1813 + $0xba8] sm:$0xff]
        %v2232 = vld [vmem:[%s1813 + $0xbb0] sm:$0xff]
        %v2233 = vld [vmem:[%s1813 + $0xbb8] sm:$0xff]
        %v2234 = vld [vmem:[%s1813 + $0xbc0] sm:$0xff]
        %v2235 = vld [vmem:[%s1813 + $0xbc8] sm:$0xff]
        %v2236 = vld [vmem:[%s1813 + $0xbd0] sm:$0xff]
        %v2237 = vld [vmem:[%s1813 + $0xbd8] sm:$0xff]
        %v2238 = vld [vmem:[%s1813 + $0xbe0] sm:$0xff]
        %v2239 = vld [vmem:[%s1813 + $0xbe8] sm:$0xff]
        %v2240 = vld [vmem:[%s1813 + $0xbf0] sm:$0xff]
        %v2241 = vld [vmem:[%s1813 + $0xbf8] sm:$0xff]
        %v2242 = vld [vmem:[%s1813 + $0xc00] sm:$0xff]
        %v2243 = vld [vmem:[%s1813 + $0xc08] sm:$0xff]
        %v2244 = vld [vmem:[%s1813 + $0xc10] sm:$0xff]
        %v2245 = vld [vmem:[%s1813 + $0xc18] sm:$0xff]
        %v2246 = vld [vmem:[%s1813 + $0xc20] sm:$0xff]
        %v2247 = vld [vmem:[%s1813 + $0xc28] sm:$0xff]
        %v2248 = vld [vmem:[%s1813 + $0xc30] sm:$0xff]
        %v2249 = vld [vmem:[%s1813 + $0xc38] sm:$0xff]
        %v2250 = vld [vmem:[%s1813 + $0xc40] sm:$0xff]
        %v2251 = vld [vmem:[%s1813 + $0xc48] sm:$0xff]
        %v2252 = vld [vmem:[%s1813 + $0xc50] sm:$0xff]
        %v2253 = vld [vmem:[%s1813 + $0xc58] sm:$0xff]
        %v2254 = vld [vmem:[%s1813 + $0xc60] sm:$0xff]
        %v2255 = vld [vmem:[%s1813 + $0xc68] sm:$0xff]
        %v2256 = vld [vmem:[%s1813 + $0xc70] sm:$0xff]
        %v2257 = vld [vmem:[%s1813 + $0xc78] sm:$0xff]
        %v2258 = vld [vmem:[%s1850] sm:$0x3]
        %v2260 = vlaneseq
        %v2261 = vshrl.u32 %v2260, 7
        %v2262 = vsub.s32 0, %v2261
        %v2263 = vrot.slane %v2258, %v2262
        %v2264 = vlaneseq
        %v2265 = vshrl.u32 %v2264, 7
        %v2266 = vsub.s32 1, %v2265
        %v2267 = vrot.slane %v2258, %v2266
        %v2274 = vcombine.high %v1854, %v1854
        %v2276 = vunpack.c.l.s4 1966171168
        %v2277 = vunpack.c.0.s8 %v2276
        %v2278 = vlaneseq
        %v2279 = vshrl.u32 %v2278, 7
        %v2280 = vsub.s32 %v2277, %v2279
        %v2281 = vrot.slane %v1854, %v2280
        %v2283 = vunpack.c.l.s4 1966171168
        %v2284 = vunpack.c.0.s8 %v2283
        %v2285 = vlaneseq
        %v2286 = vshrl.u32 %v2285, 7
        %v2287 = vsub.s32 %v2284, %v2286
        %v2288 = vrot.slane %v2274, %v2287
        %v2289 = vcombine.high %v2281, %v2281
        %v2290 = vcombine.high %v2288, %v2288
        %v2292 = vunpack.c.l.s4 1966171168
        %v2293 = vunpack.c.0.s8 %v2292
        %v2294 = vlaneseq
        %v2295 = vshrl.u32 %v2294, 7
        %v2296 = vsub.s32 %v2293, %v2295
        %v2297 = vrot.slane %v2281, %v2296
        %v2299 = vunpack.c.l.s4 1966171168
        %v2300 = vunpack.c.0.s8 %v2299
        %v2301 = vlaneseq
        %v2302 = vshrl.u32 %v2301, 7
        %v2303 = vsub.s32 %v2300, %v2302
        %v2304 = vrot.slane %v2288, %v2303
        %v2306 = vunpack.c.l.s4 1966171168
        %v2307 = vunpack.c.0.s8 %v2306
        %v2308 = vlaneseq
        %v2309 = vshrl.u32 %v2308, 7
        %v2310 = vsub.s32 %v2307, %v2309
        %v2311 = vrot.slane %v2289, %v2310
        %v2313 = vunpack.c.l.s4 1966171168
        %v2314 = vunpack.c.0.s8 %v2313
        %v2315 = vlaneseq
        %v2316 = vshrl.u32 %v2315, 7
        %v2317 = vsub.s32 %v2314, %v2316
        %v2318 = vrot.slane %v2290, %v2317
        %v2319 = vcombine.high %v2297, %v2297
        %v2320 = vcombine.high %v2304, %v2304
        %v2321 = vcombine.high %v2311, %v2311
        %v2322 = vcombine.high %v2318, %v2318
        %v2323 = vcombine.high %v1855, %v1855
        %v2325 = vunpack.c.l.s4 1966171168
        %v2326 = vunpack.c.0.s8 %v2325
        %v2327 = vlaneseq
        %v2328 = vshrl.u32 %v2327, 7
        %v2329 = vsub.s32 %v2326, %v2328
        %v2330 = vrot.slane %v1855, %v2329
        %v2332 = vunpack.c.l.s4 1966171168
        %v2333 = vunpack.c.0.s8 %v2332
        %v2334 = vlaneseq
        %v2335 = vshrl.u32 %v2334, 7
        %v2336 = vsub.s32 %v2333, %v2335
        %v2337 = vrot.slane %v2323, %v2336
        %v2338 = vcombine.high %v2330, %v2330
        %v2339 = vcombine.high %v2337, %v2337
        %v2341 = vunpack.c.l.s4 1966171168
        %v2342 = vunpack.c.0.s8 %v2341
        %v2343 = vlaneseq
        %v2344 = vshrl.u32 %v2343, 7
        %v2345 = vsub.s32 %v2342, %v2344
        %v2346 = vrot.slane %v2330, %v2345
        %v2348 = vunpack.c.l.s4 1966171168
        %v2349 = vunpack.c.0.s8 %v2348
        %v2350 = vlaneseq
        %v2351 = vshrl.u32 %v2350, 7
        %v2352 = vsub.s32 %v2349, %v2351
        %v2353 = vrot.slane %v2337, %v2352
        %v2355 = vunpack.c.l.s4 1966171168
        %v2356 = vunpack.c.0.s8 %v2355
        %v2357 = vlaneseq
        %v2358 = vshrl.u32 %v2357, 7
        %v2359 = vsub.s32 %v2356, %v2358
        %v2360 = vrot.slane %v2338, %v2359
        %v2362 = vunpack.c.l.s4 1966171168
        %v2363 = vunpack.c.0.s8 %v2362
        %v2364 = vlaneseq
        %v2365 = vshrl.u32 %v2364, 7
        %v2366 = vsub.s32 %v2363, %v2365
        %v2367 = vrot.slane %v2339, %v2366
        %v2368 = vcombine.high %v2346, %v2346
        %v2369 = vcombine.high %v2353, %v2353
        %v2370 = vcombine.high %v2360, %v2360
        %v2371 = vcombine.high %v2367, %v2367
        %v2372 = vcombine.high %v1856, %v1856
        %v2374 = vunpack.c.l.s4 1966171168
        %v2375 = vunpack.c.0.s8 %v2374
        %v2376 = vlaneseq
        %v2377 = vshrl.u32 %v2376, 7
        %v2378 = vsub.s32 %v2375, %v2377
        %v2379 = vrot.slane %v1856, %v2378
        %v2381 = vunpack.c.l.s4 1966171168
        %v2382 = vunpack.c.0.s8 %v2381
        %v2383 = vlaneseq
        %v2384 = vshrl.u32 %v2383, 7
        %v2385 = vsub.s32 %v2382, %v2384
        %v2386 = vrot.slane %v2372, %v2385
        %v2387 = vcombine.high %v2379, %v2379
        %v2388 = vcombine.high %v2386, %v2386
        %v2390 = vunpack.c.l.s4 1966171168
        %v2391 = vunpack.c.0.s8 %v2390
        %v2392 = vlaneseq
        %v2393 = vshrl.u32 %v2392, 7
        %v2394 = vsub.s32 %v2391, %v2393
        %v2395 = vrot.slane %v2379, %v2394
        %v2397 = vunpack.c.l.s4 1966171168
        %v2398 = vunpack.c.0.s8 %v2397
        %v2399 = vlaneseq
        %v2400 = vshrl.u32 %v2399, 7
        %v2401 = vsub.s32 %v2398, %v2400
        %v2402 = vrot.slane %v2386, %v2401
        %v2404 = vunpack.c.l.s4 1966171168
        %v2405 = vunpack.c.0.s8 %v2404
        %v2406 = vlaneseq
        %v2407 = vshrl.u32 %v2406, 7
        %v2408 = vsub.s32 %v2405, %v2407
        %v2409 = vrot.slane %v2387, %v2408
        %v2411 = vunpack.c.l.s4 1966171168
        %v2412 = vunpack.c.0.s8 %v2411
        %v2413 = vlaneseq
        %v2414 = vshrl.u32 %v2413, 7
        %v2415 = vsub.s32 %v2412, %v2414
        %v2416 = vrot.slane %v2388, %v2415
        %v2417 = vcombine.high %v2395, %v2395
        %v2418 = vcombine.high %v2402, %v2402
        %v2419 = vcombine.high %v2409, %v2409
        %v2420 = vcombine.high %v2416, %v2416
        %v2422 = vunpack.c.l.s4 1966171168
        %v2423 = vunpack.c.0.s8 %v2422
        %v2424 = vlaneseq
        %v2425 = vshrl.u32 %v2424, 7
        %v2426 = vsub.s32 %v2423, %v2425
        %v2427 = vrot.slane %v1857, %v2426
        %v2429 = vunpack.c.l.s4 1966171168
        %v2430 = vunpack.c.0.s8 %v2429
        %v2431 = vlaneseq
        %v2432 = vshrl.u32 %v2431, 7
        %v2433 = vsub.s32 %v2430, %v2432
        %v2434 = vrot.slane %v2427, %v2433
        %v2860 = vunpack.c.l.b16 %v1858
        %v2861 = vunpack.c.h.b16 %v1858
        %v2862 = vunpack.c.l.b16 %v1859
        %v2863 = vunpack.c.h.b16 %v1859
        %v2864 = vunpack.c.l.b16 %v1860
        %v2865 = vunpack.c.h.b16 %v1860
        %v2866 = vunpack.c.l.b16 %v1861
        %v2867 = vunpack.c.h.b16 %v1861
        %v2868 = vunpack.c.l.b16 %v1862
        %v2869 = vunpack.c.h.b16 %v1862
        %v2870 = vunpack.c.l.b16 %v1863
        %v2871 = vunpack.c.h.b16 %v1863
        %v2872 = vunpack.c.l.b16 %v1864
        %v2873 = vunpack.c.h.b16 %v1864
        %v2874 = vunpack.c.l.b16 %v1865
        %v2875 = vunpack.c.h.b16 %v1865
        %v2876 = vunpack.c.l.b16 %v1866
        %v2877 = vunpack.c.h.b16 %v1866
        %v2878 = vunpack.c.l.b16 %v1867
        %v2879 = vunpack.c.h.b16 %v1867
        %v2880 = vunpack.c.l.b16 %v1868
        %v2881 = vunpack.c.h.b16 %v1868
        %v2882 = vunpack.c.l.b16 %v1869
        %v2883 = vunpack.c.h.b16 %v1869
        %v2884 = vunpack.c.l.b16 %v1870
        %v2885 = vunpack.c.h.b16 %v1870
        %v2886 = vunpack.c.l.b16 %v1871
        %v2887 = vunpack.c.h.b16 %v1871
        %v2888 = vunpack.c.l.b16 %v1872
        %v2889 = vunpack.c.h.b16 %v1872
        %v2890 = vunpack.c.l.b16 %v1873
        %v2891 = vunpack.c.h.b16 %v1873
        %v2892 = vunpack.c.l.b16 %v1874
        %v2893 = vunpack.c.h.b16 %v1874
        %v2894 = vunpack.c.l.b16 %v1875
        %v2895 = vunpack.c.h.b16 %v1875
        %v2896 = vunpack.c.l.b16 %v1876
        %v2897 = vunpack.c.h.b16 %v1876
        %v2898 = vunpack.c.l.b16 %v1877
        %v2899 = vunpack.c.h.b16 %v1877
        %v2900 = vunpack.c.l.b16 %v1878
        %v2901 = vunpack.c.h.b16 %v1878
        %v2902 = vunpack.c.l.b16 %v1879
        %v2903 = vunpack.c.h.b16 %v1879
        %v2904 = vunpack.c.l.b16 %v1880
        %v2905 = vunpack.c.h.b16 %v1880
        %v2906 = vunpack.c.l.b16 %v1881
        %v2907 = vunpack.c.h.b16 %v1881
        %v2908 = vunpack.c.l.b16 %v1882
        %v2909 = vunpack.c.h.b16 %v1882
        %v2910 = vunpack.c.l.b16 %v1883
        %v2911 = vunpack.c.h.b16 %v1883
        %v2912 = vunpack.c.l.b16 %v1884
        %v2913 = vunpack.c.h.b16 %v1884
        %v2914 = vunpack.c.l.b16 %v1885
        %v2915 = vunpack.c.h.b16 %v1885
        %v2916 = vunpack.c.l.b16 %v1886
        %v2917 = vunpack.c.h.b16 %v1886
        %v2918 = vunpack.c.l.b16 %v1887
        %v2919 = vunpack.c.h.b16 %v1887
        %v2920 = vunpack.c.l.b16 %v1888
        %v2921 = vunpack.c.h.b16 %v1888
        %v2922 = vunpack.c.l.b16 %v1889
        %v2923 = vunpack.c.h.b16 %v1889
        %v2924 = vunpack.c.l.b16 %v1890
        %v2925 = vunpack.c.h.b16 %v1890
        %v2926 = vunpack.c.l.b16 %v1891
        %v2927 = vunpack.c.h.b16 %v1891
        %v2928 = vunpack.c.l.b16 %v1892
        %v2929 = vunpack.c.h.b16 %v1892
        %v2930 = vunpack.c.l.b16 %v1893
        %v2931 = vunpack.c.h.b16 %v1893
        %v2932 = vunpack.c.l.b16 %v1894
        %v2933 = vunpack.c.h.b16 %v1894
        %v2934 = vunpack.c.l.b16 %v1895
        %v2935 = vunpack.c.h.b16 %v1895
        %v2936 = vunpack.c.l.b16 %v1896
        %v2937 = vunpack.c.h.b16 %v1896
        %v2938 = vunpack.c.l.b16 %v1897
        %v2939 = vunpack.c.h.b16 %v1897
        %v2940 = vunpack.c.l.b16 %v1898
        %v2941 = vunpack.c.h.b16 %v1898
        %v2942 = vunpack.c.l.b16 %v1899
        %v2943 = vunpack.c.h.b16 %v1899
        %v2944 = vunpack.c.l.b16 %v1900
        %v2945 = vunpack.c.h.b16 %v1900
        %v2946 = vunpack.c.l.b16 %v1901
        %v2947 = vunpack.c.h.b16 %v1901
        %v2948 = vunpack.c.l.b16 %v1902
        %v2949 = vunpack.c.h.b16 %v1902
        %v2950 = vunpack.c.l.b16 %v1903
        %v2951 = vunpack.c.h.b16 %v1903
        %v2952 = vunpack.c.l.b16 %v1904
        %v2953 = vunpack.c.h.b16 %v1904
        %v2954 = vunpack.c.l.b16 %v1905
        %v2955 = vunpack.c.h.b16 %v1905
        %v2956 = vunpack.c.l.b16 %v1906
        %v2957 = vunpack.c.h.b16 %v1906
        %v2958 = vunpack.c.l.b16 %v1907
        %v2959 = vunpack.c.h.b16 %v1907
        %v2960 = vunpack.c.l.b16 %v1908
        %v2961 = vunpack.c.h.b16 %v1908
        %v2962 = vunpack.c.l.b16 %v1909
        %v2963 = vunpack.c.h.b16 %v1909
        %v2964 = vunpack.c.l.b16 %v1910
        %v2965 = vunpack.c.h.b16 %v1910
        %v2966 = vunpack.c.l.b16 %v1911
        %v2967 = vunpack.c.h.b16 %v1911
        %v2968 = vunpack.c.l.b16 %v1912
        %v2969 = vunpack.c.h.b16 %v1912
        %v2970 = vunpack.c.l.b16 %v1913
        %v2971 = vunpack.c.h.b16 %v1913
        %v2972 = vunpack.c.l.b16 %v1914
        %v2973 = vunpack.c.h.b16 %v1914
        %v2974 = vunpack.c.l.b16 %v1915
        %v2975 = vunpack.c.h.b16 %v1915
        %v2976 = vunpack.c.l.b16 %v1916
        %v2977 = vunpack.c.h.b16 %v1916
        %v2978 = vunpack.c.l.b16 %v1917
        %v2979 = vunpack.c.h.b16 %v1917
        %v2980 = vunpack.c.l.b16 %v1918
        %v2981 = vunpack.c.h.b16 %v1918
        %v2982 = vunpack.c.l.b16 %v1919
        %v2983 = vunpack.c.h.b16 %v1919
        %v2984 = vunpack.c.l.b16 %v1920
        %v2985 = vunpack.c.h.b16 %v1920
        %v2986 = vunpack.c.l.b16 %v1921
        %v2987 = vunpack.c.h.b16 %v1921
        %v2988 = vunpack.c.l.b16 %v1922
        %v2989 = vunpack.c.h.b16 %v1922
        %v2990 = vunpack.c.l.b16 %v1923
        %v2991 = vunpack.c.h.b16 %v1923
        %v2992 = vunpack.c.l.b16 %v1924
        %v2993 = vunpack.c.h.b16 %v1924
        %v2994 = vunpack.c.l.b16 %v1925
        %v2995 = vunpack.c.h.b16 %v1925
        %v2996 = vunpack.c.l.b16 %v1926
        %v2997 = vunpack.c.h.b16 %v1926
        %v2998 = vunpack.c.l.b16 %v1927
        %v2999 = vunpack.c.h.b16 %v1927
        %v3000 = vunpack.c.l.b16 %v1928
        %v3001 = vunpack.c.h.b16 %v1928
        %v3002 = vunpack.c.l.b16 %v1929
        %v3003 = vunpack.c.h.b16 %v1929
        %v3004 = vunpack.c.l.b16 %v1930
        %v3005 = vunpack.c.h.b16 %v1930
        %v3006 = vunpack.c.l.b16 %v1931
        %v3007 = vunpack.c.h.b16 %v1931
        %v3008 = vunpack.c.l.b16 %v1932
        %v3009 = vunpack.c.h.b16 %v1932
        %v3010 = vunpack.c.l.b16 %v1933
        %v3011 = vunpack.c.h.b16 %v1933
        %v3012 = vunpack.c.l.b16 %v1934
        %v3013 = vunpack.c.h.b16 %v1934
        %v3014 = vunpack.c.l.b16 %v1935
        %v3015 = vunpack.c.h.b16 %v1935
        %v3016 = vunpack.c.l.b16 %v1936
        %v3017 = vunpack.c.h.b16 %v1936
        %v3018 = vunpack.c.l.b16 %v1937
        %v3019 = vunpack.c.h.b16 %v1937
        %v3020 = vunpack.c.l.b16 %v1938
        %v3021 = vunpack.c.h.b16 %v1938
        %v3022 = vunpack.c.l.b16 %v1939
        %v3023 = vunpack.c.h.b16 %v1939
        %v3024 = vunpack.c.l.b16 %v1940
        %v3025 = vunpack.c.h.b16 %v1940
        %v3026 = vunpack.c.l.b16 %v1941
        %v3027 = vunpack.c.h.b16 %v1941
        %v3028 = vunpack.c.l.b16 %v1942
        %v3029 = vunpack.c.h.b16 %v1942
        %v3030 = vunpack.c.l.b16 %v1943
        %v3031 = vunpack.c.h.b16 %v1943
        %v3032 = vunpack.c.l.b16 %v1944
        %v3033 = vunpack.c.h.b16 %v1944
        %v3034 = vunpack.c.l.b16 %v1945
        %v3035 = vunpack.c.h.b16 %v1945
        %v3036 = vunpack.c.l.b16 %v1946
        %v3037 = vunpack.c.h.b16 %v1946
        %v3038 = vunpack.c.l.b16 %v1947
        %v3039 = vunpack.c.h.b16 %v1947
        %v3040 = vunpack.c.l.b16 %v1948
        %v3041 = vunpack.c.h.b16 %v1948
        %v3042 = vunpack.c.l.b16 %v1949
        %v3043 = vunpack.c.h.b16 %v1949
        %v3044 = vunpack.c.l.b16 %v1950
        %v3045 = vunpack.c.h.b16 %v1950
        %v3046 = vunpack.c.l.b16 %v1951
        %v3047 = vunpack.c.h.b16 %v1951
        %v3048 = vunpack.c.l.b16 %v1952
        %v3049 = vunpack.c.h.b16 %v1952
        %v3050 = vunpack.c.l.b16 %v1953
        %v3051 = vunpack.c.h.b16 %v1953
        %v3052 = vunpack.c.l.b16 %v1954
        %v3053 = vunpack.c.h.b16 %v1954
        %v3054 = vunpack.c.l.b16 %v1955
        %v3055 = vunpack.c.h.b16 %v1955
        %v3056 = vunpack.c.l.b16 %v1956
        %v3057 = vunpack.c.h.b16 %v1956
        %v3058 = vunpack.c.l.b16 %v1957
        %v3059 = vunpack.c.h.b16 %v1957
        %v3060 = vunpack.c.l.b16 %v1958
        %v3061 = vunpack.c.h.b16 %v1958
        %v3062 = vunpack.c.l.b16 %v1959
        %v3063 = vunpack.c.h.b16 %v1959
        %v3064 = vunpack.c.l.b16 %v1960
        %v3065 = vunpack.c.h.b16 %v1960
        %v3066 = vunpack.c.l.b16 %v1961
        %v3067 = vunpack.c.h.b16 %v1961
        %v3068 = vunpack.c.l.b16 %v1962
        %v3069 = vunpack.c.h.b16 %v1962
        %v3070 = vunpack.c.l.b16 %v1963
        %v3071 = vunpack.c.h.b16 %v1963
        %v3072 = vunpack.c.l.b16 %v1964
        %v3073 = vunpack.c.h.b16 %v1964
        %v3074 = vunpack.c.l.b16 %v1965
        %v3075 = vunpack.c.h.b16 %v1965
        %v3076 = vunpack.c.l.b16 %v1966
        %v3077 = vunpack.c.h.b16 %v1966
        %v3078 = vunpack.c.l.b16 %v1967
        %v3079 = vunpack.c.h.b16 %v1967
        %v3080 = vunpack.c.l.b16 %v1968
        %v3081 = vunpack.c.h.b16 %v1968
        %v3082 = vunpack.c.l.b16 %v1969
        %v3083 = vunpack.c.h.b16 %v1969
        %v3084 = vunpack.c.l.b16 %v1970
        %v3085 = vunpack.c.h.b16 %v1970
        %v3086 = vunpack.c.l.b16 %v1971
        %v3087 = vunpack.c.h.b16 %v1971
        %v3088 = vunpack.c.l.b16 %v1972
        %v3089 = vunpack.c.h.b16 %v1972
        %v3090 = vunpack.c.l.b16 %v1973
        %v3091 = vunpack.c.h.b16 %v1973
        %v3092 = vunpack.c.l.b16 %v1974
        %v3093 = vunpack.c.h.b16 %v1974
        %v3094 = vunpack.c.l.b16 %v1975
        %v3095 = vunpack.c.h.b16 %v1975
        %v3096 = vunpack.c.l.b16 %v1976
        %v3097 = vunpack.c.h.b16 %v1976
        %v3098 = vunpack.c.l.b16 %v1977
        %v3099 = vunpack.c.h.b16 %v1977
        %v3100 = vunpack.c.l.b16 %v1978
        %v3101 = vunpack.c.h.b16 %v1978
        %v3102 = vunpack.c.l.b16 %v1979
        %v3103 = vunpack.c.h.b16 %v1979
        %v3104 = vunpack.c.l.b16 %v1980
        %v3105 = vunpack.c.h.b16 %v1980
        %v3106 = vunpack.c.l.b16 %v1981
        %v3107 = vunpack.c.h.b16 %v1981
        %v3108 = vunpack.c.l.b16 %v1982
        %v3109 = vunpack.c.h.b16 %v1982
        %v3110 = vunpack.c.l.b16 %v1983
        %v3111 = vunpack.c.h.b16 %v1983
        %v3112 = vunpack.c.l.b16 %v1984
        %v3113 = vunpack.c.h.b16 %v1984
        %v3114 = vunpack.c.l.b16 %v1985
        %v3115 = vunpack.c.h.b16 %v1985
        %v3116 = vunpack.c.l.b16 %v1986
        %v3117 = vunpack.c.h.b16 %v1986
        %v3118 = vunpack.c.l.b16 %v1987
        %v3119 = vunpack.c.h.b16 %v1987
        %v3120 = vunpack.c.l.b16 %v1988
        %v3121 = vunpack.c.h.b16 %v1988
        %v3122 = vunpack.c.l.b16 %v1989
        %v3123 = vunpack.c.h.b16 %v1989
        %v3124 = vunpack.c.l.b16 %v1990
        %v3125 = vunpack.c.h.b16 %v1990
        %v3126 = vunpack.c.l.b16 %v1991
        %v3127 = vunpack.c.h.b16 %v1991
        %v3128 = vunpack.c.l.b16 %v1992
        %v3129 = vunpack.c.h.b16 %v1992
        %v3130 = vunpack.c.l.b16 %v1993
        %v3131 = vunpack.c.h.b16 %v1993
        %v3132 = vunpack.c.l.b16 %v1994
        %v3133 = vunpack.c.h.b16 %v1994
        %v3134 = vunpack.c.l.b16 %v1995
        %v3135 = vunpack.c.h.b16 %v1995
        %v3136 = vunpack.c.l.b16 %v1996
        %v3137 = vunpack.c.h.b16 %v1996
        %v3138 = vunpack.c.l.b16 %v1997
        %v3139 = vunpack.c.h.b16 %v1997
        %v3140 = vunpack.c.l.b16 %v1998
        %v3141 = vunpack.c.h.b16 %v1998
        %v3142 = vunpack.c.l.b16 %v1999
        %v3143 = vunpack.c.h.b16 %v1999
        %v3144 = vunpack.c.l.b16 %v2000
        %v3145 = vunpack.c.h.b16 %v2000
        %v3146 = vunpack.c.l.b16 %v2001
        %v3147 = vunpack.c.h.b16 %v2001
        %v3148 = vunpack.c.l.b16 %v2002
        %v3149 = vunpack.c.h.b16 %v2002
        %v3150 = vunpack.c.l.b16 %v2003
        %v3151 = vunpack.c.h.b16 %v2003
        %v3152 = vunpack.c.l.b16 %v2004
        %v3153 = vunpack.c.h.b16 %v2004
        %v3154 = vunpack.c.l.b16 %v2005
        %v3155 = vunpack.c.h.b16 %v2005
        %v3156 = vunpack.c.l.b16 %v2006
        %v3157 = vunpack.c.h.b16 %v2006
        %v3158 = vunpack.c.l.b16 %v2007
        %v3159 = vunpack.c.h.b16 %v2007
        %v3160 = vunpack.c.l.b16 %v2008
        %v3161 = vunpack.c.h.b16 %v2008
        %v3162 = vunpack.c.l.b16 %v2009
        %v3163 = vunpack.c.h.b16 %v2009
        %v3164 = vunpack.c.l.b16 %v2010
        %v3165 = vunpack.c.h.b16 %v2010
        %v3166 = vunpack.c.l.b16 %v2011
        %v3167 = vunpack.c.h.b16 %v2011
        %v3168 = vunpack.c.l.b16 %v2012
        %v3169 = vunpack.c.h.b16 %v2012
        %v3170 = vunpack.c.l.b16 %v2013
        %v3171 = vunpack.c.h.b16 %v2013
        %v3172 = vunpack.c.l.b16 %v2014
        %v3173 = vunpack.c.h.b16 %v2014
        %v3174 = vunpack.c.l.b16 %v2015
        %v3175 = vunpack.c.h.b16 %v2015
        %v3176 = vunpack.c.l.b16 %v2016
        %v3177 = vunpack.c.h.b16 %v2016
        %v3178 = vunpack.c.l.b16 %v2017
        %v3179 = vunpack.c.h.b16 %v2017
        %v3180 = vunpack.c.l.b16 %v2018
        %v3181 = vunpack.c.h.b16 %v2018
        %v3182 = vunpack.c.l.b16 %v2019
        %v3183 = vunpack.c.h.b16 %v2019
        %v3184 = vunpack.c.l.b16 %v2020
        %v3185 = vunpack.c.h.b16 %v2020
        %v3186 = vunpack.c.l.b16 %v2021
        %v3187 = vunpack.c.h.b16 %v2021
        %v3188 = vunpack.c.l.b16 %v2022
        %v3189 = vunpack.c.h.b16 %v2022
        %v3190 = vunpack.c.l.b16 %v2023
        %v3191 = vunpack.c.h.b16 %v2023
        %v3192 = vunpack.c.l.b16 %v2024
        %v3193 = vunpack.c.h.b16 %v2024
        %v3194 = vunpack.c.l.b16 %v2025
        %v3195 = vunpack.c.h.b16 %v2025
        %v3196 = vunpack.c.l.b16 %v2026
        %v3197 = vunpack.c.h.b16 %v2026
        %v3198 = vunpack.c.l.b16 %v2027
        %v3199 = vunpack.c.h.b16 %v2027
        %v3200 = vunpack.c.l.b16 %v2028
        %v3201 = vunpack.c.h.b16 %v2028
        %v3202 = vunpack.c.l.b16 %v2029
        %v3203 = vunpack.c.h.b16 %v2029
        %v3204 = vunpack.c.l.b16 %v2030
        %v3205 = vunpack.c.h.b16 %v2030
        %v3206 = vunpack.c.l.b16 %v2031
        %v3207 = vunpack.c.h.b16 %v2031
        %v3208 = vunpack.c.l.b16 %v2032
        %v3209 = vunpack.c.h.b16 %v2032
        %v3210 = vunpack.c.l.b16 %v2033
        %v3211 = vunpack.c.h.b16 %v2033
        %v3212 = vunpack.c.l.b16 %v2034
        %v3213 = vunpack.c.h.b16 %v2034
        %v3214 = vunpack.c.l.b16 %v2035
        %v3215 = vunpack.c.h.b16 %v2035
        %v3216 = vunpack.c.l.b16 %v2036
        %v3217 = vunpack.c.h.b16 %v2036
        %v3218 = vunpack.c.l.b16 %v2037
        %v3219 = vunpack.c.h.b16 %v2037
        %v3220 = vunpack.c.l.b16 %v2038
        %v3221 = vunpack.c.h.b16 %v2038
        %v3222 = vunpack.c.l.b16 %v2039
        %v3223 = vunpack.c.h.b16 %v2039
        %v3224 = vunpack.c.l.b16 %v2040
        %v3225 = vunpack.c.h.b16 %v2040
        %v3226 = vunpack.c.l.b16 %v2041
        %v3227 = vunpack.c.h.b16 %v2041
        %v3228 = vunpack.c.l.b16 %v2042
        %v3229 = vunpack.c.h.b16 %v2042
        %v3230 = vunpack.c.l.b16 %v2043
        %v3231 = vunpack.c.h.b16 %v2043
        %v3232 = vunpack.c.l.b16 %v2044
        %v3233 = vunpack.c.h.b16 %v2044
        %v3234 = vunpack.c.l.b16 %v2045
        %v3235 = vunpack.c.h.b16 %v2045
        %v3236 = vunpack.c.l.b16 %v2046
        %v3237 = vunpack.c.h.b16 %v2046
        %v3238 = vunpack.c.l.b16 %v2047
        %v3239 = vunpack.c.h.b16 %v2047
        %v3240 = vunpack.c.l.b16 %v2048
        %v3241 = vunpack.c.h.b16 %v2048
        %v3242 = vunpack.c.l.b16 %v2049
        %v3243 = vunpack.c.h.b16 %v2049
        %v3244 = vunpack.c.l.b16 %v2050
        %v3245 = vunpack.c.h.b16 %v2050
        %v3246 = vunpack.c.l.b16 %v2051
        %v3247 = vunpack.c.h.b16 %v2051
        %v3248 = vunpack.c.l.b16 %v2052
        %v3249 = vunpack.c.h.b16 %v2052
        %v3250 = vunpack.c.l.b16 %v2053
        %v3251 = vunpack.c.h.b16 %v2053
        %v3252 = vunpack.c.l.b16 %v2054
        %v3253 = vunpack.c.h.b16 %v2054
        %v3254 = vunpack.c.l.b16 %v2055
        %v3255 = vunpack.c.h.b16 %v2055
        %v3256 = vunpack.c.l.b16 %v2056
        %v3257 = vunpack.c.h.b16 %v2056
        %v3258 = vunpack.c.l.b16 %v2057
        %v3259 = vunpack.c.h.b16 %v2057
        %v3260 = vunpack.c.l.b16 %v2058
        %v3261 = vunpack.c.h.b16 %v2058
        %v3262 = vunpack.c.l.b16 %v2059
        %v3263 = vunpack.c.h.b16 %v2059
        %v3264 = vunpack.c.l.b16 %v2060
        %v3265 = vunpack.c.h.b16 %v2060
        %v3266 = vunpack.c.l.b16 %v2061
        %v3267 = vunpack.c.h.b16 %v2061
        %v3268 = vunpack.c.l.b16 %v2062
        %v3269 = vunpack.c.h.b16 %v2062
        %v3270 = vunpack.c.l.b16 %v2063
        %v3271 = vunpack.c.h.b16 %v2063
        %v3272 = vunpack.c.l.b16 %v2064
        %v3273 = vunpack.c.h.b16 %v2064
        %v3274 = vunpack.c.l.b16 %v2065
        %v3275 = vunpack.c.h.b16 %v2065
        %v3276 = vunpack.c.l.b16 %v2066
        %v3277 = vunpack.c.h.b16 %v2066
        %v3278 = vunpack.c.l.b16 %v2067
        %v3279 = vunpack.c.h.b16 %v2067
        %v3280 = vunpack.c.l.b16 %v2068
        %v3281 = vunpack.c.h.b16 %v2068
        %v3282 = vunpack.c.l.b16 %v2069
        %v3283 = vunpack.c.h.b16 %v2069
        %v3284 = vunpack.c.l.b16 %v2070
        %v3285 = vunpack.c.h.b16 %v2070
        %v3286 = vunpack.c.l.b16 %v2071
        %v3287 = vunpack.c.h.b16 %v2071
        %v3288 = vunpack.c.l.b16 %v2072
        %v3289 = vunpack.c.h.b16 %v2072
        %v3290 = vunpack.c.l.b16 %v2073
        %v3291 = vunpack.c.h.b16 %v2073
        %v3292 = vunpack.c.l.b16 %v2074
        %v3293 = vunpack.c.h.b16 %v2074
        %v3294 = vunpack.c.l.b16 %v2075
        %v3295 = vunpack.c.h.b16 %v2075
        %v3296 = vunpack.c.l.b16 %v2076
        %v3297 = vunpack.c.h.b16 %v2076
        %v3298 = vunpack.c.l.b16 %v2077
        %v3299 = vunpack.c.h.b16 %v2077
        %v3300 = vunpack.c.l.b16 %v2078
        %v3301 = vunpack.c.h.b16 %v2078
        %v3302 = vunpack.c.l.b16 %v2079
        %v3303 = vunpack.c.h.b16 %v2079
        %v3304 = vunpack.c.l.b16 %v2080
        %v3305 = vunpack.c.h.b16 %v2080
        %v3306 = vunpack.c.l.b16 %v2081
        %v3307 = vunpack.c.h.b16 %v2081
        %v3308 = vunpack.c.l.b16 %v2082
        %v3309 = vunpack.c.h.b16 %v2082
        %v3310 = vunpack.c.l.b16 %v2083
        %v3311 = vunpack.c.h.b16 %v2083
        %v3312 = vunpack.c.l.b16 %v2084
        %v3313 = vunpack.c.h.b16 %v2084
        %v3314 = vunpack.c.l.b16 %v2085
        %v3315 = vunpack.c.h.b16 %v2085
        %v3316 = vunpack.c.l.b16 %v2086
        %v3317 = vunpack.c.h.b16 %v2086
        %v3318 = vunpack.c.l.b16 %v2087
        %v3319 = vunpack.c.h.b16 %v2087
        %v3320 = vunpack.c.l.b16 %v2088
        %v3321 = vunpack.c.h.b16 %v2088
        %v3322 = vunpack.c.l.b16 %v2089
        %v3323 = vunpack.c.h.b16 %v2089
        %v3324 = vunpack.c.l.b16 %v2090
        %v3325 = vunpack.c.h.b16 %v2090
        %v3326 = vunpack.c.l.b16 %v2091
        %v3327 = vunpack.c.h.b16 %v2091
        %v3328 = vunpack.c.l.b16 %v2092
        %v3329 = vunpack.c.h.b16 %v2092
        %v3330 = vunpack.c.l.b16 %v2093
        %v3331 = vunpack.c.h.b16 %v2093
        %v3332 = vunpack.c.l.b16 %v2094
        %v3333 = vunpack.c.h.b16 %v2094
        %v3334 = vunpack.c.l.b16 %v2095
        %v3335 = vunpack.c.h.b16 %v2095
        %v3336 = vunpack.c.l.b16 %v2096
        %v3337 = vunpack.c.h.b16 %v2096
        %v3338 = vunpack.c.l.b16 %v2097
        %v3339 = vunpack.c.h.b16 %v2097
        %v3340 = vunpack.c.l.b16 %v2098
        %v3341 = vunpack.c.h.b16 %v2098
        %v3342 = vunpack.c.l.b16 %v2099
        %v3343 = vunpack.c.h.b16 %v2099
        %v3344 = vunpack.c.l.b16 %v2100
        %v3345 = vunpack.c.h.b16 %v2100
        %v3346 = vunpack.c.l.b16 %v2101
        %v3347 = vunpack.c.h.b16 %v2101
        %v3348 = vunpack.c.l.b16 %v2102
        %v3349 = vunpack.c.h.b16 %v2102
        %v3350 = vunpack.c.l.b16 %v2103
        %v3351 = vunpack.c.h.b16 %v2103
        %v3352 = vunpack.c.l.b16 %v2104
        %v3353 = vunpack.c.h.b16 %v2104
        %v3354 = vunpack.c.l.b16 %v2105
        %v3355 = vunpack.c.h.b16 %v2105
        %v3356 = vunpack.c.l.b16 %v2106
        %v3357 = vunpack.c.h.b16 %v2106
        %v3358 = vunpack.c.l.b16 %v2107
        %v3359 = vunpack.c.h.b16 %v2107
        %v3360 = vunpack.c.l.b16 %v2108
        %v3361 = vunpack.c.h.b16 %v2108
        %v3362 = vunpack.c.l.b16 %v2109
        %v3363 = vunpack.c.h.b16 %v2109
        %v3364 = vunpack.c.l.b16 %v2110
        %v3365 = vunpack.c.h.b16 %v2110
        %v3366 = vunpack.c.l.b16 %v2111
        %v3367 = vunpack.c.h.b16 %v2111
        %v3368 = vunpack.c.l.b16 %v2112
        %v3369 = vunpack.c.h.b16 %v2112
        %v3370 = vunpack.c.l.b16 %v2113
        %v3371 = vunpack.c.h.b16 %v2113
        %v3372 = vunpack.c.l.b16 %v2114
        %v3373 = vunpack.c.h.b16 %v2114
        %v3374 = vunpack.c.l.b16 %v2115
        %v3375 = vunpack.c.h.b16 %v2115
        %v3376 = vunpack.c.l.b16 %v2116
        %v3377 = vunpack.c.h.b16 %v2116
        %v3378 = vunpack.c.l.b16 %v2117
        %v3379 = vunpack.c.h.b16 %v2117
        %v3380 = vunpack.c.l.b16 %v2118
        %v3381 = vunpack.c.h.b16 %v2118
        %v3382 = vunpack.c.l.b16 %v2119
        %v3383 = vunpack.c.h.b16 %v2119
        %v3384 = vunpack.c.l.b16 %v2120
        %v3385 = vunpack.c.h.b16 %v2120
        %v3386 = vunpack.c.l.b16 %v2121
        %v3387 = vunpack.c.h.b16 %v2121
        %v3388 = vunpack.c.l.b16 %v2122
        %v3389 = vunpack.c.h.b16 %v2122
        %v3390 = vunpack.c.l.b16 %v2123
        %v3391 = vunpack.c.h.b16 %v2123
        %v3392 = vunpack.c.l.b16 %v2124
        %v3393 = vunpack.c.h.b16 %v2124
        %v3394 = vunpack.c.l.b16 %v2125
        %v3395 = vunpack.c.h.b16 %v2125
        %v3396 = vunpack.c.l.b16 %v2126
        %v3397 = vunpack.c.h.b16 %v2126
        %v3398 = vunpack.c.l.b16 %v2127
        %v3399 = vunpack.c.h.b16 %v2127
        %v3400 = vunpack.c.l.b16 %v2128
        %v3401 = vunpack.c.h.b16 %v2128
        %v3402 = vunpack.c.l.b16 %v2129
        %v3403 = vunpack.c.h.b16 %v2129
        %v3404 = vunpack.c.l.b16 %v2130
        %v3405 = vunpack.c.h.b16 %v2130
        %v3406 = vunpack.c.l.b16 %v2131
        %v3407 = vunpack.c.h.b16 %v2131
        %v3408 = vunpack.c.l.b16 %v2132
        %v3409 = vunpack.c.h.b16 %v2132
        %v3410 = vunpack.c.l.b16 %v2133
        %v3411 = vunpack.c.h.b16 %v2133
        %v3412 = vunpack.c.l.b16 %v2134
        %v3413 = vunpack.c.h.b16 %v2134
        %v3414 = vunpack.c.l.b16 %v2135
        %v3415 = vunpack.c.h.b16 %v2135
        %v3416 = vunpack.c.l.b16 %v2136
        %v3417 = vunpack.c.h.b16 %v2136
        %v3418 = vunpack.c.l.b16 %v2137
        %v3419 = vunpack.c.h.b16 %v2137
        %v3420 = vunpack.c.l.b16 %v2138
        %v3421 = vunpack.c.h.b16 %v2138
        %v3422 = vunpack.c.l.b16 %v2139
        %v3423 = vunpack.c.h.b16 %v2139
        %v3424 = vunpack.c.l.b16 %v2140
        %v3425 = vunpack.c.h.b16 %v2140
        %v3426 = vunpack.c.l.b16 %v2141
        %v3427 = vunpack.c.h.b16 %v2141
        %v3428 = vunpack.c.l.b16 %v2142
        %v3429 = vunpack.c.h.b16 %v2142
        %v3430 = vunpack.c.l.b16 %v2143
        %v3431 = vunpack.c.h.b16 %v2143
        %v3432 = vunpack.c.l.b16 %v2144
        %v3433 = vunpack.c.h.b16 %v2144
        %v3434 = vunpack.c.l.b16 %v2145
        %v3435 = vunpack.c.h.b16 %v2145
        %v3436 = vunpack.c.l.b16 %v2146
        %v3437 = vunpack.c.h.b16 %v2146
        %v3438 = vunpack.c.l.b16 %v2147
        %v3439 = vunpack.c.h.b16 %v2147
        %v3440 = vunpack.c.l.b16 %v2148
        %v3441 = vunpack.c.h.b16 %v2148
        %v3442 = vunpack.c.l.b16 %v2149
        %v3443 = vunpack.c.h.b16 %v2149
        %v3444 = vunpack.c.l.b16 %v2150
        %v3445 = vunpack.c.h.b16 %v2150
        %v3446 = vunpack.c.l.b16 %v2151
        %v3447 = vunpack.c.h.b16 %v2151
        %v3448 = vunpack.c.l.b16 %v2152
        %v3449 = vunpack.c.h.b16 %v2152
        %v3450 = vunpack.c.l.b16 %v2153
        %v3451 = vunpack.c.h.b16 %v2153
        %v3452 = vunpack.c.l.b16 %v2154
        %v3453 = vunpack.c.h.b16 %v2154
        %v3454 = vunpack.c.l.b16 %v2155
        %v3455 = vunpack.c.h.b16 %v2155
        %v3456 = vunpack.c.l.b16 %v2156
        %v3457 = vunpack.c.h.b16 %v2156
        %v3458 = vunpack.c.l.b16 %v2157
        %v3459 = vunpack.c.h.b16 %v2157
        %v3460 = vunpack.c.l.b16 %v2158
        %v3461 = vunpack.c.h.b16 %v2158
        %v3462 = vunpack.c.l.b16 %v2159
        %v3463 = vunpack.c.h.b16 %v2159
        %v3464 = vunpack.c.l.b16 %v2160
        %v3465 = vunpack.c.h.b16 %v2160
        %v3466 = vunpack.c.l.b16 %v2161
        %v3467 = vunpack.c.h.b16 %v2161
        %v3468 = vunpack.c.l.b16 %v2162
        %v3469 = vunpack.c.h.b16 %v2162
        %v3470 = vunpack.c.l.b16 %v2163
        %v3471 = vunpack.c.h.b16 %v2163
        %v3472 = vunpack.c.l.b16 %v2164
        %v3473 = vunpack.c.h.b16 %v2164
        %v3474 = vunpack.c.l.b16 %v2165
        %v3475 = vunpack.c.h.b16 %v2165
        %v3476 = vunpack.c.l.b16 %v2166
        %v3477 = vunpack.c.h.b16 %v2166
        %v3478 = vunpack.c.l.b16 %v2167
        %v3479 = vunpack.c.h.b16 %v2167
        %v3480 = vunpack.c.l.b16 %v2168
        %v3481 = vunpack.c.h.b16 %v2168
        %v3482 = vunpack.c.l.b16 %v2169
        %v3483 = vunpack.c.h.b16 %v2169
        %v3484 = vunpack.c.l.b16 %v2170
        %v3485 = vunpack.c.h.b16 %v2170
        %v3486 = vunpack.c.l.b16 %v2171
        %v3487 = vunpack.c.h.b16 %v2171
        %v3488 = vunpack.c.l.b16 %v2172
        %v3489 = vunpack.c.h.b16 %v2172
        %v3490 = vunpack.c.l.b16 %v2173
        %v3491 = vunpack.c.h.b16 %v2173
        %v3492 = vunpack.c.l.b16 %v2174
        %v3493 = vunpack.c.h.b16 %v2174
        %v3494 = vunpack.c.l.b16 %v2175
        %v3495 = vunpack.c.h.b16 %v2175
        %v3496 = vunpack.c.l.b16 %v2176
        %v3497 = vunpack.c.h.b16 %v2176
        %v3498 = vunpack.c.l.b16 %v2177
        %v3499 = vunpack.c.h.b16 %v2177
        %v3500 = vunpack.c.l.b16 %v2178
        %v3501 = vunpack.c.h.b16 %v2178
        %v3502 = vunpack.c.l.b16 %v2179
        %v3503 = vunpack.c.h.b16 %v2179
        %v3504 = vunpack.c.l.b16 %v2180
        %v3505 = vunpack.c.h.b16 %v2180
        %v3506 = vunpack.c.l.b16 %v2181
        %v3507 = vunpack.c.h.b16 %v2181
        %v3508 = vunpack.c.l.b16 %v2182
        %v3509 = vunpack.c.h.b16 %v2182
        %v3510 = vunpack.c.l.b16 %v2183
        %v3511 = vunpack.c.h.b16 %v2183
        %v3512 = vunpack.c.l.b16 %v2184
        %v3513 = vunpack.c.h.b16 %v2184
        %v3514 = vunpack.c.l.b16 %v2185
        %v3515 = vunpack.c.h.b16 %v2185
        %v3516 = vunpack.c.l.b16 %v2186
        %v3517 = vunpack.c.h.b16 %v2186
        %v3518 = vunpack.c.l.b16 %v2187
        %v3519 = vunpack.c.h.b16 %v2187
        %v3520 = vunpack.c.l.b16 %v2188
        %v3521 = vunpack.c.h.b16 %v2188
        %v3522 = vunpack.c.l.b16 %v2189
        %v3523 = vunpack.c.h.b16 %v2189
        %v3524 = vunpack.c.l.b16 %v2190
        %v3525 = vunpack.c.h.b16 %v2190
        %v3526 = vunpack.c.l.b16 %v2191
        %v3527 = vunpack.c.h.b16 %v2191
        %v3528 = vunpack.c.l.b16 %v2192
        %v3529 = vunpack.c.h.b16 %v2192
        %v3530 = vunpack.c.l.b16 %v2193
        %v3531 = vunpack.c.h.b16 %v2193
        %v3532 = vunpack.c.l.b16 %v2194
        %v3533 = vunpack.c.h.b16 %v2194
        %v3534 = vunpack.c.l.b16 %v2195
        %v3535 = vunpack.c.h.b16 %v2195
        %v3536 = vunpack.c.l.b16 %v2196
        %v3537 = vunpack.c.h.b16 %v2196
        %v3538 = vunpack.c.l.b16 %v2197
        %v3539 = vunpack.c.h.b16 %v2197
        %v3540 = vunpack.c.l.b16 %v2198
        %v3541 = vunpack.c.h.b16 %v2198
        %v3542 = vunpack.c.l.b16 %v2199
        %v3543 = vunpack.c.h.b16 %v2199
        %v3544 = vunpack.c.l.b16 %v2200
        %v3545 = vunpack.c.h.b16 %v2200
        %v3546 = vunpack.c.l.b16 %v2201
        %v3547 = vunpack.c.h.b16 %v2201
        %v3548 = vunpack.c.l.b16 %v2202
        %v3549 = vunpack.c.h.b16 %v2202
        %v3550 = vunpack.c.l.b16 %v2203
        %v3551 = vunpack.c.h.b16 %v2203
        %v3552 = vunpack.c.l.b16 %v2204
        %v3553 = vunpack.c.h.b16 %v2204
        %v3554 = vunpack.c.l.b16 %v2205
        %v3555 = vunpack.c.h.b16 %v2205
        %v3556 = vunpack.c.l.b16 %v2206
        %v3557 = vunpack.c.h.b16 %v2206
        %v3558 = vunpack.c.l.b16 %v2207
        %v3559 = vunpack.c.h.b16 %v2207
        %v3560 = vunpack.c.l.b16 %v2208
        %v3561 = vunpack.c.h.b16 %v2208
        %v3562 = vunpack.c.l.b16 %v2209
        %v3563 = vunpack.c.h.b16 %v2209
        %v3564 = vunpack.c.l.b16 %v2210
        %v3565 = vunpack.c.h.b16 %v2210
        %v3566 = vunpack.c.l.b16 %v2211
        %v3567 = vunpack.c.h.b16 %v2211
        %v3568 = vunpack.c.l.b16 %v2212
        %v3569 = vunpack.c.h.b16 %v2212
        %v3570 = vunpack.c.l.b16 %v2213
        %v3571 = vunpack.c.h.b16 %v2213
        %v3572 = vunpack.c.l.b16 %v2214
        %v3573 = vunpack.c.h.b16 %v2214
        %v3574 = vunpack.c.l.b16 %v2215
        %v3575 = vunpack.c.h.b16 %v2215
        %v3576 = vunpack.c.l.b16 %v2216
        %v3577 = vunpack.c.h.b16 %v2216
        %v3578 = vunpack.c.l.b16 %v2217
        %v3579 = vunpack.c.h.b16 %v2217
        %v3580 = vunpack.c.l.b16 %v2218
        %v3581 = vunpack.c.h.b16 %v2218
        %v3582 = vunpack.c.l.b16 %v2219
        %v3583 = vunpack.c.h.b16 %v2219
        %v3584 = vunpack.c.l.b16 %v2220
        %v3585 = vunpack.c.h.b16 %v2220
        %v3586 = vunpack.c.l.b16 %v2221
        %v3587 = vunpack.c.h.b16 %v2221
        %v3588 = vunpack.c.l.b16 %v2222
        %v3589 = vunpack.c.h.b16 %v2222
        %v3590 = vunpack.c.l.b16 %v2223
        %v3591 = vunpack.c.h.b16 %v2223
        %v3592 = vunpack.c.l.b16 %v2224
        %v3593 = vunpack.c.h.b16 %v2224
        %v3594 = vunpack.c.l.b16 %v2225
        %v3595 = vunpack.c.h.b16 %v2225
        %v3596 = vunpack.c.l.b16 %v2226
        %v3597 = vunpack.c.h.b16 %v2226
        %v3598 = vunpack.c.l.b16 %v2227
        %v3599 = vunpack.c.h.b16 %v2227
        %v3600 = vunpack.c.l.b16 %v2228
        %v3601 = vunpack.c.h.b16 %v2228
        %v3602 = vunpack.c.l.b16 %v2229
        %v3603 = vunpack.c.h.b16 %v2229
        %v3604 = vunpack.c.l.b16 %v2230
        %v3605 = vunpack.c.h.b16 %v2230
        %v3606 = vunpack.c.l.b16 %v2231
        %v3607 = vunpack.c.h.b16 %v2231
        %v3608 = vunpack.c.l.b16 %v2232
        %v3609 = vunpack.c.h.b16 %v2232
        %v3610 = vunpack.c.l.b16 %v2233
        %v3611 = vunpack.c.h.b16 %v2233
        %v3612 = vunpack.c.l.b16 %v2234
        %v3613 = vunpack.c.h.b16 %v2234
        %v3614 = vunpack.c.l.b16 %v2235
        %v3615 = vunpack.c.h.b16 %v2235
        %v3616 = vunpack.c.l.b16 %v2236
        %v3617 = vunpack.c.h.b16 %v2236
        %v3618 = vunpack.c.l.b16 %v2237
        %v3619 = vunpack.c.h.b16 %v2237
        %v3620 = vunpack.c.l.b16 %v2238
        %v3621 = vunpack.c.h.b16 %v2238
        %v3622 = vunpack.c.l.b16 %v2239
        %v3623 = vunpack.c.h.b16 %v2239
        %v3624 = vunpack.c.l.b16 %v2240
        %v3625 = vunpack.c.h.b16 %v2240
        %v3626 = vunpack.c.l.b16 %v2241
        %v3627 = vunpack.c.h.b16 %v2241
        %v3628 = vunpack.c.l.b16 %v2242
        %v3629 = vunpack.c.h.b16 %v2242
        %v3630 = vunpack.c.l.b16 %v2243
        %v3631 = vunpack.c.h.b16 %v2243
        %v3632 = vunpack.c.l.b16 %v2244
        %v3633 = vunpack.c.h.b16 %v2244
        %v3634 = vunpack.c.l.b16 %v2245
        %v3635 = vunpack.c.h.b16 %v2245
        %v3636 = vunpack.c.l.b16 %v2246
        %v3637 = vunpack.c.h.b16 %v2246
        %v3638 = vunpack.c.l.b16 %v2247
        %v3639 = vunpack.c.h.b16 %v2247
        %v3640 = vunpack.c.l.b16 %v2248
        %v3641 = vunpack.c.h.b16 %v2248
        %v3642 = vunpack.c.l.b16 %v2249
        %v3643 = vunpack.c.h.b16 %v2249
        %v3644 = vunpack.c.l.b16 %v2250
        %v3645 = vunpack.c.h.b16 %v2250
        %v3646 = vunpack.c.l.b16 %v2251
        %v3647 = vunpack.c.h.b16 %v2251
        %v3648 = vunpack.c.l.b16 %v2252
        %v3649 = vunpack.c.h.b16 %v2252
        %v3650 = vunpack.c.l.b16 %v2253
        %v3651 = vunpack.c.h.b16 %v2253
        %v3652 = vunpack.c.l.b16 %v2254
        %v3653 = vunpack.c.h.b16 %v2254
        %v3654 = vunpack.c.l.b16 %v2255
        %v3655 = vunpack.c.h.b16 %v2255
        %v3656 = vunpack.c.l.b16 %v2256
        %v3657 = vunpack.c.h.b16 %v2256
        %v3658 = vunpack.c.l.b16 %v2257
        %v3659 = vunpack.c.h.b16 %v2257
        %v3660 = vpack.c.b16 %v2862, %v2860
        %v3661 = vpack.c.b16 %v2863, %v2861
        %v3662 = vpack.c.b16 %v2866, %v2864
        %v3663 = vpack.c.b16 %v2867, %v2865
        %v3664 = vpack.c.b16 %v2870, %v2868
        %v3665 = vpack.c.b16 %v2871, %v2869
        %v3666 = vpack.c.b16 %v2874, %v2872
        %v3667 = vpack.c.b16 %v2875, %v2873
        %v3668 = vpack.c.b16 %v2878, %v2876
        %v3669 = vpack.c.b16 %v2879, %v2877
        %v3670 = vpack.c.b16 %v2882, %v2880
        %v3671 = vpack.c.b16 %v2883, %v2881
        %v3672 = vpack.c.b16 %v2886, %v2884
        %v3673 = vpack.c.b16 %v2887, %v2885
        %v3674 = vpack.c.b16 %v2890, %v2888
        %v3675 = vpack.c.b16 %v2891, %v2889
        %v3676 = vpack.c.b16 %v2894, %v2892
        %v3677 = vpack.c.b16 %v2895, %v2893
        %v3678 = vpack.c.b16 %v2898, %v2896
        %v3679 = vpack.c.b16 %v2899, %v2897
        %v3680 = vpack.c.b16 %v2902, %v2900
        %v3681 = vpack.c.b16 %v2903, %v2901
        %v3682 = vpack.c.b16 %v2906, %v2904
        %v3683 = vpack.c.b16 %v2907, %v2905
        %v3684 = vpack.c.b16 %v2910, %v2908
        %v3685 = vpack.c.b16 %v2911, %v2909
        %v3686 = vpack.c.b16 %v2914, %v2912
        %v3687 = vpack.c.b16 %v2915, %v2913
        %v3688 = vpack.c.b16 %v2918, %v2916
        %v3689 = vpack.c.b16 %v2919, %v2917
        %v3690 = vpack.c.b16 %v2922, %v2920
        %v3691 = vpack.c.b16 %v2923, %v2921
        %v3692 = vpack.c.b16 %v2926, %v2924
        %v3693 = vpack.c.b16 %v2927, %v2925
        %v3694 = vpack.c.b16 %v2930, %v2928
        %v3695 = vpack.c.b16 %v2931, %v2929
        %v3696 = vpack.c.b16 %v2934, %v2932
        %v3697 = vpack.c.b16 %v2935, %v2933
        %v3698 = vpack.c.b16 %v2938, %v2936
        %v3699 = vpack.c.b16 %v2939, %v2937
        %v3700 = vpack.c.b16 %v2942, %v2940
        %v3701 = vpack.c.b16 %v2943, %v2941
        %v3702 = vpack.c.b16 %v2946, %v2944
        %v3703 = vpack.c.b16 %v2947, %v2945
        %v3704 = vpack.c.b16 %v2950, %v2948
        %v3705 = vpack.c.b16 %v2951, %v2949
        %v3706 = vpack.c.b16 %v2954, %v2952
        %v3707 = vpack.c.b16 %v2955, %v2953
        %v3708 = vpack.c.b16 %v2958, %v2956
        %v3709 = vpack.c.b16 %v2959, %v2957
        %v3710 = vpack.c.b16 %v2962, %v2960
        %v3711 = vpack.c.b16 %v2963, %v2961
        %v3712 = vpack.c.b16 %v2966, %v2964
        %v3713 = vpack.c.b16 %v2967, %v2965
        %v3714 = vpack.c.b16 %v2970, %v2968
        %v3715 = vpack.c.b16 %v2971, %v2969
        %v3716 = vpack.c.b16 %v2974, %v2972
        %v3717 = vpack.c.b16 %v2975, %v2973
        %v3718 = vpack.c.b16 %v2978, %v2976
        %v3719 = vpack.c.b16 %v2979, %v2977
        %v3720 = vpack.c.b16 %v2982, %v2980
        %v3721 = vpack.c.b16 %v2983, %v2981
        %v3722 = vpack.c.b16 %v2986, %v2984
        %v3723 = vpack.c.b16 %v2987, %v2985
        %v3724 = vpack.c.b16 %v2990, %v2988
        %v3725 = vpack.c.b16 %v2991, %v2989
        %v3726 = vpack.c.b16 %v2994, %v2992
        %v3727 = vpack.c.b16 %v2995, %v2993
        %v3728 = vpack.c.b16 %v2998, %v2996
        %v3729 = vpack.c.b16 %v2999, %v2997
        %v3730 = vpack.c.b16 %v3002, %v3000
        %v3731 = vpack.c.b16 %v3003, %v3001
        %v3732 = vpack.c.b16 %v3006, %v3004
        %v3733 = vpack.c.b16 %v3007, %v3005
        %v3734 = vpack.c.b16 %v3010, %v3008
        %v3735 = vpack.c.b16 %v3011, %v3009
        %v3736 = vpack.c.b16 %v3014, %v3012
        %v3737 = vpack.c.b16 %v3015, %v3013
        %v3738 = vpack.c.b16 %v3018, %v3016
        %v3739 = vpack.c.b16 %v3019, %v3017
        %v3740 = vpack.c.b16 %v3022, %v3020
        %v3741 = vpack.c.b16 %v3023, %v3021
        %v3742 = vpack.c.b16 %v3026, %v3024
        %v3743 = vpack.c.b16 %v3027, %v3025
        %v3744 = vpack.c.b16 %v3030, %v3028
        %v3745 = vpack.c.b16 %v3031, %v3029
        %v3746 = vpack.c.b16 %v3034, %v3032
        %v3747 = vpack.c.b16 %v3035, %v3033
        %v3748 = vpack.c.b16 %v3038, %v3036
        %v3749 = vpack.c.b16 %v3039, %v3037
        %v3750 = vpack.c.b16 %v3042, %v3040
        %v3751 = vpack.c.b16 %v3043, %v3041
        %v3752 = vpack.c.b16 %v3046, %v3044
        %v3753 = vpack.c.b16 %v3047, %v3045
        %v3754 = vpack.c.b16 %v3050, %v3048
        %v3755 = vpack.c.b16 %v3051, %v3049
        %v3756 = vpack.c.b16 %v3054, %v3052
        %v3757 = vpack.c.b16 %v3055, %v3053
        %v3758 = vpack.c.b16 %v3058, %v3056
        %v3759 = vpack.c.b16 %v3059, %v3057
        %v3760 = vpack.c.b16 %v3062, %v3060
        %v3761 = vpack.c.b16 %v3063, %v3061
        %v3762 = vpack.c.b16 %v3066, %v3064
        %v3763 = vpack.c.b16 %v3067, %v3065
        %v3764 = vpack.c.b16 %v3070, %v3068
        %v3765 = vpack.c.b16 %v3071, %v3069
        %v3766 = vpack.c.b16 %v3074, %v3072
        %v3767 = vpack.c.b16 %v3075, %v3073
        %v3768 = vpack.c.b16 %v3078, %v3076
        %v3769 = vpack.c.b16 %v3079, %v3077
        %v3770 = vpack.c.b16 %v3082, %v3080
        %v3771 = vpack.c.b16 %v3083, %v3081
        %v3772 = vpack.c.b16 %v3086, %v3084
        %v3773 = vpack.c.b16 %v3087, %v3085
        %v3774 = vpack.c.b16 %v3090, %v3088
        %v3775 = vpack.c.b16 %v3091, %v3089
        %v3776 = vpack.c.b16 %v3094, %v3092
        %v3777 = vpack.c.b16 %v3095, %v3093
        %v3778 = vpack.c.b16 %v3098, %v3096
        %v3779 = vpack.c.b16 %v3099, %v3097
        %v3780 = vpack.c.b16 %v3102, %v3100
        %v3781 = vpack.c.b16 %v3103, %v3101
        %v3782 = vpack.c.b16 %v3106, %v3104
        %v3783 = vpack.c.b16 %v3107, %v3105
        %v3784 = vpack.c.b16 %v3110, %v3108
        %v3785 = vpack.c.b16 %v3111, %v3109
        %v3786 = vpack.c.b16 %v3114, %v3112
        %v3787 = vpack.c.b16 %v3115, %v3113
        %v3788 = vpack.c.b16 %v3118, %v3116
        %v3789 = vpack.c.b16 %v3119, %v3117
        %v3790 = vpack.c.b16 %v3122, %v3120
        %v3791 = vpack.c.b16 %v3123, %v3121
        %v3792 = vpack.c.b16 %v3126, %v3124
        %v3793 = vpack.c.b16 %v3127, %v3125
        %v3794 = vpack.c.b16 %v3130, %v3128
        %v3795 = vpack.c.b16 %v3131, %v3129
        %v3796 = vpack.c.b16 %v3134, %v3132
        %v3797 = vpack.c.b16 %v3135, %v3133
        %v3798 = vpack.c.b16 %v3138, %v3136
        %v3799 = vpack.c.b16 %v3139, %v3137
        %v3800 = vpack.c.b16 %v3142, %v3140
        %v3801 = vpack.c.b16 %v3143, %v3141
        %v3802 = vpack.c.b16 %v3146, %v3144
        %v3803 = vpack.c.b16 %v3147, %v3145
        %v3804 = vpack.c.b16 %v3150, %v3148
        %v3805 = vpack.c.b16 %v3151, %v3149
        %v3806 = vpack.c.b16 %v3154, %v3152
        %v3807 = vpack.c.b16 %v3155, %v3153
        %v3808 = vpack.c.b16 %v3158, %v3156
        %v3809 = vpack.c.b16 %v3159, %v3157
        %v3810 = vpack.c.b16 %v3162, %v3160
        %v3811 = vpack.c.b16 %v3163, %v3161
        %v3812 = vpack.c.b16 %v3166, %v3164
        %v3813 = vpack.c.b16 %v3167, %v3165
        %v3814 = vpack.c.b16 %v3170, %v3168
        %v3815 = vpack.c.b16 %v3171, %v3169
        %v3816 = vpack.c.b16 %v3174, %v3172
        %v3817 = vpack.c.b16 %v3175, %v3173
        %v3818 = vpack.c.b16 %v3178, %v3176
        %v3819 = vpack.c.b16 %v3179, %v3177
        %v3820 = vpack.c.b16 %v3182, %v3180
        %v3821 = vpack.c.b16 %v3183, %v3181
        %v3822 = vpack.c.b16 %v3186, %v3184
        %v3823 = vpack.c.b16 %v3187, %v3185
        %v3824 = vpack.c.b16 %v3190, %v3188
        %v3825 = vpack.c.b16 %v3191, %v3189
        %v3826 = vpack.c.b16 %v3194, %v3192
        %v3827 = vpack.c.b16 %v3195, %v3193
        %v3828 = vpack.c.b16 %v3198, %v3196
        %v3829 = vpack.c.b16 %v3199, %v3197
        %v3830 = vpack.c.b16 %v3202, %v3200
        %v3831 = vpack.c.b16 %v3203, %v3201
        %v3832 = vpack.c.b16 %v3206, %v3204
        %v3833 = vpack.c.b16 %v3207, %v3205
        %v3834 = vpack.c.b16 %v3210, %v3208
        %v3835 = vpack.c.b16 %v3211, %v3209
        %v3836 = vpack.c.b16 %v3214, %v3212
        %v3837 = vpack.c.b16 %v3215, %v3213
        %v3838 = vpack.c.b16 %v3218, %v3216
        %v3839 = vpack.c.b16 %v3219, %v3217
        %v3840 = vpack.c.b16 %v3222, %v3220
        %v3841 = vpack.c.b16 %v3223, %v3221
        %v3842 = vpack.c.b16 %v3226, %v3224
        %v3843 = vpack.c.b16 %v3227, %v3225
        %v3844 = vpack.c.b16 %v3230, %v3228
        %v3845 = vpack.c.b16 %v3231, %v3229
        %v3846 = vpack.c.b16 %v3234, %v3232
        %v3847 = vpack.c.b16 %v3235, %v3233
        %v3848 = vpack.c.b16 %v3238, %v3236
        %v3849 = vpack.c.b16 %v3239, %v3237
        %v3850 = vpack.c.b16 %v3242, %v3240
        %v3851 = vpack.c.b16 %v3243, %v3241
        %v3852 = vpack.c.b16 %v3246, %v3244
        %v3853 = vpack.c.b16 %v3247, %v3245
        %v3854 = vpack.c.b16 %v3250, %v3248
        %v3855 = vpack.c.b16 %v3251, %v3249
        %v3856 = vpack.c.b16 %v3254, %v3252
        %v3857 = vpack.c.b16 %v3255, %v3253
        %v3858 = vpack.c.b16 %v3258, %v3256
        %v3859 = vpack.c.b16 %v3259, %v3257
        %v3860 = vpack.c.b16 %v3262, %v3260
        %v3861 = vpack.c.b16 %v3263, %v3261
        %v3862 = vpack.c.b16 %v3266, %v3264
        %v3863 = vpack.c.b16 %v3267, %v3265
        %v3864 = vpack.c.b16 %v3270, %v3268
        %v3865 = vpack.c.b16 %v3271, %v3269
        %v3866 = vpack.c.b16 %v3274, %v3272
        %v3867 = vpack.c.b16 %v3275, %v3273
        %v3868 = vpack.c.b16 %v3278, %v3276
        %v3869 = vpack.c.b16 %v3279, %v3277
        %v3870 = vpack.c.b16 %v3282, %v3280
        %v3871 = vpack.c.b16 %v3283, %v3281
        %v3872 = vpack.c.b16 %v3286, %v3284
        %v3873 = vpack.c.b16 %v3287, %v3285
        %v3874 = vpack.c.b16 %v3290, %v3288
        %v3875 = vpack.c.b16 %v3291, %v3289
        %v3876 = vpack.c.b16 %v3294, %v3292
        %v3877 = vpack.c.b16 %v3295, %v3293
        %v3878 = vpack.c.b16 %v3298, %v3296
        %v3879 = vpack.c.b16 %v3299, %v3297
        %v3880 = vpack.c.b16 %v3302, %v3300
        %v3881 = vpack.c.b16 %v3303, %v3301
        %v3882 = vpack.c.b16 %v3306, %v3304
        %v3883 = vpack.c.b16 %v3307, %v3305
        %v3884 = vpack.c.b16 %v3310, %v3308
        %v3885 = vpack.c.b16 %v3311, %v3309
        %v3886 = vpack.c.b16 %v3314, %v3312
        %v3887 = vpack.c.b16 %v3315, %v3313
        %v3888 = vpack.c.b16 %v3318, %v3316
        %v3889 = vpack.c.b16 %v3319, %v3317
        %v3890 = vpack.c.b16 %v3322, %v3320
        %v3891 = vpack.c.b16 %v3323, %v3321
        %v3892 = vpack.c.b16 %v3326, %v3324
        %v3893 = vpack.c.b16 %v3327, %v3325
        %v3894 = vpack.c.b16 %v3330, %v3328
        %v3895 = vpack.c.b16 %v3331, %v3329
        %v3896 = vpack.c.b16 %v3334, %v3332
        %v3897 = vpack.c.b16 %v3335, %v3333
        %v3898 = vpack.c.b16 %v3338, %v3336
        %v3899 = vpack.c.b16 %v3339, %v3337
        %v3900 = vpack.c.b16 %v3342, %v3340
        %v3901 = vpack.c.b16 %v3343, %v3341
        %v3902 = vpack.c.b16 %v3346, %v3344
        %v3903 = vpack.c.b16 %v3347, %v3345
        %v3904 = vpack.c.b16 %v3350, %v3348
        %v3905 = vpack.c.b16 %v3351, %v3349
        %v3906 = vpack.c.b16 %v3354, %v3352
        %v3907 = vpack.c.b16 %v3355, %v3353
        %v3908 = vpack.c.b16 %v3358, %v3356
        %v3909 = vpack.c.b16 %v3359, %v3357
        %v3910 = vpack.c.b16 %v3362, %v3360
        %v3911 = vpack.c.b16 %v3363, %v3361
        %v3912 = vpack.c.b16 %v3366, %v3364
        %v3913 = vpack.c.b16 %v3367, %v3365
        %v3914 = vpack.c.b16 %v3370, %v3368
        %v3915 = vpack.c.b16 %v3371, %v3369
        %v3916 = vpack.c.b16 %v3374, %v3372
        %v3917 = vpack.c.b16 %v3375, %v3373
        %v3918 = vpack.c.b16 %v3378, %v3376
        %v3919 = vpack.c.b16 %v3379, %v3377
        %v3920 = vpack.c.b16 %v3382, %v3380
        %v3921 = vpack.c.b16 %v3383, %v3381
        %v3922 = vpack.c.b16 %v3386, %v3384
        %v3923 = vpack.c.b16 %v3387, %v3385
        %v3924 = vpack.c.b16 %v3390, %v3388
        %v3925 = vpack.c.b16 %v3391, %v3389
        %v3926 = vpack.c.b16 %v3394, %v3392
        %v3927 = vpack.c.b16 %v3395, %v3393
        %v3928 = vpack.c.b16 %v3398, %v3396
        %v3929 = vpack.c.b16 %v3399, %v3397
        %v3930 = vpack.c.b16 %v3402, %v3400
        %v3931 = vpack.c.b16 %v3403, %v3401
        %v3932 = vpack.c.b16 %v3406, %v3404
        %v3933 = vpack.c.b16 %v3407, %v3405
        %v3934 = vpack.c.b16 %v3410, %v3408
        %v3935 = vpack.c.b16 %v3411, %v3409
        %v3936 = vpack.c.b16 %v3414, %v3412
        %v3937 = vpack.c.b16 %v3415, %v3413
        %v3938 = vpack.c.b16 %v3418, %v3416
        %v3939 = vpack.c.b16 %v3419, %v3417
        %v3940 = vpack.c.b16 %v3422, %v3420
        %v3941 = vpack.c.b16 %v3423, %v3421
        %v3942 = vpack.c.b16 %v3426, %v3424
        %v3943 = vpack.c.b16 %v3427, %v3425
        %v3944 = vpack.c.b16 %v3430, %v3428
        %v3945 = vpack.c.b16 %v3431, %v3429
        %v3946 = vpack.c.b16 %v3434, %v3432
        %v3947 = vpack.c.b16 %v3435, %v3433
        %v3948 = vpack.c.b16 %v3438, %v3436
        %v3949 = vpack.c.b16 %v3439, %v3437
        %v3950 = vpack.c.b16 %v3442, %v3440
        %v3951 = vpack.c.b16 %v3443, %v3441
        %v3952 = vpack.c.b16 %v3446, %v3444
        %v3953 = vpack.c.b16 %v3447, %v3445
        %v3954 = vpack.c.b16 %v3450, %v3448
        %v3955 = vpack.c.b16 %v3451, %v3449
        %v3956 = vpack.c.b16 %v3454, %v3452
        %v3957 = vpack.c.b16 %v3455, %v3453
        %v3958 = vpack.c.b16 %v3458, %v3456
        %v3959 = vpack.c.b16 %v3459, %v3457
        %v3960 = vpack.c.b16 %v3462, %v3460
        %v3961 = vpack.c.b16 %v3463, %v3461
        %v3962 = vpack.c.b16 %v3466, %v3464
        %v3963 = vpack.c.b16 %v3467, %v3465
        %v3964 = vpack.c.b16 %v3470, %v3468
        %v3965 = vpack.c.b16 %v3471, %v3469
        %v3966 = vpack.c.b16 %v3474, %v3472
        %v3967 = vpack.c.b16 %v3475, %v3473
        %v3968 = vpack.c.b16 %v3478, %v3476
        %v3969 = vpack.c.b16 %v3479, %v3477
        %v3970 = vpack.c.b16 %v3482, %v3480
        %v3971 = vpack.c.b16 %v3483, %v3481
        %v3972 = vpack.c.b16 %v3486, %v3484
        %v3973 = vpack.c.b16 %v3487, %v3485
        %v3974 = vpack.c.b16 %v3490, %v3488
        %v3975 = vpack.c.b16 %v3491, %v3489
        %v3976 = vpack.c.b16 %v3494, %v3492
        %v3977 = vpack.c.b16 %v3495, %v3493
        %v3978 = vpack.c.b16 %v3498, %v3496
        %v3979 = vpack.c.b16 %v3499, %v3497
        %v3980 = vpack.c.b16 %v3502, %v3500
        %v3981 = vpack.c.b16 %v3503, %v3501
        %v3982 = vpack.c.b16 %v3506, %v3504
        %v3983 = vpack.c.b16 %v3507, %v3505
        %v3984 = vpack.c.b16 %v3510, %v3508
        %v3985 = vpack.c.b16 %v3511, %v3509
        %v3986 = vpack.c.b16 %v3514, %v3512
        %v3987 = vpack.c.b16 %v3515, %v3513
        %v3988 = vpack.c.b16 %v3518, %v3516
        %v3989 = vpack.c.b16 %v3519, %v3517
        %v3990 = vpack.c.b16 %v3522, %v3520
        %v3991 = vpack.c.b16 %v3523, %v3521
        %v3992 = vpack.c.b16 %v3526, %v3524
        %v3993 = vpack.c.b16 %v3527, %v3525
        %v3994 = vpack.c.b16 %v3530, %v3528
        %v3995 = vpack.c.b16 %v3531, %v3529
        %v3996 = vpack.c.b16 %v3534, %v3532
        %v3997 = vpack.c.b16 %v3535, %v3533
        %v3998 = vpack.c.b16 %v3538, %v3536
        %v3999 = vpack.c.b16 %v3539, %v3537
        %v4000 = vpack.c.b16 %v3542, %v3540
        %v4001 = vpack.c.b16 %v3543, %v3541
        %v4002 = vpack.c.b16 %v3546, %v3544
        %v4003 = vpack.c.b16 %v3547, %v3545
        %v4004 = vpack.c.b16 %v3550, %v3548
        %v4005 = vpack.c.b16 %v3551, %v3549
        %v4006 = vpack.c.b16 %v3554, %v3552
        %v4007 = vpack.c.b16 %v3555, %v3553
        %v4008 = vpack.c.b16 %v3558, %v3556
        %v4009 = vpack.c.b16 %v3559, %v3557
        %v4010 = vpack.c.b16 %v3562, %v3560
        %v4011 = vpack.c.b16 %v3563, %v3561
        %v4012 = vpack.c.b16 %v3566, %v3564
        %v4013 = vpack.c.b16 %v3567, %v3565
        %v4014 = vpack.c.b16 %v3570, %v3568
        %v4015 = vpack.c.b16 %v3571, %v3569
        %v4016 = vpack.c.b16 %v3574, %v3572
        %v4017 = vpack.c.b16 %v3575, %v3573
        %v4018 = vpack.c.b16 %v3578, %v3576
        %v4019 = vpack.c.b16 %v3579, %v3577
        %v4020 = vpack.c.b16 %v3582, %v3580
        %v4021 = vpack.c.b16 %v3583, %v3581
        %v4022 = vpack.c.b16 %v3586, %v3584
        %v4023 = vpack.c.b16 %v3587, %v3585
        %v4024 = vpack.c.b16 %v3590, %v3588
        %v4025 = vpack.c.b16 %v3591, %v3589
        %v4026 = vpack.c.b16 %v3594, %v3592
        %v4027 = vpack.c.b16 %v3595, %v3593
        %v4028 = vpack.c.b16 %v3598, %v3596
        %v4029 = vpack.c.b16 %v3599, %v3597
        %v4030 = vpack.c.b16 %v3602, %v3600
        %v4031 = vpack.c.b16 %v3603, %v3601
        %v4032 = vpack.c.b16 %v3606, %v3604
        %v4033 = vpack.c.b16 %v3607, %v3605
        %v4034 = vpack.c.b16 %v3610, %v3608
        %v4035 = vpack.c.b16 %v3611, %v3609
        %v4036 = vpack.c.b16 %v3614, %v3612
        %v4037 = vpack.c.b16 %v3615, %v3613
        %v4038 = vpack.c.b16 %v3618, %v3616
        %v4039 = vpack.c.b16 %v3619, %v3617
        %v4040 = vpack.c.b16 %v3622, %v3620
        %v4041 = vpack.c.b16 %v3623, %v3621
        %v4042 = vpack.c.b16 %v3626, %v3624
        %v4043 = vpack.c.b16 %v3627, %v3625
        %v4044 = vpack.c.b16 %v3630, %v3628
        %v4045 = vpack.c.b16 %v3631, %v3629
        %v4046 = vpack.c.b16 %v3634, %v3632
        %v4047 = vpack.c.b16 %v3635, %v3633
        %v4048 = vpack.c.b16 %v3638, %v3636
        %v4049 = vpack.c.b16 %v3639, %v3637
        %v4050 = vpack.c.b16 %v3642, %v3640
        %v4051 = vpack.c.b16 %v3643, %v3641
        %v4052 = vpack.c.b16 %v3646, %v3644
        %v4053 = vpack.c.b16 %v3647, %v3645
        %v4054 = vpack.c.b16 %v3650, %v3648
        %v4055 = vpack.c.b16 %v3651, %v3649
        %v4056 = vpack.c.b16 %v3654, %v3652
        %v4057 = vpack.c.b16 %v3655, %v3653
        %v4058 = vpack.c.b16 %v3658, %v3656
        %v4059 = vpack.c.b16 %v3659, %v3657
        %4460 = vmatprep.subr.bf16.mxu0 %v3675
        %4461 = vmatpush1.bf16.msra.mxu0 %v3674
        %4462 = vmatprep.subr.bf16.mxu0 %v3673
        %4463 = vmatpush1.bf16.msra.mxu0 %v3672
        %4464 = vmatprep.subr.bf16.mxu0 %v3671
        %4465 = vmatpush1.bf16.msra.mxu0 %v3670
        %4466 = vmatprep.subr.bf16.mxu0 %v3669
        %4467 = vmatpush1.bf16.msra.mxu0 %v3668
        %4468 = vmatprep.subr.bf16.mxu0 %v3667
        %4469 = vmatpush1.bf16.msra.mxu0 %v3666
        %4470 = vmatprep.subr.bf16.mxu0 %v3665
        %4471 = vmatpush1.bf16.msra.mxu0 %v3664
        %4472 = vmatprep.subr.bf16.mxu0 %v3663
        %4473 = vmatpush1.bf16.msra.mxu0 %v3662
        %4474 = vmatprep.subr.bf16.mxu0 %v3661
        %4475 = vmatpush1.bf16.msra.mxu0 %v3660
        %4476 = vmatprep.subr.bf16.mxu0 %v3691
        %4477 = vmatpush2.bf16.msra.mxu0 %v3690
        %4478 = vmatprep.subr.bf16.mxu0 %v3689
        %4479 = vmatpush2.bf16.msra.mxu0 %v3688
        %4480 = vmatprep.subr.bf16.mxu0 %v3687
        %4481 = vmatpush2.bf16.msra.mxu0 %v3686
        %4482 = vmatprep.subr.bf16.mxu0 %v3685
        %4483 = vmatpush2.bf16.msra.mxu0 %v3684
        %4484 = vmatprep.subr.bf16.mxu0 %v3683
        %4485 = vmatpush2.bf16.msra.mxu0 %v3682
        %4486 = vmatprep.subr.bf16.mxu0 %v3681
        %4487 = vmatpush2.bf16.msra.mxu0 %v3680
        %4488 = vmatprep.subr.bf16.mxu0 %v3679
        %4489 = vmatpush2.bf16.msra.mxu0 %v3678
        %4490 = vmatprep.subr.bf16.mxu0 %v3677
        %4491 = vmatpush2.bf16.msra.mxu0 %v3676
        %4492 = vmatprep.mubr.bf16.mxu0 %v2311
        %4493 = vmatmul.mubr.bf16.gmra.mxu0 %v2297
        %v4494 = vpop.f32.mrf.mxu0
        %v4495 = vadd.f32 %v2263, %v4494
        %v4496 = vpop.f32.mrf.mxu0
        %v4497 = vadd.f32 %v2267, %v4496
        %v4498 = vpop.f32.mrf.mxu0
        %v4499 = vpop.f32.mrf.mxu0
        %4500 = vdwg.mxu0
        %4501 = vmatprep.subr.bf16.mxu0 %v3707
        %4502 = vmatpush1.bf16.msra.mxu0 %v3706
        %4503 = vmatprep.subr.bf16.mxu0 %v3705
        %4504 = vmatpush1.bf16.msra.mxu0 %v3704
        %4505 = vmatprep.subr.bf16.mxu0 %v3703
        %4506 = vmatpush1.bf16.msra.mxu0 %v3702
        %4507 = vmatprep.subr.bf16.mxu0 %v3701
        %4508 = vmatpush1.bf16.msra.mxu0 %v3700
        %4509 = vmatprep.subr.bf16.mxu0 %v3699
        %4510 = vmatpush1.bf16.msra.mxu0 %v3698
        %4511 = vmatprep.subr.bf16.mxu0 %v3697
        %4512 = vmatpush1.bf16.msra.mxu0 %v3696
        %4513 = vmatprep.subr.bf16.mxu0 %v3695
        %4514 = vmatpush1.bf16.msra.mxu0 %v3694
        %4515 = vmatprep.subr.bf16.mxu0 %v3693
        %4516 = vmatpush1.bf16.msra.mxu0 %v3692
        %4517 = vmatprep.subr.bf16.mxu0 %v3723
        %4518 = vmatpush2.bf16.msra.mxu0 %v3722
        %4519 = vmatprep.subr.bf16.mxu0 %v3721
        %4520 = vmatpush2.bf16.msra.mxu0 %v3720
        %4521 = vmatprep.subr.bf16.mxu0 %v3719
        %4522 = vmatpush2.bf16.msra.mxu0 %v3718
        %4523 = vmatprep.subr.bf16.mxu0 %v3717
        %4524 = vmatpush2.bf16.msra.mxu0 %v3716
        %4525 = vmatprep.subr.bf16.mxu0 %v3715
        %4526 = vmatpush2.bf16.msra.mxu0 %v3714
        %4527 = vmatprep.subr.bf16.mxu0 %v3713
        %4528 = vmatpush2.bf16.msra.mxu0 %v3712
        %4529 = vmatprep.subr.bf16.mxu0 %v3711
        %4530 = vmatpush2.bf16.msra.mxu0 %v3710
        %4531 = vmatprep.subr.bf16.mxu0 %v3709
        %4532 = vmatpush2.bf16.msra.mxu0 %v3708
        %4533 = vmatprep.mubr.bf16.mxu0 %v2321
        %4534 = vmatmul.mubr.bf16.gmra.mxu0 %v2319
        %v4535 = vpop.f32.mrf.mxu0
        %v4536 = vadd.f32 %v4495, %v4535
        %v4537 = vpop.f32.mrf.mxu0
        %v4538 = vadd.f32 %v4497, %v4537
        %v4539 = vpop.f32.mrf.mxu0
        %v4540 = vpop.f32.mrf.mxu0
        %4541 = vdwg.mxu0
        %4542 = vmatprep.subr.bf16.mxu0 %v3739
        %4543 = vmatpush1.bf16.msra.mxu0 %v3738
        %4544 = vmatprep.subr.bf16.mxu0 %v3737
        %4545 = vmatpush1.bf16.msra.mxu0 %v3736
        %4546 = vmatprep.subr.bf16.mxu0 %v3735
        %4547 = vmatpush1.bf16.msra.mxu0 %v3734
        %4548 = vmatprep.subr.bf16.mxu0 %v3733
        %4549 = vmatpush1.bf16.msra.mxu0 %v3732
        %4550 = vmatprep.subr.bf16.mxu0 %v3731
        %4551 = vmatpush1.bf16.msra.mxu0 %v3730
        %4552 = vmatprep.subr.bf16.mxu0 %v3729
        %4553 = vmatpush1.bf16.msra.mxu0 %v3728
        %4554 = vmatprep.subr.bf16.mxu0 %v3727
        %4555 = vmatpush1.bf16.msra.mxu0 %v3726
        %4556 = vmatprep.subr.bf16.mxu0 %v3725
        %4557 = vmatpush1.bf16.msra.mxu0 %v3724
        %4558 = vmatprep.subr.bf16.mxu0 %v3755
        %4559 = vmatpush2.bf16.msra.mxu0 %v3754
        %4560 = vmatprep.subr.bf16.mxu0 %v3753
        %4561 = vmatpush2.bf16.msra.mxu0 %v3752
        %4562 = vmatprep.subr.bf16.mxu0 %v3751
        %4563 = vmatpush2.bf16.msra.mxu0 %v3750
        %4564 = vmatprep.subr.bf16.mxu0 %v3749
        %4565 = vmatpush2.bf16.msra.mxu0 %v3748
        %4566 = vmatprep.subr.bf16.mxu0 %v3747
        %4567 = vmatpush2.bf16.msra.mxu0 %v3746
        %4568 = vmatprep.subr.bf16.mxu0 %v3745
        %4569 = vmatpush2.bf16.msra.mxu0 %v3744
        %4570 = vmatprep.subr.bf16.mxu0 %v3743
        %4571 = vmatpush2.bf16.msra.mxu0 %v3742
        %4572 = vmatprep.subr.bf16.mxu0 %v3741
        %4573 = vmatpush2.bf16.msra.mxu0 %v3740
        %4574 = vmatprep.mubr.bf16.mxu0 %v2318
        %4575 = vmatmul.mubr.bf16.gmra.mxu0 %v2304
        %v4576 = vpop.f32.mrf.mxu0
        %v4577 = vadd.f32 %v4536, %v4576
        %v4578 = vpop.f32.mrf.mxu0
        %v4579 = vadd.f32 %v4538, %v4578
        %v4580 = vpop.f32.mrf.mxu0
        %v4581 = vpop.f32.mrf.mxu0
        %4582 = vdwg.mxu0
        %4583 = vmatprep.subr.bf16.mxu0 %v3771
        %4584 = vmatpush1.bf16.msra.mxu0 %v3770
        %4585 = vmatprep.subr.bf16.mxu0 %v3769
        %4586 = vmatpush1.bf16.msra.mxu0 %v3768
        %4587 = vmatprep.subr.bf16.mxu0 %v3767
        %4588 = vmatpush1.bf16.msra.mxu0 %v3766
        %4589 = vmatprep.subr.bf16.mxu0 %v3765
        %4590 = vmatpush1.bf16.msra.mxu0 %v3764
        %4591 = vmatprep.subr.bf16.mxu0 %v3763
        %4592 = vmatpush1.bf16.msra.mxu0 %v3762
        %4593 = vmatprep.subr.bf16.mxu0 %v3761
        %4594 = vmatpush1.bf16.msra.mxu0 %v3760
        %4595 = vmatprep.subr.bf16.mxu0 %v3759
        %4596 = vmatpush1.bf16.msra.mxu0 %v3758
        %4597 = vmatprep.subr.bf16.mxu0 %v3757
        %4598 = vmatpush1.bf16.msra.mxu0 %v3756
        %4599 = vmatprep.subr.bf16.mxu0 %v3787
        %4600 = vmatpush2.bf16.msra.mxu0 %v3786
        %4601 = vmatprep.subr.bf16.mxu0 %v3785
        %4602 = vmatpush2.bf16.msra.mxu0 %v3784
        %4603 = vmatprep.subr.bf16.mxu0 %v3783
        %4604 = vmatpush2.bf16.msra.mxu0 %v3782
        %4605 = vmatprep.subr.bf16.mxu0 %v3781
        %4606 = vmatpush2.bf16.msra.mxu0 %v3780
        %4607 = vmatprep.subr.bf16.mxu0 %v3779
        %4608 = vmatpush2.bf16.msra.mxu0 %v3778
        %4609 = vmatprep.subr.bf16.mxu0 %v3777
        %4610 = vmatpush2.bf16.msra.mxu0 %v3776
        %4611 = vmatprep.subr.bf16.mxu0 %v3775
        %4612 = vmatpush2.bf16.msra.mxu0 %v3774
        %4613 = vmatprep.subr.bf16.mxu0 %v3773
        %4614 = vmatpush2.bf16.msra.mxu0 %v3772
        %4615 = vmatprep.mubr.bf16.mxu0 %v2322
        %4616 = vmatmul.mubr.bf16.gmra.mxu0 %v2320
        %v4617 = vpop.f32.mrf.mxu0
        %v4618 = vadd.f32 %v4577, %v4617
        %v4619 = vpop.f32.mrf.mxu0
        %v4620 = vadd.f32 %v4579, %v4619
        %v4621 = vpop.f32.mrf.mxu0
        %v4622 = vpop.f32.mrf.mxu0
        %4623 = vdwg.mxu0
        %4624 = vmatprep.subr.bf16.mxu0 %v3803
        %4625 = vmatpush1.bf16.msra.mxu0 %v3802
        %4626 = vmatprep.subr.bf16.mxu0 %v3801
        %4627 = vmatpush1.bf16.msra.mxu0 %v3800
        %4628 = vmatprep.subr.bf16.mxu0 %v3799
        %4629 = vmatpush1.bf16.msra.mxu0 %v3798
        %4630 = vmatprep.subr.bf16.mxu0 %v3797
        %4631 = vmatpush1.bf16.msra.mxu0 %v3796
        %4632 = vmatprep.subr.bf16.mxu0 %v3795
        %4633 = vmatpush1.bf16.msra.mxu0 %v3794
        %4634 = vmatprep.subr.bf16.mxu0 %v3793
        %4635 = vmatpush1.bf16.msra.mxu0 %v3792
        %4636 = vmatprep.subr.bf16.mxu0 %v3791
        %4637 = vmatpush1.bf16.msra.mxu0 %v3790
        %4638 = vmatprep.subr.bf16.mxu0 %v3789
        %4639 = vmatpush1.bf16.msra.mxu0 %v3788
        %4640 = vmatprep.subr.bf16.mxu0 %v3819
        %4641 = vmatpush2.bf16.msra.mxu0 %v3818
        %4642 = vmatprep.subr.bf16.mxu0 %v3817
        %4643 = vmatpush2.bf16.msra.mxu0 %v3816
        %4644 = vmatprep.subr.bf16.mxu0 %v3815
        %4645 = vmatpush2.bf16.msra.mxu0 %v3814
        %4646 = vmatprep.subr.bf16.mxu0 %v3813
        %4647 = vmatpush2.bf16.msra.mxu0 %v3812
        %4648 = vmatprep.subr.bf16.mxu0 %v3811
        %4649 = vmatpush2.bf16.msra.mxu0 %v3810
        %4650 = vmatprep.subr.bf16.mxu0 %v3809
        %4651 = vmatpush2.bf16.msra.mxu0 %v3808
        %4652 = vmatprep.subr.bf16.mxu0 %v3807
        %4653 = vmatpush2.bf16.msra.mxu0 %v3806
        %4654 = vmatprep.subr.bf16.mxu0 %v3805
        %4655 = vmatpush2.bf16.msra.mxu0 %v3804
        %4656 = vmatprep.mubr.bf16.mxu0 %v2360
        %4657 = vmatmul.mubr.bf16.gmra.mxu0 %v2346
        %v4658 = vpop.f32.mrf.mxu0
        %v4659 = vadd.f32 %v4618, %v4658
        %v4660 = vpop.f32.mrf.mxu0
        %v4661 = vadd.f32 %v4620, %v4660
        %v4662 = vpop.f32.mrf.mxu0
        %v4663 = vpop.f32.mrf.mxu0
        %4664 = vdwg.mxu0
        %4665 = vmatprep.subr.bf16.mxu0 %v3835
        %4666 = vmatpush1.bf16.msra.mxu0 %v3834
        %4667 = vmatprep.subr.bf16.mxu0 %v3833
        %4668 = vmatpush1.bf16.msra.mxu0 %v3832
        %4669 = vmatprep.subr.bf16.mxu0 %v3831
        %4670 = vmatpush1.bf16.msra.mxu0 %v3830
        %4671 = vmatprep.subr.bf16.mxu0 %v3829
        %4672 = vmatpush1.bf16.msra.mxu0 %v3828
        %4673 = vmatprep.subr.bf16.mxu0 %v3827
        %4674 = vmatpush1.bf16.msra.mxu0 %v3826
        %4675 = vmatprep.subr.bf16.mxu0 %v3825
        %4676 = vmatpush1.bf16.msra.mxu0 %v3824
        %4677 = vmatprep.subr.bf16.mxu0 %v3823
        %4678 = vmatpush1.bf16.msra.mxu0 %v3822
        %4679 = vmatprep.subr.bf16.mxu0 %v3821
        %4680 = vmatpush1.bf16.msra.mxu0 %v3820
        %4681 = vmatprep.subr.bf16.mxu0 %v3851
        %4682 = vmatpush2.bf16.msra.mxu0 %v3850
        %4683 = vmatprep.subr.bf16.mxu0 %v3849
        %4684 = vmatpush2.bf16.msra.mxu0 %v3848
        %4685 = vmatprep.subr.bf16.mxu0 %v3847
        %4686 = vmatpush2.bf16.msra.mxu0 %v3846
        %4687 = vmatprep.subr.bf16.mxu0 %v3845
        %4688 = vmatpush2.bf16.msra.mxu0 %v3844
        %4689 = vmatprep.subr.bf16.mxu0 %v3843
        %4690 = vmatpush2.bf16.msra.mxu0 %v3842
        %4691 = vmatprep.subr.bf16.mxu0 %v3841
        %4692 = vmatpush2.bf16.msra.mxu0 %v3840
        %4693 = vmatprep.subr.bf16.mxu0 %v3839
        %4694 = vmatpush2.bf16.msra.mxu0 %v3838
        %4695 = vmatprep.subr.bf16.mxu0 %v3837
        %4696 = vmatpush2.bf16.msra.mxu0 %v3836
        %4697 = vmatprep.mubr.bf16.mxu0 %v2370
        %4698 = vmatmul.mubr.bf16.gmra.mxu0 %v2368
        %v4699 = vpop.f32.mrf.mxu0
        %v4700 = vadd.f32 %v4659, %v4699
        %v4701 = vpop.f32.mrf.mxu0
        %v4702 = vadd.f32 %v4661, %v4701
        %v4703 = vpop.f32.mrf.mxu0
        %v4704 = vpop.f32.mrf.mxu0
        %4705 = vdwg.mxu0
        %4706 = vmatprep.subr.bf16.mxu0 %v3867
        %4707 = vmatpush1.bf16.msra.mxu0 %v3866
        %4708 = vmatprep.subr.bf16.mxu0 %v3865
        %4709 = vmatpush1.bf16.msra.mxu0 %v3864
        %4710 = vmatprep.subr.bf16.mxu0 %v3863
        %4711 = vmatpush1.bf16.msra.mxu0 %v3862
        %4712 = vmatprep.subr.bf16.mxu0 %v3861
        %4713 = vmatpush1.bf16.msra.mxu0 %v3860
        %4714 = vmatprep.subr.bf16.mxu0 %v3859
        %4715 = vmatpush1.bf16.msra.mxu0 %v3858
        %4716 = vmatprep.subr.bf16.mxu0 %v3857
        %4717 = vmatpush1.bf16.msra.mxu0 %v3856
        %4718 = vmatprep.subr.bf16.mxu0 %v3855
        %4719 = vmatpush1.bf16.msra.mxu0 %v3854
        %4720 = vmatprep.subr.bf16.mxu0 %v3853
        %4721 = vmatpush1.bf16.msra.mxu0 %v3852
        %4722 = vmatprep.subr.bf16.mxu0 %v3883
        %4723 = vmatpush2.bf16.msra.mxu0 %v3882
        %4724 = vmatprep.subr.bf16.mxu0 %v3881
        %4725 = vmatpush2.bf16.msra.mxu0 %v3880
        %4726 = vmatprep.subr.bf16.mxu0 %v3879
        %4727 = vmatpush2.bf16.msra.mxu0 %v3878
        %4728 = vmatprep.subr.bf16.mxu0 %v3877
        %4729 = vmatpush2.bf16.msra.mxu0 %v3876
        %4730 = vmatprep.subr.bf16.mxu0 %v3875
        %4731 = vmatpush2.bf16.msra.mxu0 %v3874
        %4732 = vmatprep.subr.bf16.mxu0 %v3873
        %4733 = vmatpush2.bf16.msra.mxu0 %v3872
        %4734 = vmatprep.subr.bf16.mxu0 %v3871
        %4735 = vmatpush2.bf16.msra.mxu0 %v3870
        %4736 = vmatprep.subr.bf16.mxu0 %v3869
        %4737 = vmatpush2.bf16.msra.mxu0 %v3868
        %4738 = vmatprep.mubr.bf16.mxu0 %v2367
        %4739 = vmatmul.mubr.bf16.gmra.mxu0 %v2353
        %v4740 = vpop.f32.mrf.mxu0
        %v4741 = vadd.f32 %v4700, %v4740
        %v4742 = vpop.f32.mrf.mxu0
        %v4743 = vadd.f32 %v4702, %v4742
        %v4744 = vpop.f32.mrf.mxu0
        %v4745 = vpop.f32.mrf.mxu0
        %4746 = vdwg.mxu0
        %4747 = vmatprep.subr.bf16.mxu0 %v3899
        %4748 = vmatpush1.bf16.msra.mxu0 %v3898
        %4749 = vmatprep.subr.bf16.mxu0 %v3897
        %4750 = vmatpush1.bf16.msra.mxu0 %v3896
        %4751 = vmatprep.subr.bf16.mxu0 %v3895
        %4752 = vmatpush1.bf16.msra.mxu0 %v3894
        %4753 = vmatprep.subr.bf16.mxu0 %v3893
        %4754 = vmatpush1.bf16.msra.mxu0 %v3892
        %4755 = vmatprep.subr.bf16.mxu0 %v3891
        %4756 = vmatpush1.bf16.msra.mxu0 %v3890
        %4757 = vmatprep.subr.bf16.mxu0 %v3889
        %4758 = vmatpush1.bf16.msra.mxu0 %v3888
        %4759 = vmatprep.subr.bf16.mxu0 %v3887
        %4760 = vmatpush1.bf16.msra.mxu0 %v3886
        %4761 = vmatprep.subr.bf16.mxu0 %v3885
        %4762 = vmatpush1.bf16.msra.mxu0 %v3884
        %4763 = vmatprep.subr.bf16.mxu0 %v3915
        %4764 = vmatpush2.bf16.msra.mxu0 %v3914
        %4765 = vmatprep.subr.bf16.mxu0 %v3913
        %4766 = vmatpush2.bf16.msra.mxu0 %v3912
        %4767 = vmatprep.subr.bf16.mxu0 %v3911
        %4768 = vmatpush2.bf16.msra.mxu0 %v3910
        %4769 = vmatprep.subr.bf16.mxu0 %v3909
        %4770 = vmatpush2.bf16.msra.mxu0 %v3908
        %4771 = vmatprep.subr.bf16.mxu0 %v3907
        %4772 = vmatpush2.bf16.msra.mxu0 %v3906
        %4773 = vmatprep.subr.bf16.mxu0 %v3905
        %4774 = vmatpush2.bf16.msra.mxu0 %v3904
        %4775 = vmatprep.subr.bf16.mxu0 %v3903
        %4776 = vmatpush2.bf16.msra.mxu0 %v3902
        %4777 = vmatprep.subr.bf16.mxu0 %v3901
        %4778 = vmatpush2.bf16.msra.mxu0 %v3900
        %4779 = vmatprep.mubr.bf16.mxu0 %v2371
        %4780 = vmatmul.mubr.bf16.gmra.mxu0 %v2369
        %v4781 = vpop.f32.mrf.mxu0
        %v4782 = vadd.f32 %v4741, %v4781
        %v4783 = vpop.f32.mrf.mxu0
        %v4784 = vadd.f32 %v4743, %v4783
        %v4785 = vpop.f32.mrf.mxu0
        %v4786 = vpop.f32.mrf.mxu0
        %4787 = vdwg.mxu0
        %4788 = vmatprep.subr.bf16.mxu0 %v3931
        %4789 = vmatpush1.bf16.msra.mxu0 %v3930
        %4790 = vmatprep.subr.bf16.mxu0 %v3929
        %4791 = vmatpush1.bf16.msra.mxu0 %v3928
        %4792 = vmatprep.subr.bf16.mxu0 %v3927
        %4793 = vmatpush1.bf16.msra.mxu0 %v3926
        %4794 = vmatprep.subr.bf16.mxu0 %v3925
        %4795 = vmatpush1.bf16.msra.mxu0 %v3924
        %4796 = vmatprep.subr.bf16.mxu0 %v3923
        %4797 = vmatpush1.bf16.msra.mxu0 %v3922
        %4798 = vmatprep.subr.bf16.mxu0 %v3921
        %4799 = vmatpush1.bf16.msra.mxu0 %v3920
        %4800 = vmatprep.subr.bf16.mxu0 %v3919
        %4801 = vmatpush1.bf16.msra.mxu0 %v3918
        %4802 = vmatprep.subr.bf16.mxu0 %v3917
        %4803 = vmatpush1.bf16.msra.mxu0 %v3916
        %4804 = vmatprep.subr.bf16.mxu0 %v3947
        %4805 = vmatpush2.bf16.msra.mxu0 %v3946
        %4806 = vmatprep.subr.bf16.mxu0 %v3945
        %4807 = vmatpush2.bf16.msra.mxu0 %v3944
        %4808 = vmatprep.subr.bf16.mxu0 %v3943
        %4809 = vmatpush2.bf16.msra.mxu0 %v3942
        %4810 = vmatprep.subr.bf16.mxu0 %v3941
        %4811 = vmatpush2.bf16.msra.mxu0 %v3940
        %4812 = vmatprep.subr.bf16.mxu0 %v3939
        %4813 = vmatpush2.bf16.msra.mxu0 %v3938
        %4814 = vmatprep.subr.bf16.mxu0 %v3937
        %4815 = vmatpush2.bf16.msra.mxu0 %v3936
        %4816 = vmatprep.subr.bf16.mxu0 %v3935
        %4817 = vmatpush2.bf16.msra.mxu0 %v3934
        %4818 = vmatprep.subr.bf16.mxu0 %v3933
        %4819 = vmatpush2.bf16.msra.mxu0 %v3932
        %4820 = vmatprep.mubr.bf16.mxu0 %v2409
        %4821 = vmatmul.mubr.bf16.gmra.mxu0 %v2395
        %v4822 = vpop.f32.mrf.mxu0
        %v4823 = vadd.f32 %v4782, %v4822
        %v4824 = vpop.f32.mrf.mxu0
        %v4825 = vadd.f32 %v4784, %v4824
        %v4826 = vpop.f32.mrf.mxu0
        %v4827 = vpop.f32.mrf.mxu0
        %4828 = vdwg.mxu0
        %4829 = vmatprep.subr.bf16.mxu0 %v3963
        %4830 = vmatpush1.bf16.msra.mxu0 %v3962
        %4831 = vmatprep.subr.bf16.mxu0 %v3961
        %4832 = vmatpush1.bf16.msra.mxu0 %v3960
        %4833 = vmatprep.subr.bf16.mxu0 %v3959
        %4834 = vmatpush1.bf16.msra.mxu0 %v3958
        %4835 = vmatprep.subr.bf16.mxu0 %v3957
        %4836 = vmatpush1.bf16.msra.mxu0 %v3956
        %4837 = vmatprep.subr.bf16.mxu0 %v3955
        %4838 = vmatpush1.bf16.msra.mxu0 %v3954
        %4839 = vmatprep.subr.bf16.mxu0 %v3953
        %4840 = vmatpush1.bf16.msra.mxu0 %v3952
        %4841 = vmatprep.subr.bf16.mxu0 %v3951
        %4842 = vmatpush1.bf16.msra.mxu0 %v3950
        %4843 = vmatprep.subr.bf16.mxu0 %v3949
        %4844 = vmatpush1.bf16.msra.mxu0 %v3948
        %4845 = vmatprep.subr.bf16.mxu0 %v3979
        %4846 = vmatpush2.bf16.msra.mxu0 %v3978
        %4847 = vmatprep.subr.bf16.mxu0 %v3977
        %4848 = vmatpush2.bf16.msra.mxu0 %v3976
        %4849 = vmatprep.subr.bf16.mxu0 %v3975
        %4850 = vmatpush2.bf16.msra.mxu0 %v3974
        %4851 = vmatprep.subr.bf16.mxu0 %v3973
        %4852 = vmatpush2.bf16.msra.mxu0 %v3972
        %4853 = vmatprep.subr.bf16.mxu0 %v3971
        %4854 = vmatpush2.bf16.msra.mxu0 %v3970
        %4855 = vmatprep.subr.bf16.mxu0 %v3969
        %4856 = vmatpush2.bf16.msra.mxu0 %v3968
        %4857 = vmatprep.subr.bf16.mxu0 %v3967
        %4858 = vmatpush2.bf16.msra.mxu0 %v3966
        %4859 = vmatprep.subr.bf16.mxu0 %v3965
        %4860 = vmatpush2.bf16.msra.mxu0 %v3964
        %4861 = vmatprep.mubr.bf16.mxu0 %v2419
        %4862 = vmatmul.mubr.bf16.gmra.mxu0 %v2417
        %v4863 = vpop.f32.mrf.mxu0
        %v4864 = vadd.f32 %v4823, %v4863
        %v4865 = vpop.f32.mrf.mxu0
        %v4866 = vadd.f32 %v4825, %v4865
        %v4867 = vpop.f32.mrf.mxu0
        %v4868 = vpop.f32.mrf.mxu0
        %4869 = vdwg.mxu0
        %4870 = vmatprep.subr.bf16.mxu0 %v3995
        %4871 = vmatpush1.bf16.msra.mxu0 %v3994
        %4872 = vmatprep.subr.bf16.mxu0 %v3993
        %4873 = vmatpush1.bf16.msra.mxu0 %v3992
        %4874 = vmatprep.subr.bf16.mxu0 %v3991
        %4875 = vmatpush1.bf16.msra.mxu0 %v3990
        %4876 = vmatprep.subr.bf16.mxu0 %v3989
        %4877 = vmatpush1.bf16.msra.mxu0 %v3988
        %4878 = vmatprep.subr.bf16.mxu0 %v3987
        %4879 = vmatpush1.bf16.msra.mxu0 %v3986
        %4880 = vmatprep.subr.bf16.mxu0 %v3985
        %4881 = vmatpush1.bf16.msra.mxu0 %v3984
        %4882 = vmatprep.subr.bf16.mxu0 %v3983
        %4883 = vmatpush1.bf16.msra.mxu0 %v3982
        %4884 = vmatprep.subr.bf16.mxu0 %v3981
        %4885 = vmatpush1.bf16.msra.mxu0 %v3980
        %4886 = vmatprep.subr.bf16.mxu0 %v4011
        %4887 = vmatpush2.bf16.msra.mxu0 %v4010
        %4888 = vmatprep.subr.bf16.mxu0 %v4009
        %4889 = vmatpush2.bf16.msra.mxu0 %v4008
        %4890 = vmatprep.subr.bf16.mxu0 %v4007
        %4891 = vmatpush2.bf16.msra.mxu0 %v4006
        %4892 = vmatprep.subr.bf16.mxu0 %v4005
        %4893 = vmatpush2.bf16.msra.mxu0 %v4004
        %4894 = vmatprep.subr.bf16.mxu0 %v4003
        %4895 = vmatpush2.bf16.msra.mxu0 %v4002
        %4896 = vmatprep.subr.bf16.mxu0 %v4001
        %4897 = vmatpush2.bf16.msra.mxu0 %v4000
        %4898 = vmatprep.subr.bf16.mxu0 %v3999
        %4899 = vmatpush2.bf16.msra.mxu0 %v3998
        %4900 = vmatprep.subr.bf16.mxu0 %v3997
        %4901 = vmatpush2.bf16.msra.mxu0 %v3996
        %4902 = vmatprep.mubr.bf16.mxu0 %v2416
        %4903 = vmatmul.mubr.bf16.gmra.mxu0 %v2402
        %v4904 = vpop.f32.mrf.mxu0
        %v4905 = vadd.f32 %v4864, %v4904
        %v4906 = vpop.f32.mrf.mxu0
        %v4907 = vadd.f32 %v4866, %v4906
        %v4908 = vpop.f32.mrf.mxu0
        %v4909 = vpop.f32.mrf.mxu0
        %4910 = vdwg.mxu0
        %4911 = vmatprep.subr.bf16.mxu0 %v4027
        %4912 = vmatpush1.bf16.msra.mxu0 %v4026
        %4913 = vmatprep.subr.bf16.mxu0 %v4025
        %4914 = vmatpush1.bf16.msra.mxu0 %v4024
        %4915 = vmatprep.subr.bf16.mxu0 %v4023
        %4916 = vmatpush1.bf16.msra.mxu0 %v4022
        %4917 = vmatprep.subr.bf16.mxu0 %v4021
        %4918 = vmatpush1.bf16.msra.mxu0 %v4020
        %4919 = vmatprep.subr.bf16.mxu0 %v4019
        %4920 = vmatpush1.bf16.msra.mxu0 %v4018
        %4921 = vmatprep.subr.bf16.mxu0 %v4017
        %4922 = vmatpush1.bf16.msra.mxu0 %v4016
        %4923 = vmatprep.subr.bf16.mxu0 %v4015
        %4924 = vmatpush1.bf16.msra.mxu0 %v4014
        %4925 = vmatprep.subr.bf16.mxu0 %v4013
        %4926 = vmatpush1.bf16.msra.mxu0 %v4012
        %4927 = vmatprep.subr.bf16.mxu0 %v4043
        %4928 = vmatpush2.bf16.msra.mxu0 %v4042
        %4929 = vmatprep.subr.bf16.mxu0 %v4041
        %4930 = vmatpush2.bf16.msra.mxu0 %v4040
        %4931 = vmatprep.subr.bf16.mxu0 %v4039
        %4932 = vmatpush2.bf16.msra.mxu0 %v4038
        %4933 = vmatprep.subr.bf16.mxu0 %v4037
        %4934 = vmatpush2.bf16.msra.mxu0 %v4036
        %4935 = vmatprep.subr.bf16.mxu0 %v4035
        %4936 = vmatpush2.bf16.msra.mxu0 %v4034
        %4937 = vmatprep.subr.bf16.mxu0 %v4033
        %4938 = vmatpush2.bf16.msra.mxu0 %v4032
        %4939 = vmatprep.subr.bf16.mxu0 %v4031
        %4940 = vmatpush2.bf16.msra.mxu0 %v4030
        %4941 = vmatprep.subr.bf16.mxu0 %v4029
        %4942 = vmatpush2.bf16.msra.mxu0 %v4028
        %4943 = vmatprep.mubr.bf16.mxu0 %v2420
        %4944 = vmatmul.mubr.bf16.gmra.mxu0 %v2418
        %v4945 = vpop.f32.mrf.mxu0
        %v4946 = vadd.f32 %v4905, %v4945
        %v4947 = vpop.f32.mrf.mxu0
        %v4948 = vadd.f32 %v4907, %v4947
        %v4949 = vpop.f32.mrf.mxu0
        %v4950 = vpop.f32.mrf.mxu0
        %4951 = vdwg.mxu0
        %4952 = vmatprep.subr.bf16.mxu0 %v4059
        %4953 = vmatpush1.bf16.msra.mxu0 %v4058
        %4954 = vmatprep.subr.bf16.mxu0 %v4057
        %4955 = vmatpush1.bf16.msra.mxu0 %v4056
        %4956 = vmatprep.subr.bf16.mxu0 %v4055
        %4957 = vmatpush1.bf16.msra.mxu0 %v4054
        %4958 = vmatprep.subr.bf16.mxu0 %v4053
        %4959 = vmatpush1.bf16.msra.mxu0 %v4052
        %4960 = vmatprep.subr.bf16.mxu0 %v4051
        %4961 = vmatpush1.bf16.msra.mxu0 %v4050
        %4962 = vmatprep.subr.bf16.mxu0 %v4049
        %4963 = vmatpush1.bf16.msra.mxu0 %v4048
        %4964 = vmatprep.subr.bf16.mxu0 %v4047
        %4965 = vmatpush1.bf16.msra.mxu0 %v4046
        %4966 = vmatprep.subr.bf16.mxu0 %v4045
        %4967 = vmatpush1.bf16.msra.mxu0 %v4044
        %4968 = vmatprep.subr.bf16.mxu0 0
        %4969 = vmatpush2.bf16.msra.mxu0 0
        %4970 = vmatprep.subr.bf16.mxu0 0
        %4971 = vmatpush2.bf16.msra.mxu0 0
        %4972 = vmatprep.subr.bf16.mxu0 0
        %4973 = vmatpush2.bf16.msra.mxu0 0
        %4974 = vmatprep.subr.bf16.mxu0 0
        %4975 = vmatpush2.bf16.msra.mxu0 0
        %4976 = vmatprep.subr.bf16.mxu0 0
        %4977 = vmatpush2.bf16.msra.mxu0 0
        %4978 = vmatprep.subr.bf16.mxu0 0
        %4979 = vmatpush2.bf16.msra.mxu0 0
        %4980 = vmatprep.subr.bf16.mxu0 0
        %4981 = vmatpush2.bf16.msra.mxu0 0
        %4982 = vmatprep.subr.bf16.mxu0 0
        %4983 = vmatpush2.bf16.msra.mxu0 0
        %4984 = vmatprep.mubr.bf16.mxu0 0
        %4985 = vmatmul.mubr.bf16.gmra.mxu0 %v2434
        %v4986 = vpop.f32.mrf.mxu0
        %v4987 = vadd.f32 %v4946, %v4986
        %v4988 = vpop.f32.mrf.mxu0
        %v4989 = vadd.f32 %v4948, %v4988
        %v4990 = vpop.f32.mrf.mxu0
        %v4991 = vpop.f32.mrf.mxu0
        %4992 = vdwg.mxu0
        %v4993 = vmax.f32 %v4987, 0.0
        %v4994 = vmax.f32 %v4989, 0.0
        %v4997 = vcombine.low %v4993, %v4994
        %v4999 = vunpack.c.l.s4 1983009808
        %v5000 = vunpack.c.0.s8 %v4999
        %v5001 = vlaneseq
        %v5002 = vshrl.u32 %v5001, 7
        %v5003 = vsub.s32 %v5000, %v5002
        %v5004 = vrot.slane %v4997, %v5003
        %5006 = vst [vmem:[%s1841] sm:$0xf] %v5004
        %s5007 = sand.u32 %s117, 1
        %s5008 = scalar_lea.sflag [#allocation4], %s5007
        %s5009 = sand.u32 %s117, 1
        %s5010 = smul.addr %s5009, 4
        %s5011 = scalar_lea.vmem [#allocation3], %s5010
        // Predicated region
        $region71: #{atari_model_forward.7} parent=65 // pred_check
          %p5012 = pneg %p127
        $region72: #{atari_model_forward.7} parent=65 // pred_check_branch
          %5014 = sbr.rel (%p5012) target = $region74
        $region73: #{atari_model_forward.7} parent=65 // pred_region
          %s5015 = smul.u32 2, %s22
          %s5017 = ssub.s32 64, 64
          %5018 = vsyncadd %s5008, %s5017
          %s5019 = smul.addr %s21, 4
          %s5020 = sadd.s32 %s5015, %s5019
          %s5021 = smul.addr %s5020, 32
          %s5022 = scalar_lea.hbm %s3, %s5021
          %s5024 = sshll.u32 %s5011, 4
          %s5025 = int_to_ptr.vmem [resolvable:$true] %s5024
          %5027 = dma.vmem_to_hbm [thread:$0]  %s5025, 64, %s5022, %s5008
        $region74: #{atari_model_forward.7} parent=65 // pred_fallthru
          _
      $region66: #{atari_model_forward.7} parent=5 // pred_fallthru
        _
      %p5028 = scmp.le.s32.totalorder 2, %s12
      // Predicated region
      $region75: #{atari_model_forward.7} parent=5 // pred_check
        %p5029 = pneg %p5028
      $region76: #{atari_model_forward.7} parent=5 // pred_check_branch
        %5031 = sbr.rel (%p5029) target = $region78
      $region77: #{atari_model_forward.7} parent=5 // pred_region
        %s5032 = ssub.s32 %s12, 2
        // Predicated region
        $region79: #{atari_model_forward.7} parent=77 // pred_check
          %p5033 = pneg %p133
        $region80: #{atari_model_forward.7} parent=77 // pred_check_branch
          %5035 = sbr.rel (%p5033) target = $region82
        $region81: #{atari_model_forward.7} parent=77 // pred_region
          %s5036 = sand.u32 %s118, 1
          %s5037 = scalar_lea.sflag [#allocation4], %s5036
          %s5038 = sand.u32 %s118, 1
          %s5039 = smul.addr %s5038, 4
          %s5040 = scalar_lea.vmem [#allocation3], %s5039
          %5041 = dma.done %s5037, 64
        $region82: #{atari_model_forward.7} parent=77 // pred_fallthru
          _
      $region78: #{atari_model_forward.7} parent=5 // pred_fallthru
        _
    $region6: #{atari_model_forward.7} parent=1 // loop_footer
      %s16 = sadd.s32 1, %s12
    $region7: #{atari_model_forward.7} parent=1 // loop_footer_branch
      %11 = sbr.rel target = $region3
    $region8: #{atari_model_forward.7} parent=1 // loop_exit
      _
    %5042 = vsyncpa [#allocation4], 1
    %s5043 = scalar_lea.sflag [#allocation4], 1
    %5044 = vsyncpa %s5043, 1

</llo_original>
